<compile_context>
chip_gen: v7x
topology: tpu7x:2x2x1
jax: 0.10.0
libtpu: 0.0.40
codegen_flags: <defaults>
</compile_context>

<pallas_src>
import functools
import math

import jax
import jax.numpy as jnp
from jax.experimental import pallas as pl
from jax.experimental.pallas import tpu as pltpu

LRELU_SLOPE = 0.1
PERIODS = (2, 3, 5, 7, 11)
_INV_SQRT2 = 1.0 / math.sqrt(2.0)


def _rup(x, m):
    return ((x + m - 1) // m) * m


# ---------------------------------------------------------------------------
# Pallas kernel: tiled matmul (bf16 A/B on MXU, f32 accum) + bias + leaky-relu
# ---------------------------------------------------------------------------
def _mm_bias_kernel(a_ref, b_ref, bias_ref, o_ref, acc_ref, *, act):
    @pl.when(pl.program_id(2) == 0)
    def _():
        acc_ref[...] = jnp.zeros_like(acc_ref)

    acc_ref[...] += jnp.dot(a_ref[...], b_ref[...],
                            preferred_element_type=jnp.float32)

    @pl.when(pl.program_id(2) == pl.num_programs(2) - 1)
    def _():
        y = acc_ref[...] + bias_ref[...]
        if act:
            # mul+max instead of cmp+select: fewer VALU ops (helps v5e most).
            y = jnp.maximum(y, y * LRELU_SLOPE)
        o_ref[...] = y.astype(o_ref.dtype)


_MM_KERNEL_ACT = functools.partial(_mm_bias_kernel, act=True)
_MM_KERNEL_NOACT = functools.partial(_mm_bias_kernel, act=False)


def _pick_tk(kp):
    """Largest multiple of 128 that divides kp and is <= 2048 (VMEM budget)."""
    if kp <= 2048:
        return kp
    for cand in range(2048, 127, -128):
        if kp % cand == 0:
            return cand
    return 128


def _pallas_gemm(a, wm, bias2d, act=True):
    """a: (M, Kp) bf16, wm: (Kp, N) bf16 (zero-padded K rows), bias2d: (1, N) f32.
    Returns (M, N) bf16 = [leaky_relu](a @ wm + bias), f32 accumulation."""
    M, Kp = a.shape
    Kp2, N = wm.shape
    assert Kp == Kp2 and N % 128 == 0 and Kp % 128 == 0

    # Tile selection: big tiles for big layers (fewer A/B re-reads, fewer grid
    # steps); TN chosen so the widest layers expose >=2 parallel N tiles (v7x).
    TM = 1024 if M >= 1024 else max(16, _rup(M, 16))
    if N >= 1024 and N % 512 == 0:
        TN = 512
    elif N >= 512 and N % 256 == 0:
        TN = 256
    else:
        TN = N
    TK = _pick_tk(Kp)

    n_i = pl.cdiv(M, TM)     # ragged last M tile: OOB reads discarded rows,
    n_j = N // TN            # OOB stores masked by Pallas.
    n_k = Kp // TK

    cost = pl.CostEstimate(
        flops=2 * M * Kp * N,
        transcendentals=0,
        bytes_accessed=int(M * Kp * 2 * n_j + Kp * N * 2 * n_i
                           + M * N * 2 + N * 4),
    )

    kernel = _MM_KERNEL_ACT if act else _MM_KERNEL_NOACT
    return pl.pallas_call(
        kernel,
        out_shape=jax.ShapeDtypeStruct((M, N), jnp.bfloat16),
        grid_spec=pltpu.PrefetchScalarGridSpec(
            num_scalar_prefetch=0,
            grid=(n_i, n_j, n_k),
            in_specs=[pl.BlockSpec((TM, TK), lambda i, j, k: (i, k)),
                      pl.BlockSpec((TK, TN), lambda i, j, k: (k, j)),
                      pl.BlockSpec((1, TN), lambda i, j, k: (0, j))],
            out_specs=pl.BlockSpec((TM, TN), lambda i, j, k: (i, j)),
            scratch_shapes=[pltpu.VMEM((TM, TN), jnp.float32)]),
        compiler_params=pltpu.CompilerParams(
            dimension_semantics=("parallel", "parallel", "arbitrary"),
            vmem_limit_bytes=32 * 1024 * 1024),   # fits v5e/v6e/v7x (64 MiB/TC)
        cost_estimate=cost,
    )(a, wm, bias2d)


# ---------------------------------------------------------------------------
# im2col via k strided H-slices (NHWC, tap-major column order).
# dtype cast and K zero-padding are folded into the slice/concat so the A
# matrix is written exactly once, already in bf16 and already Kp wide.
# ---------------------------------------------------------------------------
def _im2col(x, k, s, pad, *, k_pad_to=None, dtype=None):
    B, H, W, C = x.shape
    if dtype is not None:
        x = x.astype(dtype)
    xp = jnp.pad(x, ((0, 0), (pad, pad), (0, 0), (0, 0)))
    Hp = H + 2 * pad
    Ho = (Hp - k) // s + 1
    span = (Ho - 1) * s + 1
    cols = [xp[:, t:t + span:s, :, :] for t in range(k)]      # each (B,Ho,W,C)
    K = k * C
    Kp = K if k_pad_to is None else k_pad_to
    if Kp > K:
        cols.append(jnp.zeros((B, Ho, W, Kp - K), xp.dtype))  # K pad, no 2nd pass
    a = jnp.concatenate(cols, axis=-1)                        # (B,Ho,W,Kp)
    # TODO(synk): replace this materialization with per-tap element-offset
    # (halo) BlockSpecs feeding the Pallas reduction directly.
    return a.reshape(B * Ho * W, Kp), (B, Ho, W)


def conv2d_kx1_mxu(x, layer, *, k, s, pad):
    """(k,1)/(s,1) Conv2d on NHWC via fused Pallas GEMM + bias + leaky-relu."""
    Kp, N = layer["wm"].shape
    a, (B, Ho, W) = _im2col(x, k, s, pad, k_pad_to=Kp, dtype=jnp.bfloat16)
    y = _pallas_gemm(a, layer["wm"], layer["b2"], act=True)   # (M, N) bf16
    return y.reshape(B, Ho, W, N)


def conv2d_kx1_small(x, layer, *, k, s, pad, act, out_dtype=jnp.bfloat16):
    """Degenerate (Ci*k tiny) conv: plain JAX — MXU padding would be waste."""
    a, (B, Ho, W) = _im2col(x, k, s, pad)                     # (M, k*Ci) f32
    y = a @ layer["wk"] + layer["b"]
    if act:
        y = jnp.maximum(y, y * LRELU_SLOPE)
    return y.astype(out_dtype).reshape(B, Ho, W, layer["wk"].shape[1])


def conv1d_pointwise(x, layer):
    """Conv1d(Cin, 1, 1): weighted channel sum (plain JAX)."""
    y = jnp.einsum("bct,c->bt", x, layer["w"]) + layer["b"]
    return y[:, None, :]


def conv_post_nx1(x, layer):
    """Conv2d(1024, 1, (3,1), pad (1,0)): N=1 mat-vec, plain JAX (lane-dense)."""
    B, H, W, C = x.shape
    xp = jnp.pad(x, ((0, 0), (1, 1), (0, 0), (0, 0)))
    wt = layer["wt"]                                          # (3, C) f32
    y = layer["b"] + sum(
        jnp.einsum("bhwc,c->bhw", xp[:, t:t + H, :, :], wt[t],
                   preferred_element_type=jnp.float32) for t in range(3))
    return y[..., None]                                       # (B, H, W, 1) f32


# ---------------------------------------------------------------------------
# haar DWT_1D (stride 2, kernel 2 -> no padding) and period folding (glue)
# ---------------------------------------------------------------------------
def dwt_haar(x):
    B, C, T = x.shape
    x2 = x.reshape(B, C, T // 2, 2)
    low = (x2[..., 0] + x2[..., 1]) * _INV_SQRT2     # rec_lo = [r, r]
    high = (x2[..., 0] - x2[..., 1]) * _INV_SQRT2    # rec_hi = [r, -r]
    return low, high


def fold_period_nhwc(x, period):
    """(B, 1, T) -> reflect-pad T to a multiple of period -> NHWC (B,T//p,p,1)."""
    B, C, T = x.shape
    r = T % period
    if r != 0:
        n_pad = period - r
        # PyTorch reflect pad requires n_pad < T; guard tiny deep-DWT signals.
        mode = "reflect" if n_pad < T else "edge"
        x = jnp.pad(x, ((0, 0), (0, 0), (0, n_pad)), mode=mode)
        T += n_pad
    return x.reshape(B, C, T // period, period).transpose(0, 2, 3, 1)


# ---------------------------------------------------------------------------
# DiscriminatorP forward (semantics match the PyTorch module)
# ---------------------------------------------------------------------------
@functools.partial(jax.jit, static_argnames=("period", "nchw_fmaps"))
def discriminator_p(params, x, period, nchw_fmaps=False):
    fmap = []

    # DWT level 1 (torch's *_high names hold the low-pass outputs)
    lo1, hi1 = dwt_haar(x)
    xd1 = conv1d_pointwise(jnp.concatenate([lo1, hi1], axis=1), params["dwt_conv1"])
    xd1 = conv2d_kx1_small(fold_period_nhwc(xd1, period), params["dwt_proj1"],
                           k=5, s=3, pad=2, act=False)

    # DWT level 2
    lo2a, hi2a = dwt_haar(lo1)
    lo2b, hi2b = dwt_haar(hi1)
    xd2 = conv1d_pointwise(jnp.concatenate([lo2a, hi2a, lo2b, hi2b], axis=1),
                           params["dwt_conv2"])
    xd2 = conv2d_kx1_small(fold_period_nhwc(xd2, period), params["dwt_proj2"],
                           k=5, s=3, pad=2, act=False)

    # DWT level 3
    lvl3 = []
    for t in (lo2a, hi2a, lo2b, hi2b):
        lo, hi = dwt_haar(t)
        lvl3 += [lo, hi]
    xd3 = conv1d_pointwise(jnp.concatenate(lvl3, axis=1), params["dwt_conv3"])
    xd3 = conv2d_kx1_small(fold_period_nhwc(xd3, period), params["dwt_proj3"],
                           k=5, s=3, pad=2, act=False)

    # Main stack (NHWC, bf16): convs[0] K=5 -> plain JAX; convs[1..4] -> Pallas MXU
    xm = fold_period_nhwc(x, period)
    xm = conv2d_kx1_small(xm, params["convs0"], k=5, s=3, pad=2, act=True)
    fmap.append(xm)
    xm = jnp.concatenate([xm, xd1], axis=1)           # concat along H

    strides = (3, 3, 3, 1)
    skips = (xd2, xd3, None, None)
    for layer, s, skip in zip(params["convs"], strides, skips):
        xm = conv2d_kx1_mxu(xm, layer, k=5, s=s, pad=2)
        fmap.append(xm)
        if skip is not None:
            xm = jnp.concatenate([xm, skip], axis=1)

    xm = conv_post_nx1(xm, params["conv_post"])
    fmap.append(xm)

    out = xm.reshape(xm.shape[0], -1)
    if nchw_fmaps:
        # Layout-only parity with PyTorch (values identical); off by default
        # because it costs one full relayout HBM round trip per fmap.
        fmap = [f.transpose(0, 3, 1, 2) for f in fmap]
    return out, fmap


# ---------------------------------------------------------------------------
# Parameter init + one-time preprocessing (transpose / pad / cast at init)
# ---------------------------------------------------------------------------
def _conv_params(key, co, ci, kh, kw, scale=0.05):
    kwgt, kb = jax.random.split(key)
    w = scale * jax.random.normal(kwgt, (co, ci, kh, kw), jnp.float32)
    b = scale * jax.random.normal(kb, (co,), jnp.float32)
    return w, b


def _prep_gemm_layer(w, b):
    # (Co, Ci, k, 1) -> bf16 (Kp, Co), rows tap-major to match im2col columns,
    # Kp rounded to a multiple of 128 for lane-clean A blocks / MXU chunks.
    co, ci, k, _ = w.shape
    K = ci * k
    wm = jnp.transpose(w[:, :, :, 0], (2, 1, 0)).reshape(K, co)
    Kp = _rup(K, 128)
    wm = jnp.pad(wm, ((0, Kp - K), (0, 0))).astype(jnp.bfloat16)
    assert co % 128 == 0          # all Pallas layers here need no N padding
    return {"wm": wm, "b2": b.reshape(1, co).astype(jnp.float32)}


def _prep_small_layer(w, b):
    co, ci, k, _ = w.shape
    wk = jnp.transpose(w[:, :, :, 0], (2, 1, 0)).reshape(k * ci, co)
    return {"wk": wk, "b": b}


def _prep_pointwise(w, b):
    return {"w": w[0, :, 0, 0], "b": b[0]}


def _prep_post(w, b):
    return {"wt": jnp.transpose(w[0, :, :, 0], (1, 0)), "b": b[0]}   # (3, Ci)


def init_discriminator(key):
    keys = jax.random.split(key, 12)
    convs_raw = [
        _conv_params(keys[6], 32, 1, 5, 1),
        _conv_params(keys[7], 128, 32, 5, 1),
        _conv_params(keys[8], 512, 128, 5, 1),
        _conv_params(keys[9], 1024, 512, 5, 1),
        _conv_params(keys[10], 1024, 1024, 5, 1),
    ]
    return {
        "dwt_conv1": _prep_pointwise(*_conv_params(keys[0], 1, 2, 1, 1)),
        "dwt_proj1": _prep_small_layer(*_conv_params(keys[1], 32, 1, 5, 1)),
        "dwt_conv2": _prep_pointwise(*_conv_params(keys[2], 1, 4, 1, 1)),
        "dwt_proj2": _prep_small_layer(*_conv_params(keys[3], 128, 1, 5, 1)),
        "dwt_conv3": _prep_pointwise(*_conv_params(keys[4], 1, 8, 1, 1)),
        "dwt_proj3": _prep_small_layer(*_conv_params(keys[5], 512, 1, 5, 1)),
        "convs0": _prep_small_layer(*convs_raw[0]),
        "convs": [_prep_gemm_layer(*cw) for cw in convs_raw[1:]],
        "conv_post": _prep_post(*_conv_params(keys[11], 1, 1024, 3, 1)),
    }


def init_params(key):
    return [init_discriminator(k) for k in jax.random.split(key, len(PERIODS))]


def res_wise_multi_period_discriminator(params, y, y_hat):
    B = y.shape[0]
    yy = jnp.concatenate([y, y_hat], axis=0)   # shared weights: one pass for both
    y_d_rs, y_d_gs, fmap_rs, fmap_gs = [], [], [], []
    for p, period in zip(params, PERIODS):
        out, fmap = discriminator_p(p, yy, period=period)
        y_d_rs.append(out[:B])
        y_d_gs.append(out[B:])
        fmap_rs.append([f[:B] for f in fmap])
        fmap_gs.append([f[B:] for f in fmap])
    return y_d_rs, y_d_gs, fmap_rs, fmap_gs


if __name__ == "__main__":
    key = jax.random.PRNGKey(0)
    kp, ky, kg = jax.random.split(key, 3)
    params = init_params(kp)

    B, T = 2, 64   # T survives 3 haar levels + reflect fold for every period
    y = jax.random.normal(ky, (B, 1, T), dtype=jnp.float32)
    y_hat = jax.random.normal(kg, (B, 1, T), dtype=jnp.float32)

    outs = res_wise_multi_period_discriminator(params, y, y_hat)
    jax.block_until_ready(outs)
    print("KERNEL_OK")
</pallas_src>

<mosaic_0001>
module attributes {stable_mosaic.version = 11 : i64} {
  func.func @_mm_bias_kernel(%arg0: i32, %arg1: i32, %arg2: i32, %arg3: memref<48x256xbf16, #tpu.memory_space<vmem>>, %arg4: memref<256x128xbf16, #tpu.memory_space<vmem>>, %arg5: memref<1x128xf32, #tpu.memory_space<vmem>>, %arg6: memref<48x128xbf16, #tpu.memory_space<vmem>>, %arg7: memref<48x128xf32, #tpu.memory_space<vmem>>) attributes {dimension_semantics = [#tpu.dimension_semantics<parallel>, #tpu.dimension_semantics<parallel>, #tpu.dimension_semantics<arbitrary>], iteration_bounds = array<i64: 1, 1, 1>, scalar_prefetch = 0 : i64, scratch_operands = 1 : i64, tpu.core_type = #tpu.core_type<tc>, window_params = [{transform_indices = @transform_0, window_bounds = array<i64: 48, 256>}, {transform_indices = @transform_1, window_bounds = array<i64: 256, 128>}, {transform_indices = @transform_2, window_bounds = array<i64: 1, 128>}, {transform_indices = @transform_3, window_bounds = array<i64: 48, 128>}]} {
    %c0_i32 = arith.constant 0 : i32
    %0 = arith.cmpi eq, %arg2, %c0_i32 : i32
    %1 = arith.extui %0 : i1 to i32
    %c0_i32_0 = arith.constant 0 : i32
    %2 = arith.cmpi ne, %1, %c0_i32_0 : i32
    scf.if %2 {
      %cst_10 = arith.constant 0.000000e+00 : f32
      %12 = vector.broadcast %cst_10 : f32 to vector<48x128xf32>
      %c0_11 = arith.constant 0 : index
      %c0_12 = arith.constant 0 : index
      %13 = vector.load %arg7[%c0_11, %c0_12] : memref<48x128xf32, #tpu.memory_space<vmem>>, vector<48x128xf32>
      tpu.vector_store %arg7[%c0_11, %c0_12], %12 {strides = array<i32>} : memref<48x128xf32, #tpu.memory_space<vmem>>, vector<48x128xf32>,
    } else {
    }
    %c0 = arith.constant 0 : index
    %c0_1 = arith.constant 0 : index
    %3 = vector.load %arg7[%c0, %c0_1] : memref<48x128xf32, #tpu.memory_space<vmem>>, vector<48x128xf32>
    %c0_2 = arith.constant 0 : index
    %c0_3 = arith.constant 0 : index
    %4 = vector.load %arg3[%c0_2, %c0_3] : memref<48x256xbf16, #tpu.memory_space<vmem>>, vector<48x256xbf16>
    %c0_4 = arith.constant 0 : index
    %c0_5 = arith.constant 0 : index
    %5 = vector.load %arg4[%c0_4, %c0_5] : memref<256x128xbf16, #tpu.memory_space<vmem>>, vector<256x128xbf16>
    %cst = arith.constant dense<0.000000e+00> : vector<48x128xf32>
    %6 = tpu.matmul %4, %5, %cst {dimension_numbers = #tpu.dot_dimension_numbers<[1], [0], [0], [1], [0, 0, 1, 1], [], []>} : vector<48x256xbf16>, vector<256x128xbf16>, vector<48x128xf32> -> vector<48x128xf32>
    %7 = arith.addf %3, %6 : vector<48x128xf32>
    %c0_6 = arith.constant 0 : index
    %c0_7 = arith.constant 0 : index
    %8 = vector.load %arg7[%c0_6, %c0_7] : memref<48x128xf32, #tpu.memory_space<vmem>>, vector<48x128xf32>
    tpu.vector_store %arg7[%c0_6, %c0_7], %7 {strides = array<i32>} : memref<48x128xf32, #tpu.memory_space<vmem>>, vector<48x128xf32>,
    %c0_i32_8 = arith.constant 0 : i32
    %9 = arith.cmpi eq, %arg2, %c0_i32_8 : i32
    %10 = arith.extui %9 : i1 to i32
    %c0_i32_9 = arith.constant 0 : i32
    %11 = arith.cmpi ne, %10, %c0_i32_9 : i32
    scf.if %11 {
      %c0_10 = arith.constant 0 : index
      %c0_11 = arith.constant 0 : index
      %12 = vector.load %arg7[%c0_10, %c0_11] : memref<48x128xf32, #tpu.memory_space<vmem>>, vector<48x128xf32>
      %c0_12 = arith.constant 0 : index
      %c0_13 = arith.constant 0 : index
      %13 = vector.load %arg5[%c0_12, %c0_13] : memref<1x128xf32, #tpu.memory_space<vmem>>, vector<1x128xf32>
      %14 = vector.broadcast %13 : vector<1x128xf32> to vector<48x128xf32>
      %15 = arith.addf %12, %14 : vector<48x128xf32>
      %cst_14 = arith.constant 1.000000e-01 : f32
      %16 = vector.broadcast %cst_14 : f32 to vector<48x128xf32>
      %17 = arith.mulf %15, %16 : vector<48x128xf32>
      %18 = arith.maximumf %15, %17 : vector<48x128xf32>
      %19 = arith.truncf %18 : vector<48x128xf32> to vector<48x128xbf16>
      %c0_15 = arith.constant 0 : index
      %c0_16 = arith.constant 0 : index
      %20 = vector.load %arg6[%c0_15, %c0_16] : memref<48x128xbf16, #tpu.memory_space<vmem>>, vector<48x128xbf16>
      tpu.vector_store %arg6[%c0_15, %c0_16], %19 {strides = array<i32>} : memref<48x128xbf16, #tpu.memory_space<vmem>>, vector<48x128xbf16>,
    } else {
    }
    return
  }
  func.func @transform_0(%arg0: i32, %arg1: i32, %arg2: i32) -> (i32, i32) {
    %c0_i32 = arith.constant 0 : i32
    return %arg0, %arg2 : i32, i32
  }
  func.func @transform_1(%arg0: i32, %arg1: i32, %arg2: i32) -> (i32, i32) {
    %c0_i32 = arith.constant 0 : i32
    return %arg2, %arg1 : i32, i32
  }
  func.func @transform_2(%arg0: i32, %arg1: i32, %arg2: i32) -> (i32, i32) {
    %c0_i32 = arith.constant 0 : i32
    %c0_i32_0 = arith.constant 0 : i32
    return %c0_i32, %arg1 : i32, i32
  }
  func.func @transform_3(%arg0: i32, %arg1: i32, %arg2: i32) -> (i32, i32) {
    %c0_i32 = arith.constant 0 : i32
    return %arg0, %arg1 : i32, i32
  }
}

module attributes {stable_mosaic.version = 11 : i64} {
  func.func @_mm_bias_kernel(%arg0: i32, %arg1: i32, %arg2: i32, %arg3: memref<32x640xbf16, #tpu.memory_space<vmem>>, %arg4: memref<640x256xbf16, #tpu.memory_space<vmem>>, %arg5: memref<1x256xf32, #tpu.memory_space<vmem>>, %arg6: memref<32x256xbf16, #tpu.memory_space<vmem>>, %arg7: memref<32x256xf32, #tpu.memory_space<vmem>>) attributes {dimension_semantics = [#tpu.dimension_semantics<parallel>, #tpu.dimension_semantics<parallel>, #tpu.dimension_semantics<arbitrary>], iteration_bounds = array<i64: 1, 2, 1>, scalar_prefetch = 0 : i64, scratch_operands = 1 : i64, tpu.core_type = #tpu.core_type<tc>, window_params = [{transform_indices = @transform_0, window_bounds = array<i64: 32, 640>}, {transform_indices = @transform_1, window_bounds = array<i64: 640, 256>}, {transform_indices = @transform_2, window_bounds = array<i64: 1, 256>}, {transform_indices = @transform_3, window_bounds = array<i64: 32, 256>}]} {
    %c0_i32 = arith.constant 0 : i32
    %0 = arith.cmpi eq, %arg2, %c0_i32 : i32
    %1 = arith.extui %0 : i1 to i32
    %c0_i32_0 = arith.constant 0 : i32
    %2 = arith.cmpi ne, %1, %c0_i32_0 : i32
    scf.if %2 {
      %cst_10 = arith.constant 0.000000e+00 : f32
      %12 = vector.broadcast %cst_10 : f32 to vector<32x256xf32>
      %c0_11 = arith.constant 0 : index
      %c0_12 = arith.constant 0 : index
      %13 = vector.load %arg7[%c0_11, %c0_12] : memref<32x256xf32, #tpu.memory_space<vmem>>, vector<32x256xf32>
      tpu.vector_store %arg7[%c0_11, %c0_12], %12 {strides = array<i32>} : memref<32x256xf32, #tpu.memory_space<vmem>>, vector<32x256xf32>,
    } else {
    }
    %c0 = arith.constant 0 : index
    %c0_1 = arith.constant 0 : index
    %3 = vector.load %arg7[%c0, %c0_1] : memref<32x256xf32, #tpu.memory_space<vmem>>, vector<32x256xf32>
    %c0_2 = arith.constant 0 : index
    %c0_3 = arith.constant 0 : index
    %4 = vector.load %arg3[%c0_2, %c0_3] : memref<32x640xbf16, #tpu.memory_space<vmem>>, vector<32x640xbf16>
    %c0_4 = arith.constant 0 : index
    %c0_5 = arith.constant 0 : index
    %5 = vector.load %arg4[%c0_4, %c0_5] : memref<640x256xbf16, #tpu.memory_space<vmem>>, vector<640x256xbf16>
    %cst = arith.constant dense<0.000000e+00> : vector<32x256xf32>
    %6 = tpu.matmul %4, %5, %cst {dimension_numbers = #tpu.dot_dimension_numbers<[1], [0], [0], [1], [0, 0, 1, 1], [], []>} : vector<32x640xbf16>, vector<640x256xbf16>, vector<32x256xf32> -> vector<32x256xf32>
    %7 = arith.addf %3, %6 : vector<32x256xf32>
    %c0_6 = arith.constant 0 : index
    %c0_7 = arith.constant 0 : index
    %8 = vector.load %arg7[%c0_6, %c0_7] : memref<32x256xf32, #tpu.memory_space<vmem>>, vector<32x256xf32>
    tpu.vector_store %arg7[%c0_6, %c0_7], %7 {strides = array<i32>} : memref<32x256xf32, #tpu.memory_space<vmem>>, vector<32x256xf32>,
    %c0_i32_8 = arith.constant 0 : i32
    %9 = arith.cmpi eq, %arg2, %c0_i32_8 : i32
    %10 = arith.extui %9 : i1 to i32
    %c0_i32_9 = arith.constant 0 : i32
    %11 = arith.cmpi ne, %10, %c0_i32_9 : i32
    scf.if %11 {
      %c0_10 = arith.constant 0 : index
      %c0_11 = arith.constant 0 : index
      %12 = vector.load %arg7[%c0_10, %c0_11] : memref<32x256xf32, #tpu.memory_space<vmem>>, vector<32x256xf32>
      %c0_12 = arith.constant 0 : index
      %c0_13 = arith.constant 0 : index
      %13 = vector.load %arg5[%c0_12, %c0_13] : memref<1x256xf32, #tpu.memory_space<vmem>>, vector<1x256xf32>
      %14 = vector.broadcast %13 : vector<1x256xf32> to vector<32x256xf32>
      %15 = arith.addf %12, %14 : vector<32x256xf32>
      %cst_14 = arith.constant 1.000000e-01 : f32
      %16 = vector.broadcast %cst_14 : f32 to vector<32x256xf32>
      %17 = arith.mulf %15, %16 : vector<32x256xf32>
      %18 = arith.maximumf %15, %17 : vector<32x256xf32>
      %19 = arith.truncf %18 : vector<32x256xf32> to vector<32x256xbf16>
      %c0_15 = arith.constant 0 : index
      %c0_16 = arith.constant 0 : index
      %20 = vector.load %arg6[%c0_15, %c0_16] : memref<32x256xbf16, #tpu.memory_space<vmem>>, vector<32x256xbf16>
      tpu.vector_store %arg6[%c0_15, %c0_16], %19 {strides = array<i32>} : memref<32x256xbf16, #tpu.memory_space<vmem>>, vector<32x256xbf16>,
    } else {
    }
    return
  }
  func.func @transform_0(%arg0: i32, %arg1: i32, %arg2: i32) -> (i32, i32) {
    %c0_i32 = arith.constant 0 : i32
    return %arg0, %arg2 : i32, i32
  }
  func.func @transform_1(%arg0: i32, %arg1: i32, %arg2: i32) -> (i32, i32) {
    %c0_i32 = arith.constant 0 : i32
    return %arg2, %arg1 : i32, i32
  }
  func.func @transform_2(%arg0: i32, %arg1: i32, %arg2: i32) -> (i32, i32) {
    %c0_i32 = arith.constant 0 : i32
    %c0_i32_0 = arith.constant 0 : i32
    return %c0_i32, %arg1 : i32, i32
  }
  func.func @transform_3(%arg0: i32, %arg1: i32, %arg2: i32) -> (i32, i32) {
    %c0_i32 = arith.constant 0 : i32
    return %arg0, %arg1 : i32, i32
  }
}

module attributes {stable_mosaic.version = 11 : i64} {
  func.func @_mm_bias_kernel(%arg0: i32, %arg1: i32, %arg2: i32, %arg3: memref<16x1280xbf16, #tpu.memory_space<vmem>>, %arg4: memref<1280x512xbf16, #tpu.memory_space<vmem>>, %arg5: memref<1x512xf32, #tpu.memory_space<vmem>>, %arg6: memref<16x512xbf16, #tpu.memory_space<vmem>>, %arg7: memref<16x512xf32, #tpu.memory_space<vmem>>) attributes {dimension_semantics = [#tpu.dimension_semantics<parallel>, #tpu.dimension_semantics<parallel>, #tpu.dimension_semantics<arbitrary>], iteration_bounds = array<i64: 1, 2, 2>, scalar_prefetch = 0 : i64, scratch_operands = 1 : i64, tpu.core_type = #tpu.core_type<tc>, window_params = [{transform_indices = @transform_0, window_bounds = array<i64: 16, 1280>}, {transform_indices = @transform_1, window_bounds = array<i64: 1280, 512>}, {transform_indices = @transform_2, window_bounds = array<i64: 1, 512>}, {transform_indices = @transform_3, window_bounds = array<i64: 16, 512>}]} {
    %c0_i32 = arith.constant 0 : i32
    %0 = arith.cmpi eq, %arg2, %c0_i32 : i32
    %1 = arith.extui %0 : i1 to i32
    %c0_i32_0 = arith.constant 0 : i32
    %2 = arith.cmpi ne, %1, %c0_i32_0 : i32
    scf.if %2 {
      %cst_9 = arith.constant 0.000000e+00 : f32
      %12 = vector.broadcast %cst_9 : f32 to vector<16x512xf32>
      %c0_10 = arith.constant 0 : index
      %c0_11 = arith.constant 0 : index
      %13 = vector.load %arg7[%c0_10, %c0_11] : memref<16x512xf32, #tpu.memory_space<vmem>>, vector<16x512xf32>
      tpu.vector_store %arg7[%c0_10, %c0_11], %12 {strides = array<i32>} : memref<16x512xf32, #tpu.memory_space<vmem>>, vector<16x512xf32>,
    } else {
    }
    %c0 = arith.constant 0 : index
    %c0_1 = arith.constant 0 : index
    %3 = vector.load %arg7[%c0, %c0_1] : memref<16x512xf32, #tpu.memory_space<vmem>>, vector<16x512xf32>
    %c0_2 = arith.constant 0 : index
    %c0_3 = arith.constant 0 : index
    %4 = vector.load %arg3[%c0_2, %c0_3] : memref<16x1280xbf16, #tpu.memory_space<vmem>>, vector<16x1280xbf16>
    %c0_4 = arith.constant 0 : index
    %c0_5 = arith.constant 0 : index
    %5 = vector.load %arg4[%c0_4, %c0_5] : memref<1280x512xbf16, #tpu.memory_space<vmem>>, vector<1280x512xbf16>
    %cst = arith.constant dense<0.000000e+00> : vector<16x512xf32>
    %6 = tpu.matmul %4, %5, %cst {dimension_numbers = #tpu.dot_dimension_numbers<[1], [0], [0], [1], [0, 0, 1, 1], [], []>} : vector<16x1280xbf16>, vector<1280x512xbf16>, vector<16x512xf32> -> vector<16x512xf32>
    %7 = arith.addf %3, %6 : vector<16x512xf32>
    %c0_6 = arith.constant 0 : index
    %c0_7 = arith.constant 0 : index
    %8 = vector.load %arg7[%c0_6, %c0_7] : memref<16x512xf32, #tpu.memory_space<vmem>>, vector<16x512xf32>
    tpu.vector_store %arg7[%c0_6, %c0_7], %7 {strides = array<i32>} : memref<16x512xf32, #tpu.memory_space<vmem>>, vector<16x512xf32>,
    %c1_i32 = arith.constant 1 : i32
    %9 = arith.cmpi eq, %arg2, %c1_i32 : i32
    %10 = arith.extui %9 : i1 to i32
    %c0_i32_8 = arith.constant 0 : i32
    %11 = arith.cmpi ne, %10, %c0_i32_8 : i32
    scf.if %11 {
      %c0_9 = arith.constant 0 : index
      %c0_10 = arith.constant 0 : index
      %12 = vector.load %arg7[%c0_9, %c0_10] : memref<16x512xf32, #tpu.memory_space<vmem>>, vector<16x512xf32>
      %c0_11 = arith.constant 0 : index
      %c0_12 = arith.constant 0 : index
      %13 = vector.load %arg5[%c0_11, %c0_12] : memref<1x512xf32, #tpu.memory_space<vmem>>, vector<1x512xf32>
      %14 = vector.broadcast %13 : vector<1x512xf32> to vector<16x512xf32>
      %15 = arith.addf %12, %14 : vector<16x512xf32>
      %cst_13 = arith.constant 1.000000e-01 : f32
      %16 = vector.broadcast %cst_13 : f32 to vector<16x512xf32>
      %17 = arith.mulf %15, %16 : vector<16x512xf32>
      %18 = arith.maximumf %15, %17 : vector<16x512xf32>
      %19 = arith.truncf %18 : vector<16x512xf32> to vector<16x512xbf16>
      %c0_14 = arith.constant 0 : index
      %c0_15 = arith.constant 0 : index
      %20 = vector.load %arg6[%c0_14, %c0_15] : memref<16x512xbf16, #tpu.memory_space<vmem>>, vector<16x512xbf16>
      tpu.vector_store %arg6[%c0_14, %c0_15], %19 {strides = array<i32>} : memref<16x512xbf16, #tpu.memory_space<vmem>>, vector<16x512xbf16>,
    } else {
    }
    return
  }
  func.func @transform_0(%arg0: i32, %arg1: i32, %arg2: i32) -> (i32, i32) {
    %c0_i32 = arith.constant 0 : i32
    return %arg0, %arg2 : i32, i32
  }
  func.func @transform_1(%arg0: i32, %arg1: i32, %arg2: i32) -> (i32, i32) {
    %c0_i32 = arith.constant 0 : i32
    return %arg2, %arg1 : i32, i32
  }
  func.func @transform_2(%arg0: i32, %arg1: i32, %arg2: i32) -> (i32, i32) {
    %c0_i32 = arith.constant 0 : i32
    %c0_i32_0 = arith.constant 0 : i32
    return %c0_i32, %arg1 : i32, i32
  }
  func.func @transform_3(%arg0: i32, %arg1: i32, %arg2: i32) -> (i32, i32) {
    %c0_i32 = arith.constant 0 : i32
    return %arg0, %arg1 : i32, i32
  }
}

module attributes {stable_mosaic.version = 11 : i64} {
  func.func @_mm_bias_kernel(%arg0: i32, %arg1: i32, %arg2: i32, %arg3: memref<16x1280xbf16, #tpu.memory_space<vmem>>, %arg4: memref<1280x512xbf16, #tpu.memory_space<vmem>>, %arg5: memref<1x512xf32, #tpu.memory_space<vmem>>, %arg6: memref<16x512xbf16, #tpu.memory_space<vmem>>, %arg7: memref<16x512xf32, #tpu.memory_space<vmem>>) attributes {dimension_semantics = [#tpu.dimension_semantics<parallel>, #tpu.dimension_semantics<parallel>, #tpu.dimension_semantics<arbitrary>], iteration_bounds = array<i64: 1, 2, 4>, scalar_prefetch = 0 : i64, scratch_operands = 1 : i64, tpu.core_type = #tpu.core_type<tc>, window_params = [{transform_indices = @transform_0, window_bounds = array<i64: 16, 1280>}, {transform_indices = @transform_1, window_bounds = array<i64: 1280, 512>}, {transform_indices = @transform_2, window_bounds = array<i64: 1, 512>}, {transform_indices = @transform_3, window_bounds = array<i64: 16, 512>}]} {
    %c0_i32 = arith.constant 0 : i32
    %0 = arith.cmpi eq, %arg2, %c0_i32 : i32
    %1 = arith.extui %0 : i1 to i32
    %c0_i32_0 = arith.constant 0 : i32
    %2 = arith.cmpi ne, %1, %c0_i32_0 : i32
    scf.if %2 {
      %cst_9 = arith.constant 0.000000e+00 : f32
      %12 = vector.broadcast %cst_9 : f32 to vector<16x512xf32>
      %c0_10 = arith.constant 0 : index
      %c0_11 = arith.constant 0 : index
      %13 = vector.load %arg7[%c0_10, %c0_11] : memref<16x512xf32, #tpu.memory_space<vmem>>, vector<16x512xf32>
      tpu.vector_store %arg7[%c0_10, %c0_11], %12 {strides = array<i32>} : memref<16x512xf32, #tpu.memory_space<vmem>>, vector<16x512xf32>,
    } else {
    }
    %c0 = arith.constant 0 : index
    %c0_1 = arith.constant 0 : index
    %3 = vector.load %arg7[%c0, %c0_1] : memref<16x512xf32, #tpu.memory_space<vmem>>, vector<16x512xf32>
    %c0_2 = arith.constant 0 : index
    %c0_3 = arith.constant 0 : index
    %4 = vector.load %arg3[%c0_2, %c0_3] : memref<16x1280xbf16, #tpu.memory_space<vmem>>, vector<16x1280xbf16>
    %c0_4 = arith.constant 0 : index
    %c0_5 = arith.constant 0 : index
    %5 = vector.load %arg4[%c0_4, %c0_5] : memref<1280x512xbf16, #tpu.memory_space<vmem>>, vector<1280x512xbf16>
    %cst = arith.constant dense<0.000000e+00> : vector<16x512xf32>
    %6 = tpu.matmul %4, %5, %cst {dimension_numbers = #tpu.dot_dimension_numbers<[1], [0], [0], [1], [0, 0, 1, 1], [], []>} : vector<16x1280xbf16>, vector<1280x512xbf16>, vector<16x512xf32> -> vector<16x512xf32>
    %7 = arith.addf %3, %6 : vector<16x512xf32>
    %c0_6 = arith.constant 0 : index
    %c0_7 = arith.constant 0 : index
    %8 = vector.load %arg7[%c0_6, %c0_7] : memref<16x512xf32, #tpu.memory_space<vmem>>, vector<16x512xf32>
    tpu.vector_store %arg7[%c0_6, %c0_7], %7 {strides = array<i32>} : memref<16x512xf32, #tpu.memory_space<vmem>>, vector<16x512xf32>,
    %c3_i32 = arith.constant 3 : i32
    %9 = arith.cmpi eq, %arg2, %c3_i32 : i32
    %10 = arith.extui %9 : i1 to i32
    %c0_i32_8 = arith.constant 0 : i32
    %11 = arith.cmpi ne, %10, %c0_i32_8 : i32
    scf.if %11 {
      %c0_9 = arith.constant 0 : index
      %c0_10 = arith.constant 0 : index
      %12 = vector.load %arg7[%c0_9, %c0_10] : memref<16x512xf32, #tpu.memory_space<vmem>>, vector<16x512xf32>
      %c0_11 = arith.constant 0 : index
      %c0_12 = arith.constant 0 : index
      %13 = vector.load %arg5[%c0_11, %c0_12] : memref<1x512xf32, #tpu.memory_space<vmem>>, vector<1x512xf32>
      %14 = vector.broadcast %13 : vector<1x512xf32> to vector<16x512xf32>
      %15 = arith.addf %12, %14 : vector<16x512xf32>
      %cst_13 = arith.constant 1.000000e-01 : f32
      %16 = vector.broadcast %cst_13 : f32 to vector<16x512xf32>
      %17 = arith.mulf %15, %16 : vector<16x512xf32>
      %18 = arith.maximumf %15, %17 : vector<16x512xf32>
      %19 = arith.truncf %18 : vector<16x512xf32> to vector<16x512xbf16>
      %c0_14 = arith.constant 0 : index
      %c0_15 = arith.constant 0 : index
      %20 = vector.load %arg6[%c0_14, %c0_15] : memref<16x512xbf16, #tpu.memory_space<vmem>>, vector<16x512xbf16>
      tpu.vector_store %arg6[%c0_14, %c0_15], %19 {strides = array<i32>} : memref<16x512xbf16, #tpu.memory_space<vmem>>, vector<16x512xbf16>,
    } else {
    }
    return
  }
  func.func @transform_0(%arg0: i32, %arg1: i32, %arg2: i32) -> (i32, i32) {
    %c0_i32 = arith.constant 0 : i32
    return %arg0, %arg2 : i32, i32
  }
  func.func @transform_1(%arg0: i32, %arg1: i32, %arg2: i32) -> (i32, i32) {
    %c0_i32 = arith.constant 0 : i32
    return %arg2, %arg1 : i32, i32
  }
  func.func @transform_2(%arg0: i32, %arg1: i32, %arg2: i32) -> (i32, i32) {
    %c0_i32 = arith.constant 0 : i32
    %c0_i32_0 = arith.constant 0 : i32
    return %c0_i32, %arg1 : i32, i32
  }
  func.func @transform_3(%arg0: i32, %arg1: i32, %arg2: i32) -> (i32, i32) {
    %c0_i32 = arith.constant 0 : i32
    return %arg0, %arg1 : i32, i32
  }
}

</mosaic_0001>

<llo_original>
// kernel: discriminator_p.5
$region0: #{discriminator_p.5}
  #allocation0 [shape = 'u32[]', space=smem, size = 0x4, offset = 0x4, fixed_abs, tag = 'smem constant byte address 0x4 - core index']
  #allocation1 [shape = 'u32[144,128]{1,0:T(1,128)}', space=vmem, size = 0x12000, scoped, tag = 'internal scratch']
  #allocation2 [shape = 'f32[32,256]{1,0:T(8,128)}', space=vmem, size = 0x8000, scoped, tag = 'scratch operand']
  %s0 = inlined_call_operand.vmem [shape: bf16[24,640], index: 0, kind: input, shape index: {}]
  %s1 = inlined_call_operand.hbm [shape: bf16[640,512], index: 1, kind: input, shape index: {}]
  %s2 = inlined_call_operand.hbm [shape: f32[1,512], index: 2, kind: input, shape index: {}]
  %s3 = inlined_call_operand.vmem [shape: bf16[24,512], index: 3, kind: output, shape index: {}]
  %s4 = sld [smem:[#allocation0]]
  $region109: #{discriminator_p.5} parent=0
    _
  %s6 = ssub.s32 1, %s4
  %s7 = scalar_select 0, %s6, %s4
  $region1: #{discriminator_p.5} parent=0
    #allocation3 [shape = 'u8[655360]{0}', space=vmem, size = 0xa0000, scoped, tag = 'input window, operand 1']
    #allocation4 [shape = 's32[2]{0}', space=sflag, size = 0x8, scoped, tag = 'scoped memory for discriminator_p.5']
    #allocation5 [shape = 'u8[2048]{0}', space=vmem, size = 0x800, scoped, tag = 'input window, operand 2']
    #allocation6 [shape = 's32[2]{0}', space=sflag, size = 0x8, scoped, tag = 'scoped memory for discriminator_p.5']
    #allocation7 [shape = 'u8[32768]{0}', space=vmem, size = 0x8000, scoped, tag = 'output window, operand 0']
    %8 = vsyncpa [#allocation4], 0
    %s9 = scalar_lea.sflag [#allocation4], 1
    %10 = vsyncpa %s9, 0
    %11 = vsyncpa [#allocation6], 0
    %s12 = scalar_lea.sflag [#allocation6], 1
    %13 = vsyncpa %s12, 0
    loop: start=0, step=1, limit=4
    $region2: #{discriminator_p.5} parent=1 // loop_pre_header
      _
    $region3: #{discriminator_p.5} parent=1 // loop_header
      %s15 = sphi 0, %s19
      %p16 = scmp.ge.s32.totalorder %s15, 4
      %s22 = sphi 0, %s41
      %s23 = sphi 0, %s37
      %s24 = sphi 0, %s33
      %s25 = sphi 0, %s22
      %s26 = sphi 0, %s23
      %s27 = sphi 0, %s24
      %s28 = sphi 0, %s25
      %s29 = sphi 0, %s26
      %s30 = sphi 0, %s27
      %s46 = sphi 0, %s48
      %s49 = sphi 0, %s46
      %s50 = sphi 0, %s49
      %s66 = sphi 0, %s50
      %s74 = sphi 0, %s76
      %s77 = sphi 0, %s74
      %s78 = sphi 0, %s77
      %s94 = sphi 0, %s78
      %s100 = sphi 0, %s102
      %s103 = sphi 0, %s100
      %s104 = sphi 0, %s103
      %s120 = sphi 0, %s104
      %s128 = sphi 0, %s130
      %s131 = sphi 0, %s128
      %s132 = sphi 0, %s131
      %s148 = sphi 0, %s132
    $region4: #{discriminator_p.5} parent=1 // loop_header_branch
      %18 = sbr.rel (%p16) target = $region8
    $region5: #{discriminator_p.5} parent=1 // loop_body
      %s20 = ssub.s32 %s15, 1
      %s21 = ssub.s32 %s15, 2
      %s31 = sadd.s32 1, %s24
      %p32 = scmp.ge.s32.totalorder %s31, 1
      %s33 = scalar_select %p32, 0, %s31
      %s34 = sadd.s32 1, %s23
      %s35 = scalar_select %p32, %s34, %s23
      %p36 = scmp.ge.s32.totalorder %s35, 2
      %s37 = scalar_select %p36, 0, %s35
      %s38 = sadd.s32 1, %s22
      %s39 = scalar_select %p36, %s38, %s22
      %p40 = scmp.ge.s32.totalorder %s39, 1
      %s41 = scalar_select %p40, 0, %s39
      %s42 = ssub.s32 %s22, %s41
      %s43 = ssub.s32 %s24, %s33
      %s44 = sor.u32 %s42, %s43
      %p45 = scmp.eq.s32.totalorder %s44, 0
      %s47 = sadd.s32 %s46, 1
      %s48 = scalar_select %p45, %s46, %s47
      %p51 = pneg %p45
      %p52 = scmp.eq.s32.totalorder %s15, 1
      %p53 = por %p51, %p52
      %p54 = scmp.ne.s32.totalorder %s46, %s49
      %p55 = scmp.eq.s32.totalorder %s15, 0
      %p56 = por %p54, %p55
      %p57 = scmp.ne.s32.totalorder %s46, %s49
      %p58 = scmp.eq.s32.totalorder %s20, 1
      %p59 = por %p57, %p58
      %p60 = scmp.ne.s32.totalorder %s49, %s50
      %p61 = scmp.eq.s32.totalorder %s20, 0
      %p62 = por %p60, %p61
      %p63 = scmp.ne.s32.totalorder %s49, %s50
      %p64 = scmp.eq.s32.totalorder %s21, 1
      %p65 = por %p63, %p64
      %p67 = scmp.ne.s32.totalorder %s50, %s66
      %p68 = scmp.eq.s32.totalorder %s21, 0
      %p69 = por %p67, %p68
      %s70 = ssub.s32 %s24, %s33
      %s71 = ssub.s32 %s23, %s37
      %s72 = sor.u32 %s70, %s71
      %p73 = scmp.eq.s32.totalorder %s72, 0
      %s75 = sadd.s32 %s74, 1
      %s76 = scalar_select %p73, %s74, %s75
      %p79 = pneg %p73
      %p80 = scmp.eq.s32.totalorder %s15, 1
      %p81 = por %p79, %p80
      %p82 = scmp.ne.s32.totalorder %s74, %s77
      %p83 = scmp.eq.s32.totalorder %s15, 0
      %p84 = por %p82, %p83
      %p85 = scmp.ne.s32.totalorder %s74, %s77
      %p86 = scmp.eq.s32.totalorder %s20, 1
      %p87 = por %p85, %p86
      %p88 = scmp.ne.s32.totalorder %s77, %s78
      %p89 = scmp.eq.s32.totalorder %s20, 0
      %p90 = por %p88, %p89
      %p91 = scmp.ne.s32.totalorder %s77, %s78
      %p92 = scmp.eq.s32.totalorder %s21, 1
      %p93 = por %p91, %p92
      %p95 = scmp.ne.s32.totalorder %s78, %s94
      %p96 = scmp.eq.s32.totalorder %s21, 0
      %p97 = por %p95, %p96
      %s98 = ssub.s32 %s23, %s37
      %p99 = scmp.eq.s32.totalorder %s98, 0
      %s101 = sadd.s32 %s100, 1
      %s102 = scalar_select %p99, %s100, %s101
      %p105 = pneg %p99
      %p106 = scmp.eq.s32.totalorder %s15, 1
      %p107 = por %p105, %p106
      %p108 = scmp.ne.s32.totalorder %s100, %s103
      %p109 = scmp.eq.s32.totalorder %s15, 0
      %p110 = por %p108, %p109
      %p111 = scmp.ne.s32.totalorder %s100, %s103
      %p112 = scmp.eq.s32.totalorder %s20, 1
      %p113 = por %p111, %p112
      %p114 = scmp.ne.s32.totalorder %s103, %s104
      %p115 = scmp.eq.s32.totalorder %s20, 0
      %p116 = por %p114, %p115
      %p117 = scmp.ne.s32.totalorder %s103, %s104
      %p118 = scmp.eq.s32.totalorder %s21, 1
      %p119 = por %p117, %p118
      %p121 = scmp.ne.s32.totalorder %s104, %s120
      %p122 = scmp.eq.s32.totalorder %s21, 0
      %p123 = por %p121, %p122
      %s124 = ssub.s32 %s22, %s41
      %s125 = ssub.s32 %s23, %s37
      %s126 = sor.u32 %s124, %s125
      %p127 = scmp.eq.s32.totalorder %s126, 0
      %s129 = sadd.s32 %s128, 1
      %s130 = scalar_select %p127, %s128, %s129
      %p133 = pneg %p127
      %p134 = scmp.eq.s32.totalorder %s15, 1
      %p135 = por %p133, %p134
      %p136 = scmp.ne.s32.totalorder %s128, %s131
      %p137 = scmp.eq.s32.totalorder %s15, 0
      %p138 = por %p136, %p137
      %p139 = scmp.ne.s32.totalorder %s128, %s131
      %p140 = scmp.eq.s32.totalorder %s20, 1
      %p141 = por %p139, %p140
      %p142 = scmp.ne.s32.totalorder %s131, %s132
      %p143 = scmp.eq.s32.totalorder %s20, 0
      %p144 = por %p142, %p143
      %p145 = scmp.ne.s32.totalorder %s131, %s132
      %p146 = scmp.eq.s32.totalorder %s21, 1
      %p147 = por %p145, %p146
      %p149 = scmp.ne.s32.totalorder %s132, %s148
      %p150 = scmp.eq.s32.totalorder %s21, 0
      %p151 = por %p149, %p150
      %p152 = scmp.le.s32.totalorder 1, %s15
      %p153 = scmp.lt.s32.totalorder %s15, 3
      %p154 = pnand %p152, %p153
      %p155 = pneg %p154
      // Predicated region
      $region9: #{discriminator_p.5} parent=5 // pred_check
        _
      $region10: #{discriminator_p.5} parent=5 // pred_check_branch
        %157 = sbr.rel (%p154) target = $region12
      $region11: #{discriminator_p.5} parent=5 // pred_region
        %s158 = ssub.s32 %s15, 1
        // Predicated region
        $region13: #{discriminator_p.5} parent=11 // pred_check
          %p159 = pneg %p62
        $region14: #{discriminator_p.5} parent=11 // pred_check_branch
          %161 = sbr.rel (%p159) target = $region16
        $region15: #{discriminator_p.5} parent=11 // pred_region
          %s162 = smul.u32 4, %s25
          %s163 = smul.u32 5, %s27
          %s164 = ssub.s32 3, %s162
          %s165 = smul.u32 64, %s164
          %s166 = smul.u32 %s165, 5
          %p167 = scmp.lt.s32.totalorder %s162, 2
          %s168 = scalar_select %p167, %s162, 2
          %p169 = scmp.lt.s32.totalorder %s163, 4
          %s170 = scalar_select %p169, %s163, 4
          %s171 = smul.addr %s168, 5
          %s172 = sadd.s32 %s170, %s171
          %s173 = smul.addr %s172, 4
          %s174 = scalar_lea.vmem %s0, %s173
          %s175 = smul.u32 4, %s25
          %s176 = smul.u32 5, %s27
          %s177 = ssub.s32 3, %s175
          %s178 = smul.u32 64, %s177
          %s179 = smul.u32 %s178, 5
        $region16: #{discriminator_p.5} parent=11 // pred_fallthru
          _
      $region12: #{discriminator_p.5} parent=5 // pred_fallthru
        _
      %p180 = scmp.lt.s32.totalorder %s15, 2
      // Predicated region
      $region17: #{discriminator_p.5} parent=5 // pred_check
        %p181 = pneg %p180
      $region18: #{discriminator_p.5} parent=5 // pred_check_branch
        %183 = sbr.rel (%p181) target = $region20
      $region19: #{discriminator_p.5} parent=5 // pred_region
        // Predicated region
        $region21: #{discriminator_p.5} parent=19 // pred_check
          %p184 = pneg %p84
        $region22: #{discriminator_p.5} parent=19 // pred_check_branch
          %186 = sbr.rel (%p184) target = $region24
        $region23: #{discriminator_p.5} parent=19 // pred_region
          %s187 = sand.u32 %s74, 1
          %s188 = scalar_lea.sflag [#allocation4], %s187
          %s189 = sand.u32 %s74, 1
          %s190 = smul.addr %s189, 640
          %s191 = scalar_lea.vmem [#allocation3], %s190
          %s192 = smul.u32 80, %s24
          %s193 = smul.u32 2, %s23
          %s195 = ssub.s32 10240, 10240
          %196 = vsyncadd %s188, %s195
          %s197 = smul.addr %s192, 4
          %s198 = sadd.s32 %s193, %s197
          %s199 = smul.addr %s198, 64
          %s200 = scalar_lea.hbm %s1, %s199
          %s201 = sshll.u32 %s191, 4
          %s202 = int_to_ptr.vmem [resolvable:$true] %s201
          %207 = dma.hbm_to_vmem [thread:$0]  %s200, 10240, %s202, %s188, 256, 128, 8
        $region24: #{discriminator_p.5} parent=19 // pred_fallthru
          _
        // Predicated region
        $region25: #{discriminator_p.5} parent=19 // pred_check
          %p208 = pneg %p110
        $region26: #{discriminator_p.5} parent=19 // pred_check_branch
          %210 = sbr.rel (%p208) target = $region28
        $region27: #{discriminator_p.5} parent=19 // pred_region
          %s211 = sand.u32 %s100, 1
          %s212 = scalar_lea.sflag [#allocation6], %s211
          %s213 = sand.u32 %s100, 1
          %s214 = smul.addr %s213, 2
          %s215 = scalar_lea.vmem [#allocation5], %s214
          %s216 = smul.u32 2, %s23
          %s218 = ssub.s32 32, 32
          %219 = vsyncadd %s212, %s218
          %s220 = smul.addr %s216, 16
          %s221 = scalar_lea.hbm %s2, %s220
          %s223 = sshll.u32 %s215, 4
          %s224 = int_to_ptr.vmem [resolvable:$true] %s223
          %226 = dma.hbm_to_vmem [thread:$0]  %s221, 32, %s224, %s212
        $region28: #{discriminator_p.5} parent=19 // pred_fallthru
          _
      $region20: #{discriminator_p.5} parent=5 // pred_fallthru
        _
      %p227 = scmp.le.s32.totalorder 1, %s15
      %p228 = scmp.lt.s32.totalorder %s15, 3
      %p229 = pnand %p227, %p228
      %p230 = pneg %p229
      // Predicated region
      $region29: #{discriminator_p.5} parent=5 // pred_check
        _
      $region30: #{discriminator_p.5} parent=5 // pred_check_branch
        %232 = sbr.rel (%p229) target = $region32
      $region31: #{discriminator_p.5} parent=5 // pred_region
        %s233 = ssub.s32 %s15, 1
        %s234 = sand.u32 %s77, 1
        %s235 = scalar_lea.sflag [#allocation4], %s234
        %s236 = sand.u32 %s77, 1
        %s237 = smul.addr %s236, 640
        %s238 = scalar_lea.vmem [#allocation3], %s237
        // Predicated region
        $region33: #{discriminator_p.5} parent=31 // pred_check
          %p239 = pneg %p90
        $region34: #{discriminator_p.5} parent=31 // pred_check_branch
          %241 = sbr.rel (%p239) target = $region36
        $region35: #{discriminator_p.5} parent=31 // pred_region
          %242 = dma.done %s235, 10240
        $region36: #{discriminator_p.5} parent=31 // pred_fallthru
          _
        %s243 = sand.u32 %s103, 1
        %s244 = scalar_lea.sflag [#allocation6], %s243
        %s245 = sand.u32 %s103, 1
        %s246 = smul.addr %s245, 2
        %s247 = scalar_lea.vmem [#allocation5], %s246
        // Predicated region
        $region37: #{discriminator_p.5} parent=31 // pred_check
          %p248 = pneg %p116
        $region38: #{discriminator_p.5} parent=31 // pred_check_branch
          %250 = sbr.rel (%p248) target = $region40
        $region39: #{discriminator_p.5} parent=31 // pred_region
          %251 = dma.done %s244, 32
        $region40: #{discriminator_p.5} parent=31 // pred_fallthru
          _
        %s252 = smul.u32 4, %s25
        %s253 = smul.u32 5, %s27
        %s254 = ssub.s32 3, %s252
        %s255 = smul.u32 64, %s254
        %s256 = smul.u32 %s255, 5
        %p257 = scmp.lt.s32.totalorder %s252, 2
        %s258 = scalar_select %p257, %s252, 2
        %p259 = scmp.lt.s32.totalorder %s253, 4
        %s260 = scalar_select %p259, %s253, 4
        %s261 = smul.addr %s258, 5
        %s262 = sadd.s32 %s260, %s261
        %s263 = smul.addr %s262, 4
        %s264 = scalar_lea.vmem %s0, %s263
        %p265 = pneg %p62
        %p266 = pneg %p59
        %s267 = sand.u32 %s77, 1
        %s268 = scalar_lea.sflag [#allocation4], %s267
        %s269 = sand.u32 %s77, 1
        %s270 = smul.addr %s269, 640
        %s271 = scalar_lea.vmem [#allocation3], %s270
        %p272 = pneg %p90
        %p273 = pneg %p87
        %s274 = sand.u32 %s103, 1
        %s275 = scalar_lea.sflag [#allocation6], %s274
        %s276 = sand.u32 %s103, 1
        %s277 = smul.addr %s276, 2
        %s278 = scalar_lea.vmem [#allocation5], %s277
        %p279 = pneg %p116
        %p280 = pneg %p113
        %p281 = pneg %p144
        %p282 = pneg %p141
        %s283 = sand.u32 %s131, 1
        %s284 = sand.u32 %s131, 1
        %s285 = smul.addr %s284, 32
        %s286 = scalar_lea.vmem [#allocation7], %s285
        %s287 = smul.u32 4, %s25
        %s288 = smul.u32 5, %s27
        %s289 = ssub.s32 3, %s287
        %s290 = smul.u32 64, %s289
        %s291 = smul.u32 %s290, 5
        %p292 = scmp.lt.s32.totalorder %s287, 2
        %s293 = scalar_select %p292, %s287, 2
        %p294 = scmp.lt.s32.totalorder %s288, 4
        %s295 = scalar_select %p294, %s288, 4
        %s296 = smul.addr %s293, 5
        %s297 = sadd.s32 %s295, %s296
        %s298 = smul.addr %s297, 4
        %s299 = scalar_lea.vmem %s0, %s298
        %s300 = smul.u32 4, %s25
        %s301 = smul.u32 5, %s27
        %s302 = ssub.s32 3, %s300
        %s303 = smul.u32 64, %s302
        %s304 = smul.u32 %s303, 5
        %s305 = smul.u32 80, %s27
        %s306 = smul.u32 2, %s26
        %s307 = smul.u32 2, %s26
        %s308 = smul.u32 4, %s25
        %s309 = smul.u32 2, %s26
        %s310 = ssub.s32 3, %s308
        %s311 = smul.u32 64, %s310
        %s312 = smul.u32 %s311, 2
        %p314 = scmp.eq.s32.totalorder %s27, 0
        // Predicated region
        $region41: #{discriminator_p.5} parent=31 // pred_check
          %p315 = pneg %p314
        $region42: #{discriminator_p.5} parent=31 // pred_check_branch
          %317 = sbr.rel (%p315) target = $region44
        $region43: #{discriminator_p.5} parent=31 // pred_region
          %318 = vst [vmem:[#allocation2] sm:$0xff] 0.0
          %319 = vst [vmem:[#allocation2 + $0x8] sm:$0xff] 0.0
          %320 = vst [vmem:[#allocation2 + $0x10] sm:$0xff] 0.0
          %321 = vst [vmem:[#allocation2 + $0x18] sm:$0xff] 0.0
          %322 = vst [vmem:[#allocation2 + $0x20] sm:$0xff] 0.0
          %323 = vst [vmem:[#allocation2 + $0x28] sm:$0xff] 0.0
          %324 = vst [vmem:[#allocation2 + $0x30] sm:$0xff] 0.0
          %325 = vst [vmem:[#allocation2 + $0x38] sm:$0xff] 0.0
        $region44: #{discriminator_p.5} parent=31 // pred_fallthru
          _
        %v326 = vld [vmem:[#allocation2] sm:$0xff]
        %v327 = vld [vmem:[#allocation2 + $0x8] sm:$0xff]
        %v328 = vld [vmem:[#allocation2 + $0x10] sm:$0xff]
        %v329 = vld [vmem:[#allocation2 + $0x18] sm:$0xff]
        %v330 = vld [vmem:[#allocation2 + $0x20] sm:$0xff]
        %v331 = vld [vmem:[#allocation2 + $0x28] sm:$0xff]
        %v332 = vld [vmem:[#allocation2 + $0x30] sm:$0xff]
        %v333 = vld [vmem:[#allocation2 + $0x38] sm:$0xff]
        %v334 = vld [vmem:[%s299] sm:$0xff]
        %v335 = vld [vmem:[%s299 + $0x8] sm:$0xff]
        %v336 = vld [vmem:[%s299 + $0x10] sm:$0xf]
        %v337 = vld [vmem:[%s299 + $0x14] sm:$0xff]
        %v338 = vld [vmem:[%s299 + $0x1c] sm:$0xff]
        %v339 = vld [vmem:[%s299 + $0x24] sm:$0xf]
        %v340 = vld [vmem:[%s299 + $0x28] sm:$0xff]
        %v341 = vld [vmem:[%s299 + $0x30] sm:$0xff]
        %v342 = vld [vmem:[%s299 + $0x38] sm:$0xf]
        %v343 = vld [vmem:[%s299 + $0x3c] sm:$0xff]
        %v344 = vld [vmem:[%s299 + $0x44] sm:$0xff]
        %v345 = vld [vmem:[%s299 + $0x4c] sm:$0xf]
        %v346 = vld [vmem:[%s238] sm:$0xff]
        %v347 = vld [vmem:[%s238 + $0x8] sm:$0xff]
        %v348 = vld [vmem:[%s238 + $0x10] sm:$0xff]
        %v349 = vld [vmem:[%s238 + $0x18] sm:$0xff]
        %v350 = vld [vmem:[%s238 + $0x20] sm:$0xff]
        %v351 = vld [vmem:[%s238 + $0x28] sm:$0xff]
        %v352 = vld [vmem:[%s238 + $0x30] sm:$0xff]
        %v353 = vld [vmem:[%s238 + $0x38] sm:$0xff]
        %v354 = vld [vmem:[%s238 + $0x40] sm:$0xff]
        %v355 = vld [vmem:[%s238 + $0x48] sm:$0xff]
        %v356 = vld [vmem:[%s238 + $0x50] sm:$0xff]
        %v357 = vld [vmem:[%s238 + $0x58] sm:$0xff]
        %v358 = vld [vmem:[%s238 + $0x60] sm:$0xff]
        %v359 = vld [vmem:[%s238 + $0x68] sm:$0xff]
        %v360 = vld [vmem:[%s238 + $0x70] sm:$0xff]
        %v361 = vld [vmem:[%s238 + $0x78] sm:$0xff]
        %v362 = vld [vmem:[%s238 + $0x80] sm:$0xff]
        %v363 = vld [vmem:[%s238 + $0x88] sm:$0xff]
        %v364 = vld [vmem:[%s238 + $0x90] sm:$0xff]
        %v365 = vld [vmem:[%s238 + $0x98] sm:$0xff]
        %v366 = vld [vmem:[%s238 + $0xa0] sm:$0xff]
        %v367 = vld [vmem:[%s238 + $0xa8] sm:$0xff]
        %v368 = vld [vmem:[%s238 + $0xb0] sm:$0xff]
        %v369 = vld [vmem:[%s238 + $0xb8] sm:$0xff]
        %v370 = vld [vmem:[%s238 + $0xc0] sm:$0xff]
        %v371 = vld [vmem:[%s238 + $0xc8] sm:$0xff]
        %v372 = vld [vmem:[%s238 + $0xd0] sm:$0xff]
        %v373 = vld [vmem:[%s238 + $0xd8] sm:$0xff]
        %v374 = vld [vmem:[%s238 + $0xe0] sm:$0xff]
        %v375 = vld [vmem:[%s238 + $0xe8] sm:$0xff]
        %v376 = vld [vmem:[%s238 + $0xf0] sm:$0xff]
        %v377 = vld [vmem:[%s238 + $0xf8] sm:$0xff]
        %v378 = vld [vmem:[%s238 + $0x100] sm:$0xff]
        %v379 = vld [vmem:[%s238 + $0x108] sm:$0xff]
        %v380 = vld [vmem:[%s238 + $0x110] sm:$0xff]
        %v381 = vld [vmem:[%s238 + $0x118] sm:$0xff]
        %v382 = vld [vmem:[%s238 + $0x120] sm:$0xff]
        %v383 = vld [vmem:[%s238 + $0x128] sm:$0xff]
        %v384 = vld [vmem:[%s238 + $0x130] sm:$0xff]
        %v385 = vld [vmem:[%s238 + $0x138] sm:$0xff]
        %v386 = vld [vmem:[%s238 + $0x140] sm:$0xff]
        %v387 = vld [vmem:[%s238 + $0x148] sm:$0xff]
        %v388 = vld [vmem:[%s238 + $0x150] sm:$0xff]
        %v389 = vld [vmem:[%s238 + $0x158] sm:$0xff]
        %v390 = vld [vmem:[%s238 + $0x160] sm:$0xff]
        %v391 = vld [vmem:[%s238 + $0x168] sm:$0xff]
        %v392 = vld [vmem:[%s238 + $0x170] sm:$0xff]
        %v393 = vld [vmem:[%s238 + $0x178] sm:$0xff]
        %v394 = vld [vmem:[%s238 + $0x180] sm:$0xff]
        %v395 = vld [vmem:[%s238 + $0x188] sm:$0xff]
        %v396 = vld [vmem:[%s238 + $0x190] sm:$0xff]
        %v397 = vld [vmem:[%s238 + $0x198] sm:$0xff]
        %v398 = vld [vmem:[%s238 + $0x1a0] sm:$0xff]
        %v399 = vld [vmem:[%s238 + $0x1a8] sm:$0xff]
        %v400 = vld [vmem:[%s238 + $0x1b0] sm:$0xff]
        %v401 = vld [vmem:[%s238 + $0x1b8] sm:$0xff]
        %v402 = vld [vmem:[%s238 + $0x1c0] sm:$0xff]
        %v403 = vld [vmem:[%s238 + $0x1c8] sm:$0xff]
        %v404 = vld [vmem:[%s238 + $0x1d0] sm:$0xff]
        %v405 = vld [vmem:[%s238 + $0x1d8] sm:$0xff]
        %v406 = vld [vmem:[%s238 + $0x1e0] sm:$0xff]
        %v407 = vld [vmem:[%s238 + $0x1e8] sm:$0xff]
        %v408 = vld [vmem:[%s238 + $0x1f0] sm:$0xff]
        %v409 = vld [vmem:[%s238 + $0x1f8] sm:$0xff]
        %v410 = vld [vmem:[%s238 + $0x200] sm:$0xff]
        %v411 = vld [vmem:[%s238 + $0x208] sm:$0xff]
        %v412 = vld [vmem:[%s238 + $0x210] sm:$0xff]
        %v413 = vld [vmem:[%s238 + $0x218] sm:$0xff]
        %v414 = vld [vmem:[%s238 + $0x220] sm:$0xff]
        %v415 = vld [vmem:[%s238 + $0x228] sm:$0xff]
        %v416 = vld [vmem:[%s238 + $0x230] sm:$0xff]
        %v417 = vld [vmem:[%s238 + $0x238] sm:$0xff]
        %v418 = vld [vmem:[%s238 + $0x240] sm:$0xff]
        %v419 = vld [vmem:[%s238 + $0x248] sm:$0xff]
        %v420 = vld [vmem:[%s238 + $0x250] sm:$0xff]
        %v421 = vld [vmem:[%s238 + $0x258] sm:$0xff]
        %v422 = vld [vmem:[%s238 + $0x260] sm:$0xff]
        %v423 = vld [vmem:[%s238 + $0x268] sm:$0xff]
        %v424 = vld [vmem:[%s238 + $0x270] sm:$0xff]
        %v425 = vld [vmem:[%s238 + $0x278] sm:$0xff]
        %v438 = vunpack.c.l.b16 %v334
        %v439 = vunpack.c.h.b16 %v334
        %v440 = vunpack.c.l.b16 %v335
        %v441 = vunpack.c.h.b16 %v335
        %v442 = vunpack.c.l.b16 %v336
        %v443 = vunpack.c.l.b16 %v337
        %v444 = vunpack.c.h.b16 %v337
        %v445 = vunpack.c.l.b16 %v338
        %v446 = vunpack.c.h.b16 %v338
        %v447 = vunpack.c.l.b16 %v339
        %v448 = vunpack.c.l.b16 %v340
        %v449 = vunpack.c.h.b16 %v340
        %v450 = vunpack.c.l.b16 %v341
        %v451 = vunpack.c.h.b16 %v341
        %v452 = vunpack.c.l.b16 %v342
        %v453 = vunpack.c.l.b16 %v343
        %v454 = vunpack.c.h.b16 %v343
        %v455 = vunpack.c.l.b16 %v344
        %v456 = vunpack.c.h.b16 %v344
        %v457 = vunpack.c.l.b16 %v345
        %v458 = vpack.c.b16 %v443, %v438
        %v459 = vpack.c.b16 %v444, %v439
        %v460 = vpack.c.b16 %v445, %v440
        %v461 = vpack.c.b16 %v446, %v441
        %v462 = vpack.c.b16 %v447, %v442
        %v463 = vpack.c.b16 %v453, %v448
        %v464 = vpack.c.b16 %v454, %v449
        %v465 = vpack.c.b16 %v455, %v450
        %v466 = vpack.c.b16 %v456, %v451
        %v467 = vpack.c.b16 %v457, %v452
        %v558 = vunpack.c.l.b16 %v346
        %v559 = vunpack.c.h.b16 %v346
        %v560 = vunpack.c.l.b16 %v347
        %v561 = vunpack.c.h.b16 %v347
        %v562 = vunpack.c.l.b16 %v348
        %v563 = vunpack.c.h.b16 %v348
        %v564 = vunpack.c.l.b16 %v349
        %v565 = vunpack.c.h.b16 %v349
        %v566 = vunpack.c.l.b16 %v350
        %v567 = vunpack.c.h.b16 %v350
        %v568 = vunpack.c.l.b16 %v351
        %v569 = vunpack.c.h.b16 %v351
        %v570 = vunpack.c.l.b16 %v352
        %v571 = vunpack.c.h.b16 %v352
        %v572 = vunpack.c.l.b16 %v353
        %v573 = vunpack.c.h.b16 %v353
        %v574 = vunpack.c.l.b16 %v354
        %v575 = vunpack.c.h.b16 %v354
        %v576 = vunpack.c.l.b16 %v355
        %v577 = vunpack.c.h.b16 %v355
        %v578 = vunpack.c.l.b16 %v356
        %v579 = vunpack.c.h.b16 %v356
        %v580 = vunpack.c.l.b16 %v357
        %v581 = vunpack.c.h.b16 %v357
        %v582 = vunpack.c.l.b16 %v358
        %v583 = vunpack.c.h.b16 %v358
        %v584 = vunpack.c.l.b16 %v359
        %v585 = vunpack.c.h.b16 %v359
        %v586 = vunpack.c.l.b16 %v360
        %v587 = vunpack.c.h.b16 %v360
        %v588 = vunpack.c.l.b16 %v361
        %v589 = vunpack.c.h.b16 %v361
        %v590 = vunpack.c.l.b16 %v362
        %v591 = vunpack.c.h.b16 %v362
        %v592 = vunpack.c.l.b16 %v363
        %v593 = vunpack.c.h.b16 %v363
        %v594 = vunpack.c.l.b16 %v364
        %v595 = vunpack.c.h.b16 %v364
        %v596 = vunpack.c.l.b16 %v365
        %v597 = vunpack.c.h.b16 %v365
        %v598 = vunpack.c.l.b16 %v366
        %v599 = vunpack.c.h.b16 %v366
        %v600 = vunpack.c.l.b16 %v367
        %v601 = vunpack.c.h.b16 %v367
        %v602 = vunpack.c.l.b16 %v368
        %v603 = vunpack.c.h.b16 %v368
        %v604 = vunpack.c.l.b16 %v369
        %v605 = vunpack.c.h.b16 %v369
        %v606 = vunpack.c.l.b16 %v370
        %v607 = vunpack.c.h.b16 %v370
        %v608 = vunpack.c.l.b16 %v371
        %v609 = vunpack.c.h.b16 %v371
        %v610 = vunpack.c.l.b16 %v372
        %v611 = vunpack.c.h.b16 %v372
        %v612 = vunpack.c.l.b16 %v373
        %v613 = vunpack.c.h.b16 %v373
        %v614 = vunpack.c.l.b16 %v374
        %v615 = vunpack.c.h.b16 %v374
        %v616 = vunpack.c.l.b16 %v375
        %v617 = vunpack.c.h.b16 %v375
        %v618 = vunpack.c.l.b16 %v376
        %v619 = vunpack.c.h.b16 %v376
        %v620 = vunpack.c.l.b16 %v377
        %v621 = vunpack.c.h.b16 %v377
        %v622 = vunpack.c.l.b16 %v378
        %v623 = vunpack.c.h.b16 %v378
        %v624 = vunpack.c.l.b16 %v379
        %v625 = vunpack.c.h.b16 %v379
        %v626 = vunpack.c.l.b16 %v380
        %v627 = vunpack.c.h.b16 %v380
        %v628 = vunpack.c.l.b16 %v381
        %v629 = vunpack.c.h.b16 %v381
        %v630 = vunpack.c.l.b16 %v382
        %v631 = vunpack.c.h.b16 %v382
        %v632 = vunpack.c.l.b16 %v383
        %v633 = vunpack.c.h.b16 %v383
        %v634 = vunpack.c.l.b16 %v384
        %v635 = vunpack.c.h.b16 %v384
        %v636 = vunpack.c.l.b16 %v385
        %v637 = vunpack.c.h.b16 %v385
        %v638 = vunpack.c.l.b16 %v386
        %v639 = vunpack.c.h.b16 %v386
        %v640 = vunpack.c.l.b16 %v387
        %v641 = vunpack.c.h.b16 %v387
        %v642 = vunpack.c.l.b16 %v388
        %v643 = vunpack.c.h.b16 %v388
        %v644 = vunpack.c.l.b16 %v389
        %v645 = vunpack.c.h.b16 %v389
        %v646 = vunpack.c.l.b16 %v390
        %v647 = vunpack.c.h.b16 %v390
        %v648 = vunpack.c.l.b16 %v391
        %v649 = vunpack.c.h.b16 %v391
        %v650 = vunpack.c.l.b16 %v392
        %v651 = vunpack.c.h.b16 %v392
        %v652 = vunpack.c.l.b16 %v393
        %v653 = vunpack.c.h.b16 %v393
        %v654 = vunpack.c.l.b16 %v394
        %v655 = vunpack.c.h.b16 %v394
        %v656 = vunpack.c.l.b16 %v395
        %v657 = vunpack.c.h.b16 %v395
        %v658 = vunpack.c.l.b16 %v396
        %v659 = vunpack.c.h.b16 %v396
        %v660 = vunpack.c.l.b16 %v397
        %v661 = vunpack.c.h.b16 %v397
        %v662 = vunpack.c.l.b16 %v398
        %v663 = vunpack.c.h.b16 %v398
        %v664 = vunpack.c.l.b16 %v399
        %v665 = vunpack.c.h.b16 %v399
        %v666 = vunpack.c.l.b16 %v400
        %v667 = vunpack.c.h.b16 %v400
        %v668 = vunpack.c.l.b16 %v401
        %v669 = vunpack.c.h.b16 %v401
        %v670 = vunpack.c.l.b16 %v402
        %v671 = vunpack.c.h.b16 %v402
        %v672 = vunpack.c.l.b16 %v403
        %v673 = vunpack.c.h.b16 %v403
        %v674 = vunpack.c.l.b16 %v404
        %v675 = vunpack.c.h.b16 %v404
        %v676 = vunpack.c.l.b16 %v405
        %v677 = vunpack.c.h.b16 %v405
        %v678 = vunpack.c.l.b16 %v406
        %v679 = vunpack.c.h.b16 %v406
        %v680 = vunpack.c.l.b16 %v407
        %v681 = vunpack.c.h.b16 %v407
        %v682 = vunpack.c.l.b16 %v408
        %v683 = vunpack.c.h.b16 %v408
        %v684 = vunpack.c.l.b16 %v409
        %v685 = vunpack.c.h.b16 %v409
        %v686 = vunpack.c.l.b16 %v410
        %v687 = vunpack.c.h.b16 %v410
        %v688 = vunpack.c.l.b16 %v411
        %v689 = vunpack.c.h.b16 %v411
        %v690 = vunpack.c.l.b16 %v412
        %v691 = vunpack.c.h.b16 %v412
        %v692 = vunpack.c.l.b16 %v413
        %v693 = vunpack.c.h.b16 %v413
        %v694 = vunpack.c.l.b16 %v414
        %v695 = vunpack.c.h.b16 %v414
        %v696 = vunpack.c.l.b16 %v415
        %v697 = vunpack.c.h.b16 %v415
        %v698 = vunpack.c.l.b16 %v416
        %v699 = vunpack.c.h.b16 %v416
        %v700 = vunpack.c.l.b16 %v417
        %v701 = vunpack.c.h.b16 %v417
        %v702 = vunpack.c.l.b16 %v418
        %v703 = vunpack.c.h.b16 %v418
        %v704 = vunpack.c.l.b16 %v419
        %v705 = vunpack.c.h.b16 %v419
        %v706 = vunpack.c.l.b16 %v420
        %v707 = vunpack.c.h.b16 %v420
        %v708 = vunpack.c.l.b16 %v421
        %v709 = vunpack.c.h.b16 %v421
        %v710 = vunpack.c.l.b16 %v422
        %v711 = vunpack.c.h.b16 %v422
        %v712 = vunpack.c.l.b16 %v423
        %v713 = vunpack.c.h.b16 %v423
        %v714 = vunpack.c.l.b16 %v424
        %v715 = vunpack.c.h.b16 %v424
        %v716 = vunpack.c.l.b16 %v425
        %v717 = vunpack.c.h.b16 %v425
        %v718 = vpack.c.b16 %v560, %v558
        %v719 = vpack.c.b16 %v561, %v559
        %v720 = vpack.c.b16 %v564, %v562
        %v721 = vpack.c.b16 %v565, %v563
        %v722 = vpack.c.b16 %v568, %v566
        %v723 = vpack.c.b16 %v569, %v567
        %v724 = vpack.c.b16 %v572, %v570
        %v725 = vpack.c.b16 %v573, %v571
        %v726 = vpack.c.b16 %v576, %v574
        %v727 = vpack.c.b16 %v577, %v575
        %v728 = vpack.c.b16 %v580, %v578
        %v729 = vpack.c.b16 %v581, %v579
        %v730 = vpack.c.b16 %v584, %v582
        %v731 = vpack.c.b16 %v585, %v583
        %v732 = vpack.c.b16 %v588, %v586
        %v733 = vpack.c.b16 %v589, %v587
        %v734 = vpack.c.b16 %v592, %v590
        %v735 = vpack.c.b16 %v593, %v591
        %v736 = vpack.c.b16 %v596, %v594
        %v737 = vpack.c.b16 %v597, %v595
        %v738 = vpack.c.b16 %v600, %v598
        %v739 = vpack.c.b16 %v601, %v599
        %v740 = vpack.c.b16 %v604, %v602
        %v741 = vpack.c.b16 %v605, %v603
        %v742 = vpack.c.b16 %v608, %v606
        %v743 = vpack.c.b16 %v609, %v607
        %v744 = vpack.c.b16 %v612, %v610
        %v745 = vpack.c.b16 %v613, %v611
        %v746 = vpack.c.b16 %v616, %v614
        %v747 = vpack.c.b16 %v617, %v615
        %v748 = vpack.c.b16 %v620, %v618
        %v749 = vpack.c.b16 %v621, %v619
        %v750 = vpack.c.b16 %v624, %v622
        %v751 = vpack.c.b16 %v625, %v623
        %v752 = vpack.c.b16 %v628, %v626
        %v753 = vpack.c.b16 %v629, %v627
        %v754 = vpack.c.b16 %v632, %v630
        %v755 = vpack.c.b16 %v633, %v631
        %v756 = vpack.c.b16 %v636, %v634
        %v757 = vpack.c.b16 %v637, %v635
        %v758 = vpack.c.b16 %v640, %v638
        %v759 = vpack.c.b16 %v641, %v639
        %v760 = vpack.c.b16 %v644, %v642
        %v761 = vpack.c.b16 %v645, %v643
        %v762 = vpack.c.b16 %v648, %v646
        %v763 = vpack.c.b16 %v649, %v647
        %v764 = vpack.c.b16 %v652, %v650
        %v765 = vpack.c.b16 %v653, %v651
        %v766 = vpack.c.b16 %v656, %v654
        %v767 = vpack.c.b16 %v657, %v655
        %v768 = vpack.c.b16 %v660, %v658
        %v769 = vpack.c.b16 %v661, %v659
        %v770 = vpack.c.b16 %v664, %v662
        %v771 = vpack.c.b16 %v665, %v663
        %v772 = vpack.c.b16 %v668, %v666
        %v773 = vpack.c.b16 %v669, %v667
        %v774 = vpack.c.b16 %v672, %v670
        %v775 = vpack.c.b16 %v673, %v671
        %v776 = vpack.c.b16 %v676, %v674
        %v777 = vpack.c.b16 %v677, %v675
        %v778 = vpack.c.b16 %v680, %v678
        %v779 = vpack.c.b16 %v681, %v679
        %v780 = vpack.c.b16 %v684, %v682
        %v781 = vpack.c.b16 %v685, %v683
        %v782 = vpack.c.b16 %v688, %v686
        %v783 = vpack.c.b16 %v689, %v687
        %v784 = vpack.c.b16 %v692, %v690
        %v785 = vpack.c.b16 %v693, %v691
        %v786 = vpack.c.b16 %v696, %v694
        %v787 = vpack.c.b16 %v697, %v695
        %v788 = vpack.c.b16 %v700, %v698
        %v789 = vpack.c.b16 %v701, %v699
        %v790 = vpack.c.b16 %v704, %v702
        %v791 = vpack.c.b16 %v705, %v703
        %v792 = vpack.c.b16 %v708, %v706
        %v793 = vpack.c.b16 %v709, %v707
        %v794 = vpack.c.b16 %v712, %v710
        %v795 = vpack.c.b16 %v713, %v711
        %v796 = vpack.c.b16 %v716, %v714
        %v797 = vpack.c.b16 %v717, %v715
        %878 = vmatprep.subr.bf16.mxu0 %v719
        %879 = vmatpush1.bf16.msra.mxu0 %v718
        %880 = vmatprep.subr.bf16.mxu0 %v721
        %881 = vmatpush1.bf16.msra.mxu0 %v720
        %882 = vmatprep.subr.bf16.mxu0 %v723
        %883 = vmatpush1.bf16.msra.mxu0 %v722
        %884 = vmatprep.subr.bf16.mxu0 %v725
        %885 = vmatpush1.bf16.msra.mxu0 %v724
        %886 = vmatprep.subr.bf16.mxu0 %v727
        %887 = vmatpush1.bf16.msra.mxu0 %v726
        %888 = vmatprep.subr.bf16.mxu0 %v729
        %889 = vmatpush1.bf16.msra.mxu0 %v728
        %890 = vmatprep.subr.bf16.mxu0 %v731
        %891 = vmatpush1.bf16.msra.mxu0 %v730
        %892 = vmatprep.subr.bf16.mxu0 %v733
        %893 = vmatpush1.bf16.msra.mxu0 %v732
        %894 = vmatprep.subr.bf16.mxu0 %v735
        %895 = vmatpush1.bf16.msra.mxu0 %v734
        %896 = vmatprep.subr.bf16.mxu0 %v737
        %897 = vmatpush1.bf16.msra.mxu0 %v736
        %898 = vmatprep.subr.bf16.mxu0 %v739
        %899 = vmatpush1.bf16.msra.mxu0 %v738
        %900 = vmatprep.subr.bf16.mxu0 %v741
        %901 = vmatpush1.bf16.msra.mxu0 %v740
        %902 = vmatprep.subr.bf16.mxu0 %v743
        %903 = vmatpush1.bf16.msra.mxu0 %v742
        %904 = vmatprep.subr.bf16.mxu0 %v745
        %905 = vmatpush1.bf16.msra.mxu0 %v744
        %906 = vmatprep.subr.bf16.mxu0 %v747
        %907 = vmatpush1.bf16.msra.mxu0 %v746
        %908 = vmatprep.subr.bf16.mxu0 %v749
        %909 = vmatpush1.bf16.msra.mxu0 %v748
        %910 = vmatprep.mubr.bf16.mxu0 %v459
        %911 = vmatmul.mubr.bf16.gmra.mrb[0].mxu0 %v458
        %v912 = vpop.f32.mrb[0].mxu0
        %v913 = vadd.f32 0.0, %v912
        %v914 = vpop.f32.mrb[0].mxu0
        %v915 = vadd.f32 0.0, %v914
        %v916 = vpop.f32.mrb[0].mxu0
        %v917 = vadd.f32 0.0, %v916
        %v918 = vpop.f32.mrb[0].mxu0
        %v919 = vadd.f32 0.0, %v918
        %920 = vmatprep.mubr.bf16.mxu0 %v464
        %921 = vmatmul.mubr.bf16.gmra.mrb[0].mxu0 %v463
        %v922 = vpop.f32.mrb[0].mxu0
        %v923 = vadd.f32 0.0, %v922
        %v924 = vpop.f32.mrb[0].mxu0
        %v925 = vadd.f32 0.0, %v924
        %v926 = vpop.f32.mrb[0].mxu0
        %v927 = vadd.f32 0.0, %v926
        %v928 = vpop.f32.mrb[0].mxu0
        %v929 = vadd.f32 0.0, %v928
        %930 = vdwg.mxu0
        %931 = vmatprep.subr.bf16.mxu0 %v751
        %932 = vmatpush1.bf16.msra.mxu0 %v750
        %933 = vmatprep.subr.bf16.mxu0 %v753
        %934 = vmatpush1.bf16.msra.mxu0 %v752
        %935 = vmatprep.subr.bf16.mxu0 %v755
        %936 = vmatpush1.bf16.msra.mxu0 %v754
        %937 = vmatprep.subr.bf16.mxu0 %v757
        %938 = vmatpush1.bf16.msra.mxu0 %v756
        %939 = vmatprep.subr.bf16.mxu0 %v759
        %940 = vmatpush1.bf16.msra.mxu0 %v758
        %941 = vmatprep.subr.bf16.mxu0 %v761
        %942 = vmatpush1.bf16.msra.mxu0 %v760
        %943 = vmatprep.subr.bf16.mxu0 %v763
        %944 = vmatpush1.bf16.msra.mxu0 %v762
        %945 = vmatprep.subr.bf16.mxu0 %v765
        %946 = vmatpush1.bf16.msra.mxu0 %v764
        %947 = vmatprep.subr.bf16.mxu0 %v767
        %948 = vmatpush1.bf16.msra.mxu0 %v766
        %949 = vmatprep.subr.bf16.mxu0 %v769
        %950 = vmatpush1.bf16.msra.mxu0 %v768
        %951 = vmatprep.subr.bf16.mxu0 %v771
        %952 = vmatpush1.bf16.msra.mxu0 %v770
        %953 = vmatprep.subr.bf16.mxu0 %v773
        %954 = vmatpush1.bf16.msra.mxu0 %v772
        %955 = vmatprep.subr.bf16.mxu0 %v775
        %956 = vmatpush1.bf16.msra.mxu0 %v774
        %957 = vmatprep.subr.bf16.mxu0 %v777
        %958 = vmatpush1.bf16.msra.mxu0 %v776
        %959 = vmatprep.subr.bf16.mxu0 %v779
        %960 = vmatpush1.bf16.msra.mxu0 %v778
        %961 = vmatprep.subr.bf16.mxu0 %v781
        %962 = vmatpush1.bf16.msra.mxu0 %v780
        %963 = vmatprep.mubr.bf16.mxu0 %v461
        %964 = vmatmul.mubr.bf16.gmra.mrb[0].mxu0 %v460
        %v965 = vpop.f32.mrb[0].mxu0
        %v966 = vadd.f32 %v913, %v965
        %v967 = vpop.f32.mrb[0].mxu0
        %v968 = vadd.f32 %v915, %v967
        %v969 = vpop.f32.mrb[0].mxu0
        %v970 = vadd.f32 %v917, %v969
        %v971 = vpop.f32.mrb[0].mxu0
        %v972 = vadd.f32 %v919, %v971
        %973 = vmatprep.mubr.bf16.mxu0 %v466
        %974 = vmatmul.mubr.bf16.gmra.mrb[0].mxu0 %v465
        %v975 = vpop.f32.mrb[0].mxu0
        %v976 = vadd.f32 %v923, %v975
        %v977 = vpop.f32.mrb[0].mxu0
        %v978 = vadd.f32 %v925, %v977
        %v979 = vpop.f32.mrb[0].mxu0
        %v980 = vadd.f32 %v927, %v979
        %v981 = vpop.f32.mrb[0].mxu0
        %v982 = vadd.f32 %v929, %v981
        %983 = vdwg.mxu0
        %984 = vmatprep.subr.bf16.mxu0 %v783
        %985 = vmatpush1.bf16.msra.mxu0 %v782
        %986 = vmatprep.subr.bf16.mxu0 %v785
        %987 = vmatpush1.bf16.msra.mxu0 %v784
        %988 = vmatprep.subr.bf16.mxu0 %v787
        %989 = vmatpush1.bf16.msra.mxu0 %v786
        %990 = vmatprep.subr.bf16.mxu0 %v789
        %991 = vmatpush1.bf16.msra.mxu0 %v788
        %992 = vmatprep.subr.bf16.mxu0 %v791
        %993 = vmatpush1.bf16.msra.mxu0 %v790
        %994 = vmatprep.subr.bf16.mxu0 %v793
        %995 = vmatpush1.bf16.msra.mxu0 %v792
        %996 = vmatprep.subr.bf16.mxu0 %v795
        %997 = vmatpush1.bf16.msra.mxu0 %v794
        %998 = vmatprep.subr.bf16.mxu0 %v797
        %999 = vmatpush1.bf16.msra.mxu0 %v796
        %1000 = vmatprep.subr.bf16.mxu0 0
        %1001 = vmatpush1.bf16.msra.mxu0 0
        %1002 = vmatprep.subr.bf16.mxu0 0
        %1003 = vmatpush1.bf16.msra.mxu0 0
        %1004 = vmatprep.subr.bf16.mxu0 0
        %1005 = vmatpush1.bf16.msra.mxu0 0
        %1006 = vmatprep.subr.bf16.mxu0 0
        %1007 = vmatpush1.bf16.msra.mxu0 0
        %1008 = vmatprep.subr.bf16.mxu0 0
        %1009 = vmatpush1.bf16.msra.mxu0 0
        %1010 = vmatprep.subr.bf16.mxu0 0
        %1011 = vmatpush1.bf16.msra.mxu0 0
        %1012 = vmatprep.subr.bf16.mxu0 0
        %1013 = vmatpush1.bf16.msra.mxu0 0
        %1014 = vmatprep.subr.bf16.mxu0 0
        %1015 = vmatpush1.bf16.msra.mxu0 0
        %1016 = vmatprep.mubr.bf16.mxu0 0
        %1017 = vmatmul.mubr.bf16.gmra.mrb[0].mxu0 %v462
        %v1018 = vpop.f32.mrb[0].mxu0
        %v1019 = vadd.f32 %v966, %v1018
        %v1020 = vpop.f32.mrb[0].mxu0
        %v1021 = vadd.f32 %v968, %v1020
        %v1022 = vpop.f32.mrb[0].mxu0
        %v1023 = vadd.f32 %v970, %v1022
        %v1024 = vpop.f32.mrb[0].mxu0
        %v1025 = vadd.f32 %v972, %v1024
        %1026 = vmatprep.mubr.bf16.mxu0 0
        %1027 = vmatmul.mubr.bf16.gmra.mrb[0].mxu0 %v467
        %v1028 = vpop.f32.mrb[0].mxu0
        %v1029 = vadd.f32 %v976, %v1028
        %v1030 = vpop.f32.mrb[0].mxu0
        %v1031 = vadd.f32 %v978, %v1030
        %v1032 = vpop.f32.mrb[0].mxu0
        %v1033 = vadd.f32 %v980, %v1032
        %v1034 = vpop.f32.mrb[0].mxu0
        %v1035 = vadd.f32 %v982, %v1034
        %1036 = vdwg.mxu0
        %v1037 = vadd.f32 %v326, %v1019
        %v1038 = vadd.f32 %v327, %v1021
        %v1039 = vadd.f32 %v328, %v1023
        %v1040 = vadd.f32 %v329, %v1025
        %v1041 = vadd.f32 %v330, %v1029
        %v1042 = vadd.f32 %v331, %v1031
        %v1043 = vadd.f32 %v332, %v1033
        %v1044 = vadd.f32 %v333, %v1035
        %1045 = vst [vmem:[#allocation2] sm:$0xff] %v1037
        %1046 = vst [vmem:[#allocation2 + $0x8] sm:$0xff] %v1038
        %1047 = vst [vmem:[#allocation2 + $0x10] sm:$0xff] %v1039
        %1048 = vst [vmem:[#allocation2 + $0x18] sm:$0xff] %v1040
        %1049 = vst [vmem:[#allocation2 + $0x20] sm:$0xff] %v1041
        %1050 = vst [vmem:[#allocation2 + $0x28] sm:$0xff] %v1042
        %1051 = vst [vmem:[#allocation2 + $0x30] sm:$0xff] %v1043
        %1052 = vst [vmem:[#allocation2 + $0x38] sm:$0xff] %v1044
        // Predicated region
        $region45: #{discriminator_p.5} parent=31 // pred_check
          %p1053 = pneg %p314
        $region46: #{discriminator_p.5} parent=31 // pred_check_branch
          %1055 = sbr.rel (%p1053) target = $region48
        $region47: #{discriminator_p.5} parent=31 // pred_region
          %v1056 = vld [vmem:[#allocation2] sm:$0xff]
          %v1057 = vld [vmem:[#allocation2 + $0x8] sm:$0xff]
          %v1058 = vld [vmem:[#allocation2 + $0x10] sm:$0xff]
          %v1059 = vld [vmem:[#allocation2 + $0x18] sm:$0xff]
          %v1060 = vld [vmem:[#allocation2 + $0x20] sm:$0xff]
          %v1061 = vld [vmem:[#allocation2 + $0x28] sm:$0xff]
          %v1062 = vld [vmem:[#allocation2 + $0x30] sm:$0xff]
          %v1063 = vld [vmem:[#allocation2 + $0x38] sm:$0xff]
          %v1064 = vld [vmem:[%s247] sm:$0x3]
          %v1066 = vlaneseq
          %v1067 = vshrl.u32 %v1066, 7
          %v1068 = vsub.s32 0, %v1067
          %v1069 = vrot.slane %v1064, %v1068
          %v1070 = vlaneseq
          %v1071 = vshrl.u32 %v1070, 7
          %v1072 = vsub.s32 1, %v1071
          %v1073 = vrot.slane %v1064, %v1072
          %v1076 = vadd.f32 %v1056, %v1069
          %v1077 = vadd.f32 %v1057, %v1073
          %v1078 = vadd.f32 %v1058, %v1069
          %v1079 = vadd.f32 %v1059, %v1073
          %v1080 = vadd.f32 %v1060, %v1069
          %v1081 = vadd.f32 %v1061, %v1073
          %v1082 = vadd.f32 %v1062, %v1069
          %v1083 = vadd.f32 %v1063, %v1073
          %v1084 = vmul.f32 %v1076, 0.1
          %v1085 = vmul.f32 %v1077, 0.1
          %v1086 = vmul.f32 %v1078, 0.1
          %v1087 = vmul.f32 %v1079, 0.1
          %v1088 = vmul.f32 %v1080, 0.1
          %v1089 = vmul.f32 %v1081, 0.1
          %v1090 = vmul.f32 %v1082, 0.1
          %v1091 = vmul.f32 %v1083, 0.1
          %v1092 = vmax.f32 %v1076, %v1084
          %v1093 = vmax.f32 %v1077, %v1085
          %v1094 = vmax.f32 %v1078, %v1086
          %v1095 = vmax.f32 %v1079, %v1087
          %v1096 = vmax.f32 %v1080, %v1088
          %v1097 = vmax.f32 %v1081, %v1089
          %v1098 = vmax.f32 %v1082, %v1090
          %v1099 = vmax.f32 %v1083, %v1091
          %v1100 = vpack.c.bf16 %v1094, %v1092
          %v1101 = vpack.c.bf16 %v1095, %v1093
          %v1102 = vpack.c.bf16 %v1098, %v1096
          %v1103 = vpack.c.bf16 %v1099, %v1097
          %v1108 = vunpack.c.l.b16 %v1100
          %v1109 = vunpack.c.l.b16 %v1101
          %v1110 = vunpack.c.h.b16 %v1100
          %v1111 = vunpack.c.h.b16 %v1101
          %v1112 = vunpack.c.l.b16 %v1102
          %v1113 = vunpack.c.l.b16 %v1103
          %v1114 = vunpack.c.h.b16 %v1102
          %v1115 = vunpack.c.h.b16 %v1103
          %v1116 = vpack.c.b16 %v1109, %v1108
          %v1117 = vpack.c.b16 %v1111, %v1110
          %v1118 = vpack.c.b16 %v1113, %v1112
          %v1119 = vpack.c.b16 %v1115, %v1114
          %1124 = vst [vmem:[%s286] sm:$0xff] %v1116
          %1125 = vst [vmem:[%s286 + $0x8] sm:$0xff] %v1117
          %1126 = vst [vmem:[%s286 + $0x10] sm:$0xff] %v1118
          %1127 = vst [vmem:[%s286 + $0x18] sm:$0xff] %v1119
        $region48: #{discriminator_p.5} parent=31 // pred_fallthru
          _
        %s1128 = sand.u32 %s131, 1
        %s1129 = sand.u32 %s131, 1
        %s1130 = smul.addr %s1129, 32
        %s1131 = scalar_lea.vmem [#allocation7], %s1130
        // Predicated region
        $region49: #{discriminator_p.5} parent=31 // pred_check
          %p1132 = pneg %p141
        $region50: #{discriminator_p.5} parent=31 // pred_check_branch
          %1134 = sbr.rel (%p1132) target = $region52
        $region51: #{discriminator_p.5} parent=31 // pred_region
          %s1135 = smul.u32 4, %s25
          %s1136 = smul.u32 2, %s26
          %s1137 = ssub.s32 3, %s1135
          %s1138 = smul.u32 64, %s1137
          %s1139 = smul.u32 %s1138, 2
          %p1140 = scmp.ne.s32.totalorder 0, %s1139
          %s1141 = smul.addr %s1135, 4
          %s1142 = sadd.s32 %s1136, %s1141
          %s1143 = smul.addr %s1142, 4
          %s1144 = scalar_lea.vmem %s3, %s1143
          // Predicated region
          $region53: #{discriminator_p.5} parent=51 // pred_check
            %p1145 = pneg %p1140
          $region54: #{discriminator_p.5} parent=51 // pred_check_branch
            %1147 = sbr.rel (%p1145) target = $region56
          $region55: #{discriminator_p.5} parent=51 // pred_region
            // Predicated region
            $region57: #{discriminator_p.5} parent=55 // pred_check
              _
            $region58: #{discriminator_p.5} parent=55 // pred_check_branch
              %1149 = sbr.rel (0) target = $region60
            $region59: #{discriminator_p.5} parent=55 // pred_region
              // Predicated region
              $region79: #{discriminator_p.5} parent=59 // pred_check
                _
              $region80: #{discriminator_p.5} parent=59 // pred_check_branch
                %1203 = sbr.rel (0) target = $region82
              $region81: #{discriminator_p.5} parent=59 // pred_region
                %s1204 = sdiv.u32.pop %s1137, 3
                %s1205 = srem.u32.pop %s1137, 3
                // While loop
                $region83: #{discriminator_p.5} parent=81 // loop_pre_header
                  _
                $region84: #{discriminator_p.5} parent=81 // loop_header
                  %s1207 = sphi 0, %s1209
                  %p1208 = scmp.ge.s32.totalorder %s1207, %s1204
                  %s1212 = sphi 0, %s1223
                  %s1213 = sphi %s1131, %s1226
                  %s1214 = sphi %s1144, %s1227
                $region85: #{discriminator_p.5} parent=81 // loop_header_branch
                  %1211 = sbr.rel (%p1208) target = $region89
                $region86: #{discriminator_p.5} parent=81 // loop_body
                  %v1215 = vld [vmem:[%s1213] sm:$0xff]
                  %1216 = vst [vmem:[%s1214] sm:$0xff] %v1215
                  %v1217 = vld [vmem:[%s1213 + $0x8] sm:$0xff]
                  %1218 = vst [vmem:[%s1214 + $0x10] sm:$0xff] %v1217
                  %v1219 = vld [vmem:[%s1213 + $0x10] sm:$0xff]
                  %1220 = vst [vmem:[%s1214 + $0x20] sm:$0xff] %v1219
                  %s1221 = sadd.s32 1, %s1212
                  %p1222 = scmp.ge.s32.totalorder %s1221, %s1204
                  %s1223 = scalar_select %p1222, 0, %s1221
                  %s1224 = smul.u32 %s1223, 24
                  %s1225 = smul.u32 %s1223, 48
                  %s1226 = scalar_lea.vmem %s1131, %s1224 [#allocation7]
                  %s1227 = scalar_lea.vmem %s1144, %s1225
                $region87: #{discriminator_p.5} parent=81 // loop_footer
                  %s1209 = sadd.s32 %s1207, 1
                $region88: #{discriminator_p.5} parent=81 // loop_footer_branch
                  %1206 = sbr.rel target = $region84
                $region89: #{discriminator_p.5} parent=81 // loop_exit
                  _
                %s1228 = sdiv.u32.pop %s1137, 3
                %s1229 = srem.u32.pop %s1137, 3
                %s1230 = smul.u32 %s1228, 3
                %s1231 = smul.u32 8, %s1230
                %s1232 = scalar_lea.vmem %s1131, %s1231 [#allocation7]
                %s1233 = smul.u32 16, %s1230
                %s1234 = scalar_lea.vmem %s1144, %s1233
                // While loop
                $region90: #{discriminator_p.5} parent=81 // loop_pre_header
                  _
                $region91: #{discriminator_p.5} parent=81 // loop_header
                  %s1236 = sphi 0, %s1238
                  %p1237 = scmp.ge.s32.totalorder %s1236, %s1229
                  %s1241 = sphi 0, %s1248
                  %s1242 = sphi %s1232, %s1251
                  %s1243 = sphi %s1234, %s1252
                $region92: #{discriminator_p.5} parent=81 // loop_header_branch
                  %1240 = sbr.rel (%p1237) target = $region96
                $region93: #{discriminator_p.5} parent=81 // loop_body
                  %v1244 = vld [vmem:[%s1242] sm:$0xff]
                  %1245 = vst [vmem:[%s1243] sm:$0xff] %v1244
                  %s1246 = sadd.s32 1, %s1241
                  %p1247 = scmp.ge.s32.totalorder %s1246, %s1229
                  %s1248 = scalar_select %p1247, 0, %s1246
                  %s1249 = smul.u32 %s1248, 8
                  %s1250 = smul.u32 %s1248, 16
                  %s1251 = scalar_lea.vmem %s1232, %s1249 [#allocation7]
                  %s1252 = scalar_lea.vmem %s1234, %s1250
                $region94: #{discriminator_p.5} parent=81 // loop_footer
                  %s1238 = sadd.s32 %s1236, 1
                $region95: #{discriminator_p.5} parent=81 // loop_footer_branch
                  %1235 = sbr.rel target = $region91
                $region96: #{discriminator_p.5} parent=81 // loop_exit
                  _
              $region82: #{discriminator_p.5} parent=59 // pred_fallthru
                _
              // Predicated region
              $region97: #{discriminator_p.5} parent=59 // pred_check
                _
              $region98: #{discriminator_p.5} parent=59 // pred_check_branch
                %1254 = sbr.rel target = $region100
              $region99: #{discriminator_p.5} parent=59 // pred_region
                _
              $region100: #{discriminator_p.5} parent=59 // pred_fallthru
                _
            $region60: #{discriminator_p.5} parent=55 // pred_fallthru
              _
            // Predicated region
            $region61: #{discriminator_p.5} parent=55 // pred_check
              _
            $region62: #{discriminator_p.5} parent=55 // pred_check_branch
              %1151 = sbr.rel target = $region64
            $region63: #{discriminator_p.5} parent=55 // pred_region
              %s1153 = sdiv.u32.pop %s1137, 3
              %s1154 = srem.u32.pop %s1137, 3
              // While loop
              $region65: #{discriminator_p.5} parent=63 // loop_pre_header
                _
              $region66: #{discriminator_p.5} parent=63 // loop_header
                %s1156 = sphi 0, %s1158
                %p1157 = scmp.ge.s32.totalorder %s1156, %s1153
                %s1161 = sphi 0, %s1172
                %s1162 = sphi %s1131, %s1175
                %s1163 = sphi %s1144, %s1176
              $region67: #{discriminator_p.5} parent=63 // loop_header_branch
                %1160 = sbr.rel (%p1157) target = $region71
              $region68: #{discriminator_p.5} parent=63 // loop_body
                %v1164 = vld [vmem:[%s1162] sm:$0xff]
                %1165 = vst [vmem:[%s1163] sm:$0xff] %v1164
                %v1166 = vld [vmem:[%s1162 + $0x8] sm:$0xff]
                %1167 = vst [vmem:[%s1163 + $0x10] sm:$0xff] %v1166
                %v1168 = vld [vmem:[%s1162 + $0x10] sm:$0xff]
                %1169 = vst [vmem:[%s1163 + $0x20] sm:$0xff] %v1168
                %s1170 = sadd.s32 1, %s1161
                %p1171 = scmp.ge.s32.totalorder %s1170, %s1153
                %s1172 = scalar_select %p1171, 0, %s1170
                %s1173 = smul.u32 %s1172, 24
                %s1174 = smul.u32 %s1172, 48
                %s1175 = scalar_lea.vmem %s1131, %s1173 [#allocation7]
                %s1176 = scalar_lea.vmem %s1144, %s1174
              $region69: #{discriminator_p.5} parent=63 // loop_footer
                %s1158 = sadd.s32 %s1156, 1
              $region70: #{discriminator_p.5} parent=63 // loop_footer_branch
                %1155 = sbr.rel target = $region66
              $region71: #{discriminator_p.5} parent=63 // loop_exit
                _
              %s1177 = sdiv.u32.pop %s1137, 3
              %s1178 = srem.u32.pop %s1137, 3
              %s1179 = smul.u32 %s1177, 3
              %s1180 = smul.u32 8, %s1179
              %s1181 = scalar_lea.vmem %s1131, %s1180 [#allocation7]
              %s1182 = smul.u32 16, %s1179
              %s1183 = scalar_lea.vmem %s1144, %s1182
              // While loop
              $region72: #{discriminator_p.5} parent=63 // loop_pre_header
                _
              $region73: #{discriminator_p.5} parent=63 // loop_header
                %s1185 = sphi 0, %s1187
                %p1186 = scmp.ge.s32.totalorder %s1185, %s1178
                %s1190 = sphi 0, %s1197
                %s1191 = sphi %s1181, %s1200
                %s1192 = sphi %s1183, %s1201
              $region74: #{discriminator_p.5} parent=63 // loop_header_branch
                %1189 = sbr.rel (%p1186) target = $region78
              $region75: #{discriminator_p.5} parent=63 // loop_body
                %v1193 = vld [vmem:[%s1191] sm:$0xff]
                %1194 = vst [vmem:[%s1192] sm:$0xff] %v1193
                %s1195 = sadd.s32 1, %s1190
                %p1196 = scmp.ge.s32.totalorder %s1195, %s1178
                %s1197 = scalar_select %p1196, 0, %s1195
                %s1198 = smul.u32 %s1197, 8
                %s1199 = smul.u32 %s1197, 16
                %s1200 = scalar_lea.vmem %s1181, %s1198 [#allocation7]
                %s1201 = scalar_lea.vmem %s1183, %s1199
              $region76: #{discriminator_p.5} parent=63 // loop_footer
                %s1187 = sadd.s32 %s1185, 1
              $region77: #{discriminator_p.5} parent=63 // loop_footer_branch
                %1184 = sbr.rel target = $region73
              $region78: #{discriminator_p.5} parent=63 // loop_exit
                _
            $region64: #{discriminator_p.5} parent=55 // pred_fallthru
              _
          $region56: #{discriminator_p.5} parent=51 // pred_fallthru
            _
          %1255 = vnop
        $region52: #{discriminator_p.5} parent=31 // pred_fallthru
          _
      $region32: #{discriminator_p.5} parent=5 // pred_fallthru
        _
      %p1256 = scmp.le.s32.totalorder 2, %s15
      // Predicated region
      $region101: #{discriminator_p.5} parent=5 // pred_check
        %p1257 = pneg %p1256
      $region102: #{discriminator_p.5} parent=5 // pred_check_branch
        %1259 = sbr.rel (%p1257) target = $region104
      $region103: #{discriminator_p.5} parent=5 // pred_region
        %s1260 = ssub.s32 %s15, 2
        // Predicated region
        $region105: #{discriminator_p.5} parent=103 // pred_check
          %p1261 = pneg %p147
        $region106: #{discriminator_p.5} parent=103 // pred_check_branch
          %1263 = sbr.rel (%p1261) target = $region108
        $region107: #{discriminator_p.5} parent=103 // pred_region
          %s1264 = sand.u32 %s132, 1
          %s1265 = sand.u32 %s132, 1
          %s1266 = smul.addr %s1265, 32
          %s1267 = scalar_lea.vmem [#allocation7], %s1266
        $region108: #{discriminator_p.5} parent=103 // pred_fallthru
          _
      $region104: #{discriminator_p.5} parent=5 // pred_fallthru
        _
    $region6: #{discriminator_p.5} parent=1 // loop_footer
      %s19 = sadd.s32 1, %s15
    $region7: #{discriminator_p.5} parent=1 // loop_footer_branch
      %14 = sbr.rel target = $region3
    $region8: #{discriminator_p.5} parent=1 // loop_exit
      _
    %1268 = vsyncpa [#allocation4], 1
    %s1269 = scalar_lea.sflag [#allocation4], 1
    %1270 = vsyncpa %s1269, 1
    %1271 = vsyncpa [#allocation6], 1
    %s1272 = scalar_lea.sflag [#allocation6], 1
    %1273 = vsyncpa %s1272, 1

// kernel: discriminator_p.4
$region0: #{discriminator_p.4}
  #allocation0 [shape = 'u32[]', space=smem, size = 0x4, offset = 0x4, fixed_abs, tag = 'smem constant byte address 0x4 - core index']
  #allocation1 [shape = 'u32[144,128]{1,0:T(1,128)}', space=vmem, size = 0x12000, scoped, tag = 'internal scratch']
  #allocation2 [shape = 'f32[48,128]{1,0:T(8,128)}', space=vmem, size = 0x6000, scoped, tag = 'scratch operand']
  %s0 = inlined_call_operand.vmem [shape: bf16[48,256], index: 0, kind: input, shape index: {}]
  %s1 = inlined_call_operand.hbm [shape: bf16[256,128], index: 1, kind: input, shape index: {}]
  %s2 = inlined_call_operand.hbm [shape: f32[1,128], index: 2, kind: input, shape index: {}]
  %s3 = inlined_call_operand.vmem [shape: bf16[48,128], index: 3, kind: output, shape index: {}]
  %s4 = sld [smem:[#allocation0]]
  $region38: #{discriminator_p.4} parent=0
    _
  %s6 = ssub.s32 1, %s4
  %s7 = scalar_select 0, %s6, %s4
  $region1: #{discriminator_p.4} parent=0
    #allocation3 [shape = 'u8[65536]{0}', space=vmem, size = 0x10000, scoped, tag = 'input window, operand 1, single buffered']
    #allocation4 [shape = 's32[1]{0}', space=sflag, size = 0x4, scoped, tag = 'scoped memory for discriminator_p.4']
    #allocation5 [shape = 'u8[512]{0}', space=vmem, size = 0x400, scoped, tag = 'input window, operand 2, single buffered']
    #allocation6 [shape = 's32[1]{0}', space=sflag, size = 0x4, scoped, tag = 'scoped memory for discriminator_p.4']
    %8 = vsyncpa [#allocation4], 0
    %9 = vsyncpa [#allocation6], 0
    // Predicated region
    $region2: #{discriminator_p.4} parent=1 // pred_check
      _
    $region3: #{discriminator_p.4} parent=1 // pred_check_branch
      %11 = sbr.rel (0) target = $region5
    $region4: #{discriminator_p.4} parent=1 // pred_region
      _
    $region5: #{discriminator_p.4} parent=1 // pred_fallthru
      _
    // Predicated region
    $region6: #{discriminator_p.4} parent=1 // pred_check
      _
    $region7: #{discriminator_p.4} parent=1 // pred_check_branch
      %13 = sbr.rel (0) target = $region9
    $region8: #{discriminator_p.4} parent=1 // pred_region
      %s15 = ssub.s32 2048, 2048
      %16 = vsyncadd [#allocation4], %s15
      %s17 = sshll.u32 [#allocation3], 4
      %s18 = int_to_ptr.vmem [resolvable:$true] %s17
      %23 = dma.hbm_to_vmem [thread:$0]  %s1, 2048, %s18, [#allocation4], 64, 64, 4
    $region9: #{discriminator_p.4} parent=1 // pred_fallthru
      _
    // Predicated region
    $region10: #{discriminator_p.4} parent=1 // pred_check
      _
    $region11: #{discriminator_p.4} parent=1 // pred_check_branch
      %25 = sbr.rel (0) target = $region13
    $region12: #{discriminator_p.4} parent=1 // pred_region
      %s27 = ssub.s32 16, 16
      %28 = vsyncadd [#allocation6], %s27
      %s30 = sshll.u32 [#allocation5], 4
      %s31 = int_to_ptr.vmem [resolvable:$true] %s30
      %33 = dma.hbm_to_vmem [thread:$0]  %s2, 16, %s31, [#allocation6]
    $region13: #{discriminator_p.4} parent=1 // pred_fallthru
      _
    // Predicated region
    $region14: #{discriminator_p.4} parent=1 // pred_check
      _
    $region15: #{discriminator_p.4} parent=1 // pred_check_branch
      %35 = sbr.rel (0) target = $region17
    $region16: #{discriminator_p.4} parent=1 // pred_region
      %36 = dma.done [#allocation4], 2048
    $region17: #{discriminator_p.4} parent=1 // pred_fallthru
      _
    // Predicated region
    $region18: #{discriminator_p.4} parent=1 // pred_check
      _
    $region19: #{discriminator_p.4} parent=1 // pred_check_branch
      %38 = sbr.rel (0) target = $region21
    $region20: #{discriminator_p.4} parent=1 // pred_region
      %39 = dma.done [#allocation6], 16
    $region21: #{discriminator_p.4} parent=1 // pred_fallthru
      _
    %p41 = scmp.eq.s32.totalorder 0, 0
    // Predicated region
    $region22: #{discriminator_p.4} parent=1 // pred_check
      %p42 = pneg %p41
    $region23: #{discriminator_p.4} parent=1 // pred_check_branch
      %44 = sbr.rel (%p42) target = $region25
    $region24: #{discriminator_p.4} parent=1 // pred_region
      %45 = vst [vmem:[#allocation2] sm:$0xff] 0.0
      %46 = vst [vmem:[#allocation2 + $0x8] sm:$0xff] 0.0
      %47 = vst [vmem:[#allocation2 + $0x10] sm:$0xff] 0.0
      %48 = vst [vmem:[#allocation2 + $0x18] sm:$0xff] 0.0
      %49 = vst [vmem:[#allocation2 + $0x20] sm:$0xff] 0.0
      %50 = vst [vmem:[#allocation2 + $0x28] sm:$0xff] 0.0
    $region25: #{discriminator_p.4} parent=1 // pred_fallthru
      _
    %v51 = vld [vmem:[#allocation2] sm:$0xff]
    %v52 = vld [vmem:[#allocation2 + $0x8] sm:$0xff]
    %v53 = vld [vmem:[#allocation2 + $0x10] sm:$0xff]
    %v54 = vld [vmem:[#allocation2 + $0x18] sm:$0xff]
    %v55 = vld [vmem:[#allocation2 + $0x20] sm:$0xff]
    %v56 = vld [vmem:[#allocation2 + $0x28] sm:$0xff]
    %v57 = vld [vmem:[%s0] sm:$0xff]
    %v58 = vld [vmem:[%s0 + $0x8] sm:$0xff]
    %v59 = vld [vmem:[%s0 + $0x10] sm:$0xff]
    %v60 = vld [vmem:[%s0 + $0x18] sm:$0xff]
    %v61 = vld [vmem:[%s0 + $0x20] sm:$0xff]
    %v62 = vld [vmem:[%s0 + $0x28] sm:$0xff]
    %v63 = vld [vmem:[#allocation3] sm:$0xf]
    %v64 = vld [vmem:[#allocation3 + $0x4] sm:$0xf]
    %v65 = vld [vmem:[#allocation3 + $0x8] sm:$0xf]
    %v66 = vld [vmem:[#allocation3 + $0xc] sm:$0xf]
    %v67 = vld [vmem:[#allocation3 + $0x10] sm:$0xf]
    %v68 = vld [vmem:[#allocation3 + $0x14] sm:$0xf]
    %v69 = vld [vmem:[#allocation3 + $0x18] sm:$0xf]
    %v70 = vld [vmem:[#allocation3 + $0x1c] sm:$0xf]
    %v71 = vld [vmem:[#allocation3 + $0x20] sm:$0xf]
    %v72 = vld [vmem:[#allocation3 + $0x24] sm:$0xf]
    %v73 = vld [vmem:[#allocation3 + $0x28] sm:$0xf]
    %v74 = vld [vmem:[#allocation3 + $0x2c] sm:$0xf]
    %v75 = vld [vmem:[#allocation3 + $0x30] sm:$0xf]
    %v76 = vld [vmem:[#allocation3 + $0x34] sm:$0xf]
    %v77 = vld [vmem:[#allocation3 + $0x38] sm:$0xf]
    %v78 = vld [vmem:[#allocation3 + $0x3c] sm:$0xf]
    %v79 = vld [vmem:[#allocation3 + $0x40] sm:$0xf]
    %v80 = vld [vmem:[#allocation3 + $0x44] sm:$0xf]
    %v81 = vld [vmem:[#allocation3 + $0x48] sm:$0xf]
    %v82 = vld [vmem:[#allocation3 + $0x4c] sm:$0xf]
    %v83 = vld [vmem:[#allocation3 + $0x50] sm:$0xf]
    %v84 = vld [vmem:[#allocation3 + $0x54] sm:$0xf]
    %v85 = vld [vmem:[#allocation3 + $0x58] sm:$0xf]
    %v86 = vld [vmem:[#allocation3 + $0x5c] sm:$0xf]
    %v87 = vld [vmem:[#allocation3 + $0x60] sm:$0xf]
    %v88 = vld [vmem:[#allocation3 + $0x64] sm:$0xf]
    %v89 = vld [vmem:[#allocation3 + $0x68] sm:$0xf]
    %v90 = vld [vmem:[#allocation3 + $0x6c] sm:$0xf]
    %v91 = vld [vmem:[#allocation3 + $0x70] sm:$0xf]
    %v92 = vld [vmem:[#allocation3 + $0x74] sm:$0xf]
    %v93 = vld [vmem:[#allocation3 + $0x78] sm:$0xf]
    %v94 = vld [vmem:[#allocation3 + $0x7c] sm:$0xf]
    %v101 = vunpack.c.l.b16 %v57
    %v102 = vunpack.c.h.b16 %v57
    %v103 = vunpack.c.l.b16 %v58
    %v104 = vunpack.c.h.b16 %v58
    %v105 = vunpack.c.l.b16 %v59
    %v106 = vunpack.c.h.b16 %v59
    %v107 = vunpack.c.l.b16 %v60
    %v108 = vunpack.c.h.b16 %v60
    %v109 = vunpack.c.l.b16 %v61
    %v110 = vunpack.c.h.b16 %v61
    %v111 = vunpack.c.l.b16 %v62
    %v112 = vunpack.c.h.b16 %v62
    %v113 = vpack.c.b16 %v103, %v101
    %v114 = vpack.c.b16 %v104, %v102
    %v115 = vpack.c.b16 %v107, %v105
    %v116 = vpack.c.b16 %v108, %v106
    %v117 = vpack.c.b16 %v111, %v109
    %v118 = vpack.c.b16 %v112, %v110
    %v157 = vunpack.c.l.b16 %v63
    %v158 = vunpack.c.l.b16 %v64
    %v159 = vunpack.c.l.b16 %v65
    %v160 = vunpack.c.l.b16 %v66
    %v161 = vunpack.c.l.b16 %v67
    %v162 = vunpack.c.l.b16 %v68
    %v163 = vunpack.c.l.b16 %v69
    %v164 = vunpack.c.l.b16 %v70
    %v165 = vunpack.c.l.b16 %v71
    %v166 = vunpack.c.l.b16 %v72
    %v167 = vunpack.c.l.b16 %v73
    %v168 = vunpack.c.l.b16 %v74
    %v169 = vunpack.c.l.b16 %v75
    %v170 = vunpack.c.l.b16 %v76
    %v171 = vunpack.c.l.b16 %v77
    %v172 = vunpack.c.l.b16 %v78
    %v173 = vunpack.c.l.b16 %v79
    %v174 = vunpack.c.l.b16 %v80
    %v175 = vunpack.c.l.b16 %v81
    %v176 = vunpack.c.l.b16 %v82
    %v177 = vunpack.c.l.b16 %v83
    %v178 = vunpack.c.l.b16 %v84
    %v179 = vunpack.c.l.b16 %v85
    %v180 = vunpack.c.l.b16 %v86
    %v181 = vunpack.c.l.b16 %v87
    %v182 = vunpack.c.l.b16 %v88
    %v183 = vunpack.c.l.b16 %v89
    %v184 = vunpack.c.l.b16 %v90
    %v185 = vunpack.c.l.b16 %v91
    %v186 = vunpack.c.l.b16 %v92
    %v187 = vunpack.c.l.b16 %v93
    %v188 = vunpack.c.l.b16 %v94
    %v189 = vpack.c.b16 %v158, %v157
    %v190 = vpack.c.b16 %v160, %v159
    %v191 = vpack.c.b16 %v162, %v161
    %v192 = vpack.c.b16 %v164, %v163
    %v193 = vpack.c.b16 %v166, %v165
    %v194 = vpack.c.b16 %v168, %v167
    %v195 = vpack.c.b16 %v170, %v169
    %v196 = vpack.c.b16 %v172, %v171
    %v197 = vpack.c.b16 %v174, %v173
    %v198 = vpack.c.b16 %v176, %v175
    %v199 = vpack.c.b16 %v178, %v177
    %v200 = vpack.c.b16 %v180, %v179
    %v201 = vpack.c.b16 %v182, %v181
    %v202 = vpack.c.b16 %v184, %v183
    %v203 = vpack.c.b16 %v186, %v185
    %v204 = vpack.c.b16 %v188, %v187
    %221 = vmatprep.subr.bf16.mxu0 0
    %222 = vmatpush1.bf16.msra.mxu0 %v189
    %223 = vmatprep.subr.bf16.mxu0 0
    %224 = vmatpush1.bf16.msra.mxu0 %v190
    %225 = vmatprep.subr.bf16.mxu0 0
    %226 = vmatpush1.bf16.msra.mxu0 %v191
    %227 = vmatprep.subr.bf16.mxu0 0
    %228 = vmatpush1.bf16.msra.mxu0 %v192
    %229 = vmatprep.subr.bf16.mxu0 0
    %230 = vmatpush1.bf16.msra.mxu0 %v193
    %231 = vmatprep.subr.bf16.mxu0 0
    %232 = vmatpush1.bf16.msra.mxu0 %v194
    %233 = vmatprep.subr.bf16.mxu0 0
    %234 = vmatpush1.bf16.msra.mxu0 %v195
    %235 = vmatprep.subr.bf16.mxu0 0
    %236 = vmatpush1.bf16.msra.mxu0 %v196
    %237 = vmatprep.subr.bf16.mxu0 0
    %238 = vmatpush1.bf16.msra.mxu0 %v197
    %239 = vmatprep.subr.bf16.mxu0 0
    %240 = vmatpush1.bf16.msra.mxu0 %v198
    %241 = vmatprep.subr.bf16.mxu0 0
    %242 = vmatpush1.bf16.msra.mxu0 %v199
    %243 = vmatprep.subr.bf16.mxu0 0
    %244 = vmatpush1.bf16.msra.mxu0 %v200
    %245 = vmatprep.subr.bf16.mxu0 0
    %246 = vmatpush1.bf16.msra.mxu0 %v201
    %247 = vmatprep.subr.bf16.mxu0 0
    %248 = vmatpush1.bf16.msra.mxu0 %v202
    %249 = vmatprep.subr.bf16.mxu0 0
    %250 = vmatpush1.bf16.msra.mxu0 %v203
    %251 = vmatprep.subr.bf16.mxu0 0
    %252 = vmatpush1.bf16.msra.mxu0 %v204
    %253 = vmatprep.mubr.bf16.mxu0 %v114
    %254 = vmatmul.mubr.bf16.gmra.mrb[0].mxu0 %v113
    %v255 = vpop.f32.mrb[0].mxu0
    %v256 = vadd.f32 0.0, %v255
    %v257 = vpop.f32.mrb[0].mxu0
    %v258 = vpop.f32.mrb[0].mxu0
    %v259 = vadd.f32 0.0, %v258
    %v260 = vpop.f32.mrb[0].mxu0
    %261 = vmatprep.mubr.bf16.mxu0 %v116
    %262 = vmatmul.mubr.bf16.gmra.mrb[0].mxu0 %v115
    %v263 = vpop.f32.mrb[0].mxu0
    %v264 = vadd.f32 0.0, %v263
    %v265 = vpop.f32.mrb[0].mxu0
    %v266 = vpop.f32.mrb[0].mxu0
    %v267 = vadd.f32 0.0, %v266
    %v268 = vpop.f32.mrb[0].mxu0
    %269 = vmatprep.mubr.bf16.mxu0 %v118
    %270 = vmatmul.mubr.bf16.gmra.mrb[0].mxu0 %v117
    %v271 = vpop.f32.mrb[0].mxu0
    %v272 = vadd.f32 0.0, %v271
    %v273 = vpop.f32.mrb[0].mxu0
    %v274 = vpop.f32.mrb[0].mxu0
    %v275 = vadd.f32 0.0, %v274
    %v276 = vpop.f32.mrb[0].mxu0
    %277 = vdwg.mxu0
    %v278 = vadd.f32 %v51, %v256
    %v279 = vadd.f32 %v52, %v259
    %v280 = vadd.f32 %v53, %v264
    %v281 = vadd.f32 %v54, %v267
    %v282 = vadd.f32 %v55, %v272
    %v283 = vadd.f32 %v56, %v275
    %284 = vst [vmem:[#allocation2] sm:$0xff] %v278
    %285 = vst [vmem:[#allocation2 + $0x8] sm:$0xff] %v279
    %286 = vst [vmem:[#allocation2 + $0x10] sm:$0xff] %v280
    %287 = vst [vmem:[#allocation2 + $0x18] sm:$0xff] %v281
    %288 = vst [vmem:[#allocation2 + $0x20] sm:$0xff] %v282
    %289 = vst [vmem:[#allocation2 + $0x28] sm:$0xff] %v283
    // Predicated region
    $region26: #{discriminator_p.4} parent=1 // pred_check
      %p290 = pneg %p41
    $region27: #{discriminator_p.4} parent=1 // pred_check_branch
      %292 = sbr.rel (%p290) target = $region29
    $region28: #{discriminator_p.4} parent=1 // pred_region
      %v293 = vld [vmem:[#allocation2] sm:$0xff]
      %v294 = vld [vmem:[#allocation2 + $0x8] sm:$0xff]
      %v295 = vld [vmem:[#allocation2 + $0x10] sm:$0xff]
      %v296 = vld [vmem:[#allocation2 + $0x18] sm:$0xff]
      %v297 = vld [vmem:[#allocation2 + $0x20] sm:$0xff]
      %v298 = vld [vmem:[#allocation2 + $0x28] sm:$0xff]
      %v299 = vld [vmem:[#allocation5] sm:$0x1]
      %v301 = vlaneseq
      %v302 = vshrl.u32 %v301, 7
      %v303 = vsub.s32 0, %v302
      %v304 = vrot.slane %v299, %v303
      %v306 = vadd.f32 %v293, %v304
      %v307 = vadd.f32 %v294, %v304
      %v308 = vadd.f32 %v295, %v304
      %v309 = vadd.f32 %v296, %v304
      %v310 = vadd.f32 %v297, %v304
      %v311 = vadd.f32 %v298, %v304
      %v312 = vmul.f32 %v306, 0.1
      %v313 = vmul.f32 %v307, 0.1
      %v314 = vmul.f32 %v308, 0.1
      %v315 = vmul.f32 %v309, 0.1
      %v316 = vmul.f32 %v310, 0.1
      %v317 = vmul.f32 %v311, 0.1
      %v318 = vmax.f32 %v306, %v312
      %v319 = vmax.f32 %v307, %v313
      %v320 = vmax.f32 %v308, %v314
      %v321 = vmax.f32 %v309, %v315
      %v322 = vmax.f32 %v310, %v316
      %v323 = vmax.f32 %v311, %v317
      %v324 = vpack.c.bf16 %v319, %v318
      %v325 = vpack.c.bf16 %v321, %v320
      %v326 = vpack.c.bf16 %v323, %v322
      %v330 = vunpack.c.l.b16 %v324
      %v331 = vunpack.c.h.b16 %v324
      %v332 = vunpack.c.l.b16 %v325
      %v333 = vunpack.c.h.b16 %v325
      %v334 = vunpack.c.l.b16 %v326
      %v335 = vunpack.c.h.b16 %v326
      %v336 = vpack.c.b16 %v330, %v330
      %v337 = vpack.c.b16 %v331, %v331
      %v338 = vpack.c.b16 %v332, %v332
      %v339 = vpack.c.b16 %v333, %v333
      %v340 = vpack.c.b16 %v334, %v334
      %v341 = vpack.c.b16 %v335, %v335
      %348 = vst [vmem:[%s3] sm:$0xf] %v336
      %349 = vst [vmem:[%s3 + $0x4] sm:$0xf] %v337
      %350 = vst [vmem:[%s3 + $0x8] sm:$0xf] %v338
      %351 = vst [vmem:[%s3 + $0xc] sm:$0xf] %v339
      %352 = vst [vmem:[%s3 + $0x10] sm:$0xf] %v340
      %353 = vst [vmem:[%s3 + $0x14] sm:$0xf] %v341
    $region29: #{discriminator_p.4} parent=1 // pred_fallthru
      _
    // Predicated region
    $region30: #{discriminator_p.4} parent=1 // pred_check
      _
    $region31: #{discriminator_p.4} parent=1 // pred_check_branch
      %355 = sbr.rel (0) target = $region33
    $region32: #{discriminator_p.4} parent=1 // pred_region
      _
    $region33: #{discriminator_p.4} parent=1 // pred_fallthru
      _
    // Predicated region
    $region34: #{discriminator_p.4} parent=1 // pred_check
      _
    $region35: #{discriminator_p.4} parent=1 // pred_check_branch
      %357 = sbr.rel (0) target = $region37
    $region36: #{discriminator_p.4} parent=1 // pred_region
      _
    $region37: #{discriminator_p.4} parent=1 // pred_fallthru
      _
    %358 = vsyncpa [#allocation4], 1
    %359 = vsyncpa [#allocation6], 1

// kernel: discriminator_p.6
$region0: #{discriminator_p.6}
  #allocation0 [shape = 'u32[]', space=smem, size = 0x4, offset = 0x4, fixed_abs, tag = 'smem constant byte address 0x4 - core index']
  #allocation1 [shape = 'u32[144,128]{1,0:T(1,128)}', space=vmem, size = 0x12000, scoped, tag = 'internal scratch']
  #allocation2 [shape = 'f32[16,512]{1,0:T(8,128)}', space=vmem, size = 0x8000, scoped, tag = 'scratch operand']
  %s0 = inlined_call_operand.vmem [shape: bf16[16,2560], index: 0, kind: input, shape index: {}]
  %s1 = inlined_call_operand.hbm [shape: bf16[2560,1024], index: 1, kind: input, shape index: {}]
  %s2 = inlined_call_operand.hbm [shape: f32[1,1024], index: 2, kind: input, shape index: {}]
  %s3 = inlined_call_operand.vmem [shape: bf16[16,1024], index: 3, kind: output, shape index: {}]
  %s4 = sld [smem:[#allocation0]]
  $region103: #{discriminator_p.6} parent=0
    _
  %s6 = ssub.s32 1, %s4
  %s7 = scalar_select 0, %s6, %s4
  $region1: #{discriminator_p.6} parent=0
    #allocation3 [shape = 'u8[81920]{0}', space=vmem, size = 0x14000, scoped, tag = 'input window, operand 0']
    #allocation4 [shape = 'u8[2621440]{0}', space=vmem, size = 0x280000, scoped, tag = 'input window, operand 1']
    #allocation5 [shape = 's32[2]{0}', space=sflag, size = 0x8, scoped, tag = 'scoped memory for discriminator_p.6']
    #allocation6 [shape = 'u8[4096]{0}', space=vmem, size = 0x1000, scoped, tag = 'input window, operand 2']
    #allocation7 [shape = 's32[2]{0}', space=sflag, size = 0x8, scoped, tag = 'scoped memory for discriminator_p.6']
    #allocation8 [shape = 'u8[32768]{0}', space=vmem, size = 0x8000, scoped, tag = 'output window, operand 0']
    %8 = vsyncpa [#allocation5], 0
    %s9 = scalar_lea.sflag [#allocation5], 1
    %10 = vsyncpa %s9, 0
    %11 = vsyncpa [#allocation7], 0
    %s12 = scalar_lea.sflag [#allocation7], 1
    %13 = vsyncpa %s12, 0
    loop: start=0, step=1, limit=6
    $region2: #{discriminator_p.6} parent=1 // loop_pre_header
      _
    $region3: #{discriminator_p.6} parent=1 // loop_header
      %s15 = sphi 0, %s19
      %p16 = scmp.ge.s32.totalorder %s15, 6
      %s22 = sphi 0, %s41
      %s23 = sphi 0, %s37
      %s24 = sphi 0, %s33
      %s25 = sphi 0, %s22
      %s26 = sphi 0, %s23
      %s27 = sphi 0, %s24
      %s28 = sphi 0, %s25
      %s29 = sphi 0, %s26
      %s30 = sphi 0, %s27
      %s46 = sphi 0, %s48
      %s49 = sphi 0, %s46
      %s50 = sphi 0, %s49
      %s66 = sphi 0, %s50
      %s74 = sphi 0, %s76
      %s77 = sphi 0, %s74
      %s78 = sphi 0, %s77
      %s94 = sphi 0, %s78
      %s100 = sphi 0, %s102
      %s103 = sphi 0, %s100
      %s104 = sphi 0, %s103
      %s120 = sphi 0, %s104
      %s128 = sphi 0, %s130
      %s131 = sphi 0, %s128
      %s132 = sphi 0, %s131
      %s148 = sphi 0, %s132
    $region4: #{discriminator_p.6} parent=1 // loop_header_branch
      %18 = sbr.rel (%p16) target = $region8
    $region5: #{discriminator_p.6} parent=1 // loop_body
      %s20 = ssub.s32 %s15, 1
      %s21 = ssub.s32 %s15, 2
      %s31 = sadd.s32 1, %s24
      %p32 = scmp.ge.s32.totalorder %s31, 2
      %s33 = scalar_select %p32, 0, %s31
      %s34 = sadd.s32 1, %s23
      %s35 = scalar_select %p32, %s34, %s23
      %p36 = scmp.ge.s32.totalorder %s35, 2
      %s37 = scalar_select %p36, 0, %s35
      %s38 = sadd.s32 1, %s22
      %s39 = scalar_select %p36, %s38, %s22
      %p40 = scmp.ge.s32.totalorder %s39, 1
      %s41 = scalar_select %p40, 0, %s39
      %s42 = ssub.s32 %s22, %s41
      %s43 = ssub.s32 %s24, %s33
      %s44 = sor.u32 %s42, %s43
      %p45 = scmp.eq.s32.totalorder %s44, 0
      %s47 = sadd.s32 %s46, 1
      %s48 = scalar_select %p45, %s46, %s47
      %p51 = pneg %p45
      %p52 = scmp.eq.s32.totalorder %s15, 3
      %p53 = por %p51, %p52
      %p54 = scmp.ne.s32.totalorder %s46, %s49
      %p55 = scmp.eq.s32.totalorder %s15, 0
      %p56 = por %p54, %p55
      %p57 = scmp.ne.s32.totalorder %s46, %s49
      %p58 = scmp.eq.s32.totalorder %s20, 3
      %p59 = por %p57, %p58
      %p60 = scmp.ne.s32.totalorder %s49, %s50
      %p61 = scmp.eq.s32.totalorder %s20, 0
      %p62 = por %p60, %p61
      %p63 = scmp.ne.s32.totalorder %s49, %s50
      %p64 = scmp.eq.s32.totalorder %s21, 3
      %p65 = por %p63, %p64
      %p67 = scmp.ne.s32.totalorder %s50, %s66
      %p68 = scmp.eq.s32.totalorder %s21, 0
      %p69 = por %p67, %p68
      %s70 = ssub.s32 %s24, %s33
      %s71 = ssub.s32 %s23, %s37
      %s72 = sor.u32 %s70, %s71
      %p73 = scmp.eq.s32.totalorder %s72, 0
      %s75 = sadd.s32 %s74, 1
      %s76 = scalar_select %p73, %s74, %s75
      %p79 = pneg %p73
      %p80 = scmp.eq.s32.totalorder %s15, 3
      %p81 = por %p79, %p80
      %p82 = scmp.ne.s32.totalorder %s74, %s77
      %p83 = scmp.eq.s32.totalorder %s15, 0
      %p84 = por %p82, %p83
      %p85 = scmp.ne.s32.totalorder %s74, %s77
      %p86 = scmp.eq.s32.totalorder %s20, 3
      %p87 = por %p85, %p86
      %p88 = scmp.ne.s32.totalorder %s77, %s78
      %p89 = scmp.eq.s32.totalorder %s20, 0
      %p90 = por %p88, %p89
      %p91 = scmp.ne.s32.totalorder %s77, %s78
      %p92 = scmp.eq.s32.totalorder %s21, 3
      %p93 = por %p91, %p92
      %p95 = scmp.ne.s32.totalorder %s78, %s94
      %p96 = scmp.eq.s32.totalorder %s21, 0
      %p97 = por %p95, %p96
      %s98 = ssub.s32 %s23, %s37
      %p99 = scmp.eq.s32.totalorder %s98, 0
      %s101 = sadd.s32 %s100, 1
      %s102 = scalar_select %p99, %s100, %s101
      %p105 = pneg %p99
      %p106 = scmp.eq.s32.totalorder %s15, 3
      %p107 = por %p105, %p106
      %p108 = scmp.ne.s32.totalorder %s100, %s103
      %p109 = scmp.eq.s32.totalorder %s15, 0
      %p110 = por %p108, %p109
      %p111 = scmp.ne.s32.totalorder %s100, %s103
      %p112 = scmp.eq.s32.totalorder %s20, 3
      %p113 = por %p111, %p112
      %p114 = scmp.ne.s32.totalorder %s103, %s104
      %p115 = scmp.eq.s32.totalorder %s20, 0
      %p116 = por %p114, %p115
      %p117 = scmp.ne.s32.totalorder %s103, %s104
      %p118 = scmp.eq.s32.totalorder %s21, 3
      %p119 = por %p117, %p118
      %p121 = scmp.ne.s32.totalorder %s104, %s120
      %p122 = scmp.eq.s32.totalorder %s21, 0
      %p123 = por %p121, %p122
      %s124 = ssub.s32 %s22, %s41
      %s125 = ssub.s32 %s23, %s37
      %s126 = sor.u32 %s124, %s125
      %p127 = scmp.eq.s32.totalorder %s126, 0
      %s129 = sadd.s32 %s128, 1
      %s130 = scalar_select %p127, %s128, %s129
      %p133 = pneg %p127
      %p134 = scmp.eq.s32.totalorder %s15, 3
      %p135 = por %p133, %p134
      %p136 = scmp.ne.s32.totalorder %s128, %s131
      %p137 = scmp.eq.s32.totalorder %s15, 0
      %p138 = por %p136, %p137
      %p139 = scmp.ne.s32.totalorder %s128, %s131
      %p140 = scmp.eq.s32.totalorder %s20, 3
      %p141 = por %p139, %p140
      %p142 = scmp.ne.s32.totalorder %s131, %s132
      %p143 = scmp.eq.s32.totalorder %s20, 0
      %p144 = por %p142, %p143
      %p145 = scmp.ne.s32.totalorder %s131, %s132
      %p146 = scmp.eq.s32.totalorder %s21, 3
      %p147 = por %p145, %p146
      %p149 = scmp.ne.s32.totalorder %s132, %s148
      %p150 = scmp.eq.s32.totalorder %s21, 0
      %p151 = por %p149, %p150
      %p152 = scmp.le.s32.totalorder 1, %s15
      %p153 = scmp.lt.s32.totalorder %s15, 5
      %p154 = pnand %p152, %p153
      %p155 = pneg %p154
      // Predicated region
      $region9: #{discriminator_p.6} parent=5 // pred_check
        _
      $region10: #{discriminator_p.6} parent=5 // pred_check_branch
        %157 = sbr.rel (%p154) target = $region12
      $region11: #{discriminator_p.6} parent=5 // pred_region
        %s158 = ssub.s32 %s15, 1
      $region12: #{discriminator_p.6} parent=5 // pred_fallthru
        _
      %p159 = scmp.lt.s32.totalorder %s15, 4
      // Predicated region
      $region13: #{discriminator_p.6} parent=5 // pred_check
        %p160 = pneg %p159
      $region14: #{discriminator_p.6} parent=5 // pred_check_branch
        %162 = sbr.rel (%p160) target = $region16
      $region15: #{discriminator_p.6} parent=5 // pred_region
        // Predicated region
        $region17: #{discriminator_p.6} parent=15 // pred_check
          %p163 = pneg %p56
        $region18: #{discriminator_p.6} parent=15 // pred_check_branch
          %165 = sbr.rel (%p163) target = $region20
        $region19: #{discriminator_p.6} parent=15 // pred_region
          %s166 = sand.u32 %s46, 1
          %s167 = sand.u32 %s46, 1
          %s168 = smul.addr %s167, 80
          %s169 = scalar_lea.vmem [#allocation3], %s168
          %s170 = smul.u32 2, %s22
          %s171 = smul.u32 10, %s24
          %s172 = smul.addr %s170, 20
          %s173 = sadd.s32 %s171, %s172
          %s174 = smul.addr %s173, 4
          %s175 = scalar_lea.vmem %s0, %s174
          // Predicated region
          $region21: #{discriminator_p.6} parent=19 // pred_check
            _
          $region22: #{discriminator_p.6} parent=19 // pred_check_branch
            %177 = sbr.rel (0) target = $region24
          $region23: #{discriminator_p.6} parent=19 // pred_region
            // Predicated region
            $region25: #{discriminator_p.6} parent=23 // pred_check
              _
            $region26: #{discriminator_p.6} parent=23 // pred_check_branch
              %179 = sbr.rel (0) target = $region28
            $region27: #{discriminator_p.6} parent=23 // pred_region
              loop: start=0, step=1, limit=1
              $region29: #{discriminator_p.6} parent=27 // loop_pre_header
                _
              $region30: #{discriminator_p.6} parent=27 // loop_header
                %s181 = sphi 0, %s185
                %p182 = scmp.ge.s32.totalorder %s181, 1
                %s186 = sphi %s175, %s175
                %s187 = sphi %s169, %s169
              $region31: #{discriminator_p.6} parent=27 // loop_header_branch
                %184 = sbr.rel (%p182) target = $region35
              $region32: #{discriminator_p.6} parent=27 // loop_body
                %v188 = vld [vmem:[%s186] sm:$0xff]
                %189 = vst [vmem:[%s187] sm:$0xff] %v188
                %v190 = vld [vmem:[%s186 + $0x8] sm:$0xff]
                %191 = vst [vmem:[%s187 + $0x8] sm:$0xff] %v190
                %v192 = vld [vmem:[%s186 + $0x10] sm:$0xff]
                %193 = vst [vmem:[%s187 + $0x10] sm:$0xff] %v192
                %v194 = vld [vmem:[%s186 + $0x18] sm:$0xff]
                %195 = vst [vmem:[%s187 + $0x18] sm:$0xff] %v194
                %v196 = vld [vmem:[%s186 + $0x20] sm:$0xff]
                %197 = vst [vmem:[%s187 + $0x20] sm:$0xff] %v196
                %v198 = vld [vmem:[%s186 + $0x50] sm:$0xff]
                %199 = vst [vmem:[%s187 + $0x28] sm:$0xff] %v198
                %v200 = vld [vmem:[%s186 + $0x58] sm:$0xff]
                %201 = vst [vmem:[%s187 + $0x30] sm:$0xff] %v200
                %v202 = vld [vmem:[%s186 + $0x60] sm:$0xff]
                %203 = vst [vmem:[%s187 + $0x38] sm:$0xff] %v202
                %v204 = vld [vmem:[%s186 + $0x68] sm:$0xff]
                %205 = vst [vmem:[%s187 + $0x40] sm:$0xff] %v204
                %v206 = vld [vmem:[%s186 + $0x70] sm:$0xff]
                %207 = vst [vmem:[%s187 + $0x48] sm:$0xff] %v206
              $region33: #{discriminator_p.6} parent=27 // loop_footer
                %s185 = sadd.s32 1, %s181
              $region34: #{discriminator_p.6} parent=27 // loop_footer_branch
                %180 = sbr.rel target = $region30
              $region35: #{discriminator_p.6} parent=27 // loop_exit
                _
            $region28: #{discriminator_p.6} parent=23 // pred_fallthru
              _
            // Predicated region
            $region36: #{discriminator_p.6} parent=23 // pred_check
              _
            $region37: #{discriminator_p.6} parent=23 // pred_check_branch
              %209 = sbr.rel target = $region39
            $region38: #{discriminator_p.6} parent=23 // pred_region
              _
            $region39: #{discriminator_p.6} parent=23 // pred_fallthru
              _
          $region24: #{discriminator_p.6} parent=19 // pred_fallthru
            _
          %210 = vnop
        $region20: #{discriminator_p.6} parent=15 // pred_fallthru
          _
        // Predicated region
        $region40: #{discriminator_p.6} parent=15 // pred_check
          %p211 = pneg %p84
        $region41: #{discriminator_p.6} parent=15 // pred_check_branch
          %213 = sbr.rel (%p211) target = $region43
        $region42: #{discriminator_p.6} parent=15 // pred_region
          %s214 = sand.u32 %s74, 1
          %s215 = scalar_lea.sflag [#allocation5], %s214
          %s216 = sand.u32 %s74, 1
          %s217 = smul.addr %s216, 2560
          %s218 = scalar_lea.vmem [#allocation4], %s217
          %s219 = smul.u32 160, %s24
          %s220 = smul.u32 4, %s23
          %s222 = ssub.s32 40960, 40960
          %223 = vsyncadd %s215, %s222
          %s224 = smul.addr %s219, 8
          %s225 = sadd.s32 %s220, %s224
          %s226 = smul.addr %s225, 64
          %s227 = scalar_lea.hbm %s1, %s226
          %s228 = sshll.u32 %s218, 4
          %s229 = int_to_ptr.vmem [resolvable:$true] %s228
          %234 = dma.hbm_to_vmem [thread:$0]  %s227, 40960, %s229, %s215, 512, 256, 16
        $region43: #{discriminator_p.6} parent=15 // pred_fallthru
          _
        // Predicated region
        $region44: #{discriminator_p.6} parent=15 // pred_check
          %p235 = pneg %p110
        $region45: #{discriminator_p.6} parent=15 // pred_check_branch
          %237 = sbr.rel (%p235) target = $region47
        $region46: #{discriminator_p.6} parent=15 // pred_region
          %s238 = sand.u32 %s100, 1
          %s239 = scalar_lea.sflag [#allocation7], %s238
          %s240 = sand.u32 %s100, 1
          %s241 = smul.addr %s240, 4
          %s242 = scalar_lea.vmem [#allocation6], %s241
          %s243 = smul.u32 4, %s23
          %s245 = ssub.s32 64, 64
          %246 = vsyncadd %s239, %s245
          %s247 = smul.addr %s243, 16
          %s248 = scalar_lea.hbm %s2, %s247
          %s250 = sshll.u32 %s242, 4
          %s251 = int_to_ptr.vmem [resolvable:$true] %s250
          %253 = dma.hbm_to_vmem [thread:$0]  %s248, 64, %s251, %s239
        $region47: #{discriminator_p.6} parent=15 // pred_fallthru
          _
      $region16: #{discriminator_p.6} parent=5 // pred_fallthru
        _
      %p254 = scmp.le.s32.totalorder 1, %s15
      %p255 = scmp.lt.s32.totalorder %s15, 5
      %p256 = pnand %p254, %p255
      %p257 = pneg %p256
      // Predicated region
      $region48: #{discriminator_p.6} parent=5 // pred_check
        _
      $region49: #{discriminator_p.6} parent=5 // pred_check_branch
        %259 = sbr.rel (%p256) target = $region51
      $region50: #{discriminator_p.6} parent=5 // pred_region
        %s260 = ssub.s32 %s15, 1
        %s261 = sand.u32 %s49, 1
        %s262 = sand.u32 %s49, 1
        %s263 = smul.addr %s262, 80
        %s264 = scalar_lea.vmem [#allocation3], %s263
        // Predicated region
        $region52: #{discriminator_p.6} parent=50 // pred_check
          %p265 = pneg %p62
        $region53: #{discriminator_p.6} parent=50 // pred_check_branch
          %267 = sbr.rel (%p265) target = $region55
        $region54: #{discriminator_p.6} parent=50 // pred_region
          _
        $region55: #{discriminator_p.6} parent=50 // pred_fallthru
          _
        %s268 = sand.u32 %s77, 1
        %s269 = scalar_lea.sflag [#allocation5], %s268
        %s270 = sand.u32 %s77, 1
        %s271 = smul.addr %s270, 2560
        %s272 = scalar_lea.vmem [#allocation4], %s271
        // Predicated region
        $region56: #{discriminator_p.6} parent=50 // pred_check
          %p273 = pneg %p90
        $region57: #{discriminator_p.6} parent=50 // pred_check_branch
          %275 = sbr.rel (%p273) target = $region59
        $region58: #{discriminator_p.6} parent=50 // pred_region
          %276 = dma.done %s269, 40960
        $region59: #{discriminator_p.6} parent=50 // pred_fallthru
          _
        %s277 = sand.u32 %s103, 1
        %s278 = scalar_lea.sflag [#allocation7], %s277
        %s279 = sand.u32 %s103, 1
        %s280 = smul.addr %s279, 4
        %s281 = scalar_lea.vmem [#allocation6], %s280
        // Predicated region
        $region60: #{discriminator_p.6} parent=50 // pred_check
          %p282 = pneg %p116
        $region61: #{discriminator_p.6} parent=50 // pred_check_branch
          %284 = sbr.rel (%p282) target = $region63
        $region62: #{discriminator_p.6} parent=50 // pred_region
          %285 = dma.done %s278, 64
        $region63: #{discriminator_p.6} parent=50 // pred_fallthru
          _
        %s286 = sand.u32 %s49, 1
        %s287 = sand.u32 %s49, 1
        %s288 = smul.addr %s287, 80
        %s289 = scalar_lea.vmem [#allocation3], %s288
        %p290 = pneg %p62
        %p291 = pneg %p59
        %s292 = sand.u32 %s77, 1
        %s293 = scalar_lea.sflag [#allocation5], %s292
        %s294 = sand.u32 %s77, 1
        %s295 = smul.addr %s294, 2560
        %s296 = scalar_lea.vmem [#allocation4], %s295
        %p297 = pneg %p90
        %p298 = pneg %p87
        %s299 = sand.u32 %s103, 1
        %s300 = scalar_lea.sflag [#allocation7], %s299
        %s301 = sand.u32 %s103, 1
        %s302 = smul.addr %s301, 4
        %s303 = scalar_lea.vmem [#allocation6], %s302
        %p304 = pneg %p116
        %p305 = pneg %p113
        %p306 = pneg %p144
        %p307 = pneg %p141
        %s308 = sand.u32 %s131, 1
        %s309 = sand.u32 %s131, 1
        %s310 = smul.addr %s309, 32
        %s311 = scalar_lea.vmem [#allocation8], %s310
        %s312 = smul.u32 2, %s25
        %s313 = smul.u32 10, %s27
        %s314 = smul.u32 160, %s27
        %s315 = smul.u32 4, %s26
        %s316 = smul.u32 4, %s26
        %s317 = smul.u32 2, %s25
        %s318 = smul.u32 4, %s26
        %p319 = scmp.eq.s32.totalorder %s27, 0
        // Predicated region
        $region64: #{discriminator_p.6} parent=50 // pred_check
          %p320 = pneg %p319
        $region65: #{discriminator_p.6} parent=50 // pred_check_branch
          %322 = sbr.rel (%p320) target = $region67
        $region66: #{discriminator_p.6} parent=50 // pred_region
          %323 = vst [vmem:[#allocation2] sm:$0xff] 0.0
          %324 = vst [vmem:[#allocation2 + $0x8] sm:$0xff] 0.0
          %325 = vst [vmem:[#allocation2 + $0x10] sm:$0xff] 0.0
          %326 = vst [vmem:[#allocation2 + $0x18] sm:$0xff] 0.0
          %327 = vst [vmem:[#allocation2 + $0x20] sm:$0xff] 0.0
          %328 = vst [vmem:[#allocation2 + $0x28] sm:$0xff] 0.0
          %329 = vst [vmem:[#allocation2 + $0x30] sm:$0xff] 0.0
          %330 = vst [vmem:[#allocation2 + $0x38] sm:$0xff] 0.0
        $region67: #{discriminator_p.6} parent=50 // pred_fallthru
          _
        %v331 = vld [vmem:[#allocation2] sm:$0xff]
        %v332 = vld [vmem:[#allocation2 + $0x8] sm:$0xff]
        %v333 = vld [vmem:[#allocation2 + $0x10] sm:$0xff]
        %v334 = vld [vmem:[#allocation2 + $0x18] sm:$0xff]
        %v335 = vld [vmem:[#allocation2 + $0x20] sm:$0xff]
        %v336 = vld [vmem:[#allocation2 + $0x28] sm:$0xff]
        %v337 = vld [vmem:[#allocation2 + $0x30] sm:$0xff]
        %v338 = vld [vmem:[#allocation2 + $0x38] sm:$0xff]
        %v339 = vld [vmem:[%s264] sm:$0xff]
        %v340 = vld [vmem:[%s264 + $0x8] sm:$0xff]
        %v341 = vld [vmem:[%s264 + $0x10] sm:$0xff]
        %v342 = vld [vmem:[%s264 + $0x18] sm:$0xff]
        %v343 = vld [vmem:[%s264 + $0x20] sm:$0xff]
        %v344 = vld [vmem:[%s264 + $0x28] sm:$0xff]
        %v345 = vld [vmem:[%s264 + $0x30] sm:$0xff]
        %v346 = vld [vmem:[%s264 + $0x38] sm:$0xff]
        %v347 = vld [vmem:[%s264 + $0x40] sm:$0xff]
        %v348 = vld [vmem:[%s264 + $0x48] sm:$0xff]
        %v349 = vld [vmem:[%s272] sm:$0xff]
        %v350 = vld [vmem:[%s272 + $0x8] sm:$0xff]
        %v351 = vld [vmem:[%s272 + $0x10] sm:$0xff]
        %v352 = vld [vmem:[%s272 + $0x18] sm:$0xff]
        %v353 = vld [vmem:[%s272 + $0x20] sm:$0xff]
        %v354 = vld [vmem:[%s272 + $0x28] sm:$0xff]
        %v355 = vld [vmem:[%s272 + $0x30] sm:$0xff]
        %v356 = vld [vmem:[%s272 + $0x38] sm:$0xff]
        %v357 = vld [vmem:[%s272 + $0x40] sm:$0xff]
        %v358 = vld [vmem:[%s272 + $0x48] sm:$0xff]
        %v359 = vld [vmem:[%s272 + $0x50] sm:$0xff]
        %v360 = vld [vmem:[%s272 + $0x58] sm:$0xff]
        %v361 = vld [vmem:[%s272 + $0x60] sm:$0xff]
        %v362 = vld [vmem:[%s272 + $0x68] sm:$0xff]
        %v363 = vld [vmem:[%s272 + $0x70] sm:$0xff]
        %v364 = vld [vmem:[%s272 + $0x78] sm:$0xff]
        %v365 = vld [vmem:[%s272 + $0x80] sm:$0xff]
        %v366 = vld [vmem:[%s272 + $0x88] sm:$0xff]
        %v367 = vld [vmem:[%s272 + $0x90] sm:$0xff]
        %v368 = vld [vmem:[%s272 + $0x98] sm:$0xff]
        %v369 = vld [vmem:[%s272 + $0xa0] sm:$0xff]
        %v370 = vld [vmem:[%s272 + $0xa8] sm:$0xff]
        %v371 = vld [vmem:[%s272 + $0xb0] sm:$0xff]
        %v372 = vld [vmem:[%s272 + $0xb8] sm:$0xff]
        %v373 = vld [vmem:[%s272 + $0xc0] sm:$0xff]
        %v374 = vld [vmem:[%s272 + $0xc8] sm:$0xff]
        %v375 = vld [vmem:[%s272 + $0xd0] sm:$0xff]
        %v376 = vld [vmem:[%s272 + $0xd8] sm:$0xff]
        %v377 = vld [vmem:[%s272 + $0xe0] sm:$0xff]
        %v378 = vld [vmem:[%s272 + $0xe8] sm:$0xff]
        %v379 = vld [vmem:[%s272 + $0xf0] sm:$0xff]
        %v380 = vld [vmem:[%s272 + $0xf8] sm:$0xff]
        %v381 = vld [vmem:[%s272 + $0x100] sm:$0xff]
        %v382 = vld [vmem:[%s272 + $0x108] sm:$0xff]
        %v383 = vld [vmem:[%s272 + $0x110] sm:$0xff]
        %v384 = vld [vmem:[%s272 + $0x118] sm:$0xff]
        %v385 = vld [vmem:[%s272 + $0x120] sm:$0xff]
        %v386 = vld [vmem:[%s272 + $0x128] sm:$0xff]
        %v387 = vld [vmem:[%s272 + $0x130] sm:$0xff]
        %v388 = vld [vmem:[%s272 + $0x138] sm:$0xff]
        %v389 = vld [vmem:[%s272 + $0x140] sm:$0xff]
        %v390 = vld [vmem:[%s272 + $0x148] sm:$0xff]
        %v391 = vld [vmem:[%s272 + $0x150] sm:$0xff]
        %v392 = vld [vmem:[%s272 + $0x158] sm:$0xff]
        %v393 = vld [vmem:[%s272 + $0x160] sm:$0xff]
        %v394 = vld [vmem:[%s272 + $0x168] sm:$0xff]
        %v395 = vld [vmem:[%s272 + $0x170] sm:$0xff]
        %v396 = vld [vmem:[%s272 + $0x178] sm:$0xff]
        %v397 = vld [vmem:[%s272 + $0x180] sm:$0xff]
        %v398 = vld [vmem:[%s272 + $0x188] sm:$0xff]
        %v399 = vld [vmem:[%s272 + $0x190] sm:$0xff]
        %v400 = vld [vmem:[%s272 + $0x198] sm:$0xff]
        %v401 = vld [vmem:[%s272 + $0x1a0] sm:$0xff]
        %v402 = vld [vmem:[%s272 + $0x1a8] sm:$0xff]
        %v403 = vld [vmem:[%s272 + $0x1b0] sm:$0xff]
        %v404 = vld [vmem:[%s272 + $0x1b8] sm:$0xff]
        %v405 = vld [vmem:[%s272 + $0x1c0] sm:$0xff]
        %v406 = vld [vmem:[%s272 + $0x1c8] sm:$0xff]
        %v407 = vld [vmem:[%s272 + $0x1d0] sm:$0xff]
        %v408 = vld [vmem:[%s272 + $0x1d8] sm:$0xff]
        %v409 = vld [vmem:[%s272 + $0x1e0] sm:$0xff]
        %v410 = vld [vmem:[%s272 + $0x1e8] sm:$0xff]
        %v411 = vld [vmem:[%s272 + $0x1f0] sm:$0xff]
        %v412 = vld [vmem:[%s272 + $0x1f8] sm:$0xff]
        %v413 = vld [vmem:[%s272 + $0x200] sm:$0xff]
        %v414 = vld [vmem:[%s272 + $0x208] sm:$0xff]
        %v415 = vld [vmem:[%s272 + $0x210] sm:$0xff]
        %v416 = vld [vmem:[%s272 + $0x218] sm:$0xff]
        %v417 = vld [vmem:[%s272 + $0x220] sm:$0xff]
        %v418 = vld [vmem:[%s272 + $0x228] sm:$0xff]
        %v419 = vld [vmem:[%s272 + $0x230] sm:$0xff]
        %v420 = vld [vmem:[%s272 + $0x238] sm:$0xff]
        %v421 = vld [vmem:[%s272 + $0x240] sm:$0xff]
        %v422 = vld [vmem:[%s272 + $0x248] sm:$0xff]
        %v423 = vld [vmem:[%s272 + $0x250] sm:$0xff]
        %v424 = vld [vmem:[%s272 + $0x258] sm:$0xff]
        %v425 = vld [vmem:[%s272 + $0x260] sm:$0xff]
        %v426 = vld [vmem:[%s272 + $0x268] sm:$0xff]
        %v427 = vld [vmem:[%s272 + $0x270] sm:$0xff]
        %v428 = vld [vmem:[%s272 + $0x278] sm:$0xff]
        %v429 = vld [vmem:[%s272 + $0x280] sm:$0xff]
        %v430 = vld [vmem:[%s272 + $0x288] sm:$0xff]
        %v431 = vld [vmem:[%s272 + $0x290] sm:$0xff]
        %v432 = vld [vmem:[%s272 + $0x298] sm:$0xff]
        %v433 = vld [vmem:[%s272 + $0x2a0] sm:$0xff]
        %v434 = vld [vmem:[%s272 + $0x2a8] sm:$0xff]
        %v435 = vld [vmem:[%s272 + $0x2b0] sm:$0xff]
        %v436 = vld [vmem:[%s272 + $0x2b8] sm:$0xff]
        %v437 = vld [vmem:[%s272 + $0x2c0] sm:$0xff]
        %v438 = vld [vmem:[%s272 + $0x2c8] sm:$0xff]
        %v439 = vld [vmem:[%s272 + $0x2d0] sm:$0xff]
        %v440 = vld [vmem:[%s272 + $0x2d8] sm:$0xff]
        %v441 = vld [vmem:[%s272 + $0x2e0] sm:$0xff]
        %v442 = vld [vmem:[%s272 + $0x2e8] sm:$0xff]
        %v443 = vld [vmem:[%s272 + $0x2f0] sm:$0xff]
        %v444 = vld [vmem:[%s272 + $0x2f8] sm:$0xff]
        %v445 = vld [vmem:[%s272 + $0x300] sm:$0xff]
        %v446 = vld [vmem:[%s272 + $0x308] sm:$0xff]
        %v447 = vld [vmem:[%s272 + $0x310] sm:$0xff]
        %v448 = vld [vmem:[%s272 + $0x318] sm:$0xff]
        %v449 = vld [vmem:[%s272 + $0x320] sm:$0xff]
        %v450 = vld [vmem:[%s272 + $0x328] sm:$0xff]
        %v451 = vld [vmem:[%s272 + $0x330] sm:$0xff]
        %v452 = vld [vmem:[%s272 + $0x338] sm:$0xff]
        %v453 = vld [vmem:[%s272 + $0x340] sm:$0xff]
        %v454 = vld [vmem:[%s272 + $0x348] sm:$0xff]
        %v455 = vld [vmem:[%s272 + $0x350] sm:$0xff]
        %v456 = vld [vmem:[%s272 + $0x358] sm:$0xff]
        %v457 = vld [vmem:[%s272 + $0x360] sm:$0xff]
        %v458 = vld [vmem:[%s272 + $0x368] sm:$0xff]
        %v459 = vld [vmem:[%s272 + $0x370] sm:$0xff]
        %v460 = vld [vmem:[%s272 + $0x378] sm:$0xff]
        %v461 = vld [vmem:[%s272 + $0x380] sm:$0xff]
        %v462 = vld [vmem:[%s272 + $0x388] sm:$0xff]
        %v463 = vld [vmem:[%s272 + $0x390] sm:$0xff]
        %v464 = vld [vmem:[%s272 + $0x398] sm:$0xff]
        %v465 = vld [vmem:[%s272 + $0x3a0] sm:$0xff]
        %v466 = vld [vmem:[%s272 + $0x3a8] sm:$0xff]
        %v467 = vld [vmem:[%s272 + $0x3b0] sm:$0xff]
        %v468 = vld [vmem:[%s272 + $0x3b8] sm:$0xff]
        %v469 = vld [vmem:[%s272 + $0x3c0] sm:$0xff]
        %v470 = vld [vmem:[%s272 + $0x3c8] sm:$0xff]
        %v471 = vld [vmem:[%s272 + $0x3d0] sm:$0xff]
        %v472 = vld [vmem:[%s272 + $0x3d8] sm:$0xff]
        %v473 = vld [vmem:[%s272 + $0x3e0] sm:$0xff]
        %v474 = vld [vmem:[%s272 + $0x3e8] sm:$0xff]
        %v475 = vld [vmem:[%s272 + $0x3f0] sm:$0xff]
        %v476 = vld [vmem:[%s272 + $0x3f8] sm:$0xff]
        %v477 = vld [vmem:[%s272 + $0x400] sm:$0xff]
        %v478 = vld [vmem:[%s272 + $0x408] sm:$0xff]
        %v479 = vld [vmem:[%s272 + $0x410] sm:$0xff]
        %v480 = vld [vmem:[%s272 + $0x418] sm:$0xff]
        %v481 = vld [vmem:[%s272 + $0x420] sm:$0xff]
        %v482 = vld [vmem:[%s272 + $0x428] sm:$0xff]
        %v483 = vld [vmem:[%s272 + $0x430] sm:$0xff]
        %v484 = vld [vmem:[%s272 + $0x438] sm:$0xff]
        %v485 = vld [vmem:[%s272 + $0x440] sm:$0xff]
        %v486 = vld [vmem:[%s272 + $0x448] sm:$0xff]
        %v487 = vld [vmem:[%s272 + $0x450] sm:$0xff]
        %v488 = vld [vmem:[%s272 + $0x458] sm:$0xff]
        %v489 = vld [vmem:[%s272 + $0x460] sm:$0xff]
        %v490 = vld [vmem:[%s272 + $0x468] sm:$0xff]
        %v491 = vld [vmem:[%s272 + $0x470] sm:$0xff]
        %v492 = vld [vmem:[%s272 + $0x478] sm:$0xff]
        %v493 = vld [vmem:[%s272 + $0x480] sm:$0xff]
        %v494 = vld [vmem:[%s272 + $0x488] sm:$0xff]
        %v495 = vld [vmem:[%s272 + $0x490] sm:$0xff]
        %v496 = vld [vmem:[%s272 + $0x498] sm:$0xff]
        %v497 = vld [vmem:[%s272 + $0x4a0] sm:$0xff]
        %v498 = vld [vmem:[%s272 + $0x4a8] sm:$0xff]
        %v499 = vld [vmem:[%s272 + $0x4b0] sm:$0xff]
        %v500 = vld [vmem:[%s272 + $0x4b8] sm:$0xff]
        %v501 = vld [vmem:[%s272 + $0x4c0] sm:$0xff]
        %v502 = vld [vmem:[%s272 + $0x4c8] sm:$0xff]
        %v503 = vld [vmem:[%s272 + $0x4d0] sm:$0xff]
        %v504 = vld [vmem:[%s272 + $0x4d8] sm:$0xff]
        %v505 = vld [vmem:[%s272 + $0x4e0] sm:$0xff]
        %v506 = vld [vmem:[%s272 + $0x4e8] sm:$0xff]
        %v507 = vld [vmem:[%s272 + $0x4f0] sm:$0xff]
        %v508 = vld [vmem:[%s272 + $0x4f8] sm:$0xff]
        %v509 = vld [vmem:[%s272 + $0x500] sm:$0xff]
        %v510 = vld [vmem:[%s272 + $0x508] sm:$0xff]
        %v511 = vld [vmem:[%s272 + $0x510] sm:$0xff]
        %v512 = vld [vmem:[%s272 + $0x518] sm:$0xff]
        %v513 = vld [vmem:[%s272 + $0x520] sm:$0xff]
        %v514 = vld [vmem:[%s272 + $0x528] sm:$0xff]
        %v515 = vld [vmem:[%s272 + $0x530] sm:$0xff]
        %v516 = vld [vmem:[%s272 + $0x538] sm:$0xff]
        %v517 = vld [vmem:[%s272 + $0x540] sm:$0xff]
        %v518 = vld [vmem:[%s272 + $0x548] sm:$0xff]
        %v519 = vld [vmem:[%s272 + $0x550] sm:$0xff]
        %v520 = vld [vmem:[%s272 + $0x558] sm:$0xff]
        %v521 = vld [vmem:[%s272 + $0x560] sm:$0xff]
        %v522 = vld [vmem:[%s272 + $0x568] sm:$0xff]
        %v523 = vld [vmem:[%s272 + $0x570] sm:$0xff]
        %v524 = vld [vmem:[%s272 + $0x578] sm:$0xff]
        %v525 = vld [vmem:[%s272 + $0x580] sm:$0xff]
        %v526 = vld [vmem:[%s272 + $0x588] sm:$0xff]
        %v527 = vld [vmem:[%s272 + $0x590] sm:$0xff]
        %v528 = vld [vmem:[%s272 + $0x598] sm:$0xff]
        %v529 = vld [vmem:[%s272 + $0x5a0] sm:$0xff]
        %v530 = vld [vmem:[%s272 + $0x5a8] sm:$0xff]
        %v531 = vld [vmem:[%s272 + $0x5b0] sm:$0xff]
        %v532 = vld [vmem:[%s272 + $0x5b8] sm:$0xff]
        %v533 = vld [vmem:[%s272 + $0x5c0] sm:$0xff]
        %v534 = vld [vmem:[%s272 + $0x5c8] sm:$0xff]
        %v535 = vld [vmem:[%s272 + $0x5d0] sm:$0xff]
        %v536 = vld [vmem:[%s272 + $0x5d8] sm:$0xff]
        %v537 = vld [vmem:[%s272 + $0x5e0] sm:$0xff]
        %v538 = vld [vmem:[%s272 + $0x5e8] sm:$0xff]
        %v539 = vld [vmem:[%s272 + $0x5f0] sm:$0xff]
        %v540 = vld [vmem:[%s272 + $0x5f8] sm:$0xff]
        %v541 = vld [vmem:[%s272 + $0x600] sm:$0xff]
        %v542 = vld [vmem:[%s272 + $0x608] sm:$0xff]
        %v543 = vld [vmem:[%s272 + $0x610] sm:$0xff]
        %v544 = vld [vmem:[%s272 + $0x618] sm:$0xff]
        %v545 = vld [vmem:[%s272 + $0x620] sm:$0xff]
        %v546 = vld [vmem:[%s272 + $0x628] sm:$0xff]
        %v547 = vld [vmem:[%s272 + $0x630] sm:$0xff]
        %v548 = vld [vmem:[%s272 + $0x638] sm:$0xff]
        %v549 = vld [vmem:[%s272 + $0x640] sm:$0xff]
        %v550 = vld [vmem:[%s272 + $0x648] sm:$0xff]
        %v551 = vld [vmem:[%s272 + $0x650] sm:$0xff]
        %v552 = vld [vmem:[%s272 + $0x658] sm:$0xff]
        %v553 = vld [vmem:[%s272 + $0x660] sm:$0xff]
        %v554 = vld [vmem:[%s272 + $0x668] sm:$0xff]
        %v555 = vld [vmem:[%s272 + $0x670] sm:$0xff]
        %v556 = vld [vmem:[%s272 + $0x678] sm:$0xff]
        %v557 = vld [vmem:[%s272 + $0x680] sm:$0xff]
        %v558 = vld [vmem:[%s272 + $0x688] sm:$0xff]
        %v559 = vld [vmem:[%s272 + $0x690] sm:$0xff]
        %v560 = vld [vmem:[%s272 + $0x698] sm:$0xff]
        %v561 = vld [vmem:[%s272 + $0x6a0] sm:$0xff]
        %v562 = vld [vmem:[%s272 + $0x6a8] sm:$0xff]
        %v563 = vld [vmem:[%s272 + $0x6b0] sm:$0xff]
        %v564 = vld [vmem:[%s272 + $0x6b8] sm:$0xff]
        %v565 = vld [vmem:[%s272 + $0x6c0] sm:$0xff]
        %v566 = vld [vmem:[%s272 + $0x6c8] sm:$0xff]
        %v567 = vld [vmem:[%s272 + $0x6d0] sm:$0xff]
        %v568 = vld [vmem:[%s272 + $0x6d8] sm:$0xff]
        %v569 = vld [vmem:[%s272 + $0x6e0] sm:$0xff]
        %v570 = vld [vmem:[%s272 + $0x6e8] sm:$0xff]
        %v571 = vld [vmem:[%s272 + $0x6f0] sm:$0xff]
        %v572 = vld [vmem:[%s272 + $0x6f8] sm:$0xff]
        %v573 = vld [vmem:[%s272 + $0x700] sm:$0xff]
        %v574 = vld [vmem:[%s272 + $0x708] sm:$0xff]
        %v575 = vld [vmem:[%s272 + $0x710] sm:$0xff]
        %v576 = vld [vmem:[%s272 + $0x718] sm:$0xff]
        %v577 = vld [vmem:[%s272 + $0x720] sm:$0xff]
        %v578 = vld [vmem:[%s272 + $0x728] sm:$0xff]
        %v579 = vld [vmem:[%s272 + $0x730] sm:$0xff]
        %v580 = vld [vmem:[%s272 + $0x738] sm:$0xff]
        %v581 = vld [vmem:[%s272 + $0x740] sm:$0xff]
        %v582 = vld [vmem:[%s272 + $0x748] sm:$0xff]
        %v583 = vld [vmem:[%s272 + $0x750] sm:$0xff]
        %v584 = vld [vmem:[%s272 + $0x758] sm:$0xff]
        %v585 = vld [vmem:[%s272 + $0x760] sm:$0xff]
        %v586 = vld [vmem:[%s272 + $0x768] sm:$0xff]
        %v587 = vld [vmem:[%s272 + $0x770] sm:$0xff]
        %v588 = vld [vmem:[%s272 + $0x778] sm:$0xff]
        %v589 = vld [vmem:[%s272 + $0x780] sm:$0xff]
        %v590 = vld [vmem:[%s272 + $0x788] sm:$0xff]
        %v591 = vld [vmem:[%s272 + $0x790] sm:$0xff]
        %v592 = vld [vmem:[%s272 + $0x798] sm:$0xff]
        %v593 = vld [vmem:[%s272 + $0x7a0] sm:$0xff]
        %v594 = vld [vmem:[%s272 + $0x7a8] sm:$0xff]
        %v595 = vld [vmem:[%s272 + $0x7b0] sm:$0xff]
        %v596 = vld [vmem:[%s272 + $0x7b8] sm:$0xff]
        %v597 = vld [vmem:[%s272 + $0x7c0] sm:$0xff]
        %v598 = vld [vmem:[%s272 + $0x7c8] sm:$0xff]
        %v599 = vld [vmem:[%s272 + $0x7d0] sm:$0xff]
        %v600 = vld [vmem:[%s272 + $0x7d8] sm:$0xff]
        %v601 = vld [vmem:[%s272 + $0x7e0] sm:$0xff]
        %v602 = vld [vmem:[%s272 + $0x7e8] sm:$0xff]
        %v603 = vld [vmem:[%s272 + $0x7f0] sm:$0xff]
        %v604 = vld [vmem:[%s272 + $0x7f8] sm:$0xff]
        %v605 = vld [vmem:[%s272 + $0x800] sm:$0xff]
        %v606 = vld [vmem:[%s272 + $0x808] sm:$0xff]
        %v607 = vld [vmem:[%s272 + $0x810] sm:$0xff]
        %v608 = vld [vmem:[%s272 + $0x818] sm:$0xff]
        %v609 = vld [vmem:[%s272 + $0x820] sm:$0xff]
        %v610 = vld [vmem:[%s272 + $0x828] sm:$0xff]
        %v611 = vld [vmem:[%s272 + $0x830] sm:$0xff]
        %v612 = vld [vmem:[%s272 + $0x838] sm:$0xff]
        %v613 = vld [vmem:[%s272 + $0x840] sm:$0xff]
        %v614 = vld [vmem:[%s272 + $0x848] sm:$0xff]
        %v615 = vld [vmem:[%s272 + $0x850] sm:$0xff]
        %v616 = vld [vmem:[%s272 + $0x858] sm:$0xff]
        %v617 = vld [vmem:[%s272 + $0x860] sm:$0xff]
        %v618 = vld [vmem:[%s272 + $0x868] sm:$0xff]
        %v619 = vld [vmem:[%s272 + $0x870] sm:$0xff]
        %v620 = vld [vmem:[%s272 + $0x878] sm:$0xff]
        %v621 = vld [vmem:[%s272 + $0x880] sm:$0xff]
        %v622 = vld [vmem:[%s272 + $0x888] sm:$0xff]
        %v623 = vld [vmem:[%s272 + $0x890] sm:$0xff]
        %v624 = vld [vmem:[%s272 + $0x898] sm:$0xff]
        %v625 = vld [vmem:[%s272 + $0x8a0] sm:$0xff]
        %v626 = vld [vmem:[%s272 + $0x8a8] sm:$0xff]
        %v627 = vld [vmem:[%s272 + $0x8b0] sm:$0xff]
        %v628 = vld [vmem:[%s272 + $0x8b8] sm:$0xff]
        %v629 = vld [vmem:[%s272 + $0x8c0] sm:$0xff]
        %v630 = vld [vmem:[%s272 + $0x8c8] sm:$0xff]
        %v631 = vld [vmem:[%s272 + $0x8d0] sm:$0xff]
        %v632 = vld [vmem:[%s272 + $0x8d8] sm:$0xff]
        %v633 = vld [vmem:[%s272 + $0x8e0] sm:$0xff]
        %v634 = vld [vmem:[%s272 + $0x8e8] sm:$0xff]
        %v635 = vld [vmem:[%s272 + $0x8f0] sm:$0xff]
        %v636 = vld [vmem:[%s272 + $0x8f8] sm:$0xff]
        %v637 = vld [vmem:[%s272 + $0x900] sm:$0xff]
        %v638 = vld [vmem:[%s272 + $0x908] sm:$0xff]
        %v639 = vld [vmem:[%s272 + $0x910] sm:$0xff]
        %v640 = vld [vmem:[%s272 + $0x918] sm:$0xff]
        %v641 = vld [vmem:[%s272 + $0x920] sm:$0xff]
        %v642 = vld [vmem:[%s272 + $0x928] sm:$0xff]
        %v643 = vld [vmem:[%s272 + $0x930] sm:$0xff]
        %v644 = vld [vmem:[%s272 + $0x938] sm:$0xff]
        %v645 = vld [vmem:[%s272 + $0x940] sm:$0xff]
        %v646 = vld [vmem:[%s272 + $0x948] sm:$0xff]
        %v647 = vld [vmem:[%s272 + $0x950] sm:$0xff]
        %v648 = vld [vmem:[%s272 + $0x958] sm:$0xff]
        %v649 = vld [vmem:[%s272 + $0x960] sm:$0xff]
        %v650 = vld [vmem:[%s272 + $0x968] sm:$0xff]
        %v651 = vld [vmem:[%s272 + $0x970] sm:$0xff]
        %v652 = vld [vmem:[%s272 + $0x978] sm:$0xff]
        %v653 = vld [vmem:[%s272 + $0x980] sm:$0xff]
        %v654 = vld [vmem:[%s272 + $0x988] sm:$0xff]
        %v655 = vld [vmem:[%s272 + $0x990] sm:$0xff]
        %v656 = vld [vmem:[%s272 + $0x998] sm:$0xff]
        %v657 = vld [vmem:[%s272 + $0x9a0] sm:$0xff]
        %v658 = vld [vmem:[%s272 + $0x9a8] sm:$0xff]
        %v659 = vld [vmem:[%s272 + $0x9b0] sm:$0xff]
        %v660 = vld [vmem:[%s272 + $0x9b8] sm:$0xff]
        %v661 = vld [vmem:[%s272 + $0x9c0] sm:$0xff]
        %v662 = vld [vmem:[%s272 + $0x9c8] sm:$0xff]
        %v663 = vld [vmem:[%s272 + $0x9d0] sm:$0xff]
        %v664 = vld [vmem:[%s272 + $0x9d8] sm:$0xff]
        %v665 = vld [vmem:[%s272 + $0x9e0] sm:$0xff]
        %v666 = vld [vmem:[%s272 + $0x9e8] sm:$0xff]
        %v667 = vld [vmem:[%s272 + $0x9f0] sm:$0xff]
        %v668 = vld [vmem:[%s272 + $0x9f8] sm:$0xff]
        %v679 = vunpack.c.l.b16 %v339
        %v680 = vunpack.c.h.b16 %v339
        %v681 = vunpack.c.l.b16 %v340
        %v682 = vunpack.c.h.b16 %v340
        %v683 = vunpack.c.l.b16 %v341
        %v684 = vunpack.c.h.b16 %v341
        %v685 = vunpack.c.l.b16 %v342
        %v686 = vunpack.c.h.b16 %v342
        %v687 = vunpack.c.l.b16 %v343
        %v688 = vunpack.c.h.b16 %v343
        %v689 = vunpack.c.l.b16 %v344
        %v690 = vunpack.c.h.b16 %v344
        %v691 = vunpack.c.l.b16 %v345
        %v692 = vunpack.c.h.b16 %v345
        %v693 = vunpack.c.l.b16 %v346
        %v694 = vunpack.c.h.b16 %v346
        %v695 = vunpack.c.l.b16 %v347
        %v696 = vunpack.c.h.b16 %v347
        %v697 = vunpack.c.l.b16 %v348
        %v698 = vunpack.c.h.b16 %v348
        %v699 = vpack.c.b16 %v689, %v679
        %v700 = vpack.c.b16 %v690, %v680
        %v701 = vpack.c.b16 %v691, %v681
        %v702 = vpack.c.b16 %v692, %v682
        %v703 = vpack.c.b16 %v693, %v683
        %v704 = vpack.c.b16 %v694, %v684
        %v705 = vpack.c.b16 %v695, %v685
        %v706 = vpack.c.b16 %v696, %v686
        %v707 = vpack.c.b16 %v697, %v687
        %v708 = vpack.c.b16 %v698, %v688
        %v1039 = vunpack.c.l.b16 %v349
        %v1040 = vunpack.c.h.b16 %v349
        %v1041 = vunpack.c.l.b16 %v350
        %v1042 = vunpack.c.h.b16 %v350
        %v1043 = vunpack.c.l.b16 %v351
        %v1044 = vunpack.c.h.b16 %v351
        %v1045 = vunpack.c.l.b16 %v352
        %v1046 = vunpack.c.h.b16 %v352
        %v1047 = vunpack.c.l.b16 %v353
        %v1048 = vunpack.c.h.b16 %v353
        %v1049 = vunpack.c.l.b16 %v354
        %v1050 = vunpack.c.h.b16 %v354
        %v1051 = vunpack.c.l.b16 %v355
        %v1052 = vunpack.c.h.b16 %v355
        %v1053 = vunpack.c.l.b16 %v356
        %v1054 = vunpack.c.h.b16 %v356
        %v1055 = vunpack.c.l.b16 %v357
        %v1056 = vunpack.c.h.b16 %v357
        %v1057 = vunpack.c.l.b16 %v358
        %v1058 = vunpack.c.h.b16 %v358
        %v1059 = vunpack.c.l.b16 %v359
        %v1060 = vunpack.c.h.b16 %v359
        %v1061 = vunpack.c.l.b16 %v360
        %v1062 = vunpack.c.h.b16 %v360
        %v1063 = vunpack.c.l.b16 %v361
        %v1064 = vunpack.c.h.b16 %v361
        %v1065 = vunpack.c.l.b16 %v362
        %v1066 = vunpack.c.h.b16 %v362
        %v1067 = vunpack.c.l.b16 %v363
        %v1068 = vunpack.c.h.b16 %v363
        %v1069 = vunpack.c.l.b16 %v364
        %v1070 = vunpack.c.h.b16 %v364
        %v1071 = vunpack.c.l.b16 %v365
        %v1072 = vunpack.c.h.b16 %v365
        %v1073 = vunpack.c.l.b16 %v366
        %v1074 = vunpack.c.h.b16 %v366
        %v1075 = vunpack.c.l.b16 %v367
        %v1076 = vunpack.c.h.b16 %v367
        %v1077 = vunpack.c.l.b16 %v368
        %v1078 = vunpack.c.h.b16 %v368
        %v1079 = vunpack.c.l.b16 %v369
        %v1080 = vunpack.c.h.b16 %v369
        %v1081 = vunpack.c.l.b16 %v370
        %v1082 = vunpack.c.h.b16 %v370
        %v1083 = vunpack.c.l.b16 %v371
        %v1084 = vunpack.c.h.b16 %v371
        %v1085 = vunpack.c.l.b16 %v372
        %v1086 = vunpack.c.h.b16 %v372
        %v1087 = vunpack.c.l.b16 %v373
        %v1088 = vunpack.c.h.b16 %v373
        %v1089 = vunpack.c.l.b16 %v374
        %v1090 = vunpack.c.h.b16 %v374
        %v1091 = vunpack.c.l.b16 %v375
        %v1092 = vunpack.c.h.b16 %v375
        %v1093 = vunpack.c.l.b16 %v376
        %v1094 = vunpack.c.h.b16 %v376
        %v1095 = vunpack.c.l.b16 %v377
        %v1096 = vunpack.c.h.b16 %v377
        %v1097 = vunpack.c.l.b16 %v378
        %v1098 = vunpack.c.h.b16 %v378
        %v1099 = vunpack.c.l.b16 %v379
        %v1100 = vunpack.c.h.b16 %v379
        %v1101 = vunpack.c.l.b16 %v380
        %v1102 = vunpack.c.h.b16 %v380
        %v1103 = vunpack.c.l.b16 %v381
        %v1104 = vunpack.c.h.b16 %v381
        %v1105 = vunpack.c.l.b16 %v382
        %v1106 = vunpack.c.h.b16 %v382
        %v1107 = vunpack.c.l.b16 %v383
        %v1108 = vunpack.c.h.b16 %v383
        %v1109 = vunpack.c.l.b16 %v384
        %v1110 = vunpack.c.h.b16 %v384
        %v1111 = vunpack.c.l.b16 %v385
        %v1112 = vunpack.c.h.b16 %v385
        %v1113 = vunpack.c.l.b16 %v386
        %v1114 = vunpack.c.h.b16 %v386
        %v1115 = vunpack.c.l.b16 %v387
        %v1116 = vunpack.c.h.b16 %v387
        %v1117 = vunpack.c.l.b16 %v388
        %v1118 = vunpack.c.h.b16 %v388
        %v1119 = vunpack.c.l.b16 %v389
        %v1120 = vunpack.c.h.b16 %v389
        %v1121 = vunpack.c.l.b16 %v390
        %v1122 = vunpack.c.h.b16 %v390
        %v1123 = vunpack.c.l.b16 %v391
        %v1124 = vunpack.c.h.b16 %v391
        %v1125 = vunpack.c.l.b16 %v392
        %v1126 = vunpack.c.h.b16 %v392
        %v1127 = vunpack.c.l.b16 %v393
        %v1128 = vunpack.c.h.b16 %v393
        %v1129 = vunpack.c.l.b16 %v394
        %v1130 = vunpack.c.h.b16 %v394
        %v1131 = vunpack.c.l.b16 %v395
        %v1132 = vunpack.c.h.b16 %v395
        %v1133 = vunpack.c.l.b16 %v396
        %v1134 = vunpack.c.h.b16 %v396
        %v1135 = vunpack.c.l.b16 %v397
        %v1136 = vunpack.c.h.b16 %v397
        %v1137 = vunpack.c.l.b16 %v398
        %v1138 = vunpack.c.h.b16 %v398
        %v1139 = vunpack.c.l.b16 %v399
        %v1140 = vunpack.c.h.b16 %v399
        %v1141 = vunpack.c.l.b16 %v400
        %v1142 = vunpack.c.h.b16 %v400
        %v1143 = vunpack.c.l.b16 %v401
        %v1144 = vunpack.c.h.b16 %v401
        %v1145 = vunpack.c.l.b16 %v402
        %v1146 = vunpack.c.h.b16 %v402
        %v1147 = vunpack.c.l.b16 %v403
        %v1148 = vunpack.c.h.b16 %v403
        %v1149 = vunpack.c.l.b16 %v404
        %v1150 = vunpack.c.h.b16 %v404
        %v1151 = vunpack.c.l.b16 %v405
        %v1152 = vunpack.c.h.b16 %v405
        %v1153 = vunpack.c.l.b16 %v406
        %v1154 = vunpack.c.h.b16 %v406
        %v1155 = vunpack.c.l.b16 %v407
        %v1156 = vunpack.c.h.b16 %v407
        %v1157 = vunpack.c.l.b16 %v408
        %v1158 = vunpack.c.h.b16 %v408
        %v1159 = vunpack.c.l.b16 %v409
        %v1160 = vunpack.c.h.b16 %v409
        %v1161 = vunpack.c.l.b16 %v410
        %v1162 = vunpack.c.h.b16 %v410
        %v1163 = vunpack.c.l.b16 %v411
        %v1164 = vunpack.c.h.b16 %v411
        %v1165 = vunpack.c.l.b16 %v412
        %v1166 = vunpack.c.h.b16 %v412
        %v1167 = vunpack.c.l.b16 %v413
        %v1168 = vunpack.c.h.b16 %v413
        %v1169 = vunpack.c.l.b16 %v414
        %v1170 = vunpack.c.h.b16 %v414
        %v1171 = vunpack.c.l.b16 %v415
        %v1172 = vunpack.c.h.b16 %v415
        %v1173 = vunpack.c.l.b16 %v416
        %v1174 = vunpack.c.h.b16 %v416
        %v1175 = vunpack.c.l.b16 %v417
        %v1176 = vunpack.c.h.b16 %v417
        %v1177 = vunpack.c.l.b16 %v418
        %v1178 = vunpack.c.h.b16 %v418
        %v1179 = vunpack.c.l.b16 %v419
        %v1180 = vunpack.c.h.b16 %v419
        %v1181 = vunpack.c.l.b16 %v420
        %v1182 = vunpack.c.h.b16 %v420
        %v1183 = vunpack.c.l.b16 %v421
        %v1184 = vunpack.c.h.b16 %v421
        %v1185 = vunpack.c.l.b16 %v422
        %v1186 = vunpack.c.h.b16 %v422
        %v1187 = vunpack.c.l.b16 %v423
        %v1188 = vunpack.c.h.b16 %v423
        %v1189 = vunpack.c.l.b16 %v424
        %v1190 = vunpack.c.h.b16 %v424
        %v1191 = vunpack.c.l.b16 %v425
        %v1192 = vunpack.c.h.b16 %v425
        %v1193 = vunpack.c.l.b16 %v426
        %v1194 = vunpack.c.h.b16 %v426
        %v1195 = vunpack.c.l.b16 %v427
        %v1196 = vunpack.c.h.b16 %v427
        %v1197 = vunpack.c.l.b16 %v428
        %v1198 = vunpack.c.h.b16 %v428
        %v1199 = vunpack.c.l.b16 %v429
        %v1200 = vunpack.c.h.b16 %v429
        %v1201 = vunpack.c.l.b16 %v430
        %v1202 = vunpack.c.h.b16 %v430
        %v1203 = vunpack.c.l.b16 %v431
        %v1204 = vunpack.c.h.b16 %v431
        %v1205 = vunpack.c.l.b16 %v432
        %v1206 = vunpack.c.h.b16 %v432
        %v1207 = vunpack.c.l.b16 %v433
        %v1208 = vunpack.c.h.b16 %v433
        %v1209 = vunpack.c.l.b16 %v434
        %v1210 = vunpack.c.h.b16 %v434
        %v1211 = vunpack.c.l.b16 %v435
        %v1212 = vunpack.c.h.b16 %v435
        %v1213 = vunpack.c.l.b16 %v436
        %v1214 = vunpack.c.h.b16 %v436
        %v1215 = vunpack.c.l.b16 %v437
        %v1216 = vunpack.c.h.b16 %v437
        %v1217 = vunpack.c.l.b16 %v438
        %v1218 = vunpack.c.h.b16 %v438
        %v1219 = vunpack.c.l.b16 %v439
        %v1220 = vunpack.c.h.b16 %v439
        %v1221 = vunpack.c.l.b16 %v440
        %v1222 = vunpack.c.h.b16 %v440
        %v1223 = vunpack.c.l.b16 %v441
        %v1224 = vunpack.c.h.b16 %v441
        %v1225 = vunpack.c.l.b16 %v442
        %v1226 = vunpack.c.h.b16 %v442
        %v1227 = vunpack.c.l.b16 %v443
        %v1228 = vunpack.c.h.b16 %v443
        %v1229 = vunpack.c.l.b16 %v444
        %v1230 = vunpack.c.h.b16 %v444
        %v1231 = vunpack.c.l.b16 %v445
        %v1232 = vunpack.c.h.b16 %v445
        %v1233 = vunpack.c.l.b16 %v446
        %v1234 = vunpack.c.h.b16 %v446
        %v1235 = vunpack.c.l.b16 %v447
        %v1236 = vunpack.c.h.b16 %v447
        %v1237 = vunpack.c.l.b16 %v448
        %v1238 = vunpack.c.h.b16 %v448
        %v1239 = vunpack.c.l.b16 %v449
        %v1240 = vunpack.c.h.b16 %v449
        %v1241 = vunpack.c.l.b16 %v450
        %v1242 = vunpack.c.h.b16 %v450
        %v1243 = vunpack.c.l.b16 %v451
        %v1244 = vunpack.c.h.b16 %v451
        %v1245 = vunpack.c.l.b16 %v452
        %v1246 = vunpack.c.h.b16 %v452
        %v1247 = vunpack.c.l.b16 %v453
        %v1248 = vunpack.c.h.b16 %v453
        %v1249 = vunpack.c.l.b16 %v454
        %v1250 = vunpack.c.h.b16 %v454
        %v1251 = vunpack.c.l.b16 %v455
        %v1252 = vunpack.c.h.b16 %v455
        %v1253 = vunpack.c.l.b16 %v456
        %v1254 = vunpack.c.h.b16 %v456
        %v1255 = vunpack.c.l.b16 %v457
        %v1256 = vunpack.c.h.b16 %v457
        %v1257 = vunpack.c.l.b16 %v458
        %v1258 = vunpack.c.h.b16 %v458
        %v1259 = vunpack.c.l.b16 %v459
        %v1260 = vunpack.c.h.b16 %v459
        %v1261 = vunpack.c.l.b16 %v460
        %v1262 = vunpack.c.h.b16 %v460
        %v1263 = vunpack.c.l.b16 %v461
        %v1264 = vunpack.c.h.b16 %v461
        %v1265 = vunpack.c.l.b16 %v462
        %v1266 = vunpack.c.h.b16 %v462
        %v1267 = vunpack.c.l.b16 %v463
        %v1268 = vunpack.c.h.b16 %v463
        %v1269 = vunpack.c.l.b16 %v464
        %v1270 = vunpack.c.h.b16 %v464
        %v1271 = vunpack.c.l.b16 %v465
        %v1272 = vunpack.c.h.b16 %v465
        %v1273 = vunpack.c.l.b16 %v466
        %v1274 = vunpack.c.h.b16 %v466
        %v1275 = vunpack.c.l.b16 %v467
        %v1276 = vunpack.c.h.b16 %v467
        %v1277 = vunpack.c.l.b16 %v468
        %v1278 = vunpack.c.h.b16 %v468
        %v1279 = vunpack.c.l.b16 %v469
        %v1280 = vunpack.c.h.b16 %v469
        %v1281 = vunpack.c.l.b16 %v470
        %v1282 = vunpack.c.h.b16 %v470
        %v1283 = vunpack.c.l.b16 %v471
        %v1284 = vunpack.c.h.b16 %v471
        %v1285 = vunpack.c.l.b16 %v472
        %v1286 = vunpack.c.h.b16 %v472
        %v1287 = vunpack.c.l.b16 %v473
        %v1288 = vunpack.c.h.b16 %v473
        %v1289 = vunpack.c.l.b16 %v474
        %v1290 = vunpack.c.h.b16 %v474
        %v1291 = vunpack.c.l.b16 %v475
        %v1292 = vunpack.c.h.b16 %v475
        %v1293 = vunpack.c.l.b16 %v476
        %v1294 = vunpack.c.h.b16 %v476
        %v1295 = vunpack.c.l.b16 %v477
        %v1296 = vunpack.c.h.b16 %v477
        %v1297 = vunpack.c.l.b16 %v478
        %v1298 = vunpack.c.h.b16 %v478
        %v1299 = vunpack.c.l.b16 %v479
        %v1300 = vunpack.c.h.b16 %v479
        %v1301 = vunpack.c.l.b16 %v480
        %v1302 = vunpack.c.h.b16 %v480
        %v1303 = vunpack.c.l.b16 %v481
        %v1304 = vunpack.c.h.b16 %v481
        %v1305 = vunpack.c.l.b16 %v482
        %v1306 = vunpack.c.h.b16 %v482
        %v1307 = vunpack.c.l.b16 %v483
        %v1308 = vunpack.c.h.b16 %v483
        %v1309 = vunpack.c.l.b16 %v484
        %v1310 = vunpack.c.h.b16 %v484
        %v1311 = vunpack.c.l.b16 %v485
        %v1312 = vunpack.c.h.b16 %v485
        %v1313 = vunpack.c.l.b16 %v486
        %v1314 = vunpack.c.h.b16 %v486
        %v1315 = vunpack.c.l.b16 %v487
        %v1316 = vunpack.c.h.b16 %v487
        %v1317 = vunpack.c.l.b16 %v488
        %v1318 = vunpack.c.h.b16 %v488
        %v1319 = vunpack.c.l.b16 %v489
        %v1320 = vunpack.c.h.b16 %v489
        %v1321 = vunpack.c.l.b16 %v490
        %v1322 = vunpack.c.h.b16 %v490
        %v1323 = vunpack.c.l.b16 %v491
        %v1324 = vunpack.c.h.b16 %v491
        %v1325 = vunpack.c.l.b16 %v492
        %v1326 = vunpack.c.h.b16 %v492
        %v1327 = vunpack.c.l.b16 %v493
        %v1328 = vunpack.c.h.b16 %v493
        %v1329 = vunpack.c.l.b16 %v494
        %v1330 = vunpack.c.h.b16 %v494
        %v1331 = vunpack.c.l.b16 %v495
        %v1332 = vunpack.c.h.b16 %v495
        %v1333 = vunpack.c.l.b16 %v496
        %v1334 = vunpack.c.h.b16 %v496
        %v1335 = vunpack.c.l.b16 %v497
        %v1336 = vunpack.c.h.b16 %v497
        %v1337 = vunpack.c.l.b16 %v498
        %v1338 = vunpack.c.h.b16 %v498
        %v1339 = vunpack.c.l.b16 %v499
        %v1340 = vunpack.c.h.b16 %v499
        %v1341 = vunpack.c.l.b16 %v500
        %v1342 = vunpack.c.h.b16 %v500
        %v1343 = vunpack.c.l.b16 %v501
        %v1344 = vunpack.c.h.b16 %v501
        %v1345 = vunpack.c.l.b16 %v502
        %v1346 = vunpack.c.h.b16 %v502
        %v1347 = vunpack.c.l.b16 %v503
        %v1348 = vunpack.c.h.b16 %v503
        %v1349 = vunpack.c.l.b16 %v504
        %v1350 = vunpack.c.h.b16 %v504
        %v1351 = vunpack.c.l.b16 %v505
        %v1352 = vunpack.c.h.b16 %v505
        %v1353 = vunpack.c.l.b16 %v506
        %v1354 = vunpack.c.h.b16 %v506
        %v1355 = vunpack.c.l.b16 %v507
        %v1356 = vunpack.c.h.b16 %v507
        %v1357 = vunpack.c.l.b16 %v508
        %v1358 = vunpack.c.h.b16 %v508
        %v1359 = vunpack.c.l.b16 %v509
        %v1360 = vunpack.c.h.b16 %v509
        %v1361 = vunpack.c.l.b16 %v510
        %v1362 = vunpack.c.h.b16 %v510
        %v1363 = vunpack.c.l.b16 %v511
        %v1364 = vunpack.c.h.b16 %v511
        %v1365 = vunpack.c.l.b16 %v512
        %v1366 = vunpack.c.h.b16 %v512
        %v1367 = vunpack.c.l.b16 %v513
        %v1368 = vunpack.c.h.b16 %v513
        %v1369 = vunpack.c.l.b16 %v514
        %v1370 = vunpack.c.h.b16 %v514
        %v1371 = vunpack.c.l.b16 %v515
        %v1372 = vunpack.c.h.b16 %v515
        %v1373 = vunpack.c.l.b16 %v516
        %v1374 = vunpack.c.h.b16 %v516
        %v1375 = vunpack.c.l.b16 %v517
        %v1376 = vunpack.c.h.b16 %v517
        %v1377 = vunpack.c.l.b16 %v518
        %v1378 = vunpack.c.h.b16 %v518
        %v1379 = vunpack.c.l.b16 %v519
        %v1380 = vunpack.c.h.b16 %v519
        %v1381 = vunpack.c.l.b16 %v520
        %v1382 = vunpack.c.h.b16 %v520
        %v1383 = vunpack.c.l.b16 %v521
        %v1384 = vunpack.c.h.b16 %v521
        %v1385 = vunpack.c.l.b16 %v522
        %v1386 = vunpack.c.h.b16 %v522
        %v1387 = vunpack.c.l.b16 %v523
        %v1388 = vunpack.c.h.b16 %v523
        %v1389 = vunpack.c.l.b16 %v524
        %v1390 = vunpack.c.h.b16 %v524
        %v1391 = vunpack.c.l.b16 %v525
        %v1392 = vunpack.c.h.b16 %v525
        %v1393 = vunpack.c.l.b16 %v526
        %v1394 = vunpack.c.h.b16 %v526
        %v1395 = vunpack.c.l.b16 %v527
        %v1396 = vunpack.c.h.b16 %v527
        %v1397 = vunpack.c.l.b16 %v528
        %v1398 = vunpack.c.h.b16 %v528
        %v1399 = vunpack.c.l.b16 %v529
        %v1400 = vunpack.c.h.b16 %v529
        %v1401 = vunpack.c.l.b16 %v530
        %v1402 = vunpack.c.h.b16 %v530
        %v1403 = vunpack.c.l.b16 %v531
        %v1404 = vunpack.c.h.b16 %v531
        %v1405 = vunpack.c.l.b16 %v532
        %v1406 = vunpack.c.h.b16 %v532
        %v1407 = vunpack.c.l.b16 %v533
        %v1408 = vunpack.c.h.b16 %v533
        %v1409 = vunpack.c.l.b16 %v534
        %v1410 = vunpack.c.h.b16 %v534
        %v1411 = vunpack.c.l.b16 %v535
        %v1412 = vunpack.c.h.b16 %v535
        %v1413 = vunpack.c.l.b16 %v536
        %v1414 = vunpack.c.h.b16 %v536
        %v1415 = vunpack.c.l.b16 %v537
        %v1416 = vunpack.c.h.b16 %v537
        %v1417 = vunpack.c.l.b16 %v538
        %v1418 = vunpack.c.h.b16 %v538
        %v1419 = vunpack.c.l.b16 %v539
        %v1420 = vunpack.c.h.b16 %v539
        %v1421 = vunpack.c.l.b16 %v540
        %v1422 = vunpack.c.h.b16 %v540
        %v1423 = vunpack.c.l.b16 %v541
        %v1424 = vunpack.c.h.b16 %v541
        %v1425 = vunpack.c.l.b16 %v542
        %v1426 = vunpack.c.h.b16 %v542
        %v1427 = vunpack.c.l.b16 %v543
        %v1428 = vunpack.c.h.b16 %v543
        %v1429 = vunpack.c.l.b16 %v544
        %v1430 = vunpack.c.h.b16 %v544
        %v1431 = vunpack.c.l.b16 %v545
        %v1432 = vunpack.c.h.b16 %v545
        %v1433 = vunpack.c.l.b16 %v546
        %v1434 = vunpack.c.h.b16 %v546
        %v1435 = vunpack.c.l.b16 %v547
        %v1436 = vunpack.c.h.b16 %v547
        %v1437 = vunpack.c.l.b16 %v548
        %v1438 = vunpack.c.h.b16 %v548
        %v1439 = vunpack.c.l.b16 %v549
        %v1440 = vunpack.c.h.b16 %v549
        %v1441 = vunpack.c.l.b16 %v550
        %v1442 = vunpack.c.h.b16 %v550
        %v1443 = vunpack.c.l.b16 %v551
        %v1444 = vunpack.c.h.b16 %v551
        %v1445 = vunpack.c.l.b16 %v552
        %v1446 = vunpack.c.h.b16 %v552
        %v1447 = vunpack.c.l.b16 %v553
        %v1448 = vunpack.c.h.b16 %v553
        %v1449 = vunpack.c.l.b16 %v554
        %v1450 = vunpack.c.h.b16 %v554
        %v1451 = vunpack.c.l.b16 %v555
        %v1452 = vunpack.c.h.b16 %v555
        %v1453 = vunpack.c.l.b16 %v556
        %v1454 = vunpack.c.h.b16 %v556
        %v1455 = vunpack.c.l.b16 %v557
        %v1456 = vunpack.c.h.b16 %v557
        %v1457 = vunpack.c.l.b16 %v558
        %v1458 = vunpack.c.h.b16 %v558
        %v1459 = vunpack.c.l.b16 %v559
        %v1460 = vunpack.c.h.b16 %v559
        %v1461 = vunpack.c.l.b16 %v560
        %v1462 = vunpack.c.h.b16 %v560
        %v1463 = vunpack.c.l.b16 %v561
        %v1464 = vunpack.c.h.b16 %v561
        %v1465 = vunpack.c.l.b16 %v562
        %v1466 = vunpack.c.h.b16 %v562
        %v1467 = vunpack.c.l.b16 %v563
        %v1468 = vunpack.c.h.b16 %v563
        %v1469 = vunpack.c.l.b16 %v564
        %v1470 = vunpack.c.h.b16 %v564
        %v1471 = vunpack.c.l.b16 %v565
        %v1472 = vunpack.c.h.b16 %v565
        %v1473 = vunpack.c.l.b16 %v566
        %v1474 = vunpack.c.h.b16 %v566
        %v1475 = vunpack.c.l.b16 %v567
        %v1476 = vunpack.c.h.b16 %v567
        %v1477 = vunpack.c.l.b16 %v568
        %v1478 = vunpack.c.h.b16 %v568
        %v1479 = vunpack.c.l.b16 %v569
        %v1480 = vunpack.c.h.b16 %v569
        %v1481 = vunpack.c.l.b16 %v570
        %v1482 = vunpack.c.h.b16 %v570
        %v1483 = vunpack.c.l.b16 %v571
        %v1484 = vunpack.c.h.b16 %v571
        %v1485 = vunpack.c.l.b16 %v572
        %v1486 = vunpack.c.h.b16 %v572
        %v1487 = vunpack.c.l.b16 %v573
        %v1488 = vunpack.c.h.b16 %v573
        %v1489 = vunpack.c.l.b16 %v574
        %v1490 = vunpack.c.h.b16 %v574
        %v1491 = vunpack.c.l.b16 %v575
        %v1492 = vunpack.c.h.b16 %v575
        %v1493 = vunpack.c.l.b16 %v576
        %v1494 = vunpack.c.h.b16 %v576
        %v1495 = vunpack.c.l.b16 %v577
        %v1496 = vunpack.c.h.b16 %v577
        %v1497 = vunpack.c.l.b16 %v578
        %v1498 = vunpack.c.h.b16 %v578
        %v1499 = vunpack.c.l.b16 %v579
        %v1500 = vunpack.c.h.b16 %v579
        %v1501 = vunpack.c.l.b16 %v580
        %v1502 = vunpack.c.h.b16 %v580
        %v1503 = vunpack.c.l.b16 %v581
        %v1504 = vunpack.c.h.b16 %v581
        %v1505 = vunpack.c.l.b16 %v582
        %v1506 = vunpack.c.h.b16 %v582
        %v1507 = vunpack.c.l.b16 %v583
        %v1508 = vunpack.c.h.b16 %v583
        %v1509 = vunpack.c.l.b16 %v584
        %v1510 = vunpack.c.h.b16 %v584
        %v1511 = vunpack.c.l.b16 %v585
        %v1512 = vunpack.c.h.b16 %v585
        %v1513 = vunpack.c.l.b16 %v586
        %v1514 = vunpack.c.h.b16 %v586
        %v1515 = vunpack.c.l.b16 %v587
        %v1516 = vunpack.c.h.b16 %v587
        %v1517 = vunpack.c.l.b16 %v588
        %v1518 = vunpack.c.h.b16 %v588
        %v1519 = vunpack.c.l.b16 %v589
        %v1520 = vunpack.c.h.b16 %v589
        %v1521 = vunpack.c.l.b16 %v590
        %v1522 = vunpack.c.h.b16 %v590
        %v1523 = vunpack.c.l.b16 %v591
        %v1524 = vunpack.c.h.b16 %v591
        %v1525 = vunpack.c.l.b16 %v592
        %v1526 = vunpack.c.h.b16 %v592
        %v1527 = vunpack.c.l.b16 %v593
        %v1528 = vunpack.c.h.b16 %v593
        %v1529 = vunpack.c.l.b16 %v594
        %v1530 = vunpack.c.h.b16 %v594
        %v1531 = vunpack.c.l.b16 %v595
        %v1532 = vunpack.c.h.b16 %v595
        %v1533 = vunpack.c.l.b16 %v596
        %v1534 = vunpack.c.h.b16 %v596
        %v1535 = vunpack.c.l.b16 %v597
        %v1536 = vunpack.c.h.b16 %v597
        %v1537 = vunpack.c.l.b16 %v598
        %v1538 = vunpack.c.h.b16 %v598
        %v1539 = vunpack.c.l.b16 %v599
        %v1540 = vunpack.c.h.b16 %v599
        %v1541 = vunpack.c.l.b16 %v600
        %v1542 = vunpack.c.h.b16 %v600
        %v1543 = vunpack.c.l.b16 %v601
        %v1544 = vunpack.c.h.b16 %v601
        %v1545 = vunpack.c.l.b16 %v602
        %v1546 = vunpack.c.h.b16 %v602
        %v1547 = vunpack.c.l.b16 %v603
        %v1548 = vunpack.c.h.b16 %v603
        %v1549 = vunpack.c.l.b16 %v604
        %v1550 = vunpack.c.h.b16 %v604
        %v1551 = vunpack.c.l.b16 %v605
        %v1552 = vunpack.c.h.b16 %v605
        %v1553 = vunpack.c.l.b16 %v606
        %v1554 = vunpack.c.h.b16 %v606
        %v1555 = vunpack.c.l.b16 %v607
        %v1556 = vunpack.c.h.b16 %v607
        %v1557 = vunpack.c.l.b16 %v608
        %v1558 = vunpack.c.h.b16 %v608
        %v1559 = vunpack.c.l.b16 %v609
        %v1560 = vunpack.c.h.b16 %v609
        %v1561 = vunpack.c.l.b16 %v610
        %v1562 = vunpack.c.h.b16 %v610
        %v1563 = vunpack.c.l.b16 %v611
        %v1564 = vunpack.c.h.b16 %v611
        %v1565 = vunpack.c.l.b16 %v612
        %v1566 = vunpack.c.h.b16 %v612
        %v1567 = vunpack.c.l.b16 %v613
        %v1568 = vunpack.c.h.b16 %v613
        %v1569 = vunpack.c.l.b16 %v614
        %v1570 = vunpack.c.h.b16 %v614
        %v1571 = vunpack.c.l.b16 %v615
        %v1572 = vunpack.c.h.b16 %v615
        %v1573 = vunpack.c.l.b16 %v616
        %v1574 = vunpack.c.h.b16 %v616
        %v1575 = vunpack.c.l.b16 %v617
        %v1576 = vunpack.c.h.b16 %v617
        %v1577 = vunpack.c.l.b16 %v618
        %v1578 = vunpack.c.h.b16 %v618
        %v1579 = vunpack.c.l.b16 %v619
        %v1580 = vunpack.c.h.b16 %v619
        %v1581 = vunpack.c.l.b16 %v620
        %v1582 = vunpack.c.h.b16 %v620
        %v1583 = vunpack.c.l.b16 %v621
        %v1584 = vunpack.c.h.b16 %v621
        %v1585 = vunpack.c.l.b16 %v622
        %v1586 = vunpack.c.h.b16 %v622
        %v1587 = vunpack.c.l.b16 %v623
        %v1588 = vunpack.c.h.b16 %v623
        %v1589 = vunpack.c.l.b16 %v624
        %v1590 = vunpack.c.h.b16 %v624
        %v1591 = vunpack.c.l.b16 %v625
        %v1592 = vunpack.c.h.b16 %v625
        %v1593 = vunpack.c.l.b16 %v626
        %v1594 = vunpack.c.h.b16 %v626
        %v1595 = vunpack.c.l.b16 %v627
        %v1596 = vunpack.c.h.b16 %v627
        %v1597 = vunpack.c.l.b16 %v628
        %v1598 = vunpack.c.h.b16 %v628
        %v1599 = vunpack.c.l.b16 %v629
        %v1600 = vunpack.c.h.b16 %v629
        %v1601 = vunpack.c.l.b16 %v630
        %v1602 = vunpack.c.h.b16 %v630
        %v1603 = vunpack.c.l.b16 %v631
        %v1604 = vunpack.c.h.b16 %v631
        %v1605 = vunpack.c.l.b16 %v632
        %v1606 = vunpack.c.h.b16 %v632
        %v1607 = vunpack.c.l.b16 %v633
        %v1608 = vunpack.c.h.b16 %v633
        %v1609 = vunpack.c.l.b16 %v634
        %v1610 = vunpack.c.h.b16 %v634
        %v1611 = vunpack.c.l.b16 %v635
        %v1612 = vunpack.c.h.b16 %v635
        %v1613 = vunpack.c.l.b16 %v636
        %v1614 = vunpack.c.h.b16 %v636
        %v1615 = vunpack.c.l.b16 %v637
        %v1616 = vunpack.c.h.b16 %v637
        %v1617 = vunpack.c.l.b16 %v638
        %v1618 = vunpack.c.h.b16 %v638
        %v1619 = vunpack.c.l.b16 %v639
        %v1620 = vunpack.c.h.b16 %v639
        %v1621 = vunpack.c.l.b16 %v640
        %v1622 = vunpack.c.h.b16 %v640
        %v1623 = vunpack.c.l.b16 %v641
        %v1624 = vunpack.c.h.b16 %v641
        %v1625 = vunpack.c.l.b16 %v642
        %v1626 = vunpack.c.h.b16 %v642
        %v1627 = vunpack.c.l.b16 %v643
        %v1628 = vunpack.c.h.b16 %v643
        %v1629 = vunpack.c.l.b16 %v644
        %v1630 = vunpack.c.h.b16 %v644
        %v1631 = vunpack.c.l.b16 %v645
        %v1632 = vunpack.c.h.b16 %v645
        %v1633 = vunpack.c.l.b16 %v646
        %v1634 = vunpack.c.h.b16 %v646
        %v1635 = vunpack.c.l.b16 %v647
        %v1636 = vunpack.c.h.b16 %v647
        %v1637 = vunpack.c.l.b16 %v648
        %v1638 = vunpack.c.h.b16 %v648
        %v1639 = vunpack.c.l.b16 %v649
        %v1640 = vunpack.c.h.b16 %v649
        %v1641 = vunpack.c.l.b16 %v650
        %v1642 = vunpack.c.h.b16 %v650
        %v1643 = vunpack.c.l.b16 %v651
        %v1644 = vunpack.c.h.b16 %v651
        %v1645 = vunpack.c.l.b16 %v652
        %v1646 = vunpack.c.h.b16 %v652
        %v1647 = vunpack.c.l.b16 %v653
        %v1648 = vunpack.c.h.b16 %v653
        %v1649 = vunpack.c.l.b16 %v654
        %v1650 = vunpack.c.h.b16 %v654
        %v1651 = vunpack.c.l.b16 %v655
        %v1652 = vunpack.c.h.b16 %v655
        %v1653 = vunpack.c.l.b16 %v656
        %v1654 = vunpack.c.h.b16 %v656
        %v1655 = vunpack.c.l.b16 %v657
        %v1656 = vunpack.c.h.b16 %v657
        %v1657 = vunpack.c.l.b16 %v658
        %v1658 = vunpack.c.h.b16 %v658
        %v1659 = vunpack.c.l.b16 %v659
        %v1660 = vunpack.c.h.b16 %v659
        %v1661 = vunpack.c.l.b16 %v660
        %v1662 = vunpack.c.h.b16 %v660
        %v1663 = vunpack.c.l.b16 %v661
        %v1664 = vunpack.c.h.b16 %v661
        %v1665 = vunpack.c.l.b16 %v662
        %v1666 = vunpack.c.h.b16 %v662
        %v1667 = vunpack.c.l.b16 %v663
        %v1668 = vunpack.c.h.b16 %v663
        %v1669 = vunpack.c.l.b16 %v664
        %v1670 = vunpack.c.h.b16 %v664
        %v1671 = vunpack.c.l.b16 %v665
        %v1672 = vunpack.c.h.b16 %v665
        %v1673 = vunpack.c.l.b16 %v666
        %v1674 = vunpack.c.h.b16 %v666
        %v1675 = vunpack.c.l.b16 %v667
        %v1676 = vunpack.c.h.b16 %v667
        %v1677 = vunpack.c.l.b16 %v668
        %v1678 = vunpack.c.h.b16 %v668
        %v1679 = vpack.c.b16 %v1043, %v1039
        %v1680 = vpack.c.b16 %v1044, %v1040
        %v1681 = vpack.c.b16 %v1045, %v1041
        %v1682 = vpack.c.b16 %v1046, %v1042
        %v1683 = vpack.c.b16 %v1051, %v1047
        %v1684 = vpack.c.b16 %v1052, %v1048
        %v1685 = vpack.c.b16 %v1053, %v1049
        %v1686 = vpack.c.b16 %v1054, %v1050
        %v1687 = vpack.c.b16 %v1059, %v1055
        %v1688 = vpack.c.b16 %v1060, %v1056
        %v1689 = vpack.c.b16 %v1061, %v1057
        %v1690 = vpack.c.b16 %v1062, %v1058
        %v1691 = vpack.c.b16 %v1067, %v1063
        %v1692 = vpack.c.b16 %v1068, %v1064
        %v1693 = vpack.c.b16 %v1069, %v1065
        %v1694 = vpack.c.b16 %v1070, %v1066
        %v1695 = vpack.c.b16 %v1075, %v1071
        %v1696 = vpack.c.b16 %v1076, %v1072
        %v1697 = vpack.c.b16 %v1077, %v1073
        %v1698 = vpack.c.b16 %v1078, %v1074
        %v1699 = vpack.c.b16 %v1083, %v1079
        %v1700 = vpack.c.b16 %v1084, %v1080
        %v1701 = vpack.c.b16 %v1085, %v1081
        %v1702 = vpack.c.b16 %v1086, %v1082
        %v1703 = vpack.c.b16 %v1091, %v1087
        %v1704 = vpack.c.b16 %v1092, %v1088
        %v1705 = vpack.c.b16 %v1093, %v1089
        %v1706 = vpack.c.b16 %v1094, %v1090
        %v1707 = vpack.c.b16 %v1099, %v1095
        %v1708 = vpack.c.b16 %v1100, %v1096
        %v1709 = vpack.c.b16 %v1101, %v1097
        %v1710 = vpack.c.b16 %v1102, %v1098
        %v1711 = vpack.c.b16 %v1107, %v1103
        %v1712 = vpack.c.b16 %v1108, %v1104
        %v1713 = vpack.c.b16 %v1109, %v1105
        %v1714 = vpack.c.b16 %v1110, %v1106
        %v1715 = vpack.c.b16 %v1115, %v1111
        %v1716 = vpack.c.b16 %v1116, %v1112
        %v1717 = vpack.c.b16 %v1117, %v1113
        %v1718 = vpack.c.b16 %v1118, %v1114
        %v1719 = vpack.c.b16 %v1123, %v1119
        %v1720 = vpack.c.b16 %v1124, %v1120
        %v1721 = vpack.c.b16 %v1125, %v1121
        %v1722 = vpack.c.b16 %v1126, %v1122
        %v1723 = vpack.c.b16 %v1131, %v1127
        %v1724 = vpack.c.b16 %v1132, %v1128
        %v1725 = vpack.c.b16 %v1133, %v1129
        %v1726 = vpack.c.b16 %v1134, %v1130
        %v1727 = vpack.c.b16 %v1139, %v1135
        %v1728 = vpack.c.b16 %v1140, %v1136
        %v1729 = vpack.c.b16 %v1141, %v1137
        %v1730 = vpack.c.b16 %v1142, %v1138
        %v1731 = vpack.c.b16 %v1147, %v1143
        %v1732 = vpack.c.b16 %v1148, %v1144
        %v1733 = vpack.c.b16 %v1149, %v1145
        %v1734 = vpack.c.b16 %v1150, %v1146
        %v1735 = vpack.c.b16 %v1155, %v1151
        %v1736 = vpack.c.b16 %v1156, %v1152
        %v1737 = vpack.c.b16 %v1157, %v1153
        %v1738 = vpack.c.b16 %v1158, %v1154
        %v1739 = vpack.c.b16 %v1163, %v1159
        %v1740 = vpack.c.b16 %v1164, %v1160
        %v1741 = vpack.c.b16 %v1165, %v1161
        %v1742 = vpack.c.b16 %v1166, %v1162
        %v1743 = vpack.c.b16 %v1171, %v1167
        %v1744 = vpack.c.b16 %v1172, %v1168
        %v1745 = vpack.c.b16 %v1173, %v1169
        %v1746 = vpack.c.b16 %v1174, %v1170
        %v1747 = vpack.c.b16 %v1179, %v1175
        %v1748 = vpack.c.b16 %v1180, %v1176
        %v1749 = vpack.c.b16 %v1181, %v1177
        %v1750 = vpack.c.b16 %v1182, %v1178
        %v1751 = vpack.c.b16 %v1187, %v1183
        %v1752 = vpack.c.b16 %v1188, %v1184
        %v1753 = vpack.c.b16 %v1189, %v1185
        %v1754 = vpack.c.b16 %v1190, %v1186
        %v1755 = vpack.c.b16 %v1195, %v1191
        %v1756 = vpack.c.b16 %v1196, %v1192
        %v1757 = vpack.c.b16 %v1197, %v1193
        %v1758 = vpack.c.b16 %v1198, %v1194
        %v1759 = vpack.c.b16 %v1203, %v1199
        %v1760 = vpack.c.b16 %v1204, %v1200
        %v1761 = vpack.c.b16 %v1205, %v1201
        %v1762 = vpack.c.b16 %v1206, %v1202
        %v1763 = vpack.c.b16 %v1211, %v1207
        %v1764 = vpack.c.b16 %v1212, %v1208
        %v1765 = vpack.c.b16 %v1213, %v1209
        %v1766 = vpack.c.b16 %v1214, %v1210
        %v1767 = vpack.c.b16 %v1219, %v1215
        %v1768 = vpack.c.b16 %v1220, %v1216
        %v1769 = vpack.c.b16 %v1221, %v1217
        %v1770 = vpack.c.b16 %v1222, %v1218
        %v1771 = vpack.c.b16 %v1227, %v1223
        %v1772 = vpack.c.b16 %v1228, %v1224
        %v1773 = vpack.c.b16 %v1229, %v1225
        %v1774 = vpack.c.b16 %v1230, %v1226
        %v1775 = vpack.c.b16 %v1235, %v1231
        %v1776 = vpack.c.b16 %v1236, %v1232
        %v1777 = vpack.c.b16 %v1237, %v1233
        %v1778 = vpack.c.b16 %v1238, %v1234
        %v1779 = vpack.c.b16 %v1243, %v1239
        %v1780 = vpack.c.b16 %v1244, %v1240
        %v1781 = vpack.c.b16 %v1245, %v1241
        %v1782 = vpack.c.b16 %v1246, %v1242
        %v1783 = vpack.c.b16 %v1251, %v1247
        %v1784 = vpack.c.b16 %v1252, %v1248
        %v1785 = vpack.c.b16 %v1253, %v1249
        %v1786 = vpack.c.b16 %v1254, %v1250
        %v1787 = vpack.c.b16 %v1259, %v1255
        %v1788 = vpack.c.b16 %v1260, %v1256
        %v1789 = vpack.c.b16 %v1261, %v1257
        %v1790 = vpack.c.b16 %v1262, %v1258
        %v1791 = vpack.c.b16 %v1267, %v1263
        %v1792 = vpack.c.b16 %v1268, %v1264
        %v1793 = vpack.c.b16 %v1269, %v1265
        %v1794 = vpack.c.b16 %v1270, %v1266
        %v1795 = vpack.c.b16 %v1275, %v1271
        %v1796 = vpack.c.b16 %v1276, %v1272
        %v1797 = vpack.c.b16 %v1277, %v1273
        %v1798 = vpack.c.b16 %v1278, %v1274
        %v1799 = vpack.c.b16 %v1283, %v1279
        %v1800 = vpack.c.b16 %v1284, %v1280
        %v1801 = vpack.c.b16 %v1285, %v1281
        %v1802 = vpack.c.b16 %v1286, %v1282
        %v1803 = vpack.c.b16 %v1291, %v1287
        %v1804 = vpack.c.b16 %v1292, %v1288
        %v1805 = vpack.c.b16 %v1293, %v1289
        %v1806 = vpack.c.b16 %v1294, %v1290
        %v1807 = vpack.c.b16 %v1299, %v1295
        %v1808 = vpack.c.b16 %v1300, %v1296
        %v1809 = vpack.c.b16 %v1301, %v1297
        %v1810 = vpack.c.b16 %v1302, %v1298
        %v1811 = vpack.c.b16 %v1307, %v1303
        %v1812 = vpack.c.b16 %v1308, %v1304
        %v1813 = vpack.c.b16 %v1309, %v1305
        %v1814 = vpack.c.b16 %v1310, %v1306
        %v1815 = vpack.c.b16 %v1315, %v1311
        %v1816 = vpack.c.b16 %v1316, %v1312
        %v1817 = vpack.c.b16 %v1317, %v1313
        %v1818 = vpack.c.b16 %v1318, %v1314
        %v1819 = vpack.c.b16 %v1323, %v1319
        %v1820 = vpack.c.b16 %v1324, %v1320
        %v1821 = vpack.c.b16 %v1325, %v1321
        %v1822 = vpack.c.b16 %v1326, %v1322
        %v1823 = vpack.c.b16 %v1331, %v1327
        %v1824 = vpack.c.b16 %v1332, %v1328
        %v1825 = vpack.c.b16 %v1333, %v1329
        %v1826 = vpack.c.b16 %v1334, %v1330
        %v1827 = vpack.c.b16 %v1339, %v1335
        %v1828 = vpack.c.b16 %v1340, %v1336
        %v1829 = vpack.c.b16 %v1341, %v1337
        %v1830 = vpack.c.b16 %v1342, %v1338
        %v1831 = vpack.c.b16 %v1347, %v1343
        %v1832 = vpack.c.b16 %v1348, %v1344
        %v1833 = vpack.c.b16 %v1349, %v1345
        %v1834 = vpack.c.b16 %v1350, %v1346
        %v1835 = vpack.c.b16 %v1355, %v1351
        %v1836 = vpack.c.b16 %v1356, %v1352
        %v1837 = vpack.c.b16 %v1357, %v1353
        %v1838 = vpack.c.b16 %v1358, %v1354
        %v1839 = vpack.c.b16 %v1363, %v1359
        %v1840 = vpack.c.b16 %v1364, %v1360
        %v1841 = vpack.c.b16 %v1365, %v1361
        %v1842 = vpack.c.b16 %v1366, %v1362
        %v1843 = vpack.c.b16 %v1371, %v1367
        %v1844 = vpack.c.b16 %v1372, %v1368
        %v1845 = vpack.c.b16 %v1373, %v1369
        %v1846 = vpack.c.b16 %v1374, %v1370
        %v1847 = vpack.c.b16 %v1379, %v1375
        %v1848 = vpack.c.b16 %v1380, %v1376
        %v1849 = vpack.c.b16 %v1381, %v1377
        %v1850 = vpack.c.b16 %v1382, %v1378
        %v1851 = vpack.c.b16 %v1387, %v1383
        %v1852 = vpack.c.b16 %v1388, %v1384
        %v1853 = vpack.c.b16 %v1389, %v1385
        %v1854 = vpack.c.b16 %v1390, %v1386
        %v1855 = vpack.c.b16 %v1395, %v1391
        %v1856 = vpack.c.b16 %v1396, %v1392
        %v1857 = vpack.c.b16 %v1397, %v1393
        %v1858 = vpack.c.b16 %v1398, %v1394
        %v1859 = vpack.c.b16 %v1403, %v1399
        %v1860 = vpack.c.b16 %v1404, %v1400
        %v1861 = vpack.c.b16 %v1405, %v1401
        %v1862 = vpack.c.b16 %v1406, %v1402
        %v1863 = vpack.c.b16 %v1411, %v1407
        %v1864 = vpack.c.b16 %v1412, %v1408
        %v1865 = vpack.c.b16 %v1413, %v1409
        %v1866 = vpack.c.b16 %v1414, %v1410
        %v1867 = vpack.c.b16 %v1419, %v1415
        %v1868 = vpack.c.b16 %v1420, %v1416
        %v1869 = vpack.c.b16 %v1421, %v1417
        %v1870 = vpack.c.b16 %v1422, %v1418
        %v1871 = vpack.c.b16 %v1427, %v1423
        %v1872 = vpack.c.b16 %v1428, %v1424
        %v1873 = vpack.c.b16 %v1429, %v1425
        %v1874 = vpack.c.b16 %v1430, %v1426
        %v1875 = vpack.c.b16 %v1435, %v1431
        %v1876 = vpack.c.b16 %v1436, %v1432
        %v1877 = vpack.c.b16 %v1437, %v1433
        %v1878 = vpack.c.b16 %v1438, %v1434
        %v1879 = vpack.c.b16 %v1443, %v1439
        %v1880 = vpack.c.b16 %v1444, %v1440
        %v1881 = vpack.c.b16 %v1445, %v1441
        %v1882 = vpack.c.b16 %v1446, %v1442
        %v1883 = vpack.c.b16 %v1451, %v1447
        %v1884 = vpack.c.b16 %v1452, %v1448
        %v1885 = vpack.c.b16 %v1453, %v1449
        %v1886 = vpack.c.b16 %v1454, %v1450
        %v1887 = vpack.c.b16 %v1459, %v1455
        %v1888 = vpack.c.b16 %v1460, %v1456
        %v1889 = vpack.c.b16 %v1461, %v1457
        %v1890 = vpack.c.b16 %v1462, %v1458
        %v1891 = vpack.c.b16 %v1467, %v1463
        %v1892 = vpack.c.b16 %v1468, %v1464
        %v1893 = vpack.c.b16 %v1469, %v1465
        %v1894 = vpack.c.b16 %v1470, %v1466
        %v1895 = vpack.c.b16 %v1475, %v1471
        %v1896 = vpack.c.b16 %v1476, %v1472
        %v1897 = vpack.c.b16 %v1477, %v1473
        %v1898 = vpack.c.b16 %v1478, %v1474
        %v1899 = vpack.c.b16 %v1483, %v1479
        %v1900 = vpack.c.b16 %v1484, %v1480
        %v1901 = vpack.c.b16 %v1485, %v1481
        %v1902 = vpack.c.b16 %v1486, %v1482
        %v1903 = vpack.c.b16 %v1491, %v1487
        %v1904 = vpack.c.b16 %v1492, %v1488
        %v1905 = vpack.c.b16 %v1493, %v1489
        %v1906 = vpack.c.b16 %v1494, %v1490
        %v1907 = vpack.c.b16 %v1499, %v1495
        %v1908 = vpack.c.b16 %v1500, %v1496
        %v1909 = vpack.c.b16 %v1501, %v1497
        %v1910 = vpack.c.b16 %v1502, %v1498
        %v1911 = vpack.c.b16 %v1507, %v1503
        %v1912 = vpack.c.b16 %v1508, %v1504
        %v1913 = vpack.c.b16 %v1509, %v1505
        %v1914 = vpack.c.b16 %v1510, %v1506
        %v1915 = vpack.c.b16 %v1515, %v1511
        %v1916 = vpack.c.b16 %v1516, %v1512
        %v1917 = vpack.c.b16 %v1517, %v1513
        %v1918 = vpack.c.b16 %v1518, %v1514
        %v1919 = vpack.c.b16 %v1523, %v1519
        %v1920 = vpack.c.b16 %v1524, %v1520
        %v1921 = vpack.c.b16 %v1525, %v1521
        %v1922 = vpack.c.b16 %v1526, %v1522
        %v1923 = vpack.c.b16 %v1531, %v1527
        %v1924 = vpack.c.b16 %v1532, %v1528
        %v1925 = vpack.c.b16 %v1533, %v1529
        %v1926 = vpack.c.b16 %v1534, %v1530
        %v1927 = vpack.c.b16 %v1539, %v1535
        %v1928 = vpack.c.b16 %v1540, %v1536
        %v1929 = vpack.c.b16 %v1541, %v1537
        %v1930 = vpack.c.b16 %v1542, %v1538
        %v1931 = vpack.c.b16 %v1547, %v1543
        %v1932 = vpack.c.b16 %v1548, %v1544
        %v1933 = vpack.c.b16 %v1549, %v1545
        %v1934 = vpack.c.b16 %v1550, %v1546
        %v1935 = vpack.c.b16 %v1555, %v1551
        %v1936 = vpack.c.b16 %v1556, %v1552
        %v1937 = vpack.c.b16 %v1557, %v1553
        %v1938 = vpack.c.b16 %v1558, %v1554
        %v1939 = vpack.c.b16 %v1563, %v1559
        %v1940 = vpack.c.b16 %v1564, %v1560
        %v1941 = vpack.c.b16 %v1565, %v1561
        %v1942 = vpack.c.b16 %v1566, %v1562
        %v1943 = vpack.c.b16 %v1571, %v1567
        %v1944 = vpack.c.b16 %v1572, %v1568
        %v1945 = vpack.c.b16 %v1573, %v1569
        %v1946 = vpack.c.b16 %v1574, %v1570
        %v1947 = vpack.c.b16 %v1579, %v1575
        %v1948 = vpack.c.b16 %v1580, %v1576
        %v1949 = vpack.c.b16 %v1581, %v1577
        %v1950 = vpack.c.b16 %v1582, %v1578
        %v1951 = vpack.c.b16 %v1587, %v1583
        %v1952 = vpack.c.b16 %v1588, %v1584
        %v1953 = vpack.c.b16 %v1589, %v1585
        %v1954 = vpack.c.b16 %v1590, %v1586
        %v1955 = vpack.c.b16 %v1595, %v1591
        %v1956 = vpack.c.b16 %v1596, %v1592
        %v1957 = vpack.c.b16 %v1597, %v1593
        %v1958 = vpack.c.b16 %v1598, %v1594
        %v1959 = vpack.c.b16 %v1603, %v1599
        %v1960 = vpack.c.b16 %v1604, %v1600
        %v1961 = vpack.c.b16 %v1605, %v1601
        %v1962 = vpack.c.b16 %v1606, %v1602
        %v1963 = vpack.c.b16 %v1611, %v1607
        %v1964 = vpack.c.b16 %v1612, %v1608
        %v1965 = vpack.c.b16 %v1613, %v1609
        %v1966 = vpack.c.b16 %v1614, %v1610
        %v1967 = vpack.c.b16 %v1619, %v1615
        %v1968 = vpack.c.b16 %v1620, %v1616
        %v1969 = vpack.c.b16 %v1621, %v1617
        %v1970 = vpack.c.b16 %v1622, %v1618
        %v1971 = vpack.c.b16 %v1627, %v1623
        %v1972 = vpack.c.b16 %v1628, %v1624
        %v1973 = vpack.c.b16 %v1629, %v1625
        %v1974 = vpack.c.b16 %v1630, %v1626
        %v1975 = vpack.c.b16 %v1635, %v1631
        %v1976 = vpack.c.b16 %v1636, %v1632
        %v1977 = vpack.c.b16 %v1637, %v1633
        %v1978 = vpack.c.b16 %v1638, %v1634
        %v1979 = vpack.c.b16 %v1643, %v1639
        %v1980 = vpack.c.b16 %v1644, %v1640
        %v1981 = vpack.c.b16 %v1645, %v1641
        %v1982 = vpack.c.b16 %v1646, %v1642
        %v1983 = vpack.c.b16 %v1651, %v1647
        %v1984 = vpack.c.b16 %v1652, %v1648
        %v1985 = vpack.c.b16 %v1653, %v1649
        %v1986 = vpack.c.b16 %v1654, %v1650
        %v1987 = vpack.c.b16 %v1659, %v1655
        %v1988 = vpack.c.b16 %v1660, %v1656
        %v1989 = vpack.c.b16 %v1661, %v1657
        %v1990 = vpack.c.b16 %v1662, %v1658
        %v1991 = vpack.c.b16 %v1667, %v1663
        %v1992 = vpack.c.b16 %v1668, %v1664
        %v1993 = vpack.c.b16 %v1669, %v1665
        %v1994 = vpack.c.b16 %v1670, %v1666
        %v1995 = vpack.c.b16 %v1675, %v1671
        %v1996 = vpack.c.b16 %v1676, %v1672
        %v1997 = vpack.c.b16 %v1677, %v1673
        %v1998 = vpack.c.b16 %v1678, %v1674
        %2319 = vmatprep.subr.bf16.mxu0 %v1680
        %2320 = vmatpush1.bf16.msra.mxu0 %v1679
        %2321 = vmatprep.subr.bf16.mxu0 %v1684
        %2322 = vmatpush1.bf16.msra.mxu0 %v1683
        %2323 = vmatprep.subr.bf16.mxu0 %v1688
        %2324 = vmatpush1.bf16.msra.mxu0 %v1687
        %2325 = vmatprep.subr.bf16.mxu0 %v1692
        %2326 = vmatpush1.bf16.msra.mxu0 %v1691
        %2327 = vmatprep.subr.bf16.mxu0 %v1696
        %2328 = vmatpush1.bf16.msra.mxu0 %v1695
        %2329 = vmatprep.subr.bf16.mxu0 %v1700
        %2330 = vmatpush1.bf16.msra.mxu0 %v1699
        %2331 = vmatprep.subr.bf16.mxu0 %v1704
        %2332 = vmatpush1.bf16.msra.mxu0 %v1703
        %2333 = vmatprep.subr.bf16.mxu0 %v1708
        %2334 = vmatpush1.bf16.msra.mxu0 %v1707
        %2335 = vmatprep.subr.bf16.mxu0 %v1712
        %2336 = vmatpush1.bf16.msra.mxu0 %v1711
        %2337 = vmatprep.subr.bf16.mxu0 %v1716
        %2338 = vmatpush1.bf16.msra.mxu0 %v1715
        %2339 = vmatprep.subr.bf16.mxu0 %v1720
        %2340 = vmatpush1.bf16.msra.mxu0 %v1719
        %2341 = vmatprep.subr.bf16.mxu0 %v1724
        %2342 = vmatpush1.bf16.msra.mxu0 %v1723
        %2343 = vmatprep.subr.bf16.mxu0 %v1728
        %2344 = vmatpush1.bf16.msra.mxu0 %v1727
        %2345 = vmatprep.subr.bf16.mxu0 %v1732
        %2346 = vmatpush1.bf16.msra.mxu0 %v1731
        %2347 = vmatprep.subr.bf16.mxu0 %v1736
        %2348 = vmatpush1.bf16.msra.mxu0 %v1735
        %2349 = vmatprep.subr.bf16.mxu0 %v1740
        %2350 = vmatpush1.bf16.msra.mxu0 %v1739
        %2351 = vmatprep.mubr.bf16.mxu0 %v700
        %2352 = vmatmul.mubr.bf16.gmra.mrb[0].mxu0 %v699
        %v2353 = vpop.f32.mrb[0].mxu0
        %v2354 = vadd.f32 0.0, %v2353
        %v2355 = vpop.f32.mrb[0].mxu0
        %v2356 = vadd.f32 0.0, %v2355
        %v2357 = vpop.f32.mrb[0].mxu0
        %v2358 = vadd.f32 0.0, %v2357
        %v2359 = vpop.f32.mrb[0].mxu0
        %v2360 = vadd.f32 0.0, %v2359
        %2361 = vdwg.mxu0
        %2362 = vmatprep.subr.bf16.mxu0 %v1744
        %2363 = vmatpush1.bf16.msra.mxu0 %v1743
        %2364 = vmatprep.subr.bf16.mxu0 %v1748
        %2365 = vmatpush1.bf16.msra.mxu0 %v1747
        %2366 = vmatprep.subr.bf16.mxu0 %v1752
        %2367 = vmatpush1.bf16.msra.mxu0 %v1751
        %2368 = vmatprep.subr.bf16.mxu0 %v1756
        %2369 = vmatpush1.bf16.msra.mxu0 %v1755
        %2370 = vmatprep.subr.bf16.mxu0 %v1760
        %2371 = vmatpush1.bf16.msra.mxu0 %v1759
        %2372 = vmatprep.subr.bf16.mxu0 %v1764
        %2373 = vmatpush1.bf16.msra.mxu0 %v1763
        %2374 = vmatprep.subr.bf16.mxu0 %v1768
        %2375 = vmatpush1.bf16.msra.mxu0 %v1767
        %2376 = vmatprep.subr.bf16.mxu0 %v1772
        %2377 = vmatpush1.bf16.msra.mxu0 %v1771
        %2378 = vmatprep.subr.bf16.mxu0 %v1776
        %2379 = vmatpush1.bf16.msra.mxu0 %v1775
        %2380 = vmatprep.subr.bf16.mxu0 %v1780
        %2381 = vmatpush1.bf16.msra.mxu0 %v1779
        %2382 = vmatprep.subr.bf16.mxu0 %v1784
        %2383 = vmatpush1.bf16.msra.mxu0 %v1783
        %2384 = vmatprep.subr.bf16.mxu0 %v1788
        %2385 = vmatpush1.bf16.msra.mxu0 %v1787
        %2386 = vmatprep.subr.bf16.mxu0 %v1792
        %2387 = vmatpush1.bf16.msra.mxu0 %v1791
        %2388 = vmatprep.subr.bf16.mxu0 %v1796
        %2389 = vmatpush1.bf16.msra.mxu0 %v1795
        %2390 = vmatprep.subr.bf16.mxu0 %v1800
        %2391 = vmatpush1.bf16.msra.mxu0 %v1799
        %2392 = vmatprep.subr.bf16.mxu0 %v1804
        %2393 = vmatpush1.bf16.msra.mxu0 %v1803
        %2394 = vmatprep.mubr.bf16.mxu0 %v702
        %2395 = vmatmul.mubr.bf16.gmra.mrb[0].mxu0 %v701
        %v2396 = vpop.f32.mrb[0].mxu0
        %v2397 = vadd.f32 %v2354, %v2396
        %v2398 = vpop.f32.mrb[0].mxu0
        %v2399 = vadd.f32 %v2356, %v2398
        %v2400 = vpop.f32.mrb[0].mxu0
        %v2401 = vadd.f32 %v2358, %v2400
        %v2402 = vpop.f32.mrb[0].mxu0
        %v2403 = vadd.f32 %v2360, %v2402
        %2404 = vdwg.mxu0
        %2405 = vmatprep.subr.bf16.mxu0 %v1808
        %2406 = vmatpush1.bf16.msra.mxu0 %v1807
        %2407 = vmatprep.subr.bf16.mxu0 %v1812
        %2408 = vmatpush1.bf16.msra.mxu0 %v1811
        %2409 = vmatprep.subr.bf16.mxu0 %v1816
        %2410 = vmatpush1.bf16.msra.mxu0 %v1815
        %2411 = vmatprep.subr.bf16.mxu0 %v1820
        %2412 = vmatpush1.bf16.msra.mxu0 %v1819
        %2413 = vmatprep.subr.bf16.mxu0 %v1824
        %2414 = vmatpush1.bf16.msra.mxu0 %v1823
        %2415 = vmatprep.subr.bf16.mxu0 %v1828
        %2416 = vmatpush1.bf16.msra.mxu0 %v1827
        %2417 = vmatprep.subr.bf16.mxu0 %v1832
        %2418 = vmatpush1.bf16.msra.mxu0 %v1831
        %2419 = vmatprep.subr.bf16.mxu0 %v1836
        %2420 = vmatpush1.bf16.msra.mxu0 %v1835
        %2421 = vmatprep.subr.bf16.mxu0 %v1840
        %2422 = vmatpush1.bf16.msra.mxu0 %v1839
        %2423 = vmatprep.subr.bf16.mxu0 %v1844
        %2424 = vmatpush1.bf16.msra.mxu0 %v1843
        %2425 = vmatprep.subr.bf16.mxu0 %v1848
        %2426 = vmatpush1.bf16.msra.mxu0 %v1847
        %2427 = vmatprep.subr.bf16.mxu0 %v1852
        %2428 = vmatpush1.bf16.msra.mxu0 %v1851
        %2429 = vmatprep.subr.bf16.mxu0 %v1856
        %2430 = vmatpush1.bf16.msra.mxu0 %v1855
        %2431 = vmatprep.subr.bf16.mxu0 %v1860
        %2432 = vmatpush1.bf16.msra.mxu0 %v1859
        %2433 = vmatprep.subr.bf16.mxu0 %v1864
        %2434 = vmatpush1.bf16.msra.mxu0 %v1863
        %2435 = vmatprep.subr.bf16.mxu0 %v1868
        %2436 = vmatpush1.bf16.msra.mxu0 %v1867
        %2437 = vmatprep.mubr.bf16.mxu0 %v704
        %2438 = vmatmul.mubr.bf16.gmra.mrb[0].mxu0 %v703
        %v2439 = vpop.f32.mrb[0].mxu0
        %v2440 = vadd.f32 %v2397, %v2439
        %v2441 = vpop.f32.mrb[0].mxu0
        %v2442 = vadd.f32 %v2399, %v2441
        %v2443 = vpop.f32.mrb[0].mxu0
        %v2444 = vadd.f32 %v2401, %v2443
        %v2445 = vpop.f32.mrb[0].mxu0
        %v2446 = vadd.f32 %v2403, %v2445
        %2447 = vdwg.mxu0
        %2448 = vmatprep.subr.bf16.mxu0 %v1872
        %2449 = vmatpush1.bf16.msra.mxu0 %v1871
        %2450 = vmatprep.subr.bf16.mxu0 %v1876
        %2451 = vmatpush1.bf16.msra.mxu0 %v1875
        %2452 = vmatprep.subr.bf16.mxu0 %v1880
        %2453 = vmatpush1.bf16.msra.mxu0 %v1879
        %2454 = vmatprep.subr.bf16.mxu0 %v1884
        %2455 = vmatpush1.bf16.msra.mxu0 %v1883
        %2456 = vmatprep.subr.bf16.mxu0 %v1888
        %2457 = vmatpush1.bf16.msra.mxu0 %v1887
        %2458 = vmatprep.subr.bf16.mxu0 %v1892
        %2459 = vmatpush1.bf16.msra.mxu0 %v1891
        %2460 = vmatprep.subr.bf16.mxu0 %v1896
        %2461 = vmatpush1.bf16.msra.mxu0 %v1895
        %2462 = vmatprep.subr.bf16.mxu0 %v1900
        %2463 = vmatpush1.bf16.msra.mxu0 %v1899
        %2464 = vmatprep.subr.bf16.mxu0 %v1904
        %2465 = vmatpush1.bf16.msra.mxu0 %v1903
        %2466 = vmatprep.subr.bf16.mxu0 %v1908
        %2467 = vmatpush1.bf16.msra.mxu0 %v1907
        %2468 = vmatprep.subr.bf16.mxu0 %v1912
        %2469 = vmatpush1.bf16.msra.mxu0 %v1911
        %2470 = vmatprep.subr.bf16.mxu0 %v1916
        %2471 = vmatpush1.bf16.msra.mxu0 %v1915
        %2472 = vmatprep.subr.bf16.mxu0 %v1920
        %2473 = vmatpush1.bf16.msra.mxu0 %v1919
        %2474 = vmatprep.subr.bf16.mxu0 %v1924
        %2475 = vmatpush1.bf16.msra.mxu0 %v1923
        %2476 = vmatprep.subr.bf16.mxu0 %v1928
        %2477 = vmatpush1.bf16.msra.mxu0 %v1927
        %2478 = vmatprep.subr.bf16.mxu0 %v1932
        %2479 = vmatpush1.bf16.msra.mxu0 %v1931
        %2480 = vmatprep.mubr.bf16.mxu0 %v706
        %2481 = vmatmul.mubr.bf16.gmra.mrb[0].mxu0 %v705
        %v2482 = vpop.f32.mrb[0].mxu0
        %v2483 = vadd.f32 %v2440, %v2482
        %v2484 = vpop.f32.mrb[0].mxu0
        %v2485 = vadd.f32 %v2442, %v2484
        %v2486 = vpop.f32.mrb[0].mxu0
        %v2487 = vadd.f32 %v2444, %v2486
        %v2488 = vpop.f32.mrb[0].mxu0
        %v2489 = vadd.f32 %v2446, %v2488
        %2490 = vdwg.mxu0
        %2491 = vmatprep.subr.bf16.mxu0 %v1936
        %2492 = vmatpush1.bf16.msra.mxu0 %v1935
        %2493 = vmatprep.subr.bf16.mxu0 %v1940
        %2494 = vmatpush1.bf16.msra.mxu0 %v1939
        %2495 = vmatprep.subr.bf16.mxu0 %v1944
        %2496 = vmatpush1.bf16.msra.mxu0 %v1943
        %2497 = vmatprep.subr.bf16.mxu0 %v1948
        %2498 = vmatpush1.bf16.msra.mxu0 %v1947
        %2499 = vmatprep.subr.bf16.mxu0 %v1952
        %2500 = vmatpush1.bf16.msra.mxu0 %v1951
        %2501 = vmatprep.subr.bf16.mxu0 %v1956
        %2502 = vmatpush1.bf16.msra.mxu0 %v1955
        %2503 = vmatprep.subr.bf16.mxu0 %v1960
        %2504 = vmatpush1.bf16.msra.mxu0 %v1959
        %2505 = vmatprep.subr.bf16.mxu0 %v1964
        %2506 = vmatpush1.bf16.msra.mxu0 %v1963
        %2507 = vmatprep.subr.bf16.mxu0 %v1968
        %2508 = vmatpush1.bf16.msra.mxu0 %v1967
        %2509 = vmatprep.subr.bf16.mxu0 %v1972
        %2510 = vmatpush1.bf16.msra.mxu0 %v1971
        %2511 = vmatprep.subr.bf16.mxu0 %v1976
        %2512 = vmatpush1.bf16.msra.mxu0 %v1975
        %2513 = vmatprep.subr.bf16.mxu0 %v1980
        %2514 = vmatpush1.bf16.msra.mxu0 %v1979
        %2515 = vmatprep.subr.bf16.mxu0 %v1984
        %2516 = vmatpush1.bf16.msra.mxu0 %v1983
        %2517 = vmatprep.subr.bf16.mxu0 %v1988
        %2518 = vmatpush1.bf16.msra.mxu0 %v1987
        %2519 = vmatprep.subr.bf16.mxu0 %v1992
        %2520 = vmatpush1.bf16.msra.mxu0 %v1991
        %2521 = vmatprep.subr.bf16.mxu0 %v1996
        %2522 = vmatpush1.bf16.msra.mxu0 %v1995
        %2523 = vmatprep.mubr.bf16.mxu0 %v708
        %2524 = vmatmul.mubr.bf16.gmra.mrb[0].mxu0 %v707
        %v2525 = vpop.f32.mrb[0].mxu0
        %v2526 = vadd.f32 %v2483, %v2525
        %v2527 = vpop.f32.mrb[0].mxu0
        %v2528 = vadd.f32 %v2485, %v2527
        %v2529 = vpop.f32.mrb[0].mxu0
        %v2530 = vadd.f32 %v2487, %v2529
        %v2531 = vpop.f32.mrb[0].mxu0
        %v2532 = vadd.f32 %v2489, %v2531
        %2533 = vdwg.mxu0
        %2534 = vmatprep.subr.bf16.mxu0 %v1682
        %2535 = vmatpush1.bf16.msra.mxu0 %v1681
        %2536 = vmatprep.subr.bf16.mxu0 %v1686
        %2537 = vmatpush1.bf16.msra.mxu0 %v1685
        %2538 = vmatprep.subr.bf16.mxu0 %v1690
        %2539 = vmatpush1.bf16.msra.mxu0 %v1689
        %2540 = vmatprep.subr.bf16.mxu0 %v1694
        %2541 = vmatpush1.bf16.msra.mxu0 %v1693
        %2542 = vmatprep.subr.bf16.mxu0 %v1698
        %2543 = vmatpush1.bf16.msra.mxu0 %v1697
        %2544 = vmatprep.subr.bf16.mxu0 %v1702
        %2545 = vmatpush1.bf16.msra.mxu0 %v1701
        %2546 = vmatprep.subr.bf16.mxu0 %v1706
        %2547 = vmatpush1.bf16.msra.mxu0 %v1705
        %2548 = vmatprep.subr.bf16.mxu0 %v1710
        %2549 = vmatpush1.bf16.msra.mxu0 %v1709
        %2550 = vmatprep.subr.bf16.mxu0 %v1714
        %2551 = vmatpush1.bf16.msra.mxu0 %v1713
        %2552 = vmatprep.subr.bf16.mxu0 %v1718
        %2553 = vmatpush1.bf16.msra.mxu0 %v1717
        %2554 = vmatprep.subr.bf16.mxu0 %v1722
        %2555 = vmatpush1.bf16.msra.mxu0 %v1721
        %2556 = vmatprep.subr.bf16.mxu0 %v1726
        %2557 = vmatpush1.bf16.msra.mxu0 %v1725
        %2558 = vmatprep.subr.bf16.mxu0 %v1730
        %2559 = vmatpush1.bf16.msra.mxu0 %v1729
        %2560 = vmatprep.subr.bf16.mxu0 %v1734
        %2561 = vmatpush1.bf16.msra.mxu0 %v1733
        %2562 = vmatprep.subr.bf16.mxu0 %v1738
        %2563 = vmatpush1.bf16.msra.mxu0 %v1737
        %2564 = vmatprep.subr.bf16.mxu0 %v1742
        %2565 = vmatpush1.bf16.msra.mxu0 %v1741
        %2566 = vmatprep.mubr.bf16.mxu0 %v700
        %2567 = vmatmul.mubr.bf16.gmra.mrb[0].mxu0 %v699
        %v2568 = vpop.f32.mrb[0].mxu0
        %v2569 = vadd.f32 0.0, %v2568
        %v2570 = vpop.f32.mrb[0].mxu0
        %v2571 = vadd.f32 0.0, %v2570
        %v2572 = vpop.f32.mrb[0].mxu0
        %v2573 = vadd.f32 0.0, %v2572
        %v2574 = vpop.f32.mrb[0].mxu0
        %v2575 = vadd.f32 0.0, %v2574
        %2576 = vdwg.mxu0
        %2577 = vmatprep.subr.bf16.mxu0 %v1746
        %2578 = vmatpush1.bf16.msra.mxu0 %v1745
        %2579 = vmatprep.subr.bf16.mxu0 %v1750
        %2580 = vmatpush1.bf16.msra.mxu0 %v1749
        %2581 = vmatprep.subr.bf16.mxu0 %v1754
        %2582 = vmatpush1.bf16.msra.mxu0 %v1753
        %2583 = vmatprep.subr.bf16.mxu0 %v1758
        %2584 = vmatpush1.bf16.msra.mxu0 %v1757
        %2585 = vmatprep.subr.bf16.mxu0 %v1762
        %2586 = vmatpush1.bf16.msra.mxu0 %v1761
        %2587 = vmatprep.subr.bf16.mxu0 %v1766
        %2588 = vmatpush1.bf16.msra.mxu0 %v1765
        %2589 = vmatprep.subr.bf16.mxu0 %v1770
        %2590 = vmatpush1.bf16.msra.mxu0 %v1769
        %2591 = vmatprep.subr.bf16.mxu0 %v1774
        %2592 = vmatpush1.bf16.msra.mxu0 %v1773
        %2593 = vmatprep.subr.bf16.mxu0 %v1778
        %2594 = vmatpush1.bf16.msra.mxu0 %v1777
        %2595 = vmatprep.subr.bf16.mxu0 %v1782
        %2596 = vmatpush1.bf16.msra.mxu0 %v1781
        %2597 = vmatprep.subr.bf16.mxu0 %v1786
        %2598 = vmatpush1.bf16.msra.mxu0 %v1785
        %2599 = vmatprep.subr.bf16.mxu0 %v1790
        %2600 = vmatpush1.bf16.msra.mxu0 %v1789
        %2601 = vmatprep.subr.bf16.mxu0 %v1794
        %2602 = vmatpush1.bf16.msra.mxu0 %v1793
        %2603 = vmatprep.subr.bf16.mxu0 %v1798
        %2604 = vmatpush1.bf16.msra.mxu0 %v1797
        %2605 = vmatprep.subr.bf16.mxu0 %v1802
        %2606 = vmatpush1.bf16.msra.mxu0 %v1801
        %2607 = vmatprep.subr.bf16.mxu0 %v1806
        %2608 = vmatpush1.bf16.msra.mxu0 %v1805
        %2609 = vmatprep.mubr.bf16.mxu0 %v702
        %2610 = vmatmul.mubr.bf16.gmra.mrb[0].mxu0 %v701
        %v2611 = vpop.f32.mrb[0].mxu0
        %v2612 = vadd.f32 %v2569, %v2611
        %v2613 = vpop.f32.mrb[0].mxu0
        %v2614 = vadd.f32 %v2571, %v2613
        %v2615 = vpop.f32.mrb[0].mxu0
        %v2616 = vadd.f32 %v2573, %v2615
        %v2617 = vpop.f32.mrb[0].mxu0
        %v2618 = vadd.f32 %v2575, %v2617
        %2619 = vdwg.mxu0
        %2620 = vmatprep.subr.bf16.mxu0 %v1810
        %2621 = vmatpush1.bf16.msra.mxu0 %v1809
        %2622 = vmatprep.subr.bf16.mxu0 %v1814
        %2623 = vmatpush1.bf16.msra.mxu0 %v1813
        %2624 = vmatprep.subr.bf16.mxu0 %v1818
        %2625 = vmatpush1.bf16.msra.mxu0 %v1817
        %2626 = vmatprep.subr.bf16.mxu0 %v1822
        %2627 = vmatpush1.bf16.msra.mxu0 %v1821
        %2628 = vmatprep.subr.bf16.mxu0 %v1826
        %2629 = vmatpush1.bf16.msra.mxu0 %v1825
        %2630 = vmatprep.subr.bf16.mxu0 %v1830
        %2631 = vmatpush1.bf16.msra.mxu0 %v1829
        %2632 = vmatprep.subr.bf16.mxu0 %v1834
        %2633 = vmatpush1.bf16.msra.mxu0 %v1833
        %2634 = vmatprep.subr.bf16.mxu0 %v1838
        %2635 = vmatpush1.bf16.msra.mxu0 %v1837
        %2636 = vmatprep.subr.bf16.mxu0 %v1842
        %2637 = vmatpush1.bf16.msra.mxu0 %v1841
        %2638 = vmatprep.subr.bf16.mxu0 %v1846
        %2639 = vmatpush1.bf16.msra.mxu0 %v1845
        %2640 = vmatprep.subr.bf16.mxu0 %v1850
        %2641 = vmatpush1.bf16.msra.mxu0 %v1849
        %2642 = vmatprep.subr.bf16.mxu0 %v1854
        %2643 = vmatpush1.bf16.msra.mxu0 %v1853
        %2644 = vmatprep.subr.bf16.mxu0 %v1858
        %2645 = vmatpush1.bf16.msra.mxu0 %v1857
        %2646 = vmatprep.subr.bf16.mxu0 %v1862
        %2647 = vmatpush1.bf16.msra.mxu0 %v1861
        %2648 = vmatprep.subr.bf16.mxu0 %v1866
        %2649 = vmatpush1.bf16.msra.mxu0 %v1865
        %2650 = vmatprep.subr.bf16.mxu0 %v1870
        %2651 = vmatpush1.bf16.msra.mxu0 %v1869
        %2652 = vmatprep.mubr.bf16.mxu0 %v704
        %2653 = vmatmul.mubr.bf16.gmra.mrb[0].mxu0 %v703
        %v2654 = vpop.f32.mrb[0].mxu0
        %v2655 = vadd.f32 %v2612, %v2654
        %v2656 = vpop.f32.mrb[0].mxu0
        %v2657 = vadd.f32 %v2614, %v2656
        %v2658 = vpop.f32.mrb[0].mxu0
        %v2659 = vadd.f32 %v2616, %v2658
        %v2660 = vpop.f32.mrb[0].mxu0
        %v2661 = vadd.f32 %v2618, %v2660
        %2662 = vdwg.mxu0
        %2663 = vmatprep.subr.bf16.mxu0 %v1874
        %2664 = vmatpush1.bf16.msra.mxu0 %v1873
        %2665 = vmatprep.subr.bf16.mxu0 %v1878
        %2666 = vmatpush1.bf16.msra.mxu0 %v1877
        %2667 = vmatprep.subr.bf16.mxu0 %v1882
        %2668 = vmatpush1.bf16.msra.mxu0 %v1881
        %2669 = vmatprep.subr.bf16.mxu0 %v1886
        %2670 = vmatpush1.bf16.msra.mxu0 %v1885
        %2671 = vmatprep.subr.bf16.mxu0 %v1890
        %2672 = vmatpush1.bf16.msra.mxu0 %v1889
        %2673 = vmatprep.subr.bf16.mxu0 %v1894
        %2674 = vmatpush1.bf16.msra.mxu0 %v1893
        %2675 = vmatprep.subr.bf16.mxu0 %v1898
        %2676 = vmatpush1.bf16.msra.mxu0 %v1897
        %2677 = vmatprep.subr.bf16.mxu0 %v1902
        %2678 = vmatpush1.bf16.msra.mxu0 %v1901
        %2679 = vmatprep.subr.bf16.mxu0 %v1906
        %2680 = vmatpush1.bf16.msra.mxu0 %v1905
        %2681 = vmatprep.subr.bf16.mxu0 %v1910
        %2682 = vmatpush1.bf16.msra.mxu0 %v1909
        %2683 = vmatprep.subr.bf16.mxu0 %v1914
        %2684 = vmatpush1.bf16.msra.mxu0 %v1913
        %2685 = vmatprep.subr.bf16.mxu0 %v1918
        %2686 = vmatpush1.bf16.msra.mxu0 %v1917
        %2687 = vmatprep.subr.bf16.mxu0 %v1922
        %2688 = vmatpush1.bf16.msra.mxu0 %v1921
        %2689 = vmatprep.subr.bf16.mxu0 %v1926
        %2690 = vmatpush1.bf16.msra.mxu0 %v1925
        %2691 = vmatprep.subr.bf16.mxu0 %v1930
        %2692 = vmatpush1.bf16.msra.mxu0 %v1929
        %2693 = vmatprep.subr.bf16.mxu0 %v1934
        %2694 = vmatpush1.bf16.msra.mxu0 %v1933
        %2695 = vmatprep.mubr.bf16.mxu0 %v706
        %2696 = vmatmul.mubr.bf16.gmra.mrb[0].mxu0 %v705
        %v2697 = vpop.f32.mrb[0].mxu0
        %v2698 = vadd.f32 %v2655, %v2697
        %v2699 = vpop.f32.mrb[0].mxu0
        %v2700 = vadd.f32 %v2657, %v2699
        %v2701 = vpop.f32.mrb[0].mxu0
        %v2702 = vadd.f32 %v2659, %v2701
        %v2703 = vpop.f32.mrb[0].mxu0
        %v2704 = vadd.f32 %v2661, %v2703
        %2705 = vdwg.mxu0
        %2706 = vmatprep.subr.bf16.mxu0 %v1938
        %2707 = vmatpush1.bf16.msra.mxu0 %v1937
        %2708 = vmatprep.subr.bf16.mxu0 %v1942
        %2709 = vmatpush1.bf16.msra.mxu0 %v1941
        %2710 = vmatprep.subr.bf16.mxu0 %v1946
        %2711 = vmatpush1.bf16.msra.mxu0 %v1945
        %2712 = vmatprep.subr.bf16.mxu0 %v1950
        %2713 = vmatpush1.bf16.msra.mxu0 %v1949
        %2714 = vmatprep.subr.bf16.mxu0 %v1954
        %2715 = vmatpush1.bf16.msra.mxu0 %v1953
        %2716 = vmatprep.subr.bf16.mxu0 %v1958
        %2717 = vmatpush1.bf16.msra.mxu0 %v1957
        %2718 = vmatprep.subr.bf16.mxu0 %v1962
        %2719 = vmatpush1.bf16.msra.mxu0 %v1961
        %2720 = vmatprep.subr.bf16.mxu0 %v1966
        %2721 = vmatpush1.bf16.msra.mxu0 %v1965
        %2722 = vmatprep.subr.bf16.mxu0 %v1970
        %2723 = vmatpush1.bf16.msra.mxu0 %v1969
        %2724 = vmatprep.subr.bf16.mxu0 %v1974
        %2725 = vmatpush1.bf16.msra.mxu0 %v1973
        %2726 = vmatprep.subr.bf16.mxu0 %v1978
        %2727 = vmatpush1.bf16.msra.mxu0 %v1977
        %2728 = vmatprep.subr.bf16.mxu0 %v1982
        %2729 = vmatpush1.bf16.msra.mxu0 %v1981
        %2730 = vmatprep.subr.bf16.mxu0 %v1986
        %2731 = vmatpush1.bf16.msra.mxu0 %v1985
        %2732 = vmatprep.subr.bf16.mxu0 %v1990
        %2733 = vmatpush1.bf16.msra.mxu0 %v1989
        %2734 = vmatprep.subr.bf16.mxu0 %v1994
        %2735 = vmatpush1.bf16.msra.mxu0 %v1993
        %2736 = vmatprep.subr.bf16.mxu0 %v1998
        %2737 = vmatpush1.bf16.msra.mxu0 %v1997
        %2738 = vmatprep.mubr.bf16.mxu0 %v708
        %2739 = vmatmul.mubr.bf16.gmra.mrb[0].mxu0 %v707
        %v2740 = vpop.f32.mrb[0].mxu0
        %v2741 = vadd.f32 %v2698, %v2740
        %v2742 = vpop.f32.mrb[0].mxu0
        %v2743 = vadd.f32 %v2700, %v2742
        %v2744 = vpop.f32.mrb[0].mxu0
        %v2745 = vadd.f32 %v2702, %v2744
        %v2746 = vpop.f32.mrb[0].mxu0
        %v2747 = vadd.f32 %v2704, %v2746
        %2748 = vdwg.mxu0
        %v2749 = vadd.f32 %v331, %v2526
        %v2750 = vadd.f32 %v332, %v2528
        %v2751 = vadd.f32 %v333, %v2741
        %v2752 = vadd.f32 %v334, %v2743
        %v2753 = vadd.f32 %v335, %v2530
        %v2754 = vadd.f32 %v336, %v2532
        %v2755 = vadd.f32 %v337, %v2745
        %v2756 = vadd.f32 %v338, %v2747
        %2757 = vst [vmem:[#allocation2] sm:$0xff] %v2749
        %2758 = vst [vmem:[#allocation2 + $0x8] sm:$0xff] %v2750
        %2759 = vst [vmem:[#allocation2 + $0x10] sm:$0xff] %v2751
        %2760 = vst [vmem:[#allocation2 + $0x18] sm:$0xff] %v2752
        %2761 = vst [vmem:[#allocation2 + $0x20] sm:$0xff] %v2753
        %2762 = vst [vmem:[#allocation2 + $0x28] sm:$0xff] %v2754
        %2763 = vst [vmem:[#allocation2 + $0x30] sm:$0xff] %v2755
        %2764 = vst [vmem:[#allocation2 + $0x38] sm:$0xff] %v2756
        %p2765 = scmp.eq.s32.totalorder %s27, 1
        // Predicated region
        $region68: #{discriminator_p.6} parent=50 // pred_check
          %p2766 = pneg %p2765
        $region69: #{discriminator_p.6} parent=50 // pred_check_branch
          %2768 = sbr.rel (%p2766) target = $region71
        $region70: #{discriminator_p.6} parent=50 // pred_region
          %v2769 = vld [vmem:[#allocation2] sm:$0xff]
          %v2770 = vld [vmem:[#allocation2 + $0x8] sm:$0xff]
          %v2771 = vld [vmem:[#allocation2 + $0x10] sm:$0xff]
          %v2772 = vld [vmem:[#allocation2 + $0x18] sm:$0xff]
          %v2773 = vld [vmem:[#allocation2 + $0x20] sm:$0xff]
          %v2774 = vld [vmem:[#allocation2 + $0x28] sm:$0xff]
          %v2775 = vld [vmem:[#allocation2 + $0x30] sm:$0xff]
          %v2776 = vld [vmem:[#allocation2 + $0x38] sm:$0xff]
          %v2777 = vld [vmem:[%s281] sm:$0xf]
          %v2779 = vlaneseq
          %v2780 = vshrl.u32 %v2779, 7
          %v2781 = vsub.s32 0, %v2780
          %v2782 = vrot.slane %v2777, %v2781
          %v2783 = vlaneseq
          %v2784 = vshrl.u32 %v2783, 7
          %v2785 = vsub.s32 1, %v2784
          %v2786 = vrot.slane %v2777, %v2785
          %v2787 = vlaneseq
          %v2788 = vshrl.u32 %v2787, 7
          %v2789 = vsub.s32 2, %v2788
          %v2790 = vrot.slane %v2777, %v2789
          %v2791 = vlaneseq
          %v2792 = vshrl.u32 %v2791, 7
          %v2793 = vsub.s32 3, %v2792
          %v2794 = vrot.slane %v2777, %v2793
          %v2799 = vadd.f32 %v2769, %v2782
          %v2800 = vadd.f32 %v2770, %v2786
          %v2801 = vadd.f32 %v2771, %v2790
          %v2802 = vadd.f32 %v2772, %v2794
          %v2803 = vadd.f32 %v2773, %v2782
          %v2804 = vadd.f32 %v2774, %v2786
          %v2805 = vadd.f32 %v2775, %v2790
          %v2806 = vadd.f32 %v2776, %v2794
          %v2807 = vmul.f32 %v2799, 0.1
          %v2808 = vmul.f32 %v2800, 0.1
          %v2809 = vmul.f32 %v2801, 0.1
          %v2810 = vmul.f32 %v2802, 0.1
          %v2811 = vmul.f32 %v2803, 0.1
          %v2812 = vmul.f32 %v2804, 0.1
          %v2813 = vmul.f32 %v2805, 0.1
          %v2814 = vmul.f32 %v2806, 0.1
          %v2815 = vmax.f32 %v2799, %v2807
          %v2816 = vmax.f32 %v2800, %v2808
          %v2817 = vmax.f32 %v2801, %v2809
          %v2818 = vmax.f32 %v2802, %v2810
          %v2819 = vmax.f32 %v2803, %v2811
          %v2820 = vmax.f32 %v2804, %v2812
          %v2821 = vmax.f32 %v2805, %v2813
          %v2822 = vmax.f32 %v2806, %v2814
          %v2823 = vpack.c.bf16 %v2819, %v2815
          %v2824 = vpack.c.bf16 %v2820, %v2816
          %v2825 = vpack.c.bf16 %v2821, %v2817
          %v2826 = vpack.c.bf16 %v2822, %v2818
          %v2831 = vunpack.c.l.b16 %v2823
          %v2832 = vunpack.c.l.b16 %v2824
          %v2833 = vunpack.c.l.b16 %v2825
          %v2834 = vunpack.c.l.b16 %v2826
          %v2835 = vunpack.c.h.b16 %v2823
          %v2836 = vunpack.c.h.b16 %v2824
          %v2837 = vunpack.c.h.b16 %v2825
          %v2838 = vunpack.c.h.b16 %v2826
          %v2839 = vpack.c.b16 %v2832, %v2831
          %v2840 = vpack.c.b16 %v2834, %v2833
          %v2841 = vpack.c.b16 %v2836, %v2835
          %v2842 = vpack.c.b16 %v2838, %v2837
          %2847 = vst [vmem:[%s311] sm:$0xff] %v2839
          %2848 = vst [vmem:[%s311 + $0x8] sm:$0xff] %v2840
          %2849 = vst [vmem:[%s311 + $0x10] sm:$0xff] %v2841
          %2850 = vst [vmem:[%s311 + $0x18] sm:$0xff] %v2842
        $region71: #{discriminator_p.6} parent=50 // pred_fallthru
          _
        %s2851 = sand.u32 %s131, 1
        %s2852 = sand.u32 %s131, 1
        %s2853 = smul.addr %s2852, 32
        %s2854 = scalar_lea.vmem [#allocation8], %s2853
        // Predicated region
        $region72: #{discriminator_p.6} parent=50 // pred_check
          %p2855 = pneg %p141
        $region73: #{discriminator_p.6} parent=50 // pred_check_branch
          %2857 = sbr.rel (%p2855) target = $region75
        $region74: #{discriminator_p.6} parent=50 // pred_region
          %s2858 = smul.u32 2, %s25
          %s2859 = smul.u32 4, %s26
          %s2860 = smul.addr %s2858, 8
          %s2861 = sadd.s32 %s2859, %s2860
          %s2862 = smul.addr %s2861, 4
          %s2863 = scalar_lea.vmem %s3, %s2862
          // Predicated region
          $region76: #{discriminator_p.6} parent=74 // pred_check
            _
          $region77: #{discriminator_p.6} parent=74 // pred_check_branch
            %2865 = sbr.rel (0) target = $region79
          $region78: #{discriminator_p.6} parent=74 // pred_region
            // Predicated region
            $region80: #{discriminator_p.6} parent=78 // pred_check
              _
            $region81: #{discriminator_p.6} parent=78 // pred_check_branch
              %2867 = sbr.rel (0) target = $region83
            $region82: #{discriminator_p.6} parent=78 // pred_region
              loop: start=0, step=1, limit=1
              $region84: #{discriminator_p.6} parent=82 // loop_pre_header
                _
              $region85: #{discriminator_p.6} parent=82 // loop_header
                %s2869 = sphi 0, %s2873
                %p2870 = scmp.ge.s32.totalorder %s2869, 1
                %s2874 = sphi %s2854, %s2854
                %s2875 = sphi %s2863, %s2863
              $region86: #{discriminator_p.6} parent=82 // loop_header_branch
                %2872 = sbr.rel (%p2870) target = $region90
              $region87: #{discriminator_p.6} parent=82 // loop_body
                %v2876 = vld [vmem:[%s2874] sm:$0xff]
                %2877 = vst [vmem:[%s2875] sm:$0xff] %v2876
                %v2878 = vld [vmem:[%s2874 + $0x8] sm:$0xff]
                %2879 = vst [vmem:[%s2875 + $0x8] sm:$0xff] %v2878
                %v2880 = vld [vmem:[%s2874 + $0x10] sm:$0xff]
                %2881 = vst [vmem:[%s2875 + $0x20] sm:$0xff] %v2880
                %v2882 = vld [vmem:[%s2874 + $0x18] sm:$0xff]
                %2883 = vst [vmem:[%s2875 + $0x28] sm:$0xff] %v2882
              $region88: #{discriminator_p.6} parent=82 // loop_footer
                %s2873 = sadd.s32 1, %s2869
              $region89: #{discriminator_p.6} parent=82 // loop_footer_branch
                %2868 = sbr.rel target = $region85
              $region90: #{discriminator_p.6} parent=82 // loop_exit
                _
            $region83: #{discriminator_p.6} parent=78 // pred_fallthru
              _
            // Predicated region
            $region91: #{discriminator_p.6} parent=78 // pred_check
              _
            $region92: #{discriminator_p.6} parent=78 // pred_check_branch
              %2885 = sbr.rel target = $region94
            $region93: #{discriminator_p.6} parent=78 // pred_region
              _
            $region94: #{discriminator_p.6} parent=78 // pred_fallthru
              _
          $region79: #{discriminator_p.6} parent=74 // pred_fallthru
            _
          %2886 = vnop
        $region75: #{discriminator_p.6} parent=50 // pred_fallthru
          _
      $region51: #{discriminator_p.6} parent=5 // pred_fallthru
        _
      %p2887 = scmp.le.s32.totalorder 2, %s15
      // Predicated region
      $region95: #{discriminator_p.6} parent=5 // pred_check
        %p2888 = pneg %p2887
      $region96: #{discriminator_p.6} parent=5 // pred_check_branch
        %2890 = sbr.rel (%p2888) target = $region98
      $region97: #{discriminator_p.6} parent=5 // pred_region
        %s2891 = ssub.s32 %s15, 2
        // Predicated region
        $region99: #{discriminator_p.6} parent=97 // pred_check
          %p2892 = pneg %p147
        $region100: #{discriminator_p.6} parent=97 // pred_check_branch
          %2894 = sbr.rel (%p2892) target = $region102
        $region101: #{discriminator_p.6} parent=97 // pred_region
          %s2895 = sand.u32 %s132, 1
          %s2896 = sand.u32 %s132, 1
          %s2897 = smul.addr %s2896, 32
          %s2898 = scalar_lea.vmem [#allocation8], %s2897
        $region102: #{discriminator_p.6} parent=97 // pred_fallthru
          _
      $region98: #{discriminator_p.6} parent=5 // pred_fallthru
        _
    $region6: #{discriminator_p.6} parent=1 // loop_footer
      %s19 = sadd.s32 1, %s15
    $region7: #{discriminator_p.6} parent=1 // loop_footer_branch
      %14 = sbr.rel target = $region3
    $region8: #{discriminator_p.6} parent=1 // loop_exit
      _
    %2899 = vsyncpa [#allocation5], 1
    %s2900 = scalar_lea.sflag [#allocation5], 1
    %2901 = vsyncpa %s2900, 1
    %2902 = vsyncpa [#allocation7], 1
    %s2903 = scalar_lea.sflag [#allocation7], 1
    %2904 = vsyncpa %s2903, 1

// kernel: discriminator_p.7
$region0: #{discriminator_p.7}
  #allocation0 [shape = 'u32[]', space=smem, size = 0x4, offset = 0x4, fixed_abs, tag = 'smem constant byte address 0x4 - core index']
  #allocation1 [shape = 'u32[144,128]{1,0:T(1,128)}', space=vmem, size = 0x12000, scoped, tag = 'internal scratch']
  #allocation2 [shape = 'f32[16,512]{1,0:T(8,128)}', space=vmem, size = 0x8000, scoped, tag = 'scratch operand']
  %s0 = inlined_call_operand.vmem [shape: bf16[16,5120], index: 0, kind: input, shape index: {}]
  %s1 = inlined_call_operand.hbm [shape: bf16[5120,1024], index: 1, kind: input, shape index: {}]
  %s2 = inlined_call_operand.hbm [shape: f32[1,1024], index: 2, kind: input, shape index: {}]
  %s3 = inlined_call_operand.vmem [shape: bf16[16,1024], index: 3, kind: output, shape index: {}]
  %s4 = sld [smem:[#allocation0]]
  $region103: #{discriminator_p.7} parent=0
    _
  %s6 = ssub.s32 1, %s4
  %s7 = scalar_select 0, %s6, %s4
  $region1: #{discriminator_p.7} parent=0
    #allocation3 [shape = 'u8[81920]{0}', space=vmem, size = 0x14000, scoped, tag = 'input window, operand 0']
    #allocation4 [shape = 'u8[2621440]{0}', space=vmem, size = 0x280000, scoped, tag = 'input window, operand 1']
    #allocation5 [shape = 's32[2]{0}', space=sflag, size = 0x8, scoped, tag = 'scoped memory for discriminator_p.7']
    #allocation6 [shape = 'u8[4096]{0}', space=vmem, size = 0x1000, scoped, tag = 'input window, operand 2']
    #allocation7 [shape = 's32[2]{0}', space=sflag, size = 0x8, scoped, tag = 'scoped memory for discriminator_p.7']
    #allocation8 [shape = 'u8[32768]{0}', space=vmem, size = 0x8000, scoped, tag = 'output window, operand 0']
    %8 = vsyncpa [#allocation5], 0
    %s9 = scalar_lea.sflag [#allocation5], 1
    %10 = vsyncpa %s9, 0
    %11 = vsyncpa [#allocation7], 0
    %s12 = scalar_lea.sflag [#allocation7], 1
    %13 = vsyncpa %s12, 0
    loop: start=0, step=1, limit=10
    $region2: #{discriminator_p.7} parent=1 // loop_pre_header
      _
    $region3: #{discriminator_p.7} parent=1 // loop_header
      %s15 = sphi 0, %s19
      %p16 = scmp.ge.s32.totalorder %s15, 10
      %s22 = sphi 0, %s41
      %s23 = sphi 0, %s37
      %s24 = sphi 0, %s33
      %s25 = sphi 0, %s22
      %s26 = sphi 0, %s23
      %s27 = sphi 0, %s24
      %s28 = sphi 0, %s25
      %s29 = sphi 0, %s26
      %s30 = sphi 0, %s27
      %s46 = sphi 0, %s48
      %s49 = sphi 0, %s46
      %s50 = sphi 0, %s49
      %s66 = sphi 0, %s50
      %s74 = sphi 0, %s76
      %s77 = sphi 0, %s74
      %s78 = sphi 0, %s77
      %s94 = sphi 0, %s78
      %s100 = sphi 0, %s102
      %s103 = sphi 0, %s100
      %s104 = sphi 0, %s103
      %s120 = sphi 0, %s104
      %s128 = sphi 0, %s130
      %s131 = sphi 0, %s128
      %s132 = sphi 0, %s131
      %s148 = sphi 0, %s132
    $region4: #{discriminator_p.7} parent=1 // loop_header_branch
      %18 = sbr.rel (%p16) target = $region8
    $region5: #{discriminator_p.7} parent=1 // loop_body
      %s20 = ssub.s32 %s15, 1
      %s21 = ssub.s32 %s15, 2
      %s31 = sadd.s32 1, %s24
      %p32 = scmp.ge.s32.totalorder %s31, 4
      %s33 = scalar_select %p32, 0, %s31
      %s34 = sadd.s32 1, %s23
      %s35 = scalar_select %p32, %s34, %s23
      %p36 = scmp.ge.s32.totalorder %s35, 2
      %s37 = scalar_select %p36, 0, %s35
      %s38 = sadd.s32 1, %s22
      %s39 = scalar_select %p36, %s38, %s22
      %p40 = scmp.ge.s32.totalorder %s39, 1
      %s41 = scalar_select %p40, 0, %s39
      %s42 = ssub.s32 %s22, %s41
      %s43 = ssub.s32 %s24, %s33
      %s44 = sor.u32 %s42, %s43
      %p45 = scmp.eq.s32.totalorder %s44, 0
      %s47 = sadd.s32 %s46, 1
      %s48 = scalar_select %p45, %s46, %s47
      %p51 = pneg %p45
      %p52 = scmp.eq.s32.totalorder %s15, 7
      %p53 = por %p51, %p52
      %p54 = scmp.ne.s32.totalorder %s46, %s49
      %p55 = scmp.eq.s32.totalorder %s15, 0
      %p56 = por %p54, %p55
      %p57 = scmp.ne.s32.totalorder %s46, %s49
      %p58 = scmp.eq.s32.totalorder %s20, 7
      %p59 = por %p57, %p58
      %p60 = scmp.ne.s32.totalorder %s49, %s50
      %p61 = scmp.eq.s32.totalorder %s20, 0
      %p62 = por %p60, %p61
      %p63 = scmp.ne.s32.totalorder %s49, %s50
      %p64 = scmp.eq.s32.totalorder %s21, 7
      %p65 = por %p63, %p64
      %p67 = scmp.ne.s32.totalorder %s50, %s66
      %p68 = scmp.eq.s32.totalorder %s21, 0
      %p69 = por %p67, %p68
      %s70 = ssub.s32 %s24, %s33
      %s71 = ssub.s32 %s23, %s37
      %s72 = sor.u32 %s70, %s71
      %p73 = scmp.eq.s32.totalorder %s72, 0
      %s75 = sadd.s32 %s74, 1
      %s76 = scalar_select %p73, %s74, %s75
      %p79 = pneg %p73
      %p80 = scmp.eq.s32.totalorder %s15, 7
      %p81 = por %p79, %p80
      %p82 = scmp.ne.s32.totalorder %s74, %s77
      %p83 = scmp.eq.s32.totalorder %s15, 0
      %p84 = por %p82, %p83
      %p85 = scmp.ne.s32.totalorder %s74, %s77
      %p86 = scmp.eq.s32.totalorder %s20, 7
      %p87 = por %p85, %p86
      %p88 = scmp.ne.s32.totalorder %s77, %s78
      %p89 = scmp.eq.s32.totalorder %s20, 0
      %p90 = por %p88, %p89
      %p91 = scmp.ne.s32.totalorder %s77, %s78
      %p92 = scmp.eq.s32.totalorder %s21, 7
      %p93 = por %p91, %p92
      %p95 = scmp.ne.s32.totalorder %s78, %s94
      %p96 = scmp.eq.s32.totalorder %s21, 0
      %p97 = por %p95, %p96
      %s98 = ssub.s32 %s23, %s37
      %p99 = scmp.eq.s32.totalorder %s98, 0
      %s101 = sadd.s32 %s100, 1
      %s102 = scalar_select %p99, %s100, %s101
      %p105 = pneg %p99
      %p106 = scmp.eq.s32.totalorder %s15, 7
      %p107 = por %p105, %p106
      %p108 = scmp.ne.s32.totalorder %s100, %s103
      %p109 = scmp.eq.s32.totalorder %s15, 0
      %p110 = por %p108, %p109
      %p111 = scmp.ne.s32.totalorder %s100, %s103
      %p112 = scmp.eq.s32.totalorder %s20, 7
      %p113 = por %p111, %p112
      %p114 = scmp.ne.s32.totalorder %s103, %s104
      %p115 = scmp.eq.s32.totalorder %s20, 0
      %p116 = por %p114, %p115
      %p117 = scmp.ne.s32.totalorder %s103, %s104
      %p118 = scmp.eq.s32.totalorder %s21, 7
      %p119 = por %p117, %p118
      %p121 = scmp.ne.s32.totalorder %s104, %s120
      %p122 = scmp.eq.s32.totalorder %s21, 0
      %p123 = por %p121, %p122
      %s124 = ssub.s32 %s22, %s41
      %s125 = ssub.s32 %s23, %s37
      %s126 = sor.u32 %s124, %s125
      %p127 = scmp.eq.s32.totalorder %s126, 0
      %s129 = sadd.s32 %s128, 1
      %s130 = scalar_select %p127, %s128, %s129
      %p133 = pneg %p127
      %p134 = scmp.eq.s32.totalorder %s15, 7
      %p135 = por %p133, %p134
      %p136 = scmp.ne.s32.totalorder %s128, %s131
      %p137 = scmp.eq.s32.totalorder %s15, 0
      %p138 = por %p136, %p137
      %p139 = scmp.ne.s32.totalorder %s128, %s131
      %p140 = scmp.eq.s32.totalorder %s20, 7
      %p141 = por %p139, %p140
      %p142 = scmp.ne.s32.totalorder %s131, %s132
      %p143 = scmp.eq.s32.totalorder %s20, 0
      %p144 = por %p142, %p143
      %p145 = scmp.ne.s32.totalorder %s131, %s132
      %p146 = scmp.eq.s32.totalorder %s21, 7
      %p147 = por %p145, %p146
      %p149 = scmp.ne.s32.totalorder %s132, %s148
      %p150 = scmp.eq.s32.totalorder %s21, 0
      %p151 = por %p149, %p150
      %p152 = scmp.le.s32.totalorder 1, %s15
      %p153 = scmp.lt.s32.totalorder %s15, 9
      %p154 = pnand %p152, %p153
      %p155 = pneg %p154
      // Predicated region
      $region9: #{discriminator_p.7} parent=5 // pred_check
        _
      $region10: #{discriminator_p.7} parent=5 // pred_check_branch
        %157 = sbr.rel (%p154) target = $region12
      $region11: #{discriminator_p.7} parent=5 // pred_region
        %s158 = ssub.s32 %s15, 1
      $region12: #{discriminator_p.7} parent=5 // pred_fallthru
        _
      %p159 = scmp.lt.s32.totalorder %s15, 8
      // Predicated region
      $region13: #{discriminator_p.7} parent=5 // pred_check
        %p160 = pneg %p159
      $region14: #{discriminator_p.7} parent=5 // pred_check_branch
        %162 = sbr.rel (%p160) target = $region16
      $region15: #{discriminator_p.7} parent=5 // pred_region
        // Predicated region
        $region17: #{discriminator_p.7} parent=15 // pred_check
          %p163 = pneg %p56
        $region18: #{discriminator_p.7} parent=15 // pred_check_branch
          %165 = sbr.rel (%p163) target = $region20
        $region19: #{discriminator_p.7} parent=15 // pred_region
          %s166 = sand.u32 %s46, 1
          %s167 = sand.u32 %s46, 1
          %s168 = smul.addr %s167, 80
          %s169 = scalar_lea.vmem [#allocation3], %s168
          %s170 = smul.u32 2, %s22
          %s171 = smul.u32 10, %s24
          %s172 = smul.addr %s170, 40
          %s173 = sadd.s32 %s171, %s172
          %s174 = smul.addr %s173, 4
          %s175 = scalar_lea.vmem %s0, %s174
          // Predicated region
          $region21: #{discriminator_p.7} parent=19 // pred_check
            _
          $region22: #{discriminator_p.7} parent=19 // pred_check_branch
            %177 = sbr.rel (0) target = $region24
          $region23: #{discriminator_p.7} parent=19 // pred_region
            // Predicated region
            $region25: #{discriminator_p.7} parent=23 // pred_check
              _
            $region26: #{discriminator_p.7} parent=23 // pred_check_branch
              %179 = sbr.rel (0) target = $region28
            $region27: #{discriminator_p.7} parent=23 // pred_region
              loop: start=0, step=1, limit=1
              $region29: #{discriminator_p.7} parent=27 // loop_pre_header
                _
              $region30: #{discriminator_p.7} parent=27 // loop_header
                %s181 = sphi 0, %s185
                %p182 = scmp.ge.s32.totalorder %s181, 1
                %s186 = sphi %s175, %s175
                %s187 = sphi %s169, %s169
              $region31: #{discriminator_p.7} parent=27 // loop_header_branch
                %184 = sbr.rel (%p182) target = $region35
              $region32: #{discriminator_p.7} parent=27 // loop_body
                %v188 = vld [vmem:[%s186] sm:$0xff]
                %189 = vst [vmem:[%s187] sm:$0xff] %v188
                %v190 = vld [vmem:[%s186 + $0x8] sm:$0xff]
                %191 = vst [vmem:[%s187 + $0x8] sm:$0xff] %v190
                %v192 = vld [vmem:[%s186 + $0x10] sm:$0xff]
                %193 = vst [vmem:[%s187 + $0x10] sm:$0xff] %v192
                %v194 = vld [vmem:[%s186 + $0x18] sm:$0xff]
                %195 = vst [vmem:[%s187 + $0x18] sm:$0xff] %v194
                %v196 = vld [vmem:[%s186 + $0x20] sm:$0xff]
                %197 = vst [vmem:[%s187 + $0x20] sm:$0xff] %v196
                %v198 = vld [vmem:[%s186 + $0xa0] sm:$0xff]
                %199 = vst [vmem:[%s187 + $0x28] sm:$0xff] %v198
                %v200 = vld [vmem:[%s186 + $0xa8] sm:$0xff]
                %201 = vst [vmem:[%s187 + $0x30] sm:$0xff] %v200
                %v202 = vld [vmem:[%s186 + $0xb0] sm:$0xff]
                %203 = vst [vmem:[%s187 + $0x38] sm:$0xff] %v202
                %v204 = vld [vmem:[%s186 + $0xb8] sm:$0xff]
                %205 = vst [vmem:[%s187 + $0x40] sm:$0xff] %v204
                %v206 = vld [vmem:[%s186 + $0xc0] sm:$0xff]
                %207 = vst [vmem:[%s187 + $0x48] sm:$0xff] %v206
              $region33: #{discriminator_p.7} parent=27 // loop_footer
                %s185 = sadd.s32 1, %s181
              $region34: #{discriminator_p.7} parent=27 // loop_footer_branch
                %180 = sbr.rel target = $region30
              $region35: #{discriminator_p.7} parent=27 // loop_exit
                _
            $region28: #{discriminator_p.7} parent=23 // pred_fallthru
              _
            // Predicated region
            $region36: #{discriminator_p.7} parent=23 // pred_check
              _
            $region37: #{discriminator_p.7} parent=23 // pred_check_branch
              %209 = sbr.rel target = $region39
            $region38: #{discriminator_p.7} parent=23 // pred_region
              _
            $region39: #{discriminator_p.7} parent=23 // pred_fallthru
              _
          $region24: #{discriminator_p.7} parent=19 // pred_fallthru
            _
          %210 = vnop
        $region20: #{discriminator_p.7} parent=15 // pred_fallthru
          _
        // Predicated region
        $region40: #{discriminator_p.7} parent=15 // pred_check
          %p211 = pneg %p84
        $region41: #{discriminator_p.7} parent=15 // pred_check_branch
          %213 = sbr.rel (%p211) target = $region43
        $region42: #{discriminator_p.7} parent=15 // pred_region
          %s214 = sand.u32 %s74, 1
          %s215 = scalar_lea.sflag [#allocation5], %s214
          %s216 = sand.u32 %s74, 1
          %s217 = smul.addr %s216, 2560
          %s218 = scalar_lea.vmem [#allocation4], %s217
          %s219 = smul.u32 160, %s24
          %s220 = smul.u32 4, %s23
          %s222 = ssub.s32 40960, 40960
          %223 = vsyncadd %s215, %s222
          %s224 = smul.addr %s219, 8
          %s225 = sadd.s32 %s220, %s224
          %s226 = smul.addr %s225, 64
          %s227 = scalar_lea.hbm %s1, %s226
          %s228 = sshll.u32 %s218, 4
          %s229 = int_to_ptr.vmem [resolvable:$true] %s228
          %234 = dma.hbm_to_vmem [thread:$0]  %s227, 40960, %s229, %s215, 512, 256, 16
        $region43: #{discriminator_p.7} parent=15 // pred_fallthru
          _
        // Predicated region
        $region44: #{discriminator_p.7} parent=15 // pred_check
          %p235 = pneg %p110
        $region45: #{discriminator_p.7} parent=15 // pred_check_branch
          %237 = sbr.rel (%p235) target = $region47
        $region46: #{discriminator_p.7} parent=15 // pred_region
          %s238 = sand.u32 %s100, 1
          %s239 = scalar_lea.sflag [#allocation7], %s238
          %s240 = sand.u32 %s100, 1
          %s241 = smul.addr %s240, 4
          %s242 = scalar_lea.vmem [#allocation6], %s241
          %s243 = smul.u32 4, %s23
          %s245 = ssub.s32 64, 64
          %246 = vsyncadd %s239, %s245
          %s247 = smul.addr %s243, 16
          %s248 = scalar_lea.hbm %s2, %s247
          %s250 = sshll.u32 %s242, 4
          %s251 = int_to_ptr.vmem [resolvable:$true] %s250
          %253 = dma.hbm_to_vmem [thread:$0]  %s248, 64, %s251, %s239
        $region47: #{discriminator_p.7} parent=15 // pred_fallthru
          _
      $region16: #{discriminator_p.7} parent=5 // pred_fallthru
        _
      %p254 = scmp.le.s32.totalorder 1, %s15
      %p255 = scmp.lt.s32.totalorder %s15, 9
      %p256 = pnand %p254, %p255
      %p257 = pneg %p256
      // Predicated region
      $region48: #{discriminator_p.7} parent=5 // pred_check
        _
      $region49: #{discriminator_p.7} parent=5 // pred_check_branch
        %259 = sbr.rel (%p256) target = $region51
      $region50: #{discriminator_p.7} parent=5 // pred_region
        %s260 = ssub.s32 %s15, 1
        %s261 = sand.u32 %s49, 1
        %s262 = sand.u32 %s49, 1
        %s263 = smul.addr %s262, 80
        %s264 = scalar_lea.vmem [#allocation3], %s263
        // Predicated region
        $region52: #{discriminator_p.7} parent=50 // pred_check
          %p265 = pneg %p62
        $region53: #{discriminator_p.7} parent=50 // pred_check_branch
          %267 = sbr.rel (%p265) target = $region55
        $region54: #{discriminator_p.7} parent=50 // pred_region
          _
        $region55: #{discriminator_p.7} parent=50 // pred_fallthru
          _
        %s268 = sand.u32 %s77, 1
        %s269 = scalar_lea.sflag [#allocation5], %s268
        %s270 = sand.u32 %s77, 1
        %s271 = smul.addr %s270, 2560
        %s272 = scalar_lea.vmem [#allocation4], %s271
        // Predicated region
        $region56: #{discriminator_p.7} parent=50 // pred_check
          %p273 = pneg %p90
        $region57: #{discriminator_p.7} parent=50 // pred_check_branch
          %275 = sbr.rel (%p273) target = $region59
        $region58: #{discriminator_p.7} parent=50 // pred_region
          %276 = dma.done %s269, 40960
        $region59: #{discriminator_p.7} parent=50 // pred_fallthru
          _
        %s277 = sand.u32 %s103, 1
        %s278 = scalar_lea.sflag [#allocation7], %s277
        %s279 = sand.u32 %s103, 1
        %s280 = smul.addr %s279, 4
        %s281 = scalar_lea.vmem [#allocation6], %s280
        // Predicated region
        $region60: #{discriminator_p.7} parent=50 // pred_check
          %p282 = pneg %p116
        $region61: #{discriminator_p.7} parent=50 // pred_check_branch
          %284 = sbr.rel (%p282) target = $region63
        $region62: #{discriminator_p.7} parent=50 // pred_region
          %285 = dma.done %s278, 64
        $region63: #{discriminator_p.7} parent=50 // pred_fallthru
          _
        %s286 = sand.u32 %s49, 1
        %s287 = sand.u32 %s49, 1
        %s288 = smul.addr %s287, 80
        %s289 = scalar_lea.vmem [#allocation3], %s288
        %p290 = pneg %p62
        %p291 = pneg %p59
        %s292 = sand.u32 %s77, 1
        %s293 = scalar_lea.sflag [#allocation5], %s292
        %s294 = sand.u32 %s77, 1
        %s295 = smul.addr %s294, 2560
        %s296 = scalar_lea.vmem [#allocation4], %s295
        %p297 = pneg %p90
        %p298 = pneg %p87
        %s299 = sand.u32 %s103, 1
        %s300 = scalar_lea.sflag [#allocation7], %s299
        %s301 = sand.u32 %s103, 1
        %s302 = smul.addr %s301, 4
        %s303 = scalar_lea.vmem [#allocation6], %s302
        %p304 = pneg %p116
        %p305 = pneg %p113
        %p306 = pneg %p144
        %p307 = pneg %p141
        %s308 = sand.u32 %s131, 1
        %s309 = sand.u32 %s131, 1
        %s310 = smul.addr %s309, 32
        %s311 = scalar_lea.vmem [#allocation8], %s310
        %s312 = smul.u32 2, %s25
        %s313 = smul.u32 10, %s27
        %s314 = smul.u32 160, %s27
        %s315 = smul.u32 4, %s26
        %s316 = smul.u32 4, %s26
        %s317 = smul.u32 2, %s25
        %s318 = smul.u32 4, %s26
        %p319 = scmp.eq.s32.totalorder %s27, 0
        // Predicated region
        $region64: #{discriminator_p.7} parent=50 // pred_check
          %p320 = pneg %p319
        $region65: #{discriminator_p.7} parent=50 // pred_check_branch
          %322 = sbr.rel (%p320) target = $region67
        $region66: #{discriminator_p.7} parent=50 // pred_region
          %323 = vst [vmem:[#allocation2] sm:$0xff] 0.0
          %324 = vst [vmem:[#allocation2 + $0x8] sm:$0xff] 0.0
          %325 = vst [vmem:[#allocation2 + $0x10] sm:$0xff] 0.0
          %326 = vst [vmem:[#allocation2 + $0x18] sm:$0xff] 0.0
          %327 = vst [vmem:[#allocation2 + $0x20] sm:$0xff] 0.0
          %328 = vst [vmem:[#allocation2 + $0x28] sm:$0xff] 0.0
          %329 = vst [vmem:[#allocation2 + $0x30] sm:$0xff] 0.0
          %330 = vst [vmem:[#allocation2 + $0x38] sm:$0xff] 0.0
        $region67: #{discriminator_p.7} parent=50 // pred_fallthru
          _
        %v331 = vld [vmem:[#allocation2] sm:$0xff]
        %v332 = vld [vmem:[#allocation2 + $0x8] sm:$0xff]
        %v333 = vld [vmem:[#allocation2 + $0x10] sm:$0xff]
        %v334 = vld [vmem:[#allocation2 + $0x18] sm:$0xff]
        %v335 = vld [vmem:[#allocation2 + $0x20] sm:$0xff]
        %v336 = vld [vmem:[#allocation2 + $0x28] sm:$0xff]
        %v337 = vld [vmem:[#allocation2 + $0x30] sm:$0xff]
        %v338 = vld [vmem:[#allocation2 + $0x38] sm:$0xff]
        %v339 = vld [vmem:[%s264] sm:$0xff]
        %v340 = vld [vmem:[%s264 + $0x8] sm:$0xff]
        %v341 = vld [vmem:[%s264 + $0x10] sm:$0xff]
        %v342 = vld [vmem:[%s264 + $0x18] sm:$0xff]
        %v343 = vld [vmem:[%s264 + $0x20] sm:$0xff]
        %v344 = vld [vmem:[%s264 + $0x28] sm:$0xff]
        %v345 = vld [vmem:[%s264 + $0x30] sm:$0xff]
        %v346 = vld [vmem:[%s264 + $0x38] sm:$0xff]
        %v347 = vld [vmem:[%s264 + $0x40] sm:$0xff]
        %v348 = vld [vmem:[%s264 + $0x48] sm:$0xff]
        %v349 = vld [vmem:[%s272] sm:$0xff]
        %v350 = vld [vmem:[%s272 + $0x8] sm:$0xff]
        %v351 = vld [vmem:[%s272 + $0x10] sm:$0xff]
        %v352 = vld [vmem:[%s272 + $0x18] sm:$0xff]
        %v353 = vld [vmem:[%s272 + $0x20] sm:$0xff]
        %v354 = vld [vmem:[%s272 + $0x28] sm:$0xff]
        %v355 = vld [vmem:[%s272 + $0x30] sm:$0xff]
        %v356 = vld [vmem:[%s272 + $0x38] sm:$0xff]
        %v357 = vld [vmem:[%s272 + $0x40] sm:$0xff]
        %v358 = vld [vmem:[%s272 + $0x48] sm:$0xff]
        %v359 = vld [vmem:[%s272 + $0x50] sm:$0xff]
        %v360 = vld [vmem:[%s272 + $0x58] sm:$0xff]
        %v361 = vld [vmem:[%s272 + $0x60] sm:$0xff]
        %v362 = vld [vmem:[%s272 + $0x68] sm:$0xff]
        %v363 = vld [vmem:[%s272 + $0x70] sm:$0xff]
        %v364 = vld [vmem:[%s272 + $0x78] sm:$0xff]
        %v365 = vld [vmem:[%s272 + $0x80] sm:$0xff]
        %v366 = vld [vmem:[%s272 + $0x88] sm:$0xff]
        %v367 = vld [vmem:[%s272 + $0x90] sm:$0xff]
        %v368 = vld [vmem:[%s272 + $0x98] sm:$0xff]
        %v369 = vld [vmem:[%s272 + $0xa0] sm:$0xff]
        %v370 = vld [vmem:[%s272 + $0xa8] sm:$0xff]
        %v371 = vld [vmem:[%s272 + $0xb0] sm:$0xff]
        %v372 = vld [vmem:[%s272 + $0xb8] sm:$0xff]
        %v373 = vld [vmem:[%s272 + $0xc0] sm:$0xff]
        %v374 = vld [vmem:[%s272 + $0xc8] sm:$0xff]
        %v375 = vld [vmem:[%s272 + $0xd0] sm:$0xff]
        %v376 = vld [vmem:[%s272 + $0xd8] sm:$0xff]
        %v377 = vld [vmem:[%s272 + $0xe0] sm:$0xff]
        %v378 = vld [vmem:[%s272 + $0xe8] sm:$0xff]
        %v379 = vld [vmem:[%s272 + $0xf0] sm:$0xff]
        %v380 = vld [vmem:[%s272 + $0xf8] sm:$0xff]
        %v381 = vld [vmem:[%s272 + $0x100] sm:$0xff]
        %v382 = vld [vmem:[%s272 + $0x108] sm:$0xff]
        %v383 = vld [vmem:[%s272 + $0x110] sm:$0xff]
        %v384 = vld [vmem:[%s272 + $0x118] sm:$0xff]
        %v385 = vld [vmem:[%s272 + $0x120] sm:$0xff]
        %v386 = vld [vmem:[%s272 + $0x128] sm:$0xff]
        %v387 = vld [vmem:[%s272 + $0x130] sm:$0xff]
        %v388 = vld [vmem:[%s272 + $0x138] sm:$0xff]
        %v389 = vld [vmem:[%s272 + $0x140] sm:$0xff]
        %v390 = vld [vmem:[%s272 + $0x148] sm:$0xff]
        %v391 = vld [vmem:[%s272 + $0x150] sm:$0xff]
        %v392 = vld [vmem:[%s272 + $0x158] sm:$0xff]
        %v393 = vld [vmem:[%s272 + $0x160] sm:$0xff]
        %v394 = vld [vmem:[%s272 + $0x168] sm:$0xff]
        %v395 = vld [vmem:[%s272 + $0x170] sm:$0xff]
        %v396 = vld [vmem:[%s272 + $0x178] sm:$0xff]
        %v397 = vld [vmem:[%s272 + $0x180] sm:$0xff]
        %v398 = vld [vmem:[%s272 + $0x188] sm:$0xff]
        %v399 = vld [vmem:[%s272 + $0x190] sm:$0xff]
        %v400 = vld [vmem:[%s272 + $0x198] sm:$0xff]
        %v401 = vld [vmem:[%s272 + $0x1a0] sm:$0xff]
        %v402 = vld [vmem:[%s272 + $0x1a8] sm:$0xff]
        %v403 = vld [vmem:[%s272 + $0x1b0] sm:$0xff]
        %v404 = vld [vmem:[%s272 + $0x1b8] sm:$0xff]
        %v405 = vld [vmem:[%s272 + $0x1c0] sm:$0xff]
        %v406 = vld [vmem:[%s272 + $0x1c8] sm:$0xff]
        %v407 = vld [vmem:[%s272 + $0x1d0] sm:$0xff]
        %v408 = vld [vmem:[%s272 + $0x1d8] sm:$0xff]
        %v409 = vld [vmem:[%s272 + $0x1e0] sm:$0xff]
        %v410 = vld [vmem:[%s272 + $0x1e8] sm:$0xff]
        %v411 = vld [vmem:[%s272 + $0x1f0] sm:$0xff]
        %v412 = vld [vmem:[%s272 + $0x1f8] sm:$0xff]
        %v413 = vld [vmem:[%s272 + $0x200] sm:$0xff]
        %v414 = vld [vmem:[%s272 + $0x208] sm:$0xff]
        %v415 = vld [vmem:[%s272 + $0x210] sm:$0xff]
        %v416 = vld [vmem:[%s272 + $0x218] sm:$0xff]
        %v417 = vld [vmem:[%s272 + $0x220] sm:$0xff]
        %v418 = vld [vmem:[%s272 + $0x228] sm:$0xff]
        %v419 = vld [vmem:[%s272 + $0x230] sm:$0xff]
        %v420 = vld [vmem:[%s272 + $0x238] sm:$0xff]
        %v421 = vld [vmem:[%s272 + $0x240] sm:$0xff]
        %v422 = vld [vmem:[%s272 + $0x248] sm:$0xff]
        %v423 = vld [vmem:[%s272 + $0x250] sm:$0xff]
        %v424 = vld [vmem:[%s272 + $0x258] sm:$0xff]
        %v425 = vld [vmem:[%s272 + $0x260] sm:$0xff]
        %v426 = vld [vmem:[%s272 + $0x268] sm:$0xff]
        %v427 = vld [vmem:[%s272 + $0x270] sm:$0xff]
        %v428 = vld [vmem:[%s272 + $0x278] sm:$0xff]
        %v429 = vld [vmem:[%s272 + $0x280] sm:$0xff]
        %v430 = vld [vmem:[%s272 + $0x288] sm:$0xff]
        %v431 = vld [vmem:[%s272 + $0x290] sm:$0xff]
        %v432 = vld [vmem:[%s272 + $0x298] sm:$0xff]
        %v433 = vld [vmem:[%s272 + $0x2a0] sm:$0xff]
        %v434 = vld [vmem:[%s272 + $0x2a8] sm:$0xff]
        %v435 = vld [vmem:[%s272 + $0x2b0] sm:$0xff]
        %v436 = vld [vmem:[%s272 + $0x2b8] sm:$0xff]
        %v437 = vld [vmem:[%s272 + $0x2c0] sm:$0xff]
        %v438 = vld [vmem:[%s272 + $0x2c8] sm:$0xff]
        %v439 = vld [vmem:[%s272 + $0x2d0] sm:$0xff]
        %v440 = vld [vmem:[%s272 + $0x2d8] sm:$0xff]
        %v441 = vld [vmem:[%s272 + $0x2e0] sm:$0xff]
        %v442 = vld [vmem:[%s272 + $0x2e8] sm:$0xff]
        %v443 = vld [vmem:[%s272 + $0x2f0] sm:$0xff]
        %v444 = vld [vmem:[%s272 + $0x2f8] sm:$0xff]
        %v445 = vld [vmem:[%s272 + $0x300] sm:$0xff]
        %v446 = vld [vmem:[%s272 + $0x308] sm:$0xff]
        %v447 = vld [vmem:[%s272 + $0x310] sm:$0xff]
        %v448 = vld [vmem:[%s272 + $0x318] sm:$0xff]
        %v449 = vld [vmem:[%s272 + $0x320] sm:$0xff]
        %v450 = vld [vmem:[%s272 + $0x328] sm:$0xff]
        %v451 = vld [vmem:[%s272 + $0x330] sm:$0xff]
        %v452 = vld [vmem:[%s272 + $0x338] sm:$0xff]
        %v453 = vld [vmem:[%s272 + $0x340] sm:$0xff]
        %v454 = vld [vmem:[%s272 + $0x348] sm:$0xff]
        %v455 = vld [vmem:[%s272 + $0x350] sm:$0xff]
        %v456 = vld [vmem:[%s272 + $0x358] sm:$0xff]
        %v457 = vld [vmem:[%s272 + $0x360] sm:$0xff]
        %v458 = vld [vmem:[%s272 + $0x368] sm:$0xff]
        %v459 = vld [vmem:[%s272 + $0x370] sm:$0xff]
        %v460 = vld [vmem:[%s272 + $0x378] sm:$0xff]
        %v461 = vld [vmem:[%s272 + $0x380] sm:$0xff]
        %v462 = vld [vmem:[%s272 + $0x388] sm:$0xff]
        %v463 = vld [vmem:[%s272 + $0x390] sm:$0xff]
        %v464 = vld [vmem:[%s272 + $0x398] sm:$0xff]
        %v465 = vld [vmem:[%s272 + $0x3a0] sm:$0xff]
        %v466 = vld [vmem:[%s272 + $0x3a8] sm:$0xff]
        %v467 = vld [vmem:[%s272 + $0x3b0] sm:$0xff]
        %v468 = vld [vmem:[%s272 + $0x3b8] sm:$0xff]
        %v469 = vld [vmem:[%s272 + $0x3c0] sm:$0xff]
        %v470 = vld [vmem:[%s272 + $0x3c8] sm:$0xff]
        %v471 = vld [vmem:[%s272 + $0x3d0] sm:$0xff]
        %v472 = vld [vmem:[%s272 + $0x3d8] sm:$0xff]
        %v473 = vld [vmem:[%s272 + $0x3e0] sm:$0xff]
        %v474 = vld [vmem:[%s272 + $0x3e8] sm:$0xff]
        %v475 = vld [vmem:[%s272 + $0x3f0] sm:$0xff]
        %v476 = vld [vmem:[%s272 + $0x3f8] sm:$0xff]
        %v477 = vld [vmem:[%s272 + $0x400] sm:$0xff]
        %v478 = vld [vmem:[%s272 + $0x408] sm:$0xff]
        %v479 = vld [vmem:[%s272 + $0x410] sm:$0xff]
        %v480 = vld [vmem:[%s272 + $0x418] sm:$0xff]
        %v481 = vld [vmem:[%s272 + $0x420] sm:$0xff]
        %v482 = vld [vmem:[%s272 + $0x428] sm:$0xff]
        %v483 = vld [vmem:[%s272 + $0x430] sm:$0xff]
        %v484 = vld [vmem:[%s272 + $0x438] sm:$0xff]
        %v485 = vld [vmem:[%s272 + $0x440] sm:$0xff]
        %v486 = vld [vmem:[%s272 + $0x448] sm:$0xff]
        %v487 = vld [vmem:[%s272 + $0x450] sm:$0xff]
        %v488 = vld [vmem:[%s272 + $0x458] sm:$0xff]
        %v489 = vld [vmem:[%s272 + $0x460] sm:$0xff]
        %v490 = vld [vmem:[%s272 + $0x468] sm:$0xff]
        %v491 = vld [vmem:[%s272 + $0x470] sm:$0xff]
        %v492 = vld [vmem:[%s272 + $0x478] sm:$0xff]
        %v493 = vld [vmem:[%s272 + $0x480] sm:$0xff]
        %v494 = vld [vmem:[%s272 + $0x488] sm:$0xff]
        %v495 = vld [vmem:[%s272 + $0x490] sm:$0xff]
        %v496 = vld [vmem:[%s272 + $0x498] sm:$0xff]
        %v497 = vld [vmem:[%s272 + $0x4a0] sm:$0xff]
        %v498 = vld [vmem:[%s272 + $0x4a8] sm:$0xff]
        %v499 = vld [vmem:[%s272 + $0x4b0] sm:$0xff]
        %v500 = vld [vmem:[%s272 + $0x4b8] sm:$0xff]
        %v501 = vld [vmem:[%s272 + $0x4c0] sm:$0xff]
        %v502 = vld [vmem:[%s272 + $0x4c8] sm:$0xff]
        %v503 = vld [vmem:[%s272 + $0x4d0] sm:$0xff]
        %v504 = vld [vmem:[%s272 + $0x4d8] sm:$0xff]
        %v505 = vld [vmem:[%s272 + $0x4e0] sm:$0xff]
        %v506 = vld [vmem:[%s272 + $0x4e8] sm:$0xff]
        %v507 = vld [vmem:[%s272 + $0x4f0] sm:$0xff]
        %v508 = vld [vmem:[%s272 + $0x4f8] sm:$0xff]
        %v509 = vld [vmem:[%s272 + $0x500] sm:$0xff]
        %v510 = vld [vmem:[%s272 + $0x508] sm:$0xff]
        %v511 = vld [vmem:[%s272 + $0x510] sm:$0xff]
        %v512 = vld [vmem:[%s272 + $0x518] sm:$0xff]
        %v513 = vld [vmem:[%s272 + $0x520] sm:$0xff]
        %v514 = vld [vmem:[%s272 + $0x528] sm:$0xff]
        %v515 = vld [vmem:[%s272 + $0x530] sm:$0xff]
        %v516 = vld [vmem:[%s272 + $0x538] sm:$0xff]
        %v517 = vld [vmem:[%s272 + $0x540] sm:$0xff]
        %v518 = vld [vmem:[%s272 + $0x548] sm:$0xff]
        %v519 = vld [vmem:[%s272 + $0x550] sm:$0xff]
        %v520 = vld [vmem:[%s272 + $0x558] sm:$0xff]
        %v521 = vld [vmem:[%s272 + $0x560] sm:$0xff]
        %v522 = vld [vmem:[%s272 + $0x568] sm:$0xff]
        %v523 = vld [vmem:[%s272 + $0x570] sm:$0xff]
        %v524 = vld [vmem:[%s272 + $0x578] sm:$0xff]
        %v525 = vld [vmem:[%s272 + $0x580] sm:$0xff]
        %v526 = vld [vmem:[%s272 + $0x588] sm:$0xff]
        %v527 = vld [vmem:[%s272 + $0x590] sm:$0xff]
        %v528 = vld [vmem:[%s272 + $0x598] sm:$0xff]
        %v529 = vld [vmem:[%s272 + $0x5a0] sm:$0xff]
        %v530 = vld [vmem:[%s272 + $0x5a8] sm:$0xff]
        %v531 = vld [vmem:[%s272 + $0x5b0] sm:$0xff]
        %v532 = vld [vmem:[%s272 + $0x5b8] sm:$0xff]
        %v533 = vld [vmem:[%s272 + $0x5c0] sm:$0xff]
        %v534 = vld [vmem:[%s272 + $0x5c8] sm:$0xff]
        %v535 = vld [vmem:[%s272 + $0x5d0] sm:$0xff]
        %v536 = vld [vmem:[%s272 + $0x5d8] sm:$0xff]
        %v537 = vld [vmem:[%s272 + $0x5e0] sm:$0xff]
        %v538 = vld [vmem:[%s272 + $0x5e8] sm:$0xff]
        %v539 = vld [vmem:[%s272 + $0x5f0] sm:$0xff]
        %v540 = vld [vmem:[%s272 + $0x5f8] sm:$0xff]
        %v541 = vld [vmem:[%s272 + $0x600] sm:$0xff]
        %v542 = vld [vmem:[%s272 + $0x608] sm:$0xff]
        %v543 = vld [vmem:[%s272 + $0x610] sm:$0xff]
        %v544 = vld [vmem:[%s272 + $0x618] sm:$0xff]
        %v545 = vld [vmem:[%s272 + $0x620] sm:$0xff]
        %v546 = vld [vmem:[%s272 + $0x628] sm:$0xff]
        %v547 = vld [vmem:[%s272 + $0x630] sm:$0xff]
        %v548 = vld [vmem:[%s272 + $0x638] sm:$0xff]
        %v549 = vld [vmem:[%s272 + $0x640] sm:$0xff]
        %v550 = vld [vmem:[%s272 + $0x648] sm:$0xff]
        %v551 = vld [vmem:[%s272 + $0x650] sm:$0xff]
        %v552 = vld [vmem:[%s272 + $0x658] sm:$0xff]
        %v553 = vld [vmem:[%s272 + $0x660] sm:$0xff]
        %v554 = vld [vmem:[%s272 + $0x668] sm:$0xff]
        %v555 = vld [vmem:[%s272 + $0x670] sm:$0xff]
        %v556 = vld [vmem:[%s272 + $0x678] sm:$0xff]
        %v557 = vld [vmem:[%s272 + $0x680] sm:$0xff]
        %v558 = vld [vmem:[%s272 + $0x688] sm:$0xff]
        %v559 = vld [vmem:[%s272 + $0x690] sm:$0xff]
        %v560 = vld [vmem:[%s272 + $0x698] sm:$0xff]
        %v561 = vld [vmem:[%s272 + $0x6a0] sm:$0xff]
        %v562 = vld [vmem:[%s272 + $0x6a8] sm:$0xff]
        %v563 = vld [vmem:[%s272 + $0x6b0] sm:$0xff]
        %v564 = vld [vmem:[%s272 + $0x6b8] sm:$0xff]
        %v565 = vld [vmem:[%s272 + $0x6c0] sm:$0xff]
        %v566 = vld [vmem:[%s272 + $0x6c8] sm:$0xff]
        %v567 = vld [vmem:[%s272 + $0x6d0] sm:$0xff]
        %v568 = vld [vmem:[%s272 + $0x6d8] sm:$0xff]
        %v569 = vld [vmem:[%s272 + $0x6e0] sm:$0xff]
        %v570 = vld [vmem:[%s272 + $0x6e8] sm:$0xff]
        %v571 = vld [vmem:[%s272 + $0x6f0] sm:$0xff]
        %v572 = vld [vmem:[%s272 + $0x6f8] sm:$0xff]
        %v573 = vld [vmem:[%s272 + $0x700] sm:$0xff]
        %v574 = vld [vmem:[%s272 + $0x708] sm:$0xff]
        %v575 = vld [vmem:[%s272 + $0x710] sm:$0xff]
        %v576 = vld [vmem:[%s272 + $0x718] sm:$0xff]
        %v577 = vld [vmem:[%s272 + $0x720] sm:$0xff]
        %v578 = vld [vmem:[%s272 + $0x728] sm:$0xff]
        %v579 = vld [vmem:[%s272 + $0x730] sm:$0xff]
        %v580 = vld [vmem:[%s272 + $0x738] sm:$0xff]
        %v581 = vld [vmem:[%s272 + $0x740] sm:$0xff]
        %v582 = vld [vmem:[%s272 + $0x748] sm:$0xff]
        %v583 = vld [vmem:[%s272 + $0x750] sm:$0xff]
        %v584 = vld [vmem:[%s272 + $0x758] sm:$0xff]
        %v585 = vld [vmem:[%s272 + $0x760] sm:$0xff]
        %v586 = vld [vmem:[%s272 + $0x768] sm:$0xff]
        %v587 = vld [vmem:[%s272 + $0x770] sm:$0xff]
        %v588 = vld [vmem:[%s272 + $0x778] sm:$0xff]
        %v589 = vld [vmem:[%s272 + $0x780] sm:$0xff]
        %v590 = vld [vmem:[%s272 + $0x788] sm:$0xff]
        %v591 = vld [vmem:[%s272 + $0x790] sm:$0xff]
        %v592 = vld [vmem:[%s272 + $0x798] sm:$0xff]
        %v593 = vld [vmem:[%s272 + $0x7a0] sm:$0xff]
        %v594 = vld [vmem:[%s272 + $0x7a8] sm:$0xff]
        %v595 = vld [vmem:[%s272 + $0x7b0] sm:$0xff]
        %v596 = vld [vmem:[%s272 + $0x7b8] sm:$0xff]
        %v597 = vld [vmem:[%s272 + $0x7c0] sm:$0xff]
        %v598 = vld [vmem:[%s272 + $0x7c8] sm:$0xff]
        %v599 = vld [vmem:[%s272 + $0x7d0] sm:$0xff]
        %v600 = vld [vmem:[%s272 + $0x7d8] sm:$0xff]
        %v601 = vld [vmem:[%s272 + $0x7e0] sm:$0xff]
        %v602 = vld [vmem:[%s272 + $0x7e8] sm:$0xff]
        %v603 = vld [vmem:[%s272 + $0x7f0] sm:$0xff]
        %v604 = vld [vmem:[%s272 + $0x7f8] sm:$0xff]
        %v605 = vld [vmem:[%s272 + $0x800] sm:$0xff]
        %v606 = vld [vmem:[%s272 + $0x808] sm:$0xff]
        %v607 = vld [vmem:[%s272 + $0x810] sm:$0xff]
        %v608 = vld [vmem:[%s272 + $0x818] sm:$0xff]
        %v609 = vld [vmem:[%s272 + $0x820] sm:$0xff]
        %v610 = vld [vmem:[%s272 + $0x828] sm:$0xff]
        %v611 = vld [vmem:[%s272 + $0x830] sm:$0xff]
        %v612 = vld [vmem:[%s272 + $0x838] sm:$0xff]
        %v613 = vld [vmem:[%s272 + $0x840] sm:$0xff]
        %v614 = vld [vmem:[%s272 + $0x848] sm:$0xff]
        %v615 = vld [vmem:[%s272 + $0x850] sm:$0xff]
        %v616 = vld [vmem:[%s272 + $0x858] sm:$0xff]
        %v617 = vld [vmem:[%s272 + $0x860] sm:$0xff]
        %v618 = vld [vmem:[%s272 + $0x868] sm:$0xff]
        %v619 = vld [vmem:[%s272 + $0x870] sm:$0xff]
        %v620 = vld [vmem:[%s272 + $0x878] sm:$0xff]
        %v621 = vld [vmem:[%s272 + $0x880] sm:$0xff]
        %v622 = vld [vmem:[%s272 + $0x888] sm:$0xff]
        %v623 = vld [vmem:[%s272 + $0x890] sm:$0xff]
        %v624 = vld [vmem:[%s272 + $0x898] sm:$0xff]
        %v625 = vld [vmem:[%s272 + $0x8a0] sm:$0xff]
        %v626 = vld [vmem:[%s272 + $0x8a8] sm:$0xff]
        %v627 = vld [vmem:[%s272 + $0x8b0] sm:$0xff]
        %v628 = vld [vmem:[%s272 + $0x8b8] sm:$0xff]
        %v629 = vld [vmem:[%s272 + $0x8c0] sm:$0xff]
        %v630 = vld [vmem:[%s272 + $0x8c8] sm:$0xff]
        %v631 = vld [vmem:[%s272 + $0x8d0] sm:$0xff]
        %v632 = vld [vmem:[%s272 + $0x8d8] sm:$0xff]
        %v633 = vld [vmem:[%s272 + $0x8e0] sm:$0xff]
        %v634 = vld [vmem:[%s272 + $0x8e8] sm:$0xff]
        %v635 = vld [vmem:[%s272 + $0x8f0] sm:$0xff]
        %v636 = vld [vmem:[%s272 + $0x8f8] sm:$0xff]
        %v637 = vld [vmem:[%s272 + $0x900] sm:$0xff]
        %v638 = vld [vmem:[%s272 + $0x908] sm:$0xff]
        %v639 = vld [vmem:[%s272 + $0x910] sm:$0xff]
        %v640 = vld [vmem:[%s272 + $0x918] sm:$0xff]
        %v641 = vld [vmem:[%s272 + $0x920] sm:$0xff]
        %v642 = vld [vmem:[%s272 + $0x928] sm:$0xff]
        %v643 = vld [vmem:[%s272 + $0x930] sm:$0xff]
        %v644 = vld [vmem:[%s272 + $0x938] sm:$0xff]
        %v645 = vld [vmem:[%s272 + $0x940] sm:$0xff]
        %v646 = vld [vmem:[%s272 + $0x948] sm:$0xff]
        %v647 = vld [vmem:[%s272 + $0x950] sm:$0xff]
        %v648 = vld [vmem:[%s272 + $0x958] sm:$0xff]
        %v649 = vld [vmem:[%s272 + $0x960] sm:$0xff]
        %v650 = vld [vmem:[%s272 + $0x968] sm:$0xff]
        %v651 = vld [vmem:[%s272 + $0x970] sm:$0xff]
        %v652 = vld [vmem:[%s272 + $0x978] sm:$0xff]
        %v653 = vld [vmem:[%s272 + $0x980] sm:$0xff]
        %v654 = vld [vmem:[%s272 + $0x988] sm:$0xff]
        %v655 = vld [vmem:[%s272 + $0x990] sm:$0xff]
        %v656 = vld [vmem:[%s272 + $0x998] sm:$0xff]
        %v657 = vld [vmem:[%s272 + $0x9a0] sm:$0xff]
        %v658 = vld [vmem:[%s272 + $0x9a8] sm:$0xff]
        %v659 = vld [vmem:[%s272 + $0x9b0] sm:$0xff]
        %v660 = vld [vmem:[%s272 + $0x9b8] sm:$0xff]
        %v661 = vld [vmem:[%s272 + $0x9c0] sm:$0xff]
        %v662 = vld [vmem:[%s272 + $0x9c8] sm:$0xff]
        %v663 = vld [vmem:[%s272 + $0x9d0] sm:$0xff]
        %v664 = vld [vmem:[%s272 + $0x9d8] sm:$0xff]
        %v665 = vld [vmem:[%s272 + $0x9e0] sm:$0xff]
        %v666 = vld [vmem:[%s272 + $0x9e8] sm:$0xff]
        %v667 = vld [vmem:[%s272 + $0x9f0] sm:$0xff]
        %v668 = vld [vmem:[%s272 + $0x9f8] sm:$0xff]
        %v679 = vunpack.c.l.b16 %v339
        %v680 = vunpack.c.h.b16 %v339
        %v681 = vunpack.c.l.b16 %v340
        %v682 = vunpack.c.h.b16 %v340
        %v683 = vunpack.c.l.b16 %v341
        %v684 = vunpack.c.h.b16 %v341
        %v685 = vunpack.c.l.b16 %v342
        %v686 = vunpack.c.h.b16 %v342
        %v687 = vunpack.c.l.b16 %v343
        %v688 = vunpack.c.h.b16 %v343
        %v689 = vunpack.c.l.b16 %v344
        %v690 = vunpack.c.h.b16 %v344
        %v691 = vunpack.c.l.b16 %v345
        %v692 = vunpack.c.h.b16 %v345
        %v693 = vunpack.c.l.b16 %v346
        %v694 = vunpack.c.h.b16 %v346
        %v695 = vunpack.c.l.b16 %v347
        %v696 = vunpack.c.h.b16 %v347
        %v697 = vunpack.c.l.b16 %v348
        %v698 = vunpack.c.h.b16 %v348
        %v699 = vpack.c.b16 %v689, %v679
        %v700 = vpack.c.b16 %v690, %v680
        %v701 = vpack.c.b16 %v691, %v681
        %v702 = vpack.c.b16 %v692, %v682
        %v703 = vpack.c.b16 %v693, %v683
        %v704 = vpack.c.b16 %v694, %v684
        %v705 = vpack.c.b16 %v695, %v685
        %v706 = vpack.c.b16 %v696, %v686
        %v707 = vpack.c.b16 %v697, %v687
        %v708 = vpack.c.b16 %v698, %v688
        %v1039 = vunpack.c.l.b16 %v349
        %v1040 = vunpack.c.h.b16 %v349
        %v1041 = vunpack.c.l.b16 %v350
        %v1042 = vunpack.c.h.b16 %v350
        %v1043 = vunpack.c.l.b16 %v351
        %v1044 = vunpack.c.h.b16 %v351
        %v1045 = vunpack.c.l.b16 %v352
        %v1046 = vunpack.c.h.b16 %v352
        %v1047 = vunpack.c.l.b16 %v353
        %v1048 = vunpack.c.h.b16 %v353
        %v1049 = vunpack.c.l.b16 %v354
        %v1050 = vunpack.c.h.b16 %v354
        %v1051 = vunpack.c.l.b16 %v355
        %v1052 = vunpack.c.h.b16 %v355
        %v1053 = vunpack.c.l.b16 %v356
        %v1054 = vunpack.c.h.b16 %v356
        %v1055 = vunpack.c.l.b16 %v357
        %v1056 = vunpack.c.h.b16 %v357
        %v1057 = vunpack.c.l.b16 %v358
        %v1058 = vunpack.c.h.b16 %v358
        %v1059 = vunpack.c.l.b16 %v359
        %v1060 = vunpack.c.h.b16 %v359
        %v1061 = vunpack.c.l.b16 %v360
        %v1062 = vunpack.c.h.b16 %v360
        %v1063 = vunpack.c.l.b16 %v361
        %v1064 = vunpack.c.h.b16 %v361
        %v1065 = vunpack.c.l.b16 %v362
        %v1066 = vunpack.c.h.b16 %v362
        %v1067 = vunpack.c.l.b16 %v363
        %v1068 = vunpack.c.h.b16 %v363
        %v1069 = vunpack.c.l.b16 %v364
        %v1070 = vunpack.c.h.b16 %v364
        %v1071 = vunpack.c.l.b16 %v365
        %v1072 = vunpack.c.h.b16 %v365
        %v1073 = vunpack.c.l.b16 %v366
        %v1074 = vunpack.c.h.b16 %v366
        %v1075 = vunpack.c.l.b16 %v367
        %v1076 = vunpack.c.h.b16 %v367
        %v1077 = vunpack.c.l.b16 %v368
        %v1078 = vunpack.c.h.b16 %v368
        %v1079 = vunpack.c.l.b16 %v369
        %v1080 = vunpack.c.h.b16 %v369
        %v1081 = vunpack.c.l.b16 %v370
        %v1082 = vunpack.c.h.b16 %v370
        %v1083 = vunpack.c.l.b16 %v371
        %v1084 = vunpack.c.h.b16 %v371
        %v1085 = vunpack.c.l.b16 %v372
        %v1086 = vunpack.c.h.b16 %v372
        %v1087 = vunpack.c.l.b16 %v373
        %v1088 = vunpack.c.h.b16 %v373
        %v1089 = vunpack.c.l.b16 %v374
        %v1090 = vunpack.c.h.b16 %v374
        %v1091 = vunpack.c.l.b16 %v375
        %v1092 = vunpack.c.h.b16 %v375
        %v1093 = vunpack.c.l.b16 %v376
        %v1094 = vunpack.c.h.b16 %v376
        %v1095 = vunpack.c.l.b16 %v377
        %v1096 = vunpack.c.h.b16 %v377
        %v1097 = vunpack.c.l.b16 %v378
        %v1098 = vunpack.c.h.b16 %v378
        %v1099 = vunpack.c.l.b16 %v379
        %v1100 = vunpack.c.h.b16 %v379
        %v1101 = vunpack.c.l.b16 %v380
        %v1102 = vunpack.c.h.b16 %v380
        %v1103 = vunpack.c.l.b16 %v381
        %v1104 = vunpack.c.h.b16 %v381
        %v1105 = vunpack.c.l.b16 %v382
        %v1106 = vunpack.c.h.b16 %v382
        %v1107 = vunpack.c.l.b16 %v383
        %v1108 = vunpack.c.h.b16 %v383
        %v1109 = vunpack.c.l.b16 %v384
        %v1110 = vunpack.c.h.b16 %v384
        %v1111 = vunpack.c.l.b16 %v385
        %v1112 = vunpack.c.h.b16 %v385
        %v1113 = vunpack.c.l.b16 %v386
        %v1114 = vunpack.c.h.b16 %v386
        %v1115 = vunpack.c.l.b16 %v387
        %v1116 = vunpack.c.h.b16 %v387
        %v1117 = vunpack.c.l.b16 %v388
        %v1118 = vunpack.c.h.b16 %v388
        %v1119 = vunpack.c.l.b16 %v389
        %v1120 = vunpack.c.h.b16 %v389
        %v1121 = vunpack.c.l.b16 %v390
        %v1122 = vunpack.c.h.b16 %v390
        %v1123 = vunpack.c.l.b16 %v391
        %v1124 = vunpack.c.h.b16 %v391
        %v1125 = vunpack.c.l.b16 %v392
        %v1126 = vunpack.c.h.b16 %v392
        %v1127 = vunpack.c.l.b16 %v393
        %v1128 = vunpack.c.h.b16 %v393
        %v1129 = vunpack.c.l.b16 %v394
        %v1130 = vunpack.c.h.b16 %v394
        %v1131 = vunpack.c.l.b16 %v395
        %v1132 = vunpack.c.h.b16 %v395
        %v1133 = vunpack.c.l.b16 %v396
        %v1134 = vunpack.c.h.b16 %v396
        %v1135 = vunpack.c.l.b16 %v397
        %v1136 = vunpack.c.h.b16 %v397
        %v1137 = vunpack.c.l.b16 %v398
        %v1138 = vunpack.c.h.b16 %v398
        %v1139 = vunpack.c.l.b16 %v399
        %v1140 = vunpack.c.h.b16 %v399
        %v1141 = vunpack.c.l.b16 %v400
        %v1142 = vunpack.c.h.b16 %v400
        %v1143 = vunpack.c.l.b16 %v401
        %v1144 = vunpack.c.h.b16 %v401
        %v1145 = vunpack.c.l.b16 %v402
        %v1146 = vunpack.c.h.b16 %v402
        %v1147 = vunpack.c.l.b16 %v403
        %v1148 = vunpack.c.h.b16 %v403
        %v1149 = vunpack.c.l.b16 %v404
        %v1150 = vunpack.c.h.b16 %v404
        %v1151 = vunpack.c.l.b16 %v405
        %v1152 = vunpack.c.h.b16 %v405
        %v1153 = vunpack.c.l.b16 %v406
        %v1154 = vunpack.c.h.b16 %v406
        %v1155 = vunpack.c.l.b16 %v407
        %v1156 = vunpack.c.h.b16 %v407
        %v1157 = vunpack.c.l.b16 %v408
        %v1158 = vunpack.c.h.b16 %v408
        %v1159 = vunpack.c.l.b16 %v409
        %v1160 = vunpack.c.h.b16 %v409
        %v1161 = vunpack.c.l.b16 %v410
        %v1162 = vunpack.c.h.b16 %v410
        %v1163 = vunpack.c.l.b16 %v411
        %v1164 = vunpack.c.h.b16 %v411
        %v1165 = vunpack.c.l.b16 %v412
        %v1166 = vunpack.c.h.b16 %v412
        %v1167 = vunpack.c.l.b16 %v413
        %v1168 = vunpack.c.h.b16 %v413
        %v1169 = vunpack.c.l.b16 %v414
        %v1170 = vunpack.c.h.b16 %v414
        %v1171 = vunpack.c.l.b16 %v415
        %v1172 = vunpack.c.h.b16 %v415
        %v1173 = vunpack.c.l.b16 %v416
        %v1174 = vunpack.c.h.b16 %v416
        %v1175 = vunpack.c.l.b16 %v417
        %v1176 = vunpack.c.h.b16 %v417
        %v1177 = vunpack.c.l.b16 %v418
        %v1178 = vunpack.c.h.b16 %v418
        %v1179 = vunpack.c.l.b16 %v419
        %v1180 = vunpack.c.h.b16 %v419
        %v1181 = vunpack.c.l.b16 %v420
        %v1182 = vunpack.c.h.b16 %v420
        %v1183 = vunpack.c.l.b16 %v421
        %v1184 = vunpack.c.h.b16 %v421
        %v1185 = vunpack.c.l.b16 %v422
        %v1186 = vunpack.c.h.b16 %v422
        %v1187 = vunpack.c.l.b16 %v423
        %v1188 = vunpack.c.h.b16 %v423
        %v1189 = vunpack.c.l.b16 %v424
        %v1190 = vunpack.c.h.b16 %v424
        %v1191 = vunpack.c.l.b16 %v425
        %v1192 = vunpack.c.h.b16 %v425
        %v1193 = vunpack.c.l.b16 %v426
        %v1194 = vunpack.c.h.b16 %v426
        %v1195 = vunpack.c.l.b16 %v427
        %v1196 = vunpack.c.h.b16 %v427
        %v1197 = vunpack.c.l.b16 %v428
        %v1198 = vunpack.c.h.b16 %v428
        %v1199 = vunpack.c.l.b16 %v429
        %v1200 = vunpack.c.h.b16 %v429
        %v1201 = vunpack.c.l.b16 %v430
        %v1202 = vunpack.c.h.b16 %v430
        %v1203 = vunpack.c.l.b16 %v431
        %v1204 = vunpack.c.h.b16 %v431
        %v1205 = vunpack.c.l.b16 %v432
        %v1206 = vunpack.c.h.b16 %v432
        %v1207 = vunpack.c.l.b16 %v433
        %v1208 = vunpack.c.h.b16 %v433
        %v1209 = vunpack.c.l.b16 %v434
        %v1210 = vunpack.c.h.b16 %v434
        %v1211 = vunpack.c.l.b16 %v435
        %v1212 = vunpack.c.h.b16 %v435
        %v1213 = vunpack.c.l.b16 %v436
        %v1214 = vunpack.c.h.b16 %v436
        %v1215 = vunpack.c.l.b16 %v437
        %v1216 = vunpack.c.h.b16 %v437
        %v1217 = vunpack.c.l.b16 %v438
        %v1218 = vunpack.c.h.b16 %v438
        %v1219 = vunpack.c.l.b16 %v439
        %v1220 = vunpack.c.h.b16 %v439
        %v1221 = vunpack.c.l.b16 %v440
        %v1222 = vunpack.c.h.b16 %v440
        %v1223 = vunpack.c.l.b16 %v441
        %v1224 = vunpack.c.h.b16 %v441
        %v1225 = vunpack.c.l.b16 %v442
        %v1226 = vunpack.c.h.b16 %v442
        %v1227 = vunpack.c.l.b16 %v443
        %v1228 = vunpack.c.h.b16 %v443
        %v1229 = vunpack.c.l.b16 %v444
        %v1230 = vunpack.c.h.b16 %v444
        %v1231 = vunpack.c.l.b16 %v445
        %v1232 = vunpack.c.h.b16 %v445
        %v1233 = vunpack.c.l.b16 %v446
        %v1234 = vunpack.c.h.b16 %v446
        %v1235 = vunpack.c.l.b16 %v447
        %v1236 = vunpack.c.h.b16 %v447
        %v1237 = vunpack.c.l.b16 %v448
        %v1238 = vunpack.c.h.b16 %v448
        %v1239 = vunpack.c.l.b16 %v449
        %v1240 = vunpack.c.h.b16 %v449
        %v1241 = vunpack.c.l.b16 %v450
        %v1242 = vunpack.c.h.b16 %v450
        %v1243 = vunpack.c.l.b16 %v451
        %v1244 = vunpack.c.h.b16 %v451
        %v1245 = vunpack.c.l.b16 %v452
        %v1246 = vunpack.c.h.b16 %v452
        %v1247 = vunpack.c.l.b16 %v453
        %v1248 = vunpack.c.h.b16 %v453
        %v1249 = vunpack.c.l.b16 %v454
        %v1250 = vunpack.c.h.b16 %v454
        %v1251 = vunpack.c.l.b16 %v455
        %v1252 = vunpack.c.h.b16 %v455
        %v1253 = vunpack.c.l.b16 %v456
        %v1254 = vunpack.c.h.b16 %v456
        %v1255 = vunpack.c.l.b16 %v457
        %v1256 = vunpack.c.h.b16 %v457
        %v1257 = vunpack.c.l.b16 %v458
        %v1258 = vunpack.c.h.b16 %v458
        %v1259 = vunpack.c.l.b16 %v459
        %v1260 = vunpack.c.h.b16 %v459
        %v1261 = vunpack.c.l.b16 %v460
        %v1262 = vunpack.c.h.b16 %v460
        %v1263 = vunpack.c.l.b16 %v461
        %v1264 = vunpack.c.h.b16 %v461
        %v1265 = vunpack.c.l.b16 %v462
        %v1266 = vunpack.c.h.b16 %v462
        %v1267 = vunpack.c.l.b16 %v463
        %v1268 = vunpack.c.h.b16 %v463
        %v1269 = vunpack.c.l.b16 %v464
        %v1270 = vunpack.c.h.b16 %v464
        %v1271 = vunpack.c.l.b16 %v465
        %v1272 = vunpack.c.h.b16 %v465
        %v1273 = vunpack.c.l.b16 %v466
        %v1274 = vunpack.c.h.b16 %v466
        %v1275 = vunpack.c.l.b16 %v467
        %v1276 = vunpack.c.h.b16 %v467
        %v1277 = vunpack.c.l.b16 %v468
        %v1278 = vunpack.c.h.b16 %v468
        %v1279 = vunpack.c.l.b16 %v469
        %v1280 = vunpack.c.h.b16 %v469
        %v1281 = vunpack.c.l.b16 %v470
        %v1282 = vunpack.c.h.b16 %v470
        %v1283 = vunpack.c.l.b16 %v471
        %v1284 = vunpack.c.h.b16 %v471
        %v1285 = vunpack.c.l.b16 %v472
        %v1286 = vunpack.c.h.b16 %v472
        %v1287 = vunpack.c.l.b16 %v473
        %v1288 = vunpack.c.h.b16 %v473
        %v1289 = vunpack.c.l.b16 %v474
        %v1290 = vunpack.c.h.b16 %v474
        %v1291 = vunpack.c.l.b16 %v475
        %v1292 = vunpack.c.h.b16 %v475
        %v1293 = vunpack.c.l.b16 %v476
        %v1294 = vunpack.c.h.b16 %v476
        %v1295 = vunpack.c.l.b16 %v477
        %v1296 = vunpack.c.h.b16 %v477
        %v1297 = vunpack.c.l.b16 %v478
        %v1298 = vunpack.c.h.b16 %v478
        %v1299 = vunpack.c.l.b16 %v479
        %v1300 = vunpack.c.h.b16 %v479
        %v1301 = vunpack.c.l.b16 %v480
        %v1302 = vunpack.c.h.b16 %v480
        %v1303 = vunpack.c.l.b16 %v481
        %v1304 = vunpack.c.h.b16 %v481
        %v1305 = vunpack.c.l.b16 %v482
        %v1306 = vunpack.c.h.b16 %v482
        %v1307 = vunpack.c.l.b16 %v483
        %v1308 = vunpack.c.h.b16 %v483
        %v1309 = vunpack.c.l.b16 %v484
        %v1310 = vunpack.c.h.b16 %v484
        %v1311 = vunpack.c.l.b16 %v485
        %v1312 = vunpack.c.h.b16 %v485
        %v1313 = vunpack.c.l.b16 %v486
        %v1314 = vunpack.c.h.b16 %v486
        %v1315 = vunpack.c.l.b16 %v487
        %v1316 = vunpack.c.h.b16 %v487
        %v1317 = vunpack.c.l.b16 %v488
        %v1318 = vunpack.c.h.b16 %v488
        %v1319 = vunpack.c.l.b16 %v489
        %v1320 = vunpack.c.h.b16 %v489
        %v1321 = vunpack.c.l.b16 %v490
        %v1322 = vunpack.c.h.b16 %v490
        %v1323 = vunpack.c.l.b16 %v491
        %v1324 = vunpack.c.h.b16 %v491
        %v1325 = vunpack.c.l.b16 %v492
        %v1326 = vunpack.c.h.b16 %v492
        %v1327 = vunpack.c.l.b16 %v493
        %v1328 = vunpack.c.h.b16 %v493
        %v1329 = vunpack.c.l.b16 %v494
        %v1330 = vunpack.c.h.b16 %v494
        %v1331 = vunpack.c.l.b16 %v495
        %v1332 = vunpack.c.h.b16 %v495
        %v1333 = vunpack.c.l.b16 %v496
        %v1334 = vunpack.c.h.b16 %v496
        %v1335 = vunpack.c.l.b16 %v497
        %v1336 = vunpack.c.h.b16 %v497
        %v1337 = vunpack.c.l.b16 %v498
        %v1338 = vunpack.c.h.b16 %v498
        %v1339 = vunpack.c.l.b16 %v499
        %v1340 = vunpack.c.h.b16 %v499
        %v1341 = vunpack.c.l.b16 %v500
        %v1342 = vunpack.c.h.b16 %v500
        %v1343 = vunpack.c.l.b16 %v501
        %v1344 = vunpack.c.h.b16 %v501
        %v1345 = vunpack.c.l.b16 %v502
        %v1346 = vunpack.c.h.b16 %v502
        %v1347 = vunpack.c.l.b16 %v503
        %v1348 = vunpack.c.h.b16 %v503
        %v1349 = vunpack.c.l.b16 %v504
        %v1350 = vunpack.c.h.b16 %v504
        %v1351 = vunpack.c.l.b16 %v505
        %v1352 = vunpack.c.h.b16 %v505
        %v1353 = vunpack.c.l.b16 %v506
        %v1354 = vunpack.c.h.b16 %v506
        %v1355 = vunpack.c.l.b16 %v507
        %v1356 = vunpack.c.h.b16 %v507
        %v1357 = vunpack.c.l.b16 %v508
        %v1358 = vunpack.c.h.b16 %v508
        %v1359 = vunpack.c.l.b16 %v509
        %v1360 = vunpack.c.h.b16 %v509
        %v1361 = vunpack.c.l.b16 %v510
        %v1362 = vunpack.c.h.b16 %v510
        %v1363 = vunpack.c.l.b16 %v511
        %v1364 = vunpack.c.h.b16 %v511
        %v1365 = vunpack.c.l.b16 %v512
        %v1366 = vunpack.c.h.b16 %v512
        %v1367 = vunpack.c.l.b16 %v513
        %v1368 = vunpack.c.h.b16 %v513
        %v1369 = vunpack.c.l.b16 %v514
        %v1370 = vunpack.c.h.b16 %v514
        %v1371 = vunpack.c.l.b16 %v515
        %v1372 = vunpack.c.h.b16 %v515
        %v1373 = vunpack.c.l.b16 %v516
        %v1374 = vunpack.c.h.b16 %v516
        %v1375 = vunpack.c.l.b16 %v517
        %v1376 = vunpack.c.h.b16 %v517
        %v1377 = vunpack.c.l.b16 %v518
        %v1378 = vunpack.c.h.b16 %v518
        %v1379 = vunpack.c.l.b16 %v519
        %v1380 = vunpack.c.h.b16 %v519
        %v1381 = vunpack.c.l.b16 %v520
        %v1382 = vunpack.c.h.b16 %v520
        %v1383 = vunpack.c.l.b16 %v521
        %v1384 = vunpack.c.h.b16 %v521
        %v1385 = vunpack.c.l.b16 %v522
        %v1386 = vunpack.c.h.b16 %v522
        %v1387 = vunpack.c.l.b16 %v523
        %v1388 = vunpack.c.h.b16 %v523
        %v1389 = vunpack.c.l.b16 %v524
        %v1390 = vunpack.c.h.b16 %v524
        %v1391 = vunpack.c.l.b16 %v525
        %v1392 = vunpack.c.h.b16 %v525
        %v1393 = vunpack.c.l.b16 %v526
        %v1394 = vunpack.c.h.b16 %v526
        %v1395 = vunpack.c.l.b16 %v527
        %v1396 = vunpack.c.h.b16 %v527
        %v1397 = vunpack.c.l.b16 %v528
        %v1398 = vunpack.c.h.b16 %v528
        %v1399 = vunpack.c.l.b16 %v529
        %v1400 = vunpack.c.h.b16 %v529
        %v1401 = vunpack.c.l.b16 %v530
        %v1402 = vunpack.c.h.b16 %v530
        %v1403 = vunpack.c.l.b16 %v531
        %v1404 = vunpack.c.h.b16 %v531
        %v1405 = vunpack.c.l.b16 %v532
        %v1406 = vunpack.c.h.b16 %v532
        %v1407 = vunpack.c.l.b16 %v533
        %v1408 = vunpack.c.h.b16 %v533
        %v1409 = vunpack.c.l.b16 %v534
        %v1410 = vunpack.c.h.b16 %v534
        %v1411 = vunpack.c.l.b16 %v535
        %v1412 = vunpack.c.h.b16 %v535
        %v1413 = vunpack.c.l.b16 %v536
        %v1414 = vunpack.c.h.b16 %v536
        %v1415 = vunpack.c.l.b16 %v537
        %v1416 = vunpack.c.h.b16 %v537
        %v1417 = vunpack.c.l.b16 %v538
        %v1418 = vunpack.c.h.b16 %v538
        %v1419 = vunpack.c.l.b16 %v539
        %v1420 = vunpack.c.h.b16 %v539
        %v1421 = vunpack.c.l.b16 %v540
        %v1422 = vunpack.c.h.b16 %v540
        %v1423 = vunpack.c.l.b16 %v541
        %v1424 = vunpack.c.h.b16 %v541
        %v1425 = vunpack.c.l.b16 %v542
        %v1426 = vunpack.c.h.b16 %v542
        %v1427 = vunpack.c.l.b16 %v543
        %v1428 = vunpack.c.h.b16 %v543
        %v1429 = vunpack.c.l.b16 %v544
        %v1430 = vunpack.c.h.b16 %v544
        %v1431 = vunpack.c.l.b16 %v545
        %v1432 = vunpack.c.h.b16 %v545
        %v1433 = vunpack.c.l.b16 %v546
        %v1434 = vunpack.c.h.b16 %v546
        %v1435 = vunpack.c.l.b16 %v547
        %v1436 = vunpack.c.h.b16 %v547
        %v1437 = vunpack.c.l.b16 %v548
        %v1438 = vunpack.c.h.b16 %v548
        %v1439 = vunpack.c.l.b16 %v549
        %v1440 = vunpack.c.h.b16 %v549
        %v1441 = vunpack.c.l.b16 %v550
        %v1442 = vunpack.c.h.b16 %v550
        %v1443 = vunpack.c.l.b16 %v551
        %v1444 = vunpack.c.h.b16 %v551
        %v1445 = vunpack.c.l.b16 %v552
        %v1446 = vunpack.c.h.b16 %v552
        %v1447 = vunpack.c.l.b16 %v553
        %v1448 = vunpack.c.h.b16 %v553
        %v1449 = vunpack.c.l.b16 %v554
        %v1450 = vunpack.c.h.b16 %v554
        %v1451 = vunpack.c.l.b16 %v555
        %v1452 = vunpack.c.h.b16 %v555
        %v1453 = vunpack.c.l.b16 %v556
        %v1454 = vunpack.c.h.b16 %v556
        %v1455 = vunpack.c.l.b16 %v557
        %v1456 = vunpack.c.h.b16 %v557
        %v1457 = vunpack.c.l.b16 %v558
        %v1458 = vunpack.c.h.b16 %v558
        %v1459 = vunpack.c.l.b16 %v559
        %v1460 = vunpack.c.h.b16 %v559
        %v1461 = vunpack.c.l.b16 %v560
        %v1462 = vunpack.c.h.b16 %v560
        %v1463 = vunpack.c.l.b16 %v561
        %v1464 = vunpack.c.h.b16 %v561
        %v1465 = vunpack.c.l.b16 %v562
        %v1466 = vunpack.c.h.b16 %v562
        %v1467 = vunpack.c.l.b16 %v563
        %v1468 = vunpack.c.h.b16 %v563
        %v1469 = vunpack.c.l.b16 %v564
        %v1470 = vunpack.c.h.b16 %v564
        %v1471 = vunpack.c.l.b16 %v565
        %v1472 = vunpack.c.h.b16 %v565
        %v1473 = vunpack.c.l.b16 %v566
        %v1474 = vunpack.c.h.b16 %v566
        %v1475 = vunpack.c.l.b16 %v567
        %v1476 = vunpack.c.h.b16 %v567
        %v1477 = vunpack.c.l.b16 %v568
        %v1478 = vunpack.c.h.b16 %v568
        %v1479 = vunpack.c.l.b16 %v569
        %v1480 = vunpack.c.h.b16 %v569
        %v1481 = vunpack.c.l.b16 %v570
        %v1482 = vunpack.c.h.b16 %v570
        %v1483 = vunpack.c.l.b16 %v571
        %v1484 = vunpack.c.h.b16 %v571
        %v1485 = vunpack.c.l.b16 %v572
        %v1486 = vunpack.c.h.b16 %v572
        %v1487 = vunpack.c.l.b16 %v573
        %v1488 = vunpack.c.h.b16 %v573
        %v1489 = vunpack.c.l.b16 %v574
        %v1490 = vunpack.c.h.b16 %v574
        %v1491 = vunpack.c.l.b16 %v575
        %v1492 = vunpack.c.h.b16 %v575
        %v1493 = vunpack.c.l.b16 %v576
        %v1494 = vunpack.c.h.b16 %v576
        %v1495 = vunpack.c.l.b16 %v577
        %v1496 = vunpack.c.h.b16 %v577
        %v1497 = vunpack.c.l.b16 %v578
        %v1498 = vunpack.c.h.b16 %v578
        %v1499 = vunpack.c.l.b16 %v579
        %v1500 = vunpack.c.h.b16 %v579
        %v1501 = vunpack.c.l.b16 %v580
        %v1502 = vunpack.c.h.b16 %v580
        %v1503 = vunpack.c.l.b16 %v581
        %v1504 = vunpack.c.h.b16 %v581
        %v1505 = vunpack.c.l.b16 %v582
        %v1506 = vunpack.c.h.b16 %v582
        %v1507 = vunpack.c.l.b16 %v583
        %v1508 = vunpack.c.h.b16 %v583
        %v1509 = vunpack.c.l.b16 %v584
        %v1510 = vunpack.c.h.b16 %v584
        %v1511 = vunpack.c.l.b16 %v585
        %v1512 = vunpack.c.h.b16 %v585
        %v1513 = vunpack.c.l.b16 %v586
        %v1514 = vunpack.c.h.b16 %v586
        %v1515 = vunpack.c.l.b16 %v587
        %v1516 = vunpack.c.h.b16 %v587
        %v1517 = vunpack.c.l.b16 %v588
        %v1518 = vunpack.c.h.b16 %v588
        %v1519 = vunpack.c.l.b16 %v589
        %v1520 = vunpack.c.h.b16 %v589
        %v1521 = vunpack.c.l.b16 %v590
        %v1522 = vunpack.c.h.b16 %v590
        %v1523 = vunpack.c.l.b16 %v591
        %v1524 = vunpack.c.h.b16 %v591
        %v1525 = vunpack.c.l.b16 %v592
        %v1526 = vunpack.c.h.b16 %v592
        %v1527 = vunpack.c.l.b16 %v593
        %v1528 = vunpack.c.h.b16 %v593
        %v1529 = vunpack.c.l.b16 %v594
        %v1530 = vunpack.c.h.b16 %v594
        %v1531 = vunpack.c.l.b16 %v595
        %v1532 = vunpack.c.h.b16 %v595
        %v1533 = vunpack.c.l.b16 %v596
        %v1534 = vunpack.c.h.b16 %v596
        %v1535 = vunpack.c.l.b16 %v597
        %v1536 = vunpack.c.h.b16 %v597
        %v1537 = vunpack.c.l.b16 %v598
        %v1538 = vunpack.c.h.b16 %v598
        %v1539 = vunpack.c.l.b16 %v599
        %v1540 = vunpack.c.h.b16 %v599
        %v1541 = vunpack.c.l.b16 %v600
        %v1542 = vunpack.c.h.b16 %v600
        %v1543 = vunpack.c.l.b16 %v601
        %v1544 = vunpack.c.h.b16 %v601
        %v1545 = vunpack.c.l.b16 %v602
        %v1546 = vunpack.c.h.b16 %v602
        %v1547 = vunpack.c.l.b16 %v603
        %v1548 = vunpack.c.h.b16 %v603
        %v1549 = vunpack.c.l.b16 %v604
        %v1550 = vunpack.c.h.b16 %v604
        %v1551 = vunpack.c.l.b16 %v605
        %v1552 = vunpack.c.h.b16 %v605
        %v1553 = vunpack.c.l.b16 %v606
        %v1554 = vunpack.c.h.b16 %v606
        %v1555 = vunpack.c.l.b16 %v607
        %v1556 = vunpack.c.h.b16 %v607
        %v1557 = vunpack.c.l.b16 %v608
        %v1558 = vunpack.c.h.b16 %v608
        %v1559 = vunpack.c.l.b16 %v609
        %v1560 = vunpack.c.h.b16 %v609
        %v1561 = vunpack.c.l.b16 %v610
        %v1562 = vunpack.c.h.b16 %v610
        %v1563 = vunpack.c.l.b16 %v611
        %v1564 = vunpack.c.h.b16 %v611
        %v1565 = vunpack.c.l.b16 %v612
        %v1566 = vunpack.c.h.b16 %v612
        %v1567 = vunpack.c.l.b16 %v613
        %v1568 = vunpack.c.h.b16 %v613
        %v1569 = vunpack.c.l.b16 %v614
        %v1570 = vunpack.c.h.b16 %v614
        %v1571 = vunpack.c.l.b16 %v615
        %v1572 = vunpack.c.h.b16 %v615
        %v1573 = vunpack.c.l.b16 %v616
        %v1574 = vunpack.c.h.b16 %v616
        %v1575 = vunpack.c.l.b16 %v617
        %v1576 = vunpack.c.h.b16 %v617
        %v1577 = vunpack.c.l.b16 %v618
        %v1578 = vunpack.c.h.b16 %v618
        %v1579 = vunpack.c.l.b16 %v619
        %v1580 = vunpack.c.h.b16 %v619
        %v1581 = vunpack.c.l.b16 %v620
        %v1582 = vunpack.c.h.b16 %v620
        %v1583 = vunpack.c.l.b16 %v621
        %v1584 = vunpack.c.h.b16 %v621
        %v1585 = vunpack.c.l.b16 %v622
        %v1586 = vunpack.c.h.b16 %v622
        %v1587 = vunpack.c.l.b16 %v623
        %v1588 = vunpack.c.h.b16 %v623
        %v1589 = vunpack.c.l.b16 %v624
        %v1590 = vunpack.c.h.b16 %v624
        %v1591 = vunpack.c.l.b16 %v625
        %v1592 = vunpack.c.h.b16 %v625
        %v1593 = vunpack.c.l.b16 %v626
        %v1594 = vunpack.c.h.b16 %v626
        %v1595 = vunpack.c.l.b16 %v627
        %v1596 = vunpack.c.h.b16 %v627
        %v1597 = vunpack.c.l.b16 %v628
        %v1598 = vunpack.c.h.b16 %v628
        %v1599 = vunpack.c.l.b16 %v629
        %v1600 = vunpack.c.h.b16 %v629
        %v1601 = vunpack.c.l.b16 %v630
        %v1602 = vunpack.c.h.b16 %v630
        %v1603 = vunpack.c.l.b16 %v631
        %v1604 = vunpack.c.h.b16 %v631
        %v1605 = vunpack.c.l.b16 %v632
        %v1606 = vunpack.c.h.b16 %v632
        %v1607 = vunpack.c.l.b16 %v633
        %v1608 = vunpack.c.h.b16 %v633
        %v1609 = vunpack.c.l.b16 %v634
        %v1610 = vunpack.c.h.b16 %v634
        %v1611 = vunpack.c.l.b16 %v635
        %v1612 = vunpack.c.h.b16 %v635
        %v1613 = vunpack.c.l.b16 %v636
        %v1614 = vunpack.c.h.b16 %v636
        %v1615 = vunpack.c.l.b16 %v637
        %v1616 = vunpack.c.h.b16 %v637
        %v1617 = vunpack.c.l.b16 %v638
        %v1618 = vunpack.c.h.b16 %v638
        %v1619 = vunpack.c.l.b16 %v639
        %v1620 = vunpack.c.h.b16 %v639
        %v1621 = vunpack.c.l.b16 %v640
        %v1622 = vunpack.c.h.b16 %v640
        %v1623 = vunpack.c.l.b16 %v641
        %v1624 = vunpack.c.h.b16 %v641
        %v1625 = vunpack.c.l.b16 %v642
        %v1626 = vunpack.c.h.b16 %v642
        %v1627 = vunpack.c.l.b16 %v643
        %v1628 = vunpack.c.h.b16 %v643
        %v1629 = vunpack.c.l.b16 %v644
        %v1630 = vunpack.c.h.b16 %v644
        %v1631 = vunpack.c.l.b16 %v645
        %v1632 = vunpack.c.h.b16 %v645
        %v1633 = vunpack.c.l.b16 %v646
        %v1634 = vunpack.c.h.b16 %v646
        %v1635 = vunpack.c.l.b16 %v647
        %v1636 = vunpack.c.h.b16 %v647
        %v1637 = vunpack.c.l.b16 %v648
        %v1638 = vunpack.c.h.b16 %v648
        %v1639 = vunpack.c.l.b16 %v649
        %v1640 = vunpack.c.h.b16 %v649
        %v1641 = vunpack.c.l.b16 %v650
        %v1642 = vunpack.c.h.b16 %v650
        %v1643 = vunpack.c.l.b16 %v651
        %v1644 = vunpack.c.h.b16 %v651
        %v1645 = vunpack.c.l.b16 %v652
        %v1646 = vunpack.c.h.b16 %v652
        %v1647 = vunpack.c.l.b16 %v653
        %v1648 = vunpack.c.h.b16 %v653
        %v1649 = vunpack.c.l.b16 %v654
        %v1650 = vunpack.c.h.b16 %v654
        %v1651 = vunpack.c.l.b16 %v655
        %v1652 = vunpack.c.h.b16 %v655
        %v1653 = vunpack.c.l.b16 %v656
        %v1654 = vunpack.c.h.b16 %v656
        %v1655 = vunpack.c.l.b16 %v657
        %v1656 = vunpack.c.h.b16 %v657
        %v1657 = vunpack.c.l.b16 %v658
        %v1658 = vunpack.c.h.b16 %v658
        %v1659 = vunpack.c.l.b16 %v659
        %v1660 = vunpack.c.h.b16 %v659
        %v1661 = vunpack.c.l.b16 %v660
        %v1662 = vunpack.c.h.b16 %v660
        %v1663 = vunpack.c.l.b16 %v661
        %v1664 = vunpack.c.h.b16 %v661
        %v1665 = vunpack.c.l.b16 %v662
        %v1666 = vunpack.c.h.b16 %v662
        %v1667 = vunpack.c.l.b16 %v663
        %v1668 = vunpack.c.h.b16 %v663
        %v1669 = vunpack.c.l.b16 %v664
        %v1670 = vunpack.c.h.b16 %v664
        %v1671 = vunpack.c.l.b16 %v665
        %v1672 = vunpack.c.h.b16 %v665
        %v1673 = vunpack.c.l.b16 %v666
        %v1674 = vunpack.c.h.b16 %v666
        %v1675 = vunpack.c.l.b16 %v667
        %v1676 = vunpack.c.h.b16 %v667
        %v1677 = vunpack.c.l.b16 %v668
        %v1678 = vunpack.c.h.b16 %v668
        %v1679 = vpack.c.b16 %v1043, %v1039
        %v1680 = vpack.c.b16 %v1044, %v1040
        %v1681 = vpack.c.b16 %v1045, %v1041
        %v1682 = vpack.c.b16 %v1046, %v1042
        %v1683 = vpack.c.b16 %v1051, %v1047
        %v1684 = vpack.c.b16 %v1052, %v1048
        %v1685 = vpack.c.b16 %v1053, %v1049
        %v1686 = vpack.c.b16 %v1054, %v1050
        %v1687 = vpack.c.b16 %v1059, %v1055
        %v1688 = vpack.c.b16 %v1060, %v1056
        %v1689 = vpack.c.b16 %v1061, %v1057
        %v1690 = vpack.c.b16 %v1062, %v1058
        %v1691 = vpack.c.b16 %v1067, %v1063
        %v1692 = vpack.c.b16 %v1068, %v1064
        %v1693 = vpack.c.b16 %v1069, %v1065
        %v1694 = vpack.c.b16 %v1070, %v1066
        %v1695 = vpack.c.b16 %v1075, %v1071
        %v1696 = vpack.c.b16 %v1076, %v1072
        %v1697 = vpack.c.b16 %v1077, %v1073
        %v1698 = vpack.c.b16 %v1078, %v1074
        %v1699 = vpack.c.b16 %v1083, %v1079
        %v1700 = vpack.c.b16 %v1084, %v1080
        %v1701 = vpack.c.b16 %v1085, %v1081
        %v1702 = vpack.c.b16 %v1086, %v1082
        %v1703 = vpack.c.b16 %v1091, %v1087
        %v1704 = vpack.c.b16 %v1092, %v1088
        %v1705 = vpack.c.b16 %v1093, %v1089
        %v1706 = vpack.c.b16 %v1094, %v1090
        %v1707 = vpack.c.b16 %v1099, %v1095
        %v1708 = vpack.c.b16 %v1100, %v1096
        %v1709 = vpack.c.b16 %v1101, %v1097
        %v1710 = vpack.c.b16 %v1102, %v1098
        %v1711 = vpack.c.b16 %v1107, %v1103
        %v1712 = vpack.c.b16 %v1108, %v1104
        %v1713 = vpack.c.b16 %v1109, %v1105
        %v1714 = vpack.c.b16 %v1110, %v1106
        %v1715 = vpack.c.b16 %v1115, %v1111
        %v1716 = vpack.c.b16 %v1116, %v1112
        %v1717 = vpack.c.b16 %v1117, %v1113
        %v1718 = vpack.c.b16 %v1118, %v1114
        %v1719 = vpack.c.b16 %v1123, %v1119
        %v1720 = vpack.c.b16 %v1124, %v1120
        %v1721 = vpack.c.b16 %v1125, %v1121
        %v1722 = vpack.c.b16 %v1126, %v1122
        %v1723 = vpack.c.b16 %v1131, %v1127
        %v1724 = vpack.c.b16 %v1132, %v1128
        %v1725 = vpack.c.b16 %v1133, %v1129
        %v1726 = vpack.c.b16 %v1134, %v1130
        %v1727 = vpack.c.b16 %v1139, %v1135
        %v1728 = vpack.c.b16 %v1140, %v1136
        %v1729 = vpack.c.b16 %v1141, %v1137
        %v1730 = vpack.c.b16 %v1142, %v1138
        %v1731 = vpack.c.b16 %v1147, %v1143
        %v1732 = vpack.c.b16 %v1148, %v1144
        %v1733 = vpack.c.b16 %v1149, %v1145
        %v1734 = vpack.c.b16 %v1150, %v1146
        %v1735 = vpack.c.b16 %v1155, %v1151
        %v1736 = vpack.c.b16 %v1156, %v1152
        %v1737 = vpack.c.b16 %v1157, %v1153
        %v1738 = vpack.c.b16 %v1158, %v1154
        %v1739 = vpack.c.b16 %v1163, %v1159
        %v1740 = vpack.c.b16 %v1164, %v1160
        %v1741 = vpack.c.b16 %v1165, %v1161
        %v1742 = vpack.c.b16 %v1166, %v1162
        %v1743 = vpack.c.b16 %v1171, %v1167
        %v1744 = vpack.c.b16 %v1172, %v1168
        %v1745 = vpack.c.b16 %v1173, %v1169
        %v1746 = vpack.c.b16 %v1174, %v1170
        %v1747 = vpack.c.b16 %v1179, %v1175
        %v1748 = vpack.c.b16 %v1180, %v1176
        %v1749 = vpack.c.b16 %v1181, %v1177
        %v1750 = vpack.c.b16 %v1182, %v1178
        %v1751 = vpack.c.b16 %v1187, %v1183
        %v1752 = vpack.c.b16 %v1188, %v1184
        %v1753 = vpack.c.b16 %v1189, %v1185
        %v1754 = vpack.c.b16 %v1190, %v1186
        %v1755 = vpack.c.b16 %v1195, %v1191
        %v1756 = vpack.c.b16 %v1196, %v1192
        %v1757 = vpack.c.b16 %v1197, %v1193
        %v1758 = vpack.c.b16 %v1198, %v1194
        %v1759 = vpack.c.b16 %v1203, %v1199
        %v1760 = vpack.c.b16 %v1204, %v1200
        %v1761 = vpack.c.b16 %v1205, %v1201
        %v1762 = vpack.c.b16 %v1206, %v1202
        %v1763 = vpack.c.b16 %v1211, %v1207
        %v1764 = vpack.c.b16 %v1212, %v1208
        %v1765 = vpack.c.b16 %v1213, %v1209
        %v1766 = vpack.c.b16 %v1214, %v1210
        %v1767 = vpack.c.b16 %v1219, %v1215
        %v1768 = vpack.c.b16 %v1220, %v1216
        %v1769 = vpack.c.b16 %v1221, %v1217
        %v1770 = vpack.c.b16 %v1222, %v1218
        %v1771 = vpack.c.b16 %v1227, %v1223
        %v1772 = vpack.c.b16 %v1228, %v1224
        %v1773 = vpack.c.b16 %v1229, %v1225
        %v1774 = vpack.c.b16 %v1230, %v1226
        %v1775 = vpack.c.b16 %v1235, %v1231
        %v1776 = vpack.c.b16 %v1236, %v1232
        %v1777 = vpack.c.b16 %v1237, %v1233
        %v1778 = vpack.c.b16 %v1238, %v1234
        %v1779 = vpack.c.b16 %v1243, %v1239
        %v1780 = vpack.c.b16 %v1244, %v1240
        %v1781 = vpack.c.b16 %v1245, %v1241
        %v1782 = vpack.c.b16 %v1246, %v1242
        %v1783 = vpack.c.b16 %v1251, %v1247
        %v1784 = vpack.c.b16 %v1252, %v1248
        %v1785 = vpack.c.b16 %v1253, %v1249
        %v1786 = vpack.c.b16 %v1254, %v1250
        %v1787 = vpack.c.b16 %v1259, %v1255
        %v1788 = vpack.c.b16 %v1260, %v1256
        %v1789 = vpack.c.b16 %v1261, %v1257
        %v1790 = vpack.c.b16 %v1262, %v1258
        %v1791 = vpack.c.b16 %v1267, %v1263
        %v1792 = vpack.c.b16 %v1268, %v1264
        %v1793 = vpack.c.b16 %v1269, %v1265
        %v1794 = vpack.c.b16 %v1270, %v1266
        %v1795 = vpack.c.b16 %v1275, %v1271
        %v1796 = vpack.c.b16 %v1276, %v1272
        %v1797 = vpack.c.b16 %v1277, %v1273
        %v1798 = vpack.c.b16 %v1278, %v1274
        %v1799 = vpack.c.b16 %v1283, %v1279
        %v1800 = vpack.c.b16 %v1284, %v1280
        %v1801 = vpack.c.b16 %v1285, %v1281
        %v1802 = vpack.c.b16 %v1286, %v1282
        %v1803 = vpack.c.b16 %v1291, %v1287
        %v1804 = vpack.c.b16 %v1292, %v1288
        %v1805 = vpack.c.b16 %v1293, %v1289
        %v1806 = vpack.c.b16 %v1294, %v1290
        %v1807 = vpack.c.b16 %v1299, %v1295
        %v1808 = vpack.c.b16 %v1300, %v1296
        %v1809 = vpack.c.b16 %v1301, %v1297
        %v1810 = vpack.c.b16 %v1302, %v1298
        %v1811 = vpack.c.b16 %v1307, %v1303
        %v1812 = vpack.c.b16 %v1308, %v1304
        %v1813 = vpack.c.b16 %v1309, %v1305
        %v1814 = vpack.c.b16 %v1310, %v1306
        %v1815 = vpack.c.b16 %v1315, %v1311
        %v1816 = vpack.c.b16 %v1316, %v1312
        %v1817 = vpack.c.b16 %v1317, %v1313
        %v1818 = vpack.c.b16 %v1318, %v1314
        %v1819 = vpack.c.b16 %v1323, %v1319
        %v1820 = vpack.c.b16 %v1324, %v1320
        %v1821 = vpack.c.b16 %v1325, %v1321
        %v1822 = vpack.c.b16 %v1326, %v1322
        %v1823 = vpack.c.b16 %v1331, %v1327
        %v1824 = vpack.c.b16 %v1332, %v1328
        %v1825 = vpack.c.b16 %v1333, %v1329
        %v1826 = vpack.c.b16 %v1334, %v1330
        %v1827 = vpack.c.b16 %v1339, %v1335
        %v1828 = vpack.c.b16 %v1340, %v1336
        %v1829 = vpack.c.b16 %v1341, %v1337
        %v1830 = vpack.c.b16 %v1342, %v1338
        %v1831 = vpack.c.b16 %v1347, %v1343
        %v1832 = vpack.c.b16 %v1348, %v1344
        %v1833 = vpack.c.b16 %v1349, %v1345
        %v1834 = vpack.c.b16 %v1350, %v1346
        %v1835 = vpack.c.b16 %v1355, %v1351
        %v1836 = vpack.c.b16 %v1356, %v1352
        %v1837 = vpack.c.b16 %v1357, %v1353
        %v1838 = vpack.c.b16 %v1358, %v1354
        %v1839 = vpack.c.b16 %v1363, %v1359
        %v1840 = vpack.c.b16 %v1364, %v1360
        %v1841 = vpack.c.b16 %v1365, %v1361
        %v1842 = vpack.c.b16 %v1366, %v1362
        %v1843 = vpack.c.b16 %v1371, %v1367
        %v1844 = vpack.c.b16 %v1372, %v1368
        %v1845 = vpack.c.b16 %v1373, %v1369
        %v1846 = vpack.c.b16 %v1374, %v1370
        %v1847 = vpack.c.b16 %v1379, %v1375
        %v1848 = vpack.c.b16 %v1380, %v1376
        %v1849 = vpack.c.b16 %v1381, %v1377
        %v1850 = vpack.c.b16 %v1382, %v1378
        %v1851 = vpack.c.b16 %v1387, %v1383
        %v1852 = vpack.c.b16 %v1388, %v1384
        %v1853 = vpack.c.b16 %v1389, %v1385
        %v1854 = vpack.c.b16 %v1390, %v1386
        %v1855 = vpack.c.b16 %v1395, %v1391
        %v1856 = vpack.c.b16 %v1396, %v1392
        %v1857 = vpack.c.b16 %v1397, %v1393
        %v1858 = vpack.c.b16 %v1398, %v1394
        %v1859 = vpack.c.b16 %v1403, %v1399
        %v1860 = vpack.c.b16 %v1404, %v1400
        %v1861 = vpack.c.b16 %v1405, %v1401
        %v1862 = vpack.c.b16 %v1406, %v1402
        %v1863 = vpack.c.b16 %v1411, %v1407
        %v1864 = vpack.c.b16 %v1412, %v1408
        %v1865 = vpack.c.b16 %v1413, %v1409
        %v1866 = vpack.c.b16 %v1414, %v1410
        %v1867 = vpack.c.b16 %v1419, %v1415
        %v1868 = vpack.c.b16 %v1420, %v1416
        %v1869 = vpack.c.b16 %v1421, %v1417
        %v1870 = vpack.c.b16 %v1422, %v1418
        %v1871 = vpack.c.b16 %v1427, %v1423
        %v1872 = vpack.c.b16 %v1428, %v1424
        %v1873 = vpack.c.b16 %v1429, %v1425
        %v1874 = vpack.c.b16 %v1430, %v1426
        %v1875 = vpack.c.b16 %v1435, %v1431
        %v1876 = vpack.c.b16 %v1436, %v1432
        %v1877 = vpack.c.b16 %v1437, %v1433
        %v1878 = vpack.c.b16 %v1438, %v1434
        %v1879 = vpack.c.b16 %v1443, %v1439
        %v1880 = vpack.c.b16 %v1444, %v1440
        %v1881 = vpack.c.b16 %v1445, %v1441
        %v1882 = vpack.c.b16 %v1446, %v1442
        %v1883 = vpack.c.b16 %v1451, %v1447
        %v1884 = vpack.c.b16 %v1452, %v1448
        %v1885 = vpack.c.b16 %v1453, %v1449
        %v1886 = vpack.c.b16 %v1454, %v1450
        %v1887 = vpack.c.b16 %v1459, %v1455
        %v1888 = vpack.c.b16 %v1460, %v1456
        %v1889 = vpack.c.b16 %v1461, %v1457
        %v1890 = vpack.c.b16 %v1462, %v1458
        %v1891 = vpack.c.b16 %v1467, %v1463
        %v1892 = vpack.c.b16 %v1468, %v1464
        %v1893 = vpack.c.b16 %v1469, %v1465
        %v1894 = vpack.c.b16 %v1470, %v1466
        %v1895 = vpack.c.b16 %v1475, %v1471
        %v1896 = vpack.c.b16 %v1476, %v1472
        %v1897 = vpack.c.b16 %v1477, %v1473
        %v1898 = vpack.c.b16 %v1478, %v1474
        %v1899 = vpack.c.b16 %v1483, %v1479
        %v1900 = vpack.c.b16 %v1484, %v1480
        %v1901 = vpack.c.b16 %v1485, %v1481
        %v1902 = vpack.c.b16 %v1486, %v1482
        %v1903 = vpack.c.b16 %v1491, %v1487
        %v1904 = vpack.c.b16 %v1492, %v1488
        %v1905 = vpack.c.b16 %v1493, %v1489
        %v1906 = vpack.c.b16 %v1494, %v1490
        %v1907 = vpack.c.b16 %v1499, %v1495
        %v1908 = vpack.c.b16 %v1500, %v1496
        %v1909 = vpack.c.b16 %v1501, %v1497
        %v1910 = vpack.c.b16 %v1502, %v1498
        %v1911 = vpack.c.b16 %v1507, %v1503
        %v1912 = vpack.c.b16 %v1508, %v1504
        %v1913 = vpack.c.b16 %v1509, %v1505
        %v1914 = vpack.c.b16 %v1510, %v1506
        %v1915 = vpack.c.b16 %v1515, %v1511
        %v1916 = vpack.c.b16 %v1516, %v1512
        %v1917 = vpack.c.b16 %v1517, %v1513
        %v1918 = vpack.c.b16 %v1518, %v1514
        %v1919 = vpack.c.b16 %v1523, %v1519
        %v1920 = vpack.c.b16 %v1524, %v1520
        %v1921 = vpack.c.b16 %v1525, %v1521
        %v1922 = vpack.c.b16 %v1526, %v1522
        %v1923 = vpack.c.b16 %v1531, %v1527
        %v1924 = vpack.c.b16 %v1532, %v1528
        %v1925 = vpack.c.b16 %v1533, %v1529
        %v1926 = vpack.c.b16 %v1534, %v1530
        %v1927 = vpack.c.b16 %v1539, %v1535
        %v1928 = vpack.c.b16 %v1540, %v1536
        %v1929 = vpack.c.b16 %v1541, %v1537
        %v1930 = vpack.c.b16 %v1542, %v1538
        %v1931 = vpack.c.b16 %v1547, %v1543
        %v1932 = vpack.c.b16 %v1548, %v1544
        %v1933 = vpack.c.b16 %v1549, %v1545
        %v1934 = vpack.c.b16 %v1550, %v1546
        %v1935 = vpack.c.b16 %v1555, %v1551
        %v1936 = vpack.c.b16 %v1556, %v1552
        %v1937 = vpack.c.b16 %v1557, %v1553
        %v1938 = vpack.c.b16 %v1558, %v1554
        %v1939 = vpack.c.b16 %v1563, %v1559
        %v1940 = vpack.c.b16 %v1564, %v1560
        %v1941 = vpack.c.b16 %v1565, %v1561
        %v1942 = vpack.c.b16 %v1566, %v1562
        %v1943 = vpack.c.b16 %v1571, %v1567
        %v1944 = vpack.c.b16 %v1572, %v1568
        %v1945 = vpack.c.b16 %v1573, %v1569
        %v1946 = vpack.c.b16 %v1574, %v1570
        %v1947 = vpack.c.b16 %v1579, %v1575
        %v1948 = vpack.c.b16 %v1580, %v1576
        %v1949 = vpack.c.b16 %v1581, %v1577
        %v1950 = vpack.c.b16 %v1582, %v1578
        %v1951 = vpack.c.b16 %v1587, %v1583
        %v1952 = vpack.c.b16 %v1588, %v1584
        %v1953 = vpack.c.b16 %v1589, %v1585
        %v1954 = vpack.c.b16 %v1590, %v1586
        %v1955 = vpack.c.b16 %v1595, %v1591
        %v1956 = vpack.c.b16 %v1596, %v1592
        %v1957 = vpack.c.b16 %v1597, %v1593
        %v1958 = vpack.c.b16 %v1598, %v1594
        %v1959 = vpack.c.b16 %v1603, %v1599
        %v1960 = vpack.c.b16 %v1604, %v1600
        %v1961 = vpack.c.b16 %v1605, %v1601
        %v1962 = vpack.c.b16 %v1606, %v1602
        %v1963 = vpack.c.b16 %v1611, %v1607
        %v1964 = vpack.c.b16 %v1612, %v1608
        %v1965 = vpack.c.b16 %v1613, %v1609
        %v1966 = vpack.c.b16 %v1614, %v1610
        %v1967 = vpack.c.b16 %v1619, %v1615
        %v1968 = vpack.c.b16 %v1620, %v1616
        %v1969 = vpack.c.b16 %v1621, %v1617
        %v1970 = vpack.c.b16 %v1622, %v1618
        %v1971 = vpack.c.b16 %v1627, %v1623
        %v1972 = vpack.c.b16 %v1628, %v1624
        %v1973 = vpack.c.b16 %v1629, %v1625
        %v1974 = vpack.c.b16 %v1630, %v1626
        %v1975 = vpack.c.b16 %v1635, %v1631
        %v1976 = vpack.c.b16 %v1636, %v1632
        %v1977 = vpack.c.b16 %v1637, %v1633
        %v1978 = vpack.c.b16 %v1638, %v1634
        %v1979 = vpack.c.b16 %v1643, %v1639
        %v1980 = vpack.c.b16 %v1644, %v1640
        %v1981 = vpack.c.b16 %v1645, %v1641
        %v1982 = vpack.c.b16 %v1646, %v1642
        %v1983 = vpack.c.b16 %v1651, %v1647
        %v1984 = vpack.c.b16 %v1652, %v1648
        %v1985 = vpack.c.b16 %v1653, %v1649
        %v1986 = vpack.c.b16 %v1654, %v1650
        %v1987 = vpack.c.b16 %v1659, %v1655
        %v1988 = vpack.c.b16 %v1660, %v1656
        %v1989 = vpack.c.b16 %v1661, %v1657
        %v1990 = vpack.c.b16 %v1662, %v1658
        %v1991 = vpack.c.b16 %v1667, %v1663
        %v1992 = vpack.c.b16 %v1668, %v1664
        %v1993 = vpack.c.b16 %v1669, %v1665
        %v1994 = vpack.c.b16 %v1670, %v1666
        %v1995 = vpack.c.b16 %v1675, %v1671
        %v1996 = vpack.c.b16 %v1676, %v1672
        %v1997 = vpack.c.b16 %v1677, %v1673
        %v1998 = vpack.c.b16 %v1678, %v1674
        %2319 = vmatprep.subr.bf16.mxu0 %v1680
        %2320 = vmatpush1.bf16.msra.mxu0 %v1679
        %2321 = vmatprep.subr.bf16.mxu0 %v1684
        %2322 = vmatpush1.bf16.msra.mxu0 %v1683
        %2323 = vmatprep.subr.bf16.mxu0 %v1688
        %2324 = vmatpush1.bf16.msra.mxu0 %v1687
        %2325 = vmatprep.subr.bf16.mxu0 %v1692
        %2326 = vmatpush1.bf16.msra.mxu0 %v1691
        %2327 = vmatprep.subr.bf16.mxu0 %v1696
        %2328 = vmatpush1.bf16.msra.mxu0 %v1695
        %2329 = vmatprep.subr.bf16.mxu0 %v1700
        %2330 = vmatpush1.bf16.msra.mxu0 %v1699
        %2331 = vmatprep.subr.bf16.mxu0 %v1704
        %2332 = vmatpush1.bf16.msra.mxu0 %v1703
        %2333 = vmatprep.subr.bf16.mxu0 %v1708
        %2334 = vmatpush1.bf16.msra.mxu0 %v1707
        %2335 = vmatprep.subr.bf16.mxu0 %v1712
        %2336 = vmatpush1.bf16.msra.mxu0 %v1711
        %2337 = vmatprep.subr.bf16.mxu0 %v1716
        %2338 = vmatpush1.bf16.msra.mxu0 %v1715
        %2339 = vmatprep.subr.bf16.mxu0 %v1720
        %2340 = vmatpush1.bf16.msra.mxu0 %v1719
        %2341 = vmatprep.subr.bf16.mxu0 %v1724
        %2342 = vmatpush1.bf16.msra.mxu0 %v1723
        %2343 = vmatprep.subr.bf16.mxu0 %v1728
        %2344 = vmatpush1.bf16.msra.mxu0 %v1727
        %2345 = vmatprep.subr.bf16.mxu0 %v1732
        %2346 = vmatpush1.bf16.msra.mxu0 %v1731
        %2347 = vmatprep.subr.bf16.mxu0 %v1736
        %2348 = vmatpush1.bf16.msra.mxu0 %v1735
        %2349 = vmatprep.subr.bf16.mxu0 %v1740
        %2350 = vmatpush1.bf16.msra.mxu0 %v1739
        %2351 = vmatprep.mubr.bf16.mxu0 %v700
        %2352 = vmatmul.mubr.bf16.gmra.mrb[0].mxu0 %v699
        %v2353 = vpop.f32.mrb[0].mxu0
        %v2354 = vadd.f32 0.0, %v2353
        %v2355 = vpop.f32.mrb[0].mxu0
        %v2356 = vadd.f32 0.0, %v2355
        %v2357 = vpop.f32.mrb[0].mxu0
        %v2358 = vadd.f32 0.0, %v2357
        %v2359 = vpop.f32.mrb[0].mxu0
        %v2360 = vadd.f32 0.0, %v2359
        %2361 = vdwg.mxu0
        %2362 = vmatprep.subr.bf16.mxu0 %v1744
        %2363 = vmatpush1.bf16.msra.mxu0 %v1743
        %2364 = vmatprep.subr.bf16.mxu0 %v1748
        %2365 = vmatpush1.bf16.msra.mxu0 %v1747
        %2366 = vmatprep.subr.bf16.mxu0 %v1752
        %2367 = vmatpush1.bf16.msra.mxu0 %v1751
        %2368 = vmatprep.subr.bf16.mxu0 %v1756
        %2369 = vmatpush1.bf16.msra.mxu0 %v1755
        %2370 = vmatprep.subr.bf16.mxu0 %v1760
        %2371 = vmatpush1.bf16.msra.mxu0 %v1759
        %2372 = vmatprep.subr.bf16.mxu0 %v1764
        %2373 = vmatpush1.bf16.msra.mxu0 %v1763
        %2374 = vmatprep.subr.bf16.mxu0 %v1768
        %2375 = vmatpush1.bf16.msra.mxu0 %v1767
        %2376 = vmatprep.subr.bf16.mxu0 %v1772
        %2377 = vmatpush1.bf16.msra.mxu0 %v1771
        %2378 = vmatprep.subr.bf16.mxu0 %v1776
        %2379 = vmatpush1.bf16.msra.mxu0 %v1775
        %2380 = vmatprep.subr.bf16.mxu0 %v1780
        %2381 = vmatpush1.bf16.msra.mxu0 %v1779
        %2382 = vmatprep.subr.bf16.mxu0 %v1784
        %2383 = vmatpush1.bf16.msra.mxu0 %v1783
        %2384 = vmatprep.subr.bf16.mxu0 %v1788
        %2385 = vmatpush1.bf16.msra.mxu0 %v1787
        %2386 = vmatprep.subr.bf16.mxu0 %v1792
        %2387 = vmatpush1.bf16.msra.mxu0 %v1791
        %2388 = vmatprep.subr.bf16.mxu0 %v1796
        %2389 = vmatpush1.bf16.msra.mxu0 %v1795
        %2390 = vmatprep.subr.bf16.mxu0 %v1800
        %2391 = vmatpush1.bf16.msra.mxu0 %v1799
        %2392 = vmatprep.subr.bf16.mxu0 %v1804
        %2393 = vmatpush1.bf16.msra.mxu0 %v1803
        %2394 = vmatprep.mubr.bf16.mxu0 %v702
        %2395 = vmatmul.mubr.bf16.gmra.mrb[0].mxu0 %v701
        %v2396 = vpop.f32.mrb[0].mxu0
        %v2397 = vadd.f32 %v2354, %v2396
        %v2398 = vpop.f32.mrb[0].mxu0
        %v2399 = vadd.f32 %v2356, %v2398
        %v2400 = vpop.f32.mrb[0].mxu0
        %v2401 = vadd.f32 %v2358, %v2400
        %v2402 = vpop.f32.mrb[0].mxu0
        %v2403 = vadd.f32 %v2360, %v2402
        %2404 = vdwg.mxu0
        %2405 = vmatprep.subr.bf16.mxu0 %v1808
        %2406 = vmatpush1.bf16.msra.mxu0 %v1807
        %2407 = vmatprep.subr.bf16.mxu0 %v1812
        %2408 = vmatpush1.bf16.msra.mxu0 %v1811
        %2409 = vmatprep.subr.bf16.mxu0 %v1816
        %2410 = vmatpush1.bf16.msra.mxu0 %v1815
        %2411 = vmatprep.subr.bf16.mxu0 %v1820
        %2412 = vmatpush1.bf16.msra.mxu0 %v1819
        %2413 = vmatprep.subr.bf16.mxu0 %v1824
        %2414 = vmatpush1.bf16.msra.mxu0 %v1823
        %2415 = vmatprep.subr.bf16.mxu0 %v1828
        %2416 = vmatpush1.bf16.msra.mxu0 %v1827
        %2417 = vmatprep.subr.bf16.mxu0 %v1832
        %2418 = vmatpush1.bf16.msra.mxu0 %v1831
        %2419 = vmatprep.subr.bf16.mxu0 %v1836
        %2420 = vmatpush1.bf16.msra.mxu0 %v1835
        %2421 = vmatprep.subr.bf16.mxu0 %v1840
        %2422 = vmatpush1.bf16.msra.mxu0 %v1839
        %2423 = vmatprep.subr.bf16.mxu0 %v1844
        %2424 = vmatpush1.bf16.msra.mxu0 %v1843
        %2425 = vmatprep.subr.bf16.mxu0 %v1848
        %2426 = vmatpush1.bf16.msra.mxu0 %v1847
        %2427 = vmatprep.subr.bf16.mxu0 %v1852
        %2428 = vmatpush1.bf16.msra.mxu0 %v1851
        %2429 = vmatprep.subr.bf16.mxu0 %v1856
        %2430 = vmatpush1.bf16.msra.mxu0 %v1855
        %2431 = vmatprep.subr.bf16.mxu0 %v1860
        %2432 = vmatpush1.bf16.msra.mxu0 %v1859
        %2433 = vmatprep.subr.bf16.mxu0 %v1864
        %2434 = vmatpush1.bf16.msra.mxu0 %v1863
        %2435 = vmatprep.subr.bf16.mxu0 %v1868
        %2436 = vmatpush1.bf16.msra.mxu0 %v1867
        %2437 = vmatprep.mubr.bf16.mxu0 %v704
        %2438 = vmatmul.mubr.bf16.gmra.mrb[0].mxu0 %v703
        %v2439 = vpop.f32.mrb[0].mxu0
        %v2440 = vadd.f32 %v2397, %v2439
        %v2441 = vpop.f32.mrb[0].mxu0
        %v2442 = vadd.f32 %v2399, %v2441
        %v2443 = vpop.f32.mrb[0].mxu0
        %v2444 = vadd.f32 %v2401, %v2443
        %v2445 = vpop.f32.mrb[0].mxu0
        %v2446 = vadd.f32 %v2403, %v2445
        %2447 = vdwg.mxu0
        %2448 = vmatprep.subr.bf16.mxu0 %v1872
        %2449 = vmatpush1.bf16.msra.mxu0 %v1871
        %2450 = vmatprep.subr.bf16.mxu0 %v1876
        %2451 = vmatpush1.bf16.msra.mxu0 %v1875
        %2452 = vmatprep.subr.bf16.mxu0 %v1880
        %2453 = vmatpush1.bf16.msra.mxu0 %v1879
        %2454 = vmatprep.subr.bf16.mxu0 %v1884
        %2455 = vmatpush1.bf16.msra.mxu0 %v1883
        %2456 = vmatprep.subr.bf16.mxu0 %v1888
        %2457 = vmatpush1.bf16.msra.mxu0 %v1887
        %2458 = vmatprep.subr.bf16.mxu0 %v1892
        %2459 = vmatpush1.bf16.msra.mxu0 %v1891
        %2460 = vmatprep.subr.bf16.mxu0 %v1896
        %2461 = vmatpush1.bf16.msra.mxu0 %v1895
        %2462 = vmatprep.subr.bf16.mxu0 %v1900
        %2463 = vmatpush1.bf16.msra.mxu0 %v1899
        %2464 = vmatprep.subr.bf16.mxu0 %v1904
        %2465 = vmatpush1.bf16.msra.mxu0 %v1903
        %2466 = vmatprep.subr.bf16.mxu0 %v1908
        %2467 = vmatpush1.bf16.msra.mxu0 %v1907
        %2468 = vmatprep.subr.bf16.mxu0 %v1912
        %2469 = vmatpush1.bf16.msra.mxu0 %v1911
        %2470 = vmatprep.subr.bf16.mxu0 %v1916
        %2471 = vmatpush1.bf16.msra.mxu0 %v1915
        %2472 = vmatprep.subr.bf16.mxu0 %v1920
        %2473 = vmatpush1.bf16.msra.mxu0 %v1919
        %2474 = vmatprep.subr.bf16.mxu0 %v1924
        %2475 = vmatpush1.bf16.msra.mxu0 %v1923
        %2476 = vmatprep.subr.bf16.mxu0 %v1928
        %2477 = vmatpush1.bf16.msra.mxu0 %v1927
        %2478 = vmatprep.subr.bf16.mxu0 %v1932
        %2479 = vmatpush1.bf16.msra.mxu0 %v1931
        %2480 = vmatprep.mubr.bf16.mxu0 %v706
        %2481 = vmatmul.mubr.bf16.gmra.mrb[0].mxu0 %v705
        %v2482 = vpop.f32.mrb[0].mxu0
        %v2483 = vadd.f32 %v2440, %v2482
        %v2484 = vpop.f32.mrb[0].mxu0
        %v2485 = vadd.f32 %v2442, %v2484
        %v2486 = vpop.f32.mrb[0].mxu0
        %v2487 = vadd.f32 %v2444, %v2486
        %v2488 = vpop.f32.mrb[0].mxu0
        %v2489 = vadd.f32 %v2446, %v2488
        %2490 = vdwg.mxu0
        %2491 = vmatprep.subr.bf16.mxu0 %v1936
        %2492 = vmatpush1.bf16.msra.mxu0 %v1935
        %2493 = vmatprep.subr.bf16.mxu0 %v1940
        %2494 = vmatpush1.bf16.msra.mxu0 %v1939
        %2495 = vmatprep.subr.bf16.mxu0 %v1944
        %2496 = vmatpush1.bf16.msra.mxu0 %v1943
        %2497 = vmatprep.subr.bf16.mxu0 %v1948
        %2498 = vmatpush1.bf16.msra.mxu0 %v1947
        %2499 = vmatprep.subr.bf16.mxu0 %v1952
        %2500 = vmatpush1.bf16.msra.mxu0 %v1951
        %2501 = vmatprep.subr.bf16.mxu0 %v1956
        %2502 = vmatpush1.bf16.msra.mxu0 %v1955
        %2503 = vmatprep.subr.bf16.mxu0 %v1960
        %2504 = vmatpush1.bf16.msra.mxu0 %v1959
        %2505 = vmatprep.subr.bf16.mxu0 %v1964
        %2506 = vmatpush1.bf16.msra.mxu0 %v1963
        %2507 = vmatprep.subr.bf16.mxu0 %v1968
        %2508 = vmatpush1.bf16.msra.mxu0 %v1967
        %2509 = vmatprep.subr.bf16.mxu0 %v1972
        %2510 = vmatpush1.bf16.msra.mxu0 %v1971
        %2511 = vmatprep.subr.bf16.mxu0 %v1976
        %2512 = vmatpush1.bf16.msra.mxu0 %v1975
        %2513 = vmatprep.subr.bf16.mxu0 %v1980
        %2514 = vmatpush1.bf16.msra.mxu0 %v1979
        %2515 = vmatprep.subr.bf16.mxu0 %v1984
        %2516 = vmatpush1.bf16.msra.mxu0 %v1983
        %2517 = vmatprep.subr.bf16.mxu0 %v1988
        %2518 = vmatpush1.bf16.msra.mxu0 %v1987
        %2519 = vmatprep.subr.bf16.mxu0 %v1992
        %2520 = vmatpush1.bf16.msra.mxu0 %v1991
        %2521 = vmatprep.subr.bf16.mxu0 %v1996
        %2522 = vmatpush1.bf16.msra.mxu0 %v1995
        %2523 = vmatprep.mubr.bf16.mxu0 %v708
        %2524 = vmatmul.mubr.bf16.gmra.mrb[0].mxu0 %v707
        %v2525 = vpop.f32.mrb[0].mxu0
        %v2526 = vadd.f32 %v2483, %v2525
        %v2527 = vpop.f32.mrb[0].mxu0
        %v2528 = vadd.f32 %v2485, %v2527
        %v2529 = vpop.f32.mrb[0].mxu0
        %v2530 = vadd.f32 %v2487, %v2529
        %v2531 = vpop.f32.mrb[0].mxu0
        %v2532 = vadd.f32 %v2489, %v2531
        %2533 = vdwg.mxu0
        %2534 = vmatprep.subr.bf16.mxu0 %v1682
        %2535 = vmatpush1.bf16.msra.mxu0 %v1681
        %2536 = vmatprep.subr.bf16.mxu0 %v1686
        %2537 = vmatpush1.bf16.msra.mxu0 %v1685
        %2538 = vmatprep.subr.bf16.mxu0 %v1690
        %2539 = vmatpush1.bf16.msra.mxu0 %v1689
        %2540 = vmatprep.subr.bf16.mxu0 %v1694
        %2541 = vmatpush1.bf16.msra.mxu0 %v1693
        %2542 = vmatprep.subr.bf16.mxu0 %v1698
        %2543 = vmatpush1.bf16.msra.mxu0 %v1697
        %2544 = vmatprep.subr.bf16.mxu0 %v1702
        %2545 = vmatpush1.bf16.msra.mxu0 %v1701
        %2546 = vmatprep.subr.bf16.mxu0 %v1706
        %2547 = vmatpush1.bf16.msra.mxu0 %v1705
        %2548 = vmatprep.subr.bf16.mxu0 %v1710
        %2549 = vmatpush1.bf16.msra.mxu0 %v1709
        %2550 = vmatprep.subr.bf16.mxu0 %v1714
        %2551 = vmatpush1.bf16.msra.mxu0 %v1713
        %2552 = vmatprep.subr.bf16.mxu0 %v1718
        %2553 = vmatpush1.bf16.msra.mxu0 %v1717
        %2554 = vmatprep.subr.bf16.mxu0 %v1722
        %2555 = vmatpush1.bf16.msra.mxu0 %v1721
        %2556 = vmatprep.subr.bf16.mxu0 %v1726
        %2557 = vmatpush1.bf16.msra.mxu0 %v1725
        %2558 = vmatprep.subr.bf16.mxu0 %v1730
        %2559 = vmatpush1.bf16.msra.mxu0 %v1729
        %2560 = vmatprep.subr.bf16.mxu0 %v1734
        %2561 = vmatpush1.bf16.msra.mxu0 %v1733
        %2562 = vmatprep.subr.bf16.mxu0 %v1738
        %2563 = vmatpush1.bf16.msra.mxu0 %v1737
        %2564 = vmatprep.subr.bf16.mxu0 %v1742
        %2565 = vmatpush1.bf16.msra.mxu0 %v1741
        %2566 = vmatprep.mubr.bf16.mxu0 %v700
        %2567 = vmatmul.mubr.bf16.gmra.mrb[0].mxu0 %v699
        %v2568 = vpop.f32.mrb[0].mxu0
        %v2569 = vadd.f32 0.0, %v2568
        %v2570 = vpop.f32.mrb[0].mxu0
        %v2571 = vadd.f32 0.0, %v2570
        %v2572 = vpop.f32.mrb[0].mxu0
        %v2573 = vadd.f32 0.0, %v2572
        %v2574 = vpop.f32.mrb[0].mxu0
        %v2575 = vadd.f32 0.0, %v2574
        %2576 = vdwg.mxu0
        %2577 = vmatprep.subr.bf16.mxu0 %v1746
        %2578 = vmatpush1.bf16.msra.mxu0 %v1745
        %2579 = vmatprep.subr.bf16.mxu0 %v1750
        %2580 = vmatpush1.bf16.msra.mxu0 %v1749
        %2581 = vmatprep.subr.bf16.mxu0 %v1754
        %2582 = vmatpush1.bf16.msra.mxu0 %v1753
        %2583 = vmatprep.subr.bf16.mxu0 %v1758
        %2584 = vmatpush1.bf16.msra.mxu0 %v1757
        %2585 = vmatprep.subr.bf16.mxu0 %v1762
        %2586 = vmatpush1.bf16.msra.mxu0 %v1761
        %2587 = vmatprep.subr.bf16.mxu0 %v1766
        %2588 = vmatpush1.bf16.msra.mxu0 %v1765
        %2589 = vmatprep.subr.bf16.mxu0 %v1770
        %2590 = vmatpush1.bf16.msra.mxu0 %v1769
        %2591 = vmatprep.subr.bf16.mxu0 %v1774
        %2592 = vmatpush1.bf16.msra.mxu0 %v1773
        %2593 = vmatprep.subr.bf16.mxu0 %v1778
        %2594 = vmatpush1.bf16.msra.mxu0 %v1777
        %2595 = vmatprep.subr.bf16.mxu0 %v1782
        %2596 = vmatpush1.bf16.msra.mxu0 %v1781
        %2597 = vmatprep.subr.bf16.mxu0 %v1786
        %2598 = vmatpush1.bf16.msra.mxu0 %v1785
        %2599 = vmatprep.subr.bf16.mxu0 %v1790
        %2600 = vmatpush1.bf16.msra.mxu0 %v1789
        %2601 = vmatprep.subr.bf16.mxu0 %v1794
        %2602 = vmatpush1.bf16.msra.mxu0 %v1793
        %2603 = vmatprep.subr.bf16.mxu0 %v1798
        %2604 = vmatpush1.bf16.msra.mxu0 %v1797
        %2605 = vmatprep.subr.bf16.mxu0 %v1802
        %2606 = vmatpush1.bf16.msra.mxu0 %v1801
        %2607 = vmatprep.subr.bf16.mxu0 %v1806
        %2608 = vmatpush1.bf16.msra.mxu0 %v1805
        %2609 = vmatprep.mubr.bf16.mxu0 %v702
        %2610 = vmatmul.mubr.bf16.gmra.mrb[0].mxu0 %v701
        %v2611 = vpop.f32.mrb[0].mxu0
        %v2612 = vadd.f32 %v2569, %v2611
        %v2613 = vpop.f32.mrb[0].mxu0
        %v2614 = vadd.f32 %v2571, %v2613
        %v2615 = vpop.f32.mrb[0].mxu0
        %v2616 = vadd.f32 %v2573, %v2615
        %v2617 = vpop.f32.mrb[0].mxu0
        %v2618 = vadd.f32 %v2575, %v2617
        %2619 = vdwg.mxu0
        %2620 = vmatprep.subr.bf16.mxu0 %v1810
        %2621 = vmatpush1.bf16.msra.mxu0 %v1809
        %2622 = vmatprep.subr.bf16.mxu0 %v1814
        %2623 = vmatpush1.bf16.msra.mxu0 %v1813
        %2624 = vmatprep.subr.bf16.mxu0 %v1818
        %2625 = vmatpush1.bf16.msra.mxu0 %v1817
        %2626 = vmatprep.subr.bf16.mxu0 %v1822
        %2627 = vmatpush1.bf16.msra.mxu0 %v1821
        %2628 = vmatprep.subr.bf16.mxu0 %v1826
        %2629 = vmatpush1.bf16.msra.mxu0 %v1825
        %2630 = vmatprep.subr.bf16.mxu0 %v1830
        %2631 = vmatpush1.bf16.msra.mxu0 %v1829
        %2632 = vmatprep.subr.bf16.mxu0 %v1834
        %2633 = vmatpush1.bf16.msra.mxu0 %v1833
        %2634 = vmatprep.subr.bf16.mxu0 %v1838
        %2635 = vmatpush1.bf16.msra.mxu0 %v1837
        %2636 = vmatprep.subr.bf16.mxu0 %v1842
        %2637 = vmatpush1.bf16.msra.mxu0 %v1841
        %2638 = vmatprep.subr.bf16.mxu0 %v1846
        %2639 = vmatpush1.bf16.msra.mxu0 %v1845
        %2640 = vmatprep.subr.bf16.mxu0 %v1850
        %2641 = vmatpush1.bf16.msra.mxu0 %v1849
        %2642 = vmatprep.subr.bf16.mxu0 %v1854
        %2643 = vmatpush1.bf16.msra.mxu0 %v1853
        %2644 = vmatprep.subr.bf16.mxu0 %v1858
        %2645 = vmatpush1.bf16.msra.mxu0 %v1857
        %2646 = vmatprep.subr.bf16.mxu0 %v1862
        %2647 = vmatpush1.bf16.msra.mxu0 %v1861
        %2648 = vmatprep.subr.bf16.mxu0 %v1866
        %2649 = vmatpush1.bf16.msra.mxu0 %v1865
        %2650 = vmatprep.subr.bf16.mxu0 %v1870
        %2651 = vmatpush1.bf16.msra.mxu0 %v1869
        %2652 = vmatprep.mubr.bf16.mxu0 %v704
        %2653 = vmatmul.mubr.bf16.gmra.mrb[0].mxu0 %v703
        %v2654 = vpop.f32.mrb[0].mxu0
        %v2655 = vadd.f32 %v2612, %v2654
        %v2656 = vpop.f32.mrb[0].mxu0
        %v2657 = vadd.f32 %v2614, %v2656
        %v2658 = vpop.f32.mrb[0].mxu0
        %v2659 = vadd.f32 %v2616, %v2658
        %v2660 = vpop.f32.mrb[0].mxu0
        %v2661 = vadd.f32 %v2618, %v2660
        %2662 = vdwg.mxu0
        %2663 = vmatprep.subr.bf16.mxu0 %v1874
        %2664 = vmatpush1.bf16.msra.mxu0 %v1873
        %2665 = vmatprep.subr.bf16.mxu0 %v1878
        %2666 = vmatpush1.bf16.msra.mxu0 %v1877
        %2667 = vmatprep.subr.bf16.mxu0 %v1882
        %2668 = vmatpush1.bf16.msra.mxu0 %v1881
        %2669 = vmatprep.subr.bf16.mxu0 %v1886
        %2670 = vmatpush1.bf16.msra.mxu0 %v1885
        %2671 = vmatprep.subr.bf16.mxu0 %v1890
        %2672 = vmatpush1.bf16.msra.mxu0 %v1889
        %2673 = vmatprep.subr.bf16.mxu0 %v1894
        %2674 = vmatpush1.bf16.msra.mxu0 %v1893
        %2675 = vmatprep.subr.bf16.mxu0 %v1898
        %2676 = vmatpush1.bf16.msra.mxu0 %v1897
        %2677 = vmatprep.subr.bf16.mxu0 %v1902
        %2678 = vmatpush1.bf16.msra.mxu0 %v1901
        %2679 = vmatprep.subr.bf16.mxu0 %v1906
        %2680 = vmatpush1.bf16.msra.mxu0 %v1905
        %2681 = vmatprep.subr.bf16.mxu0 %v1910
        %2682 = vmatpush1.bf16.msra.mxu0 %v1909
        %2683 = vmatprep.subr.bf16.mxu0 %v1914
        %2684 = vmatpush1.bf16.msra.mxu0 %v1913
        %2685 = vmatprep.subr.bf16.mxu0 %v1918
        %2686 = vmatpush1.bf16.msra.mxu0 %v1917
        %2687 = vmatprep.subr.bf16.mxu0 %v1922
        %2688 = vmatpush1.bf16.msra.mxu0 %v1921
        %2689 = vmatprep.subr.bf16.mxu0 %v1926
        %2690 = vmatpush1.bf16.msra.mxu0 %v1925
        %2691 = vmatprep.subr.bf16.mxu0 %v1930
        %2692 = vmatpush1.bf16.msra.mxu0 %v1929
        %2693 = vmatprep.subr.bf16.mxu0 %v1934
        %2694 = vmatpush1.bf16.msra.mxu0 %v1933
        %2695 = vmatprep.mubr.bf16.mxu0 %v706
        %2696 = vmatmul.mubr.bf16.gmra.mrb[0].mxu0 %v705
        %v2697 = vpop.f32.mrb[0].mxu0
        %v2698 = vadd.f32 %v2655, %v2697
        %v2699 = vpop.f32.mrb[0].mxu0
        %v2700 = vadd.f32 %v2657, %v2699
        %v2701 = vpop.f32.mrb[0].mxu0
        %v2702 = vadd.f32 %v2659, %v2701
        %v2703 = vpop.f32.mrb[0].mxu0
        %v2704 = vadd.f32 %v2661, %v2703
        %2705 = vdwg.mxu0
        %2706 = vmatprep.subr.bf16.mxu0 %v1938
        %2707 = vmatpush1.bf16.msra.mxu0 %v1937
        %2708 = vmatprep.subr.bf16.mxu0 %v1942
        %2709 = vmatpush1.bf16.msra.mxu0 %v1941
        %2710 = vmatprep.subr.bf16.mxu0 %v1946
        %2711 = vmatpush1.bf16.msra.mxu0 %v1945
        %2712 = vmatprep.subr.bf16.mxu0 %v1950
        %2713 = vmatpush1.bf16.msra.mxu0 %v1949
        %2714 = vmatprep.subr.bf16.mxu0 %v1954
        %2715 = vmatpush1.bf16.msra.mxu0 %v1953
        %2716 = vmatprep.subr.bf16.mxu0 %v1958
        %2717 = vmatpush1.bf16.msra.mxu0 %v1957
        %2718 = vmatprep.subr.bf16.mxu0 %v1962
        %2719 = vmatpush1.bf16.msra.mxu0 %v1961
        %2720 = vmatprep.subr.bf16.mxu0 %v1966
        %2721 = vmatpush1.bf16.msra.mxu0 %v1965
        %2722 = vmatprep.subr.bf16.mxu0 %v1970
        %2723 = vmatpush1.bf16.msra.mxu0 %v1969
        %2724 = vmatprep.subr.bf16.mxu0 %v1974
        %2725 = vmatpush1.bf16.msra.mxu0 %v1973
        %2726 = vmatprep.subr.bf16.mxu0 %v1978
        %2727 = vmatpush1.bf16.msra.mxu0 %v1977
        %2728 = vmatprep.subr.bf16.mxu0 %v1982
        %2729 = vmatpush1.bf16.msra.mxu0 %v1981
        %2730 = vmatprep.subr.bf16.mxu0 %v1986
        %2731 = vmatpush1.bf16.msra.mxu0 %v1985
        %2732 = vmatprep.subr.bf16.mxu0 %v1990
        %2733 = vmatpush1.bf16.msra.mxu0 %v1989
        %2734 = vmatprep.subr.bf16.mxu0 %v1994
        %2735 = vmatpush1.bf16.msra.mxu0 %v1993
        %2736 = vmatprep.subr.bf16.mxu0 %v1998
        %2737 = vmatpush1.bf16.msra.mxu0 %v1997
        %2738 = vmatprep.mubr.bf16.mxu0 %v708
        %2739 = vmatmul.mubr.bf16.gmra.mrb[0].mxu0 %v707
        %v2740 = vpop.f32.mrb[0].mxu0
        %v2741 = vadd.f32 %v2698, %v2740
        %v2742 = vpop.f32.mrb[0].mxu0
        %v2743 = vadd.f32 %v2700, %v2742
        %v2744 = vpop.f32.mrb[0].mxu0
        %v2745 = vadd.f32 %v2702, %v2744
        %v2746 = vpop.f32.mrb[0].mxu0
        %v2747 = vadd.f32 %v2704, %v2746
        %2748 = vdwg.mxu0
        %v2749 = vadd.f32 %v331, %v2526
        %v2750 = vadd.f32 %v332, %v2528
        %v2751 = vadd.f32 %v333, %v2741
        %v2752 = vadd.f32 %v334, %v2743
        %v2753 = vadd.f32 %v335, %v2530
        %v2754 = vadd.f32 %v336, %v2532
        %v2755 = vadd.f32 %v337, %v2745
        %v2756 = vadd.f32 %v338, %v2747
        %2757 = vst [vmem:[#allocation2] sm:$0xff] %v2749
        %2758 = vst [vmem:[#allocation2 + $0x8] sm:$0xff] %v2750
        %2759 = vst [vmem:[#allocation2 + $0x10] sm:$0xff] %v2751
        %2760 = vst [vmem:[#allocation2 + $0x18] sm:$0xff] %v2752
        %2761 = vst [vmem:[#allocation2 + $0x20] sm:$0xff] %v2753
        %2762 = vst [vmem:[#allocation2 + $0x28] sm:$0xff] %v2754
        %2763 = vst [vmem:[#allocation2 + $0x30] sm:$0xff] %v2755
        %2764 = vst [vmem:[#allocation2 + $0x38] sm:$0xff] %v2756
        %p2765 = scmp.eq.s32.totalorder %s27, 3
        // Predicated region
        $region68: #{discriminator_p.7} parent=50 // pred_check
          %p2766 = pneg %p2765
        $region69: #{discriminator_p.7} parent=50 // pred_check_branch
          %2768 = sbr.rel (%p2766) target = $region71
        $region70: #{discriminator_p.7} parent=50 // pred_region
          %v2769 = vld [vmem:[#allocation2] sm:$0xff]
          %v2770 = vld [vmem:[#allocation2 + $0x8] sm:$0xff]
          %v2771 = vld [vmem:[#allocation2 + $0x10] sm:$0xff]
          %v2772 = vld [vmem:[#allocation2 + $0x18] sm:$0xff]
          %v2773 = vld [vmem:[#allocation2 + $0x20] sm:$0xff]
          %v2774 = vld [vmem:[#allocation2 + $0x28] sm:$0xff]
          %v2775 = vld [vmem:[#allocation2 + $0x30] sm:$0xff]
          %v2776 = vld [vmem:[#allocation2 + $0x38] sm:$0xff]
          %v2777 = vld [vmem:[%s281] sm:$0xf]
          %v2779 = vlaneseq
          %v2780 = vshrl.u32 %v2779, 7
          %v2781 = vsub.s32 0, %v2780
          %v2782 = vrot.slane %v2777, %v2781
          %v2783 = vlaneseq
          %v2784 = vshrl.u32 %v2783, 7
          %v2785 = vsub.s32 1, %v2784
          %v2786 = vrot.slane %v2777, %v2785
          %v2787 = vlaneseq
          %v2788 = vshrl.u32 %v2787, 7
          %v2789 = vsub.s32 2, %v2788
          %v2790 = vrot.slane %v2777, %v2789
          %v2791 = vlaneseq
          %v2792 = vshrl.u32 %v2791, 7
          %v2793 = vsub.s32 3, %v2792
          %v2794 = vrot.slane %v2777, %v2793
          %v2799 = vadd.f32 %v2769, %v2782
          %v2800 = vadd.f32 %v2770, %v2786
          %v2801 = vadd.f32 %v2771, %v2790
          %v2802 = vadd.f32 %v2772, %v2794
          %v2803 = vadd.f32 %v2773, %v2782
          %v2804 = vadd.f32 %v2774, %v2786
          %v2805 = vadd.f32 %v2775, %v2790
          %v2806 = vadd.f32 %v2776, %v2794
          %v2807 = vmul.f32 %v2799, 0.1
          %v2808 = vmul.f32 %v2800, 0.1
          %v2809 = vmul.f32 %v2801, 0.1
          %v2810 = vmul.f32 %v2802, 0.1
          %v2811 = vmul.f32 %v2803, 0.1
          %v2812 = vmul.f32 %v2804, 0.1
          %v2813 = vmul.f32 %v2805, 0.1
          %v2814 = vmul.f32 %v2806, 0.1
          %v2815 = vmax.f32 %v2799, %v2807
          %v2816 = vmax.f32 %v2800, %v2808
          %v2817 = vmax.f32 %v2801, %v2809
          %v2818 = vmax.f32 %v2802, %v2810
          %v2819 = vmax.f32 %v2803, %v2811
          %v2820 = vmax.f32 %v2804, %v2812
          %v2821 = vmax.f32 %v2805, %v2813
          %v2822 = vmax.f32 %v2806, %v2814
          %v2823 = vpack.c.bf16 %v2819, %v2815
          %v2824 = vpack.c.bf16 %v2820, %v2816
          %v2825 = vpack.c.bf16 %v2821, %v2817
          %v2826 = vpack.c.bf16 %v2822, %v2818
          %v2831 = vunpack.c.l.b16 %v2823
          %v2832 = vunpack.c.l.b16 %v2824
          %v2833 = vunpack.c.l.b16 %v2825
          %v2834 = vunpack.c.l.b16 %v2826
          %v2835 = vunpack.c.h.b16 %v2823
          %v2836 = vunpack.c.h.b16 %v2824
          %v2837 = vunpack.c.h.b16 %v2825
          %v2838 = vunpack.c.h.b16 %v2826
          %v2839 = vpack.c.b16 %v2832, %v2831
          %v2840 = vpack.c.b16 %v2834, %v2833
          %v2841 = vpack.c.b16 %v2836, %v2835
          %v2842 = vpack.c.b16 %v2838, %v2837
          %2847 = vst [vmem:[%s311] sm:$0xff] %v2839
          %2848 = vst [vmem:[%s311 + $0x8] sm:$0xff] %v2840
          %2849 = vst [vmem:[%s311 + $0x10] sm:$0xff] %v2841
          %2850 = vst [vmem:[%s311 + $0x18] sm:$0xff] %v2842
        $region71: #{discriminator_p.7} parent=50 // pred_fallthru
          _
        %s2851 = sand.u32 %s131, 1
        %s2852 = sand.u32 %s131, 1
        %s2853 = smul.addr %s2852, 32
        %s2854 = scalar_lea.vmem [#allocation8], %s2853
        // Predicated region
        $region72: #{discriminator_p.7} parent=50 // pred_check
          %p2855 = pneg %p141
        $region73: #{discriminator_p.7} parent=50 // pred_check_branch
          %2857 = sbr.rel (%p2855) target = $region75
        $region74: #{discriminator_p.7} parent=50 // pred_region
          %s2858 = smul.u32 2, %s25
          %s2859 = smul.u32 4, %s26
          %s2860 = smul.addr %s2858, 8
          %s2861 = sadd.s32 %s2859, %s2860
          %s2862 = smul.addr %s2861, 4
          %s2863 = scalar_lea.vmem %s3, %s2862
          // Predicated region
          $region76: #{discriminator_p.7} parent=74 // pred_check
            _
          $region77: #{discriminator_p.7} parent=74 // pred_check_branch
            %2865 = sbr.rel (0) target = $region79
          $region78: #{discriminator_p.7} parent=74 // pred_region
            // Predicated region
            $region80: #{discriminator_p.7} parent=78 // pred_check
              _
            $region81: #{discriminator_p.7} parent=78 // pred_check_branch
              %2867 = sbr.rel (0) target = $region83
            $region82: #{discriminator_p.7} parent=78 // pred_region
              loop: start=0, step=1, limit=1
              $region84: #{discriminator_p.7} parent=82 // loop_pre_header
                _
              $region85: #{discriminator_p.7} parent=82 // loop_header
                %s2869 = sphi 0, %s2873
                %p2870 = scmp.ge.s32.totalorder %s2869, 1
                %s2874 = sphi %s2854, %s2854
                %s2875 = sphi %s2863, %s2863
              $region86: #{discriminator_p.7} parent=82 // loop_header_branch
                %2872 = sbr.rel (%p2870) target = $region90
              $region87: #{discriminator_p.7} parent=82 // loop_body
                %v2876 = vld [vmem:[%s2874] sm:$0xff]
                %2877 = vst [vmem:[%s2875] sm:$0xff] %v2876
                %v2878 = vld [vmem:[%s2874 + $0x8] sm:$0xff]
                %2879 = vst [vmem:[%s2875 + $0x8] sm:$0xff] %v2878
                %v2880 = vld [vmem:[%s2874 + $0x10] sm:$0xff]
                %2881 = vst [vmem:[%s2875 + $0x20] sm:$0xff] %v2880
                %v2882 = vld [vmem:[%s2874 + $0x18] sm:$0xff]
                %2883 = vst [vmem:[%s2875 + $0x28] sm:$0xff] %v2882
              $region88: #{discriminator_p.7} parent=82 // loop_footer
                %s2873 = sadd.s32 1, %s2869
              $region89: #{discriminator_p.7} parent=82 // loop_footer_branch
                %2868 = sbr.rel target = $region85
              $region90: #{discriminator_p.7} parent=82 // loop_exit
                _
            $region83: #{discriminator_p.7} parent=78 // pred_fallthru
              _
            // Predicated region
            $region91: #{discriminator_p.7} parent=78 // pred_check
              _
            $region92: #{discriminator_p.7} parent=78 // pred_check_branch
              %2885 = sbr.rel target = $region94
            $region93: #{discriminator_p.7} parent=78 // pred_region
              _
            $region94: #{discriminator_p.7} parent=78 // pred_fallthru
              _
          $region79: #{discriminator_p.7} parent=74 // pred_fallthru
            _
          %2886 = vnop
        $region75: #{discriminator_p.7} parent=50 // pred_fallthru
          _
      $region51: #{discriminator_p.7} parent=5 // pred_fallthru
        _
      %p2887 = scmp.le.s32.totalorder 2, %s15
      // Predicated region
      $region95: #{discriminator_p.7} parent=5 // pred_check
        %p2888 = pneg %p2887
      $region96: #{discriminator_p.7} parent=5 // pred_check_branch
        %2890 = sbr.rel (%p2888) target = $region98
      $region97: #{discriminator_p.7} parent=5 // pred_region
        %s2891 = ssub.s32 %s15, 2
        // Predicated region
        $region99: #{discriminator_p.7} parent=97 // pred_check
          %p2892 = pneg %p147
        $region100: #{discriminator_p.7} parent=97 // pred_check_branch
          %2894 = sbr.rel (%p2892) target = $region102
        $region101: #{discriminator_p.7} parent=97 // pred_region
          %s2895 = sand.u32 %s132, 1
          %s2896 = sand.u32 %s132, 1
          %s2897 = smul.addr %s2896, 32
          %s2898 = scalar_lea.vmem [#allocation8], %s2897
        $region102: #{discriminator_p.7} parent=97 // pred_fallthru
          _
      $region98: #{discriminator_p.7} parent=5 // pred_fallthru
        _
    $region6: #{discriminator_p.7} parent=1 // loop_footer
      %s19 = sadd.s32 1, %s15
    $region7: #{discriminator_p.7} parent=1 // loop_footer_branch
      %14 = sbr.rel target = $region3
    $region8: #{discriminator_p.7} parent=1 // loop_exit
      _
    %2899 = vsyncpa [#allocation5], 1
    %s2900 = scalar_lea.sflag [#allocation5], 1
    %2901 = vsyncpa %s2900, 1
    %2902 = vsyncpa [#allocation7], 1
    %s2903 = scalar_lea.sflag [#allocation7], 1
    %2904 = vsyncpa %s2903, 1

</llo_original>
